<compile_context>
chip_gen: v7x
topology: tpu7x:2x2x1
jax: 0.10.0
libtpu: 0.0.40
codegen_flags: <defaults>
</compile_context>

<pallas_src>
import functools

import jax
import jax.numpy as jnp
from jax.experimental import pallas as pl
from jax.experimental.pallas import tpu as pltpu


# (cout, kernel_size) per conv layer; cin of layer i is cout of layer i-1.
_CONV_CFG = [(16, 10), (32, 5), (64, 2), (128, 2), (256, 2)]
_FC1_IN, _FC1_OUT, _FC1_OUT_PAD = 2048, 3000, 3072
_CLS_PAD = 128


def _round_up(n, m):
    return ((n + m - 1) // m) * m


# --------------------------------------------------------------------------
# Pallas kernels
# --------------------------------------------------------------------------
def _conv_pool_kernel(pe_ref, po_ref, w_ref, b_ref, o_ref):
    """Fused Conv1d (im2col matmul) + bias + ReLU + MaxPool1d(2).

    pe/po hold im2col patches for the even / odd conv-output position of each
    pooled position; max(relu(pe@W+b), relu(po@W+b)) == relu(max(pe@W,po@W)+b).
    """
    ye = jnp.dot(pe_ref[...], w_ref[...], preferred_element_type=jnp.float32)
    yo = jnp.dot(po_ref[...], w_ref[...], preferred_element_type=jnp.float32)
    o_ref[...] = jnp.maximum(jnp.maximum(ye, yo) + b_ref[...], 0.0)


def _fc_fused_kernel(classes, x_ref, w1_ref, b1_ref, w2_ref, b2_ref, o_ref):
    """fc1 (bf16 weight stream, f32 accum) + ReLU + fc2 + LogSoftmax."""
    j = pl.program_id(0)

    @pl.when(j == 0)
    def _():
        o_ref[...] = jnp.zeros_like(o_ref)

    h = jnp.dot(x_ref[...].astype(jnp.bfloat16), w1_ref[...],
                preferred_element_type=jnp.float32)
    h = jnp.maximum(h + b1_ref[...], 0.0)                 # ReLU (module's "relu6")
    o_ref[...] += jnp.dot(h.astype(w2_ref.dtype), w2_ref[...],
                          preferred_element_type=jnp.float32)

    @pl.when(j == pl.num_programs(0) - 1)
    def _():
        logits = o_ref[...] + b2_ref[...]
        col = jax.lax.broadcasted_iota(jnp.int32, logits.shape, 1)
        logits = jnp.where(col < classes, logits, -jnp.inf)   # mask padded classes
        m = jnp.max(logits, axis=1, keepdims=True)
        s = logits - m
        lse = jnp.log(jnp.sum(jnp.exp(s), axis=1, keepdims=True))
        o_ref[...] = s - lse


# --------------------------------------------------------------------------
# Wrappers
# --------------------------------------------------------------------------
def conv_relu_pool(x, w, b, ks):
    """x: (N, L, Cin_pad) channels-last. Returns (N, Lpool, Cout_pad)."""
    nb, length, cin_pad = x.shape
    cout_pad = w.shape[1]
    lout = length - ks + 1
    lpool = lout // 2                       # MaxPool1d(2) floor semantics

    def window(start):                      # positions start, start+2, ... (lpool of them)
        stop = start + 2 * (lpool - 1) + 1
        return x[:, start:stop:2, :]

    k_feat = ks * cin_pad
    pe = jnp.concatenate([window(k) for k in range(ks)], axis=-1)
    po = jnp.concatenate([window(k + 1) for k in range(ks)], axis=-1)
    pe = pe.reshape(nb * lpool, k_feat)
    po = po.reshape(nb * lpool, k_feat)

    out = pl.pallas_call(
        _conv_pool_kernel,
        out_shape=jax.ShapeDtypeStruct((nb * lpool, cout_pad), jnp.float32),
    )(pe, po, w, b)
    return out.reshape(nb, lpool, cout_pad)


def fc_fused(x, w1, b1, w2, b2, classes, tn=512):
    """LogSoftmax(relu(x@w1+b1) @ w2 + b2); w1 streamed bf16, 512-wide tiles."""
    m, kf = x.shape
    np_ = w1.shape[1]
    out = pl.pallas_call(
        functools.partial(_fc_fused_kernel, classes),
        out_shape=jax.ShapeDtypeStruct((m, _CLS_PAD), jnp.float32),
        grid_spec=pltpu.PrefetchScalarGridSpec(
            num_scalar_prefetch=0,
            grid=(np_ // tn,),
            in_specs=[
                pl.BlockSpec((m, kf), lambda j: (0, 0)),
                pl.BlockSpec((kf, tn), lambda j: (0, j)),
                pl.BlockSpec((1, tn), lambda j: (0, j)),
                pl.BlockSpec((tn, _CLS_PAD), lambda j: (j, 0)),
                pl.BlockSpec((1, _CLS_PAD), lambda j: (0, 0)),
            ],
            out_specs=pl.BlockSpec((m, _CLS_PAD), lambda j: (0, 0)),
        ),
        compiler_params=pltpu.CompilerParams(
            dimension_semantics=("arbitrary",)),   # accumulates across the grid
    )(x, w1, b1, w2, b2)
    return out[:, :classes]


# --------------------------------------------------------------------------
# Parameters
# --------------------------------------------------------------------------
def init_params(key, num_channels, classes):
    """PyTorch-layout parameters (conv: (Cout,Cin,ks); linear stored as (in,out))."""
    def u(k, shape, fan_in):
        bound = 1.0 / jnp.sqrt(jnp.float32(fan_in))
        return jax.random.uniform(k, shape, jnp.float32, -bound, bound)

    ks = jax.random.split(key, 14)
    p = {}
    cin = num_channels
    for i, (cout, ksz) in enumerate(_CONV_CFG, 1):
        p[f"w{i}"] = u(ks[2 * i - 2], (cout, cin, ksz), cin * ksz)
        p[f"b{i}"] = u(ks[2 * i - 1], (cout,), cin * ksz)
        cin = cout
    p["fc1_w"] = u(ks[10], (_FC1_IN, _FC1_OUT), _FC1_IN)
    p["fc1_b"] = u(ks[11], (_FC1_OUT,), _FC1_IN)
    p["fc2_w"] = u(ks[12], (_FC1_OUT, classes), _FC1_OUT)
    p["fc2_b"] = u(ks[13], (classes,), _FC1_OUT)
    return p


def prepare_params(p, num_channels, classes):
    """One-time (outside the forward pass) conversion to kernel-ready layout:
      conv  -> (ks*Cin_pad, Cout_pad) f32 with zero-padded channel rows/cols
      fc1_w -> rows permuted for channels-last flatten, padded to 3072, bf16
      fc2_w -> padded to (3072, 128) with zero rows/cols, f32 (tiny)."""
    q = {}
    cin, cin_pad = num_channels, num_channels        # layer-1 input is unpadded
    for i, (cout, ksz) in enumerate(_CONV_CFG, 1):
        cout_pad = _round_up(cout, 128)
        wt = jnp.transpose(p[f"w{i}"], (2, 1, 0))    # (ks, cin, cout)
        wp = jnp.zeros((ksz, cin_pad, cout_pad), jnp.float32)
        wp = wp.at[:, :cin, :cout].set(wt)
        q[f"cw{i}"] = wp.reshape(ksz * cin_pad, cout_pad)
        q[f"cb{i}"] = jnp.zeros((1, cout_pad), jnp.float32).at[0, :cout].set(p[f"b{i}"])
        cin, cin_pad = cout, cout_pad

    # torch.flatten(x, 1) on NCL indexes features as c*L + l; our channels-last
    # flatten indexes l*C + c -> permute fc1 rows once here so results match.
    c_fin = _CONV_CFG[-1][0]                         # 256
    l_fin = _FC1_IN // c_fin                         # 8
    perm = (jnp.arange(c_fin)[None, :] * l_fin
            + jnp.arange(l_fin)[:, None]).reshape(-1)      # perm[l*C + c] = c*L + l
    w1 = p["fc1_w"][perm, :]
    q["fc1_w"] = (jnp.zeros((_FC1_IN, _FC1_OUT_PAD), jnp.bfloat16)
                  .at[:, :_FC1_OUT].set(w1.astype(jnp.bfloat16)))
    q["fc1_b"] = (jnp.zeros((1, _FC1_OUT_PAD), jnp.float32)
                  .at[0, :_FC1_OUT].set(p["fc1_b"]))
    q["fc2_w"] = (jnp.zeros((_FC1_OUT_PAD, _CLS_PAD), jnp.float32)
                  .at[:_FC1_OUT, :classes].set(p["fc2_w"]))
    q["fc2_b"] = (jnp.zeros((1, _CLS_PAD), jnp.float32)
                  .at[0, :classes].set(p["fc2_b"]))
    return q


# --------------------------------------------------------------------------
# Model forward
# --------------------------------------------------------------------------
def cnn1d_forward(x, q, classes):
    nb = x.shape[0]
    a = jnp.transpose(x, (0, 2, 1))                  # NCL -> NLC (channels-last), once
    for i, (_, ksz) in enumerate(_CONV_CFG, 1):
        a = conv_relu_pool(a, q[f"cw{i}"], q[f"cb{i}"], ksz)
    a = a.reshape(nb, -1)                            # (N, 8*256) channels-last flatten
    return fc_fused(a, q["fc1_w"], q["fc1_b"], q["fc2_w"], q["fc2_b"], classes)


if __name__ == "__main__":
    # fc1 in_features=2048 fixes the post-conv length at 8 (256 channels * 8),
    # which back-solves to an input length of 320.
    batch, num_channels, length, classes = 2, 4, 320, 3

    key = jax.random.PRNGKey(0)
    k_param, k_x = jax.random.split(key)
    torch_layout_params = init_params(k_param, num_channels, classes)
    params = prepare_params(torch_layout_params, num_channels, classes)  # one-time
    x = jax.random.normal(k_x, (batch, num_channels, length), jnp.float32)

    fwd = jax.jit(cnn1d_forward, static_argnums=2)
    out = jax.block_until_ready(fwd(x, params, classes))
    assert out.shape == (batch, classes)
    assert bool(jnp.all(jnp.isfinite(out)))
    print("KERNEL_OK")
</pallas_src>

<mosaic_0001>
module attributes {stable_mosaic.version = 11 : i64} {
  func.func @_conv_pool_kernel(%arg0: memref<310x40xf32, #tpu.memory_space<vmem>>, %arg1: memref<310x40xf32, #tpu.memory_space<vmem>>, %arg2: memref<40x128xf32, #tpu.memory_space<vmem>>, %arg3: memref<1x128xf32, #tpu.memory_space<vmem>>, %arg4: memref<310x128xf32, #tpu.memory_space<vmem>>) attributes {dimension_semantics = [], scalar_prefetch = 0 : i64, scratch_operands = 0 : i64, tpu.core_type = #tpu.core_type<tc>} {
    %c0 = arith.constant 0 : index
    %c0_0 = arith.constant 0 : index
    %0 = vector.load %arg0[%c0, %c0_0] : memref<310x40xf32, #tpu.memory_space<vmem>>, vector<310x40xf32>
    %c0_1 = arith.constant 0 : index
    %c0_2 = arith.constant 0 : index
    %1 = vector.load %arg2[%c0_1, %c0_2] : memref<40x128xf32, #tpu.memory_space<vmem>>, vector<40x128xf32>
    %cst = arith.constant dense<0.000000e+00> : vector<310x128xf32>
    %2 = tpu.matmul %0, %1, %cst {dimension_numbers = #tpu.dot_dimension_numbers<[1], [0], [0], [1], [0, 0, 1, 1], [], []>} : vector<310x40xf32>, vector<40x128xf32>, vector<310x128xf32> -> vector<310x128xf32>
    %c0_3 = arith.constant 0 : index
    %c0_4 = arith.constant 0 : index
    %3 = vector.load %arg1[%c0_3, %c0_4] : memref<310x40xf32, #tpu.memory_space<vmem>>, vector<310x40xf32>
    %c0_5 = arith.constant 0 : index
    %c0_6 = arith.constant 0 : index
    %4 = vector.load %arg2[%c0_5, %c0_6] : memref<40x128xf32, #tpu.memory_space<vmem>>, vector<40x128xf32>
    %cst_7 = arith.constant dense<0.000000e+00> : vector<310x128xf32>
    %5 = tpu.matmul %3, %4, %cst_7 {dimension_numbers = #tpu.dot_dimension_numbers<[1], [0], [0], [1], [0, 0, 1, 1], [], []>} : vector<310x40xf32>, vector<40x128xf32>, vector<310x128xf32> -> vector<310x128xf32>
    %6 = arith.maximumf %2, %5 : vector<310x128xf32>
    %c0_8 = arith.constant 0 : index
    %c0_9 = arith.constant 0 : index
    %7 = vector.load %arg3[%c0_8, %c0_9] : memref<1x128xf32, #tpu.memory_space<vmem>>, vector<1x128xf32>
    %8 = vector.broadcast %7 : vector<1x128xf32> to vector<310x128xf32>
    %9 = arith.addf %6, %8 : vector<310x128xf32>
    %cst_10 = arith.constant 0.000000e+00 : f32
    %10 = vector.broadcast %cst_10 : f32 to vector<310x128xf32>
    %11 = arith.maximumf %9, %10 : vector<310x128xf32>
    %c0_11 = arith.constant 0 : index
    %c0_12 = arith.constant 0 : index
    %12 = vector.load %arg4[%c0_11, %c0_12] : memref<310x128xf32, #tpu.memory_space<vmem>>, vector<310x128xf32>
    tpu.vector_store %arg4[%c0_11, %c0_12], %11 {strides = array<i32>} : memref<310x128xf32, #tpu.memory_space<vmem>>, vector<310x128xf32>,
    return
  }
}

module attributes {stable_mosaic.version = 11 : i64} {
  func.func @_conv_pool_kernel(%arg0: memref<150x640xf32, #tpu.memory_space<vmem>>, %arg1: memref<150x640xf32, #tpu.memory_space<vmem>>, %arg2: memref<640x128xf32, #tpu.memory_space<vmem>>, %arg3: memref<1x128xf32, #tpu.memory_space<vmem>>, %arg4: memref<150x128xf32, #tpu.memory_space<vmem>>) attributes {dimension_semantics = [], scalar_prefetch = 0 : i64, scratch_operands = 0 : i64, tpu.core_type = #tpu.core_type<tc>} {
    %c0 = arith.constant 0 : index
    %c0_0 = arith.constant 0 : index
    %0 = vector.load %arg0[%c0, %c0_0] : memref<150x640xf32, #tpu.memory_space<vmem>>, vector<150x640xf32>
    %c0_1 = arith.constant 0 : index
    %c0_2 = arith.constant 0 : index
    %1 = vector.load %arg2[%c0_1, %c0_2] : memref<640x128xf32, #tpu.memory_space<vmem>>, vector<640x128xf32>
    %cst = arith.constant dense<0.000000e+00> : vector<150x128xf32>
    %2 = tpu.matmul %0, %1, %cst {dimension_numbers = #tpu.dot_dimension_numbers<[1], [0], [0], [1], [0, 0, 1, 1], [], []>} : vector<150x640xf32>, vector<640x128xf32>, vector<150x128xf32> -> vector<150x128xf32>
    %c0_3 = arith.constant 0 : index
    %c0_4 = arith.constant 0 : index
    %3 = vector.load %arg1[%c0_3, %c0_4] : memref<150x640xf32, #tpu.memory_space<vmem>>, vector<150x640xf32>
    %c0_5 = arith.constant 0 : index
    %c0_6 = arith.constant 0 : index
    %4 = vector.load %arg2[%c0_5, %c0_6] : memref<640x128xf32, #tpu.memory_space<vmem>>, vector<640x128xf32>
    %cst_7 = arith.constant dense<0.000000e+00> : vector<150x128xf32>
    %5 = tpu.matmul %3, %4, %cst_7 {dimension_numbers = #tpu.dot_dimension_numbers<[1], [0], [0], [1], [0, 0, 1, 1], [], []>} : vector<150x640xf32>, vector<640x128xf32>, vector<150x128xf32> -> vector<150x128xf32>
    %6 = arith.maximumf %2, %5 : vector<150x128xf32>
    %c0_8 = arith.constant 0 : index
    %c0_9 = arith.constant 0 : index
    %7 = vector.load %arg3[%c0_8, %c0_9] : memref<1x128xf32, #tpu.memory_space<vmem>>, vector<1x128xf32>
    %8 = vector.broadcast %7 : vector<1x128xf32> to vector<150x128xf32>
    %9 = arith.addf %6, %8 : vector<150x128xf32>
    %cst_10 = arith.constant 0.000000e+00 : f32
    %10 = vector.broadcast %cst_10 : f32 to vector<150x128xf32>
    %11 = arith.maximumf %9, %10 : vector<150x128xf32>
    %c0_11 = arith.constant 0 : index
    %c0_12 = arith.constant 0 : index
    %12 = vector.load %arg4[%c0_11, %c0_12] : memref<150x128xf32, #tpu.memory_space<vmem>>, vector<150x128xf32>
    tpu.vector_store %arg4[%c0_11, %c0_12], %11 {strides = array<i32>} : memref<150x128xf32, #tpu.memory_space<vmem>>, vector<150x128xf32>,
    return
  }
}

module attributes {stable_mosaic.version = 11 : i64} {
  func.func @_conv_pool_kernel(%arg0: memref<74x256xf32, #tpu.memory_space<vmem>>, %arg1: memref<74x256xf32, #tpu.memory_space<vmem>>, %arg2: memref<256x128xf32, #tpu.memory_space<vmem>>, %arg3: memref<1x128xf32, #tpu.memory_space<vmem>>, %arg4: memref<74x128xf32, #tpu.memory_space<vmem>>) attributes {dimension_semantics = [], scalar_prefetch = 0 : i64, scratch_operands = 0 : i64, tpu.core_type = #tpu.core_type<tc>} {
    %c0 = arith.constant 0 : index
    %c0_0 = arith.constant 0 : index
    %0 = vector.load %arg0[%c0, %c0_0] : memref<74x256xf32, #tpu.memory_space<vmem>>, vector<74x256xf32>
    %c0_1 = arith.constant 0 : index
    %c0_2 = arith.constant 0 : index
    %1 = vector.load %arg2[%c0_1, %c0_2] : memref<256x128xf32, #tpu.memory_space<vmem>>, vector<256x128xf32>
    %cst = arith.constant dense<0.000000e+00> : vector<74x128xf32>
    %2 = tpu.matmul %0, %1, %cst {dimension_numbers = #tpu.dot_dimension_numbers<[1], [0], [0], [1], [0, 0, 1, 1], [], []>} : vector<74x256xf32>, vector<256x128xf32>, vector<74x128xf32> -> vector<74x128xf32>
    %c0_3 = arith.constant 0 : index
    %c0_4 = arith.constant 0 : index
    %3 = vector.load %arg1[%c0_3, %c0_4] : memref<74x256xf32, #tpu.memory_space<vmem>>, vector<74x256xf32>
    %c0_5 = arith.constant 0 : index
    %c0_6 = arith.constant 0 : index
    %4 = vector.load %arg2[%c0_5, %c0_6] : memref<256x128xf32, #tpu.memory_space<vmem>>, vector<256x128xf32>
    %cst_7 = arith.constant dense<0.000000e+00> : vector<74x128xf32>
    %5 = tpu.matmul %3, %4, %cst_7 {dimension_numbers = #tpu.dot_dimension_numbers<[1], [0], [0], [1], [0, 0, 1, 1], [], []>} : vector<74x256xf32>, vector<256x128xf32>, vector<74x128xf32> -> vector<74x128xf32>
    %6 = arith.maximumf %2, %5 : vector<74x128xf32>
    %c0_8 = arith.constant 0 : index
    %c0_9 = arith.constant 0 : index
    %7 = vector.load %arg3[%c0_8, %c0_9] : memref<1x128xf32, #tpu.memory_space<vmem>>, vector<1x128xf32>
    %8 = vector.broadcast %7 : vector<1x128xf32> to vector<74x128xf32>
    %9 = arith.addf %6, %8 : vector<74x128xf32>
    %cst_10 = arith.constant 0.000000e+00 : f32
    %10 = vector.broadcast %cst_10 : f32 to vector<74x128xf32>
    %11 = arith.maximumf %9, %10 : vector<74x128xf32>
    %c0_11 = arith.constant 0 : index
    %c0_12 = arith.constant 0 : index
    %12 = vector.load %arg4[%c0_11, %c0_12] : memref<74x128xf32, #tpu.memory_space<vmem>>, vector<74x128xf32>
    tpu.vector_store %arg4[%c0_11, %c0_12], %11 {strides = array<i32>} : memref<74x128xf32, #tpu.memory_space<vmem>>, vector<74x128xf32>,
    return
  }
}

module attributes {stable_mosaic.version = 11 : i64} {
  func.func @_conv_pool_kernel(%arg0: memref<36x256xf32, #tpu.memory_space<vmem>>, %arg1: memref<36x256xf32, #tpu.memory_space<vmem>>, %arg2: memref<256x128xf32, #tpu.memory_space<vmem>>, %arg3: memref<1x128xf32, #tpu.memory_space<vmem>>, %arg4: memref<36x128xf32, #tpu.memory_space<vmem>>) attributes {dimension_semantics = [], scalar_prefetch = 0 : i64, scratch_operands = 0 : i64, tpu.core_type = #tpu.core_type<tc>} {
    %c0 = arith.constant 0 : index
    %c0_0 = arith.constant 0 : index
    %0 = vector.load %arg0[%c0, %c0_0] : memref<36x256xf32, #tpu.memory_space<vmem>>, vector<36x256xf32>
    %c0_1 = arith.constant 0 : index
    %c0_2 = arith.constant 0 : index
    %1 = vector.load %arg2[%c0_1, %c0_2] : memref<256x128xf32, #tpu.memory_space<vmem>>, vector<256x128xf32>
    %cst = arith.constant dense<0.000000e+00> : vector<36x128xf32>
    %2 = tpu.matmul %0, %1, %cst {dimension_numbers = #tpu.dot_dimension_numbers<[1], [0], [0], [1], [0, 0, 1, 1], [], []>} : vector<36x256xf32>, vector<256x128xf32>, vector<36x128xf32> -> vector<36x128xf32>
    %c0_3 = arith.constant 0 : index
    %c0_4 = arith.constant 0 : index
    %3 = vector.load %arg1[%c0_3, %c0_4] : memref<36x256xf32, #tpu.memory_space<vmem>>, vector<36x256xf32>
    %c0_5 = arith.constant 0 : index
    %c0_6 = arith.constant 0 : index
    %4 = vector.load %arg2[%c0_5, %c0_6] : memref<256x128xf32, #tpu.memory_space<vmem>>, vector<256x128xf32>
    %cst_7 = arith.constant dense<0.000000e+00> : vector<36x128xf32>
    %5 = tpu.matmul %3, %4, %cst_7 {dimension_numbers = #tpu.dot_dimension_numbers<[1], [0], [0], [1], [0, 0, 1, 1], [], []>} : vector<36x256xf32>, vector<256x128xf32>, vector<36x128xf32> -> vector<36x128xf32>
    %6 = arith.maximumf %2, %5 : vector<36x128xf32>
    %c0_8 = arith.constant 0 : index
    %c0_9 = arith.constant 0 : index
    %7 = vector.load %arg3[%c0_8, %c0_9] : memref<1x128xf32, #tpu.memory_space<vmem>>, vector<1x128xf32>
    %8 = vector.broadcast %7 : vector<1x128xf32> to vector<36x128xf32>
    %9 = arith.addf %6, %8 : vector<36x128xf32>
    %cst_10 = arith.constant 0.000000e+00 : f32
    %10 = vector.broadcast %cst_10 : f32 to vector<36x128xf32>
    %11 = arith.maximumf %9, %10 : vector<36x128xf32>
    %c0_11 = arith.constant 0 : index
    %c0_12 = arith.constant 0 : index
    %12 = vector.load %arg4[%c0_11, %c0_12] : memref<36x128xf32, #tpu.memory_space<vmem>>, vector<36x128xf32>
    tpu.vector_store %arg4[%c0_11, %c0_12], %11 {strides = array<i32>} : memref<36x128xf32, #tpu.memory_space<vmem>>, vector<36x128xf32>,
    return
  }
}

module attributes {stable_mosaic.version = 11 : i64} {
  func.func @_conv_pool_kernel(%arg0: memref<16x256xf32, #tpu.memory_space<vmem>>, %arg1: memref<16x256xf32, #tpu.memory_space<vmem>>, %arg2: memref<256x256xf32, #tpu.memory_space<vmem>>, %arg3: memref<1x256xf32, #tpu.memory_space<vmem>>, %arg4: memref<16x256xf32, #tpu.memory_space<vmem>>) attributes {dimension_semantics = [], scalar_prefetch = 0 : i64, scratch_operands = 0 : i64, tpu.core_type = #tpu.core_type<tc>} {
    %c0 = arith.constant 0 : index
    %c0_0 = arith.constant 0 : index
    %0 = vector.load %arg0[%c0, %c0_0] : memref<16x256xf32, #tpu.memory_space<vmem>>, vector<16x256xf32>
    %c0_1 = arith.constant 0 : index
    %c0_2 = arith.constant 0 : index
    %1 = vector.load %arg2[%c0_1, %c0_2] : memref<256x256xf32, #tpu.memory_space<vmem>>, vector<256x256xf32>
    %cst = arith.constant dense<0.000000e+00> : vector<16x256xf32>
    %2 = tpu.matmul %0, %1, %cst {dimension_numbers = #tpu.dot_dimension_numbers<[1], [0], [0], [1], [0, 0, 1, 1], [], []>} : vector<16x256xf32>, vector<256x256xf32>, vector<16x256xf32> -> vector<16x256xf32>
    %c0_3 = arith.constant 0 : index
    %c0_4 = arith.constant 0 : index
    %3 = vector.load %arg1[%c0_3, %c0_4] : memref<16x256xf32, #tpu.memory_space<vmem>>, vector<16x256xf32>
    %c0_5 = arith.constant 0 : index
    %c0_6 = arith.constant 0 : index
    %4 = vector.load %arg2[%c0_5, %c0_6] : memref<256x256xf32, #tpu.memory_space<vmem>>, vector<256x256xf32>
    %cst_7 = arith.constant dense<0.000000e+00> : vector<16x256xf32>
    %5 = tpu.matmul %3, %4, %cst_7 {dimension_numbers = #tpu.dot_dimension_numbers<[1], [0], [0], [1], [0, 0, 1, 1], [], []>} : vector<16x256xf32>, vector<256x256xf32>, vector<16x256xf32> -> vector<16x256xf32>
    %6 = arith.maximumf %2, %5 : vector<16x256xf32>
    %c0_8 = arith.constant 0 : index
    %c0_9 = arith.constant 0 : index
    %7 = vector.load %arg3[%c0_8, %c0_9] : memref<1x256xf32, #tpu.memory_space<vmem>>, vector<1x256xf32>
    %8 = vector.broadcast %7 : vector<1x256xf32> to vector<16x256xf32>
    %9 = arith.addf %6, %8 : vector<16x256xf32>
    %cst_10 = arith.constant 0.000000e+00 : f32
    %10 = vector.broadcast %cst_10 : f32 to vector<16x256xf32>
    %11 = arith.maximumf %9, %10 : vector<16x256xf32>
    %c0_11 = arith.constant 0 : index
    %c0_12 = arith.constant 0 : index
    %12 = vector.load %arg4[%c0_11, %c0_12] : memref<16x256xf32, #tpu.memory_space<vmem>>, vector<16x256xf32>
    tpu.vector_store %arg4[%c0_11, %c0_12], %11 {strides = array<i32>} : memref<16x256xf32, #tpu.memory_space<vmem>>, vector<16x256xf32>,
    return
  }
}

module attributes {stable_mosaic.version = 11 : i64} {
  func.func @_fc_fused_kernel(%arg0: i32, %arg1: memref<2x2048xf32, #tpu.memory_space<vmem>>, %arg2: memref<2048x512xbf16, #tpu.memory_space<vmem>>, %arg3: memref<1x512xf32, #tpu.memory_space<vmem>>, %arg4: memref<512x128xf32, #tpu.memory_space<vmem>>, %arg5: memref<1x128xf32, #tpu.memory_space<vmem>>, %arg6: memref<2x128xf32, #tpu.memory_space<vmem>>) attributes {dimension_semantics = [#tpu.dimension_semantics<arbitrary>], iteration_bounds = array<i64: 6>, scalar_prefetch = 0 : i64, scratch_operands = 0 : i64, tpu.core_type = #tpu.core_type<tc>, window_params = [{pipeline_mode = #tpu.pipeline_mode<synchronous>, transform_indices = @transform_0, window_bounds = array<i64: 2, 2048>}, {transform_indices = @transform_1, window_bounds = array<i64: 2048, 512>}, {transform_indices = @transform_2, window_bounds = array<i64: 1, 512>}, {transform_indices = @transform_3, window_bounds = array<i64: 512, 128>}, {pipeline_mode = #tpu.pipeline_mode<synchronous>, transform_indices = @transform_4, window_bounds = array<i64: 1, 128>}, {pipeline_mode = #tpu.pipeline_mode<synchronous>, transform_indices = @transform_5, window_bounds = array<i64: 2, 128>}]} {
    %c0_i32 = arith.constant 0 : i32
    %0 = arith.cmpi eq, %arg0, %c0_i32 : i32
    %1 = arith.extui %0 : i1 to i32
    %c0_i32_0 = arith.constant 0 : i32
    %2 = arith.cmpi ne, %1, %c0_i32_0 : i32
    scf.if %2 {
      %cst_15 = arith.constant 0.000000e+00 : f32
      %20 = vector.broadcast %cst_15 : f32 to vector<2x128xf32>
      %c0_16 = arith.constant 0 : index
      %c0_17 = arith.constant 0 : index
      %21 = vector.load %arg6[%c0_16, %c0_17] : memref<2x128xf32, #tpu.memory_space<vmem>>, vector<2x128xf32>
      tpu.vector_store %arg6[%c0_16, %c0_17], %20 {strides = array<i32>} : memref<2x128xf32, #tpu.memory_space<vmem>>, vector<2x128xf32>,
    } else {
    }
    %c0 = arith.constant 0 : index
    %c0_1 = arith.constant 0 : index
    %3 = vector.load %arg1[%c0, %c0_1] : memref<2x2048xf32, #tpu.memory_space<vmem>>, vector<2x2048xf32>
    %4 = arith.truncf %3 : vector<2x2048xf32> to vector<2x2048xbf16>
    %c0_2 = arith.constant 0 : index
    %c0_3 = arith.constant 0 : index
    %5 = vector.load %arg2[%c0_2, %c0_3] : memref<2048x512xbf16, #tpu.memory_space<vmem>>, vector<2048x512xbf16>
    %cst = arith.constant dense<0.000000e+00> : vector<2x512xf32>
    %6 = tpu.matmul %4, %5, %cst {dimension_numbers = #tpu.dot_dimension_numbers<[1], [0], [0], [1], [0, 0, 1, 1], [], []>} : vector<2x2048xbf16>, vector<2048x512xbf16>, vector<2x512xf32> -> vector<2x512xf32>
    %c0_4 = arith.constant 0 : index
    %c0_5 = arith.constant 0 : index
    %7 = vector.load %arg3[%c0_4, %c0_5] : memref<1x512xf32, #tpu.memory_space<vmem>>, vector<1x512xf32>
    %8 = vector.broadcast %7 : vector<1x512xf32> to vector<2x512xf32>
    %9 = arith.addf %6, %8 : vector<2x512xf32>
    %cst_6 = arith.constant 0.000000e+00 : f32
    %10 = vector.broadcast %cst_6 : f32 to vector<2x512xf32>
    %11 = arith.maximumf %9, %10 : vector<2x512xf32>
    %c0_7 = arith.constant 0 : index
    %c0_8 = arith.constant 0 : index
    %12 = vector.load %arg6[%c0_7, %c0_8] : memref<2x128xf32, #tpu.memory_space<vmem>>, vector<2x128xf32>
    %c0_9 = arith.constant 0 : index
    %c0_10 = arith.constant 0 : index
    %13 = vector.load %arg4[%c0_9, %c0_10] : memref<512x128xf32, #tpu.memory_space<vmem>>, vector<512x128xf32>
    %cst_11 = arith.constant dense<0.000000e+00> : vector<2x128xf32>
    %14 = tpu.matmul %11, %13, %cst_11 {dimension_numbers = #tpu.dot_dimension_numbers<[1], [0], [0], [1], [0, 0, 1, 1], [], []>} : vector<2x512xf32>, vector<512x128xf32>, vector<2x128xf32> -> vector<2x128xf32>
    %15 = arith.addf %12, %14 : vector<2x128xf32>
    %c0_12 = arith.constant 0 : index
    %c0_13 = arith.constant 0 : index
    %16 = vector.load %arg6[%c0_12, %c0_13] : memref<2x128xf32, #tpu.memory_space<vmem>>, vector<2x128xf32>
    tpu.vector_store %arg6[%c0_12, %c0_13], %15 {strides = array<i32>} : memref<2x128xf32, #tpu.memory_space<vmem>>, vector<2x128xf32>,
    %c5_i32 = arith.constant 5 : i32
    %17 = arith.cmpi eq, %arg0, %c5_i32 : i32
    %18 = arith.extui %17 : i1 to i32
    %c0_i32_14 = arith.constant 0 : i32
    %19 = arith.cmpi ne, %18, %c0_i32_14 : i32
    scf.if %19 {
      %c0_15 = arith.constant 0 : index
      %c0_16 = arith.constant 0 : index
      %20 = vector.load %arg6[%c0_15, %c0_16] : memref<2x128xf32, #tpu.memory_space<vmem>>, vector<2x128xf32>
      %c0_17 = arith.constant 0 : index
      %c0_18 = arith.constant 0 : index
      %21 = vector.load %arg5[%c0_17, %c0_18] : memref<1x128xf32, #tpu.memory_space<vmem>>, vector<1x128xf32>
      %22 = vector.broadcast %21 : vector<1x128xf32> to vector<2x128xf32>
      %23 = arith.addf %20, %22 : vector<2x128xf32>
      %24 = tpu.iota {dimensions = array<i32: 1>} : vector<2x128xi32>
      %c3_i32 = arith.constant 3 : i32
      %25 = vector.broadcast %c3_i32 : i32 to vector<2x128xi32>
      %26 = arith.cmpi slt, %24, %25 : vector<2x128xi32>
      %cst_19 = arith.constant 0xFF800000 : f32
      %27 = vector.broadcast %cst_19 : f32 to vector<2x128xf32>
      %28 = arith.select %26, %23, %27 : vector<2x128xi1>, vector<2x128xf32>
      %cst_20 = arith.constant dense<0xFF800000> : vector<2xf32>
      %29 = vector.multi_reduction <maximumf>, %28, %cst_20 [1] : vector<2x128xf32> to vector<2xf32>
      %30 = vector.shape_cast %29 : vector<2xf32> to vector<2x1xf32>
      %31 = vector.broadcast %30 : vector<2x1xf32> to vector<2x128xf32>
      %32 = arith.subf %28, %31 : vector<2x128xf32>
      %33 = math.exp %32 : vector<2x128xf32>
      %cst_21 = arith.constant dense<0.000000e+00> : vector<2xf32>
      %34 = vector.multi_reduction <add>, %33, %cst_21 [1] : vector<2x128xf32> to vector<2xf32>
      %35 = vector.shape_cast %34 : vector<2xf32> to vector<2x1xf32>
      %36 = math.log %35 : vector<2x1xf32>
      %37 = vector.broadcast %36 : vector<2x1xf32> to vector<2x128xf32>
      %38 = arith.subf %32, %37 : vector<2x128xf32>
      %c0_22 = arith.constant 0 : index
      %c0_23 = arith.constant 0 : index
      %39 = vector.load %arg6[%c0_22, %c0_23] : memref<2x128xf32, #tpu.memory_space<vmem>>, vector<2x128xf32>
      tpu.vector_store %arg6[%c0_22, %c0_23], %38 {strides = array<i32>} : memref<2x128xf32, #tpu.memory_space<vmem>>, vector<2x128xf32>,
    } else {
    }
    return
  }
  func.func @transform_0(%arg0: i32) -> (i32, i32) {
    %c0_i32 = arith.constant 0 : i32
    %c0_i32_0 = arith.constant 0 : i32
    %c0_i32_1 = arith.constant 0 : i32
    return %c0_i32, %c0_i32_0 : i32, i32
  }
  func.func @transform_1(%arg0: i32) -> (i32, i32) {
    %c0_i32 = arith.constant 0 : i32
    %c0_i32_0 = arith.constant 0 : i32
    return %c0_i32, %arg0 : i32, i32
  }
  func.func @transform_2(%arg0: i32) -> (i32, i32) {
    %c0_i32 = arith.constant 0 : i32
    %c0_i32_0 = arith.constant 0 : i32
    return %c0_i32, %arg0 : i32, i32
  }
  func.func @transform_3(%arg0: i32) -> (i32, i32) {
    %c0_i32 = arith.constant 0 : i32
    %c0_i32_0 = arith.constant 0 : i32
    return %arg0, %c0_i32 : i32, i32
  }
  func.func @transform_4(%arg0: i32) -> (i32, i32) {
    %c0_i32 = arith.constant 0 : i32
    %c0_i32_0 = arith.constant 0 : i32
    %c0_i32_1 = arith.constant 0 : i32
    return %c0_i32, %c0_i32_0 : i32, i32
  }
  func.func @transform_5(%arg0: i32) -> (i32, i32) {
    %c0_i32 = arith.constant 0 : i32
    %c0_i32_0 = arith.constant 0 : i32
    %c0_i32_1 = arith.constant 0 : i32
    return %c0_i32, %c0_i32_0 : i32, i32
  }
}

</mosaic_0001>

<llo_original>
// kernel: cnn1d_forward.6
$region0: #{cnn1d_forward.6}
  #allocation0 [shape = 'u32[]', space=smem, size = 0x4, offset = 0x4, fixed_abs, tag = 'smem constant byte address 0x4 - core index']
  #allocation1 [shape = 'u32[144,128]{1,0:T(1,128)}', space=vmem, size = 0x12000, scoped, tag = 'internal scratch']
  %s0 = inlined_call_operand.vmem [shape: f32[310,40], index: 0, kind: input, shape index: {}]
  %s1 = inlined_call_operand.vmem [shape: f32[310,40], index: 1, kind: input, shape index: {}]
  %s2 = inlined_call_operand.hbm [shape: f32[40,128], index: 2, kind: input, shape index: {}]
  %s3 = inlined_call_operand.hbm [shape: f32[1,128], index: 3, kind: input, shape index: {}]
  %s4 = inlined_call_operand.vmem [shape: f32[310,128], index: 4, kind: output, shape index: {}]
  %s5 = sld [smem:[#allocation0]]
  $region34: #{cnn1d_forward.6} parent=0
    _
  %s7 = ssub.s32 1, %s5
  %s8 = scalar_select 0, %s7, %s5
  $region1: #{cnn1d_forward.6} parent=0
    #allocation2 [shape = 'u8[20480]{0}', space=vmem, size = 0x5000, scoped, tag = 'input window, operand 2, single buffered']
    #allocation3 [shape = 's32[1]{0}', space=sflag, size = 0x4, scoped, tag = 'scoped memory for cnn1d_forward.6']
    #allocation4 [shape = 'u8[512]{0}', space=vmem, size = 0x400, scoped, tag = 'input window, operand 3, single buffered']
    #allocation5 [shape = 's32[1]{0}', space=sflag, size = 0x4, scoped, tag = 'scoped memory for cnn1d_forward.6']
    %9 = vsyncpa [#allocation3], 0
    %10 = vsyncpa [#allocation5], 0
    // Predicated region
    $region2: #{cnn1d_forward.6} parent=1 // pred_check
      _
    $region3: #{cnn1d_forward.6} parent=1 // pred_check_branch
      %12 = sbr.rel (0) target = $region5
    $region4: #{cnn1d_forward.6} parent=1 // pred_region
      _
    $region5: #{cnn1d_forward.6} parent=1 // pred_fallthru
      _
    // Predicated region
    $region6: #{cnn1d_forward.6} parent=1 // pred_check
      _
    $region7: #{cnn1d_forward.6} parent=1 // pred_check_branch
      %14 = sbr.rel (0) target = $region9
    $region8: #{cnn1d_forward.6} parent=1 // pred_region
      _
    $region9: #{cnn1d_forward.6} parent=1 // pred_fallthru
      _
    // Predicated region
    $region10: #{cnn1d_forward.6} parent=1 // pred_check
      _
    $region11: #{cnn1d_forward.6} parent=1 // pred_check_branch
      %16 = sbr.rel (0) target = $region13
    $region12: #{cnn1d_forward.6} parent=1 // pred_region
      %s18 = ssub.s32 640, 640
      %19 = vsyncadd [#allocation3], %s18
      %s20 = sshll.u32 [#allocation2], 4
      %s21 = int_to_ptr.vmem [resolvable:$true] %s20
      %26 = dma.hbm_to_vmem [thread:$0]  %s2, 640, %s21, [#allocation3], 128, 128, 8
    $region13: #{cnn1d_forward.6} parent=1 // pred_fallthru
      _
    // Predicated region
    $region14: #{cnn1d_forward.6} parent=1 // pred_check
      _
    $region15: #{cnn1d_forward.6} parent=1 // pred_check_branch
      %28 = sbr.rel (0) target = $region17
    $region16: #{cnn1d_forward.6} parent=1 // pred_region
      %s30 = ssub.s32 16, 16
      %31 = vsyncadd [#allocation5], %s30
      %s33 = sshll.u32 [#allocation4], 4
      %s34 = int_to_ptr.vmem [resolvable:$true] %s33
      %36 = dma.hbm_to_vmem [thread:$0]  %s3, 16, %s34, [#allocation5]
    $region17: #{cnn1d_forward.6} parent=1 // pred_fallthru
      _
    // Predicated region
    $region18: #{cnn1d_forward.6} parent=1 // pred_check
      _
    $region19: #{cnn1d_forward.6} parent=1 // pred_check_branch
      %38 = sbr.rel (0) target = $region21
    $region20: #{cnn1d_forward.6} parent=1 // pred_region
      %39 = dma.done [#allocation3], 640
    $region21: #{cnn1d_forward.6} parent=1 // pred_fallthru
      _
    // Predicated region
    $region22: #{cnn1d_forward.6} parent=1 // pred_check
      _
    $region23: #{cnn1d_forward.6} parent=1 // pred_check_branch
      %41 = sbr.rel (0) target = $region25
    $region24: #{cnn1d_forward.6} parent=1 // pred_region
      %42 = dma.done [#allocation5], 16
    $region25: #{cnn1d_forward.6} parent=1 // pred_fallthru
      _
    %v43 = vld [vmem:[%s0] sm:$0xff]
    %v44 = vld [vmem:[%s0 + $0x8] sm:$0xff]
    %v45 = vld [vmem:[%s0 + $0x10] sm:$0xff]
    %v46 = vld [vmem:[%s0 + $0x18] sm:$0xff]
    %v47 = vld [vmem:[%s0 + $0x20] sm:$0xff]
    %v48 = vld [vmem:[%s0 + $0x28] sm:$0xff]
    %v49 = vld [vmem:[%s0 + $0x30] sm:$0xff]
    %v50 = vld [vmem:[%s0 + $0x38] sm:$0xff]
    %v51 = vld [vmem:[%s0 + $0x40] sm:$0xff]
    %v52 = vld [vmem:[%s0 + $0x48] sm:$0xff]
    %v53 = vld [vmem:[%s0 + $0x50] sm:$0xff]
    %v54 = vld [vmem:[%s0 + $0x58] sm:$0xff]
    %v55 = vld [vmem:[%s0 + $0x60] sm:$0xff]
    %v56 = vld [vmem:[%s0 + $0x68] sm:$0xff]
    %v57 = vld [vmem:[%s0 + $0x70] sm:$0xff]
    %v58 = vld [vmem:[%s0 + $0x78] sm:$0xff]
    %v59 = vld [vmem:[%s0 + $0x80] sm:$0xff]
    %v60 = vld [vmem:[%s0 + $0x88] sm:$0xff]
    %v61 = vld [vmem:[%s0 + $0x90] sm:$0xff]
    %v62 = vld [vmem:[%s0 + $0x98] sm:$0xff]
    %v63 = vld [vmem:[%s0 + $0xa0] sm:$0xff]
    %v64 = vld [vmem:[%s0 + $0xa8] sm:$0xff]
    %v65 = vld [vmem:[%s0 + $0xb0] sm:$0xff]
    %v66 = vld [vmem:[%s0 + $0xb8] sm:$0xff]
    %v67 = vld [vmem:[%s0 + $0xc0] sm:$0xff]
    %v68 = vld [vmem:[%s0 + $0xc8] sm:$0xff]
    %v69 = vld [vmem:[%s0 + $0xd0] sm:$0xff]
    %v70 = vld [vmem:[%s0 + $0xd8] sm:$0xff]
    %v71 = vld [vmem:[%s0 + $0xe0] sm:$0xff]
    %v72 = vld [vmem:[%s0 + $0xe8] sm:$0xff]
    %v73 = vld [vmem:[%s0 + $0xf0] sm:$0xff]
    %v74 = vld [vmem:[%s0 + $0xf8] sm:$0xff]
    %v75 = vld [vmem:[%s0 + $0x100] sm:$0xff]
    %v76 = vld [vmem:[%s0 + $0x108] sm:$0xff]
    %v77 = vld [vmem:[%s0 + $0x110] sm:$0xff]
    %v78 = vld [vmem:[%s0 + $0x118] sm:$0xff]
    %v79 = vld [vmem:[%s0 + $0x120] sm:$0xff]
    %v80 = vld [vmem:[%s0 + $0x128] sm:$0xff]
    %v81 = vld [vmem:[%s0 + $0x130] sm:$0x3f]
    %v82 = vld [vmem:[#allocation2] sm:$0xff]
    %v83 = vld [vmem:[#allocation2 + $0x8] sm:$0xff]
    %v84 = vld [vmem:[#allocation2 + $0x10] sm:$0xff]
    %v85 = vld [vmem:[#allocation2 + $0x18] sm:$0xff]
    %v86 = vld [vmem:[#allocation2 + $0x20] sm:$0xff]
    %vm87 = vcmask 326656
    %v89 = vsel %vm87, %v43, 0
    %v92 = vsel %vm87, %v44, 0
    %v95 = vsel %vm87, %v45, 0
    %v98 = vsel %vm87, %v46, 0
    %v101 = vsel %vm87, %v47, 0
    %v104 = vsel %vm87, %v48, 0
    %v107 = vsel %vm87, %v49, 0
    %v110 = vsel %vm87, %v50, 0
    %v113 = vsel %vm87, %v51, 0
    %v116 = vsel %vm87, %v52, 0
    %v119 = vsel %vm87, %v53, 0
    %v122 = vsel %vm87, %v54, 0
    %v125 = vsel %vm87, %v55, 0
    %v128 = vsel %vm87, %v56, 0
    %v131 = vsel %vm87, %v57, 0
    %v134 = vsel %vm87, %v58, 0
    %v137 = vsel %vm87, %v59, 0
    %v140 = vsel %vm87, %v60, 0
    %v143 = vsel %vm87, %v61, 0
    %v146 = vsel %vm87, %v62, 0
    %v149 = vsel %vm87, %v63, 0
    %v152 = vsel %vm87, %v64, 0
    %v155 = vsel %vm87, %v65, 0
    %v158 = vsel %vm87, %v66, 0
    %v161 = vsel %vm87, %v67, 0
    %v164 = vsel %vm87, %v68, 0
    %v167 = vsel %vm87, %v69, 0
    %v170 = vsel %vm87, %v70, 0
    %v173 = vsel %vm87, %v71, 0
    %v176 = vsel %vm87, %v72, 0
    %v179 = vsel %vm87, %v73, 0
    %v182 = vsel %vm87, %v74, 0
    %v185 = vsel %vm87, %v75, 0
    %v188 = vsel %vm87, %v76, 0
    %v191 = vsel %vm87, %v77, 0
    %v194 = vsel %vm87, %v78, 0
    %v197 = vsel %vm87, %v79, 0
    %v200 = vsel %vm87, %v80, 0
    %v203 = vsel %vm87, %v81, 0
    %205 = vmatprep.subr.mxu0 0.0
    %206 = vmatpush1.msra.mxu0 %v82
    %207 = vmatprep.subr.mxu0 0.0
    %208 = vmatpush1.msra.mxu0 %v83
    %209 = vmatprep.subr.mxu0 0.0
    %210 = vmatpush1.msra.mxu0 %v84
    %211 = vmatprep.subr.mxu0 0.0
    %212 = vmatpush1.msra.mxu0 %v85
    %213 = vmatprep.subr.mxu0 0.0
    %214 = vmatpush1.msra.mxu0 %v86
    %215 = vmatprep.subr.mxu0 0.0
    %216 = vmatpush1.msra.mxu0 0.0
    %217 = vmatprep.subr.mxu0 0.0
    %218 = vmatpush1.msra.mxu0 0.0
    %219 = vmatprep.subr.mxu0 0.0
    %220 = vmatpush1.msra.mxu0 0.0
    %221 = vmatprep.subr.mxu0 0.0
    %222 = vmatpush1.msra.mxu0 0.0
    %223 = vmatprep.subr.mxu0 0.0
    %224 = vmatpush1.msra.mxu0 0.0
    %225 = vmatprep.subr.mxu0 0.0
    %226 = vmatpush1.msra.mxu0 0.0
    %227 = vmatprep.subr.mxu0 0.0
    %228 = vmatpush1.msra.mxu0 0.0
    %229 = vmatprep.subr.mxu0 0.0
    %230 = vmatpush1.msra.mxu0 0.0
    %231 = vmatprep.subr.mxu0 0.0
    %232 = vmatpush1.msra.mxu0 0.0
    %233 = vmatprep.subr.mxu0 0.0
    %234 = vmatpush1.msra.mxu0 0.0
    %235 = vmatprep.subr.mxu0 0.0
    %236 = vmatpush1.msra.mxu0 0.0
    %237 = vmatprep.subr.mxu0 0.0
    %238 = vmatpush1.msra.mxu0 0.0
    %239 = vmatprep.subr.mxu0 0.0
    %240 = vmatpush1.msra.mxu0 0.0
    %241 = vmatprep.subr.mxu0 0.0
    %242 = vmatpush1.msra.mxu0 0.0
    %243 = vmatprep.subr.mxu0 0.0
    %244 = vmatpush1.msra.mxu0 0.0
    %245 = vmatprep.subr.mxu0 0.0
    %246 = vmatpush1.msra.mxu0 0.0
    %247 = vmatprep.subr.mxu0 0.0
    %248 = vmatpush1.msra.mxu0 0.0
    %249 = vmatprep.subr.mxu0 0.0
    %250 = vmatpush1.msra.mxu0 0.0
    %251 = vmatprep.subr.mxu0 0.0
    %252 = vmatpush1.msra.mxu0 0.0
    %253 = vmatprep.subr.mxu0 0.0
    %254 = vmatpush1.msra.mxu0 0.0
    %255 = vmatprep.subr.mxu0 0.0
    %256 = vmatpush1.msra.mxu0 0.0
    %257 = vmatprep.subr.mxu0 0.0
    %258 = vmatpush1.msra.mxu0 0.0
    %259 = vmatprep.subr.mxu0 0.0
    %260 = vmatpush1.msra.mxu0 0.0
    %261 = vmatprep.subr.mxu0 0.0
    %262 = vmatpush1.msra.mxu0 0.0
    %263 = vmatprep.subr.mxu0 0.0
    %264 = vmatpush1.msra.mxu0 0.0
    %265 = vmatprep.subr.mxu0 0.0
    %266 = vmatpush1.msra.mxu0 0.0
    %267 = vmatprep.subr.mxu0 0.0
    %268 = vmatpush1.msra.mxu0 0.0
    %269 = vmatprep.mubr.f32.mxu0 0.0
    %270 = vmatmul.mubr.f32.gmra.mrb[0].mxu0 %v89
    %v271 = vpop.f32.mrb[0].mxu0
    %v272 = vadd.f32 0.0, %v271
    %v273 = vpop.f32.mrb[0].mxu0
    %274 = vmatprep.mubr.f32.mxu0 0.0
    %275 = vmatmul.mubr.f32.gmra.mrb[0].mxu0 %v92
    %v276 = vpop.f32.mrb[0].mxu0
    %v277 = vadd.f32 0.0, %v276
    %v278 = vpop.f32.mrb[0].mxu0
    %279 = vmatprep.mubr.f32.mxu0 0.0
    %280 = vmatmul.mubr.f32.gmra.mrb[0].mxu0 %v95
    %v281 = vpop.f32.mrb[0].mxu0
    %v282 = vadd.f32 0.0, %v281
    %v283 = vpop.f32.mrb[0].mxu0
    %284 = vmatprep.mubr.f32.mxu0 0.0
    %285 = vmatmul.mubr.f32.gmra.mrb[0].mxu0 %v98
    %v286 = vpop.f32.mrb[0].mxu0
    %v287 = vadd.f32 0.0, %v286
    %v288 = vpop.f32.mrb[0].mxu0
    %289 = vmatprep.mubr.f32.mxu0 0.0
    %290 = vmatmul.mubr.f32.gmra.mrb[0].mxu0 %v101
    %v291 = vpop.f32.mrb[0].mxu0
    %v292 = vadd.f32 0.0, %v291
    %v293 = vpop.f32.mrb[0].mxu0
    %294 = vmatprep.mubr.f32.mxu0 0.0
    %295 = vmatmul.mubr.f32.gmra.mrb[0].mxu0 %v104
    %v296 = vpop.f32.mrb[0].mxu0
    %v297 = vadd.f32 0.0, %v296
    %v298 = vpop.f32.mrb[0].mxu0
    %299 = vmatprep.mubr.f32.mxu0 0.0
    %300 = vmatmul.mubr.f32.gmra.mrb[0].mxu0 %v107
    %v301 = vpop.f32.mrb[0].mxu0
    %v302 = vadd.f32 0.0, %v301
    %v303 = vpop.f32.mrb[0].mxu0
    %304 = vmatprep.mubr.f32.mxu0 0.0
    %305 = vmatmul.mubr.f32.gmra.mrb[0].mxu0 %v110
    %v306 = vpop.f32.mrb[0].mxu0
    %v307 = vadd.f32 0.0, %v306
    %v308 = vpop.f32.mrb[0].mxu0
    %309 = vmatprep.mubr.f32.mxu0 0.0
    %310 = vmatmul.mubr.f32.gmra.mrb[0].mxu0 %v113
    %v311 = vpop.f32.mrb[0].mxu0
    %v312 = vadd.f32 0.0, %v311
    %v313 = vpop.f32.mrb[0].mxu0
    %314 = vmatprep.mubr.f32.mxu0 0.0
    %315 = vmatmul.mubr.f32.gmra.mrb[0].mxu0 %v116
    %v316 = vpop.f32.mrb[0].mxu0
    %v317 = vadd.f32 0.0, %v316
    %v318 = vpop.f32.mrb[0].mxu0
    %319 = vmatprep.mubr.f32.mxu0 0.0
    %320 = vmatmul.mubr.f32.gmra.mrb[0].mxu0 %v119
    %v321 = vpop.f32.mrb[0].mxu0
    %v322 = vadd.f32 0.0, %v321
    %v323 = vpop.f32.mrb[0].mxu0
    %324 = vmatprep.mubr.f32.mxu0 0.0
    %325 = vmatmul.mubr.f32.gmra.mrb[0].mxu0 %v122
    %v326 = vpop.f32.mrb[0].mxu0
    %v327 = vadd.f32 0.0, %v326
    %v328 = vpop.f32.mrb[0].mxu0
    %329 = vmatprep.mubr.f32.mxu0 0.0
    %330 = vmatmul.mubr.f32.gmra.mrb[0].mxu0 %v125
    %v331 = vpop.f32.mrb[0].mxu0
    %v332 = vadd.f32 0.0, %v331
    %v333 = vpop.f32.mrb[0].mxu0
    %334 = vmatprep.mubr.f32.mxu0 0.0
    %335 = vmatmul.mubr.f32.gmra.mrb[0].mxu0 %v128
    %v336 = vpop.f32.mrb[0].mxu0
    %v337 = vadd.f32 0.0, %v336
    %v338 = vpop.f32.mrb[0].mxu0
    %339 = vmatprep.mubr.f32.mxu0 0.0
    %340 = vmatmul.mubr.f32.gmra.mrb[0].mxu0 %v131
    %v341 = vpop.f32.mrb[0].mxu0
    %v342 = vadd.f32 0.0, %v341
    %v343 = vpop.f32.mrb[0].mxu0
    %344 = vmatprep.mubr.f32.mxu0 0.0
    %345 = vmatmul.mubr.f32.gmra.mrb[0].mxu0 %v134
    %v346 = vpop.f32.mrb[0].mxu0
    %v347 = vadd.f32 0.0, %v346
    %v348 = vpop.f32.mrb[0].mxu0
    %349 = vmatprep.mubr.f32.mxu0 0.0
    %350 = vmatmul.mubr.f32.gmra.mrb[0].mxu0 %v137
    %v351 = vpop.f32.mrb[0].mxu0
    %v352 = vadd.f32 0.0, %v351
    %v353 = vpop.f32.mrb[0].mxu0
    %354 = vmatprep.mubr.f32.mxu0 0.0
    %355 = vmatmul.mubr.f32.gmra.mrb[0].mxu0 %v140
    %v356 = vpop.f32.mrb[0].mxu0
    %v357 = vadd.f32 0.0, %v356
    %v358 = vpop.f32.mrb[0].mxu0
    %359 = vmatprep.mubr.f32.mxu0 0.0
    %360 = vmatmul.mubr.f32.gmra.mrb[0].mxu0 %v143
    %v361 = vpop.f32.mrb[0].mxu0
    %v362 = vadd.f32 0.0, %v361
    %v363 = vpop.f32.mrb[0].mxu0
    %364 = vmatprep.mubr.f32.mxu0 0.0
    %365 = vmatmul.mubr.f32.gmra.mrb[0].mxu0 %v146
    %v366 = vpop.f32.mrb[0].mxu0
    %v367 = vadd.f32 0.0, %v366
    %v368 = vpop.f32.mrb[0].mxu0
    %369 = vmatprep.mubr.f32.mxu0 0.0
    %370 = vmatmul.mubr.f32.gmra.mrb[0].mxu0 %v149
    %v371 = vpop.f32.mrb[0].mxu0
    %v372 = vadd.f32 0.0, %v371
    %v373 = vpop.f32.mrb[0].mxu0
    %374 = vmatprep.mubr.f32.mxu0 0.0
    %375 = vmatmul.mubr.f32.gmra.mrb[0].mxu0 %v152
    %v376 = vpop.f32.mrb[0].mxu0
    %v377 = vadd.f32 0.0, %v376
    %v378 = vpop.f32.mrb[0].mxu0
    %379 = vmatprep.mubr.f32.mxu0 0.0
    %380 = vmatmul.mubr.f32.gmra.mrb[0].mxu0 %v155
    %v381 = vpop.f32.mrb[0].mxu0
    %v382 = vadd.f32 0.0, %v381
    %v383 = vpop.f32.mrb[0].mxu0
    %384 = vmatprep.mubr.f32.mxu0 0.0
    %385 = vmatmul.mubr.f32.gmra.mrb[0].mxu0 %v158
    %v386 = vpop.f32.mrb[0].mxu0
    %v387 = vadd.f32 0.0, %v386
    %v388 = vpop.f32.mrb[0].mxu0
    %389 = vmatprep.mubr.f32.mxu0 0.0
    %390 = vmatmul.mubr.f32.gmra.mrb[0].mxu0 %v161
    %v391 = vpop.f32.mrb[0].mxu0
    %v392 = vadd.f32 0.0, %v391
    %v393 = vpop.f32.mrb[0].mxu0
    %394 = vmatprep.mubr.f32.mxu0 0.0
    %395 = vmatmul.mubr.f32.gmra.mrb[0].mxu0 %v164
    %v396 = vpop.f32.mrb[0].mxu0
    %v397 = vadd.f32 0.0, %v396
    %v398 = vpop.f32.mrb[0].mxu0
    %399 = vmatprep.mubr.f32.mxu0 0.0
    %400 = vmatmul.mubr.f32.gmra.mrb[0].mxu0 %v167
    %v401 = vpop.f32.mrb[0].mxu0
    %v402 = vadd.f32 0.0, %v401
    %v403 = vpop.f32.mrb[0].mxu0
    %404 = vmatprep.mubr.f32.mxu0 0.0
    %405 = vmatmul.mubr.f32.gmra.mrb[0].mxu0 %v170
    %v406 = vpop.f32.mrb[0].mxu0
    %v407 = vadd.f32 0.0, %v406
    %v408 = vpop.f32.mrb[0].mxu0
    %409 = vmatprep.mubr.f32.mxu0 0.0
    %410 = vmatmul.mubr.f32.gmra.mrb[0].mxu0 %v173
    %v411 = vpop.f32.mrb[0].mxu0
    %v412 = vadd.f32 0.0, %v411
    %v413 = vpop.f32.mrb[0].mxu0
    %414 = vmatprep.mubr.f32.mxu0 0.0
    %415 = vmatmul.mubr.f32.gmra.mrb[0].mxu0 %v176
    %v416 = vpop.f32.mrb[0].mxu0
    %v417 = vadd.f32 0.0, %v416
    %v418 = vpop.f32.mrb[0].mxu0
    %419 = vmatprep.mubr.f32.mxu0 0.0
    %420 = vmatmul.mubr.f32.gmra.mrb[0].mxu0 %v179
    %v421 = vpop.f32.mrb[0].mxu0
    %v422 = vadd.f32 0.0, %v421
    %v423 = vpop.f32.mrb[0].mxu0
    %424 = vmatprep.mubr.f32.mxu0 0.0
    %425 = vmatmul.mubr.f32.gmra.mrb[0].mxu0 %v182
    %v426 = vpop.f32.mrb[0].mxu0
    %v427 = vadd.f32 0.0, %v426
    %v428 = vpop.f32.mrb[0].mxu0
    %429 = vmatprep.mubr.f32.mxu0 0.0
    %430 = vmatmul.mubr.f32.gmra.mrb[0].mxu0 %v185
    %v431 = vpop.f32.mrb[0].mxu0
    %v432 = vadd.f32 0.0, %v431
    %v433 = vpop.f32.mrb[0].mxu0
    %434 = vmatprep.mubr.f32.mxu0 0.0
    %435 = vmatmul.mubr.f32.gmra.mrb[0].mxu0 %v188
    %v436 = vpop.f32.mrb[0].mxu0
    %v437 = vadd.f32 0.0, %v436
    %v438 = vpop.f32.mrb[0].mxu0
    %439 = vmatprep.mubr.f32.mxu0 0.0
    %440 = vmatmul.mubr.f32.gmra.mrb[0].mxu0 %v191
    %v441 = vpop.f32.mrb[0].mxu0
    %v442 = vadd.f32 0.0, %v441
    %v443 = vpop.f32.mrb[0].mxu0
    %444 = vmatprep.mubr.f32.mxu0 0.0
    %445 = vmatmul.mubr.f32.gmra.mrb[0].mxu0 %v194
    %v446 = vpop.f32.mrb[0].mxu0
    %v447 = vadd.f32 0.0, %v446
    %v448 = vpop.f32.mrb[0].mxu0
    %449 = vmatprep.mubr.f32.mxu0 0.0
    %450 = vmatmul.mubr.f32.gmra.mrb[0].mxu0 %v197
    %v451 = vpop.f32.mrb[0].mxu0
    %v452 = vadd.f32 0.0, %v451
    %v453 = vpop.f32.mrb[0].mxu0
    %454 = vmatprep.mubr.f32.mxu0 0.0
    %455 = vmatmul.mubr.f32.gmra.mrb[0].mxu0 %v200
    %v456 = vpop.f32.mrb[0].mxu0
    %v457 = vadd.f32 0.0, %v456
    %v458 = vpop.f32.mrb[0].mxu0
    %459 = vmatprep.mubr.f32.mxu0 0.0
    %460 = vmatmul.mubr.f32.gmra.mrb[0].mxu0 %v203
    %v461 = vpop.f32.mrb[0].mxu0
    %v462 = vadd.f32 0.0, %v461
    %v463 = vpop.f32.mrb[0].mxu0
    %464 = vdwg.mxu0
    %v465 = vld [vmem:[%s1] sm:$0xff]
    %v466 = vld [vmem:[%s1 + $0x8] sm:$0xff]
    %v467 = vld [vmem:[%s1 + $0x10] sm:$0xff]
    %v468 = vld [vmem:[%s1 + $0x18] sm:$0xff]
    %v469 = vld [vmem:[%s1 + $0x20] sm:$0xff]
    %v470 = vld [vmem:[%s1 + $0x28] sm:$0xff]
    %v471 = vld [vmem:[%s1 + $0x30] sm:$0xff]
    %v472 = vld [vmem:[%s1 + $0x38] sm:$0xff]
    %v473 = vld [vmem:[%s1 + $0x40] sm:$0xff]
    %v474 = vld [vmem:[%s1 + $0x48] sm:$0xff]
    %v475 = vld [vmem:[%s1 + $0x50] sm:$0xff]
    %v476 = vld [vmem:[%s1 + $0x58] sm:$0xff]
    %v477 = vld [vmem:[%s1 + $0x60] sm:$0xff]
    %v478 = vld [vmem:[%s1 + $0x68] sm:$0xff]
    %v479 = vld [vmem:[%s1 + $0x70] sm:$0xff]
    %v480 = vld [vmem:[%s1 + $0x78] sm:$0xff]
    %v481 = vld [vmem:[%s1 + $0x80] sm:$0xff]
    %v482 = vld [vmem:[%s1 + $0x88] sm:$0xff]
    %v483 = vld [vmem:[%s1 + $0x90] sm:$0xff]
    %v484 = vld [vmem:[%s1 + $0x98] sm:$0xff]
    %v485 = vld [vmem:[%s1 + $0xa0] sm:$0xff]
    %v486 = vld [vmem:[%s1 + $0xa8] sm:$0xff]
    %v487 = vld [vmem:[%s1 + $0xb0] sm:$0xff]
    %v488 = vld [vmem:[%s1 + $0xb8] sm:$0xff]
    %v489 = vld [vmem:[%s1 + $0xc0] sm:$0xff]
    %v490 = vld [vmem:[%s1 + $0xc8] sm:$0xff]
    %v491 = vld [vmem:[%s1 + $0xd0] sm:$0xff]
    %v492 = vld [vmem:[%s1 + $0xd8] sm:$0xff]
    %v493 = vld [vmem:[%s1 + $0xe0] sm:$0xff]
    %v494 = vld [vmem:[%s1 + $0xe8] sm:$0xff]
    %v495 = vld [vmem:[%s1 + $0xf0] sm:$0xff]
    %v496 = vld [vmem:[%s1 + $0xf8] sm:$0xff]
    %v497 = vld [vmem:[%s1 + $0x100] sm:$0xff]
    %v498 = vld [vmem:[%s1 + $0x108] sm:$0xff]
    %v499 = vld [vmem:[%s1 + $0x110] sm:$0xff]
    %v500 = vld [vmem:[%s1 + $0x118] sm:$0xff]
    %v501 = vld [vmem:[%s1 + $0x120] sm:$0xff]
    %v502 = vld [vmem:[%s1 + $0x128] sm:$0xff]
    %v503 = vld [vmem:[%s1 + $0x130] sm:$0x3f]
    %v505 = vsel %vm87, %v465, 0
    %v508 = vsel %vm87, %v466, 0
    %v511 = vsel %vm87, %v467, 0
    %v514 = vsel %vm87, %v468, 0
    %v517 = vsel %vm87, %v469, 0
    %v520 = vsel %vm87, %v470, 0
    %v523 = vsel %vm87, %v471, 0
    %v526 = vsel %vm87, %v472, 0
    %v529 = vsel %vm87, %v473, 0
    %v532 = vsel %vm87, %v474, 0
    %v535 = vsel %vm87, %v475, 0
    %v538 = vsel %vm87, %v476, 0
    %v541 = vsel %vm87, %v477, 0
    %v544 = vsel %vm87, %v478, 0
    %v547 = vsel %vm87, %v479, 0
    %v550 = vsel %vm87, %v480, 0
    %v553 = vsel %vm87, %v481, 0
    %v556 = vsel %vm87, %v482, 0
    %v559 = vsel %vm87, %v483, 0
    %v562 = vsel %vm87, %v484, 0
    %v565 = vsel %vm87, %v485, 0
    %v568 = vsel %vm87, %v486, 0
    %v571 = vsel %vm87, %v487, 0
    %v574 = vsel %vm87, %v488, 0
    %v577 = vsel %vm87, %v489, 0
    %v580 = vsel %vm87, %v490, 0
    %v583 = vsel %vm87, %v491, 0
    %v586 = vsel %vm87, %v492, 0
    %v589 = vsel %vm87, %v493, 0
    %v592 = vsel %vm87, %v494, 0
    %v595 = vsel %vm87, %v495, 0
    %v598 = vsel %vm87, %v496, 0
    %v601 = vsel %vm87, %v497, 0
    %v604 = vsel %vm87, %v498, 0
    %v607 = vsel %vm87, %v499, 0
    %v610 = vsel %vm87, %v500, 0
    %v613 = vsel %vm87, %v501, 0
    %v616 = vsel %vm87, %v502, 0
    %v619 = vsel %vm87, %v503, 0
    %621 = vmatprep.subr.mxu0 0.0
    %622 = vmatpush1.msra.mxu0 %v82
    %623 = vmatprep.subr.mxu0 0.0
    %624 = vmatpush1.msra.mxu0 %v83
    %625 = vmatprep.subr.mxu0 0.0
    %626 = vmatpush1.msra.mxu0 %v84
    %627 = vmatprep.subr.mxu0 0.0
    %628 = vmatpush1.msra.mxu0 %v85
    %629 = vmatprep.subr.mxu0 0.0
    %630 = vmatpush1.msra.mxu0 %v86
    %631 = vmatprep.subr.mxu0 0.0
    %632 = vmatpush1.msra.mxu0 0.0
    %633 = vmatprep.subr.mxu0 0.0
    %634 = vmatpush1.msra.mxu0 0.0
    %635 = vmatprep.subr.mxu0 0.0
    %636 = vmatpush1.msra.mxu0 0.0
    %637 = vmatprep.subr.mxu0 0.0
    %638 = vmatpush1.msra.mxu0 0.0
    %639 = vmatprep.subr.mxu0 0.0
    %640 = vmatpush1.msra.mxu0 0.0
    %641 = vmatprep.subr.mxu0 0.0
    %642 = vmatpush1.msra.mxu0 0.0
    %643 = vmatprep.subr.mxu0 0.0
    %644 = vmatpush1.msra.mxu0 0.0
    %645 = vmatprep.subr.mxu0 0.0
    %646 = vmatpush1.msra.mxu0 0.0
    %647 = vmatprep.subr.mxu0 0.0
    %648 = vmatpush1.msra.mxu0 0.0
    %649 = vmatprep.subr.mxu0 0.0
    %650 = vmatpush1.msra.mxu0 0.0
    %651 = vmatprep.subr.mxu0 0.0
    %652 = vmatpush1.msra.mxu0 0.0
    %653 = vmatprep.subr.mxu0 0.0
    %654 = vmatpush1.msra.mxu0 0.0
    %655 = vmatprep.subr.mxu0 0.0
    %656 = vmatpush1.msra.mxu0 0.0
    %657 = vmatprep.subr.mxu0 0.0
    %658 = vmatpush1.msra.mxu0 0.0
    %659 = vmatprep.subr.mxu0 0.0
    %660 = vmatpush1.msra.mxu0 0.0
    %661 = vmatprep.subr.mxu0 0.0
    %662 = vmatpush1.msra.mxu0 0.0
    %663 = vmatprep.subr.mxu0 0.0
    %664 = vmatpush1.msra.mxu0 0.0
    %665 = vmatprep.subr.mxu0 0.0
    %666 = vmatpush1.msra.mxu0 0.0
    %667 = vmatprep.subr.mxu0 0.0
    %668 = vmatpush1.msra.mxu0 0.0
    %669 = vmatprep.subr.mxu0 0.0
    %670 = vmatpush1.msra.mxu0 0.0
    %671 = vmatprep.subr.mxu0 0.0
    %672 = vmatpush1.msra.mxu0 0.0
    %673 = vmatprep.subr.mxu0 0.0
    %674 = vmatpush1.msra.mxu0 0.0
    %675 = vmatprep.subr.mxu0 0.0
    %676 = vmatpush1.msra.mxu0 0.0
    %677 = vmatprep.subr.mxu0 0.0
    %678 = vmatpush1.msra.mxu0 0.0
    %679 = vmatprep.subr.mxu0 0.0
    %680 = vmatpush1.msra.mxu0 0.0
    %681 = vmatprep.subr.mxu0 0.0
    %682 = vmatpush1.msra.mxu0 0.0
    %683 = vmatprep.subr.mxu0 0.0
    %684 = vmatpush1.msra.mxu0 0.0
    %685 = vmatprep.mubr.f32.mxu0 0.0
    %686 = vmatmul.mubr.f32.gmra.mrb[0].mxu0 %v505
    %v687 = vpop.f32.mrb[0].mxu0
    %v688 = vadd.f32 0.0, %v687
    %v689 = vpop.f32.mrb[0].mxu0
    %690 = vmatprep.mubr.f32.mxu0 0.0
    %691 = vmatmul.mubr.f32.gmra.mrb[0].mxu0 %v508
    %v692 = vpop.f32.mrb[0].mxu0
    %v693 = vadd.f32 0.0, %v692
    %v694 = vpop.f32.mrb[0].mxu0
    %695 = vmatprep.mubr.f32.mxu0 0.0
    %696 = vmatmul.mubr.f32.gmra.mrb[0].mxu0 %v511
    %v697 = vpop.f32.mrb[0].mxu0
    %v698 = vadd.f32 0.0, %v697
    %v699 = vpop.f32.mrb[0].mxu0
    %700 = vmatprep.mubr.f32.mxu0 0.0
    %701 = vmatmul.mubr.f32.gmra.mrb[0].mxu0 %v514
    %v702 = vpop.f32.mrb[0].mxu0
    %v703 = vadd.f32 0.0, %v702
    %v704 = vpop.f32.mrb[0].mxu0
    %705 = vmatprep.mubr.f32.mxu0 0.0
    %706 = vmatmul.mubr.f32.gmra.mrb[0].mxu0 %v517
    %v707 = vpop.f32.mrb[0].mxu0
    %v708 = vadd.f32 0.0, %v707
    %v709 = vpop.f32.mrb[0].mxu0
    %710 = vmatprep.mubr.f32.mxu0 0.0
    %711 = vmatmul.mubr.f32.gmra.mrb[0].mxu0 %v520
    %v712 = vpop.f32.mrb[0].mxu0
    %v713 = vadd.f32 0.0, %v712
    %v714 = vpop.f32.mrb[0].mxu0
    %715 = vmatprep.mubr.f32.mxu0 0.0
    %716 = vmatmul.mubr.f32.gmra.mrb[0].mxu0 %v523
    %v717 = vpop.f32.mrb[0].mxu0
    %v718 = vadd.f32 0.0, %v717
    %v719 = vpop.f32.mrb[0].mxu0
    %720 = vmatprep.mubr.f32.mxu0 0.0
    %721 = vmatmul.mubr.f32.gmra.mrb[0].mxu0 %v526
    %v722 = vpop.f32.mrb[0].mxu0
    %v723 = vadd.f32 0.0, %v722
    %v724 = vpop.f32.mrb[0].mxu0
    %725 = vmatprep.mubr.f32.mxu0 0.0
    %726 = vmatmul.mubr.f32.gmra.mrb[0].mxu0 %v529
    %v727 = vpop.f32.mrb[0].mxu0
    %v728 = vadd.f32 0.0, %v727
    %v729 = vpop.f32.mrb[0].mxu0
    %730 = vmatprep.mubr.f32.mxu0 0.0
    %731 = vmatmul.mubr.f32.gmra.mrb[0].mxu0 %v532
    %v732 = vpop.f32.mrb[0].mxu0
    %v733 = vadd.f32 0.0, %v732
    %v734 = vpop.f32.mrb[0].mxu0
    %735 = vmatprep.mubr.f32.mxu0 0.0
    %736 = vmatmul.mubr.f32.gmra.mrb[0].mxu0 %v535
    %v737 = vpop.f32.mrb[0].mxu0
    %v738 = vadd.f32 0.0, %v737
    %v739 = vpop.f32.mrb[0].mxu0
    %740 = vmatprep.mubr.f32.mxu0 0.0
    %741 = vmatmul.mubr.f32.gmra.mrb[0].mxu0 %v538
    %v742 = vpop.f32.mrb[0].mxu0
    %v743 = vadd.f32 0.0, %v742
    %v744 = vpop.f32.mrb[0].mxu0
    %745 = vmatprep.mubr.f32.mxu0 0.0
    %746 = vmatmul.mubr.f32.gmra.mrb[0].mxu0 %v541
    %v747 = vpop.f32.mrb[0].mxu0
    %v748 = vadd.f32 0.0, %v747
    %v749 = vpop.f32.mrb[0].mxu0
    %750 = vmatprep.mubr.f32.mxu0 0.0
    %751 = vmatmul.mubr.f32.gmra.mrb[0].mxu0 %v544
    %v752 = vpop.f32.mrb[0].mxu0
    %v753 = vadd.f32 0.0, %v752
    %v754 = vpop.f32.mrb[0].mxu0
    %755 = vmatprep.mubr.f32.mxu0 0.0
    %756 = vmatmul.mubr.f32.gmra.mrb[0].mxu0 %v547
    %v757 = vpop.f32.mrb[0].mxu0
    %v758 = vadd.f32 0.0, %v757
    %v759 = vpop.f32.mrb[0].mxu0
    %760 = vmatprep.mubr.f32.mxu0 0.0
    %761 = vmatmul.mubr.f32.gmra.mrb[0].mxu0 %v550
    %v762 = vpop.f32.mrb[0].mxu0
    %v763 = vadd.f32 0.0, %v762
    %v764 = vpop.f32.mrb[0].mxu0
    %765 = vmatprep.mubr.f32.mxu0 0.0
    %766 = vmatmul.mubr.f32.gmra.mrb[0].mxu0 %v553
    %v767 = vpop.f32.mrb[0].mxu0
    %v768 = vadd.f32 0.0, %v767
    %v769 = vpop.f32.mrb[0].mxu0
    %770 = vmatprep.mubr.f32.mxu0 0.0
    %771 = vmatmul.mubr.f32.gmra.mrb[0].mxu0 %v556
    %v772 = vpop.f32.mrb[0].mxu0
    %v773 = vadd.f32 0.0, %v772
    %v774 = vpop.f32.mrb[0].mxu0
    %775 = vmatprep.mubr.f32.mxu0 0.0
    %776 = vmatmul.mubr.f32.gmra.mrb[0].mxu0 %v559
    %v777 = vpop.f32.mrb[0].mxu0
    %v778 = vadd.f32 0.0, %v777
    %v779 = vpop.f32.mrb[0].mxu0
    %780 = vmatprep.mubr.f32.mxu0 0.0
    %781 = vmatmul.mubr.f32.gmra.mrb[0].mxu0 %v562
    %v782 = vpop.f32.mrb[0].mxu0
    %v783 = vadd.f32 0.0, %v782
    %v784 = vpop.f32.mrb[0].mxu0
    %785 = vmatprep.mubr.f32.mxu0 0.0
    %786 = vmatmul.mubr.f32.gmra.mrb[0].mxu0 %v565
    %v787 = vpop.f32.mrb[0].mxu0
    %v788 = vadd.f32 0.0, %v787
    %v789 = vpop.f32.mrb[0].mxu0
    %790 = vmatprep.mubr.f32.mxu0 0.0
    %791 = vmatmul.mubr.f32.gmra.mrb[0].mxu0 %v568
    %v792 = vpop.f32.mrb[0].mxu0
    %v793 = vadd.f32 0.0, %v792
    %v794 = vpop.f32.mrb[0].mxu0
    %795 = vmatprep.mubr.f32.mxu0 0.0
    %796 = vmatmul.mubr.f32.gmra.mrb[0].mxu0 %v571
    %v797 = vpop.f32.mrb[0].mxu0
    %v798 = vadd.f32 0.0, %v797
    %v799 = vpop.f32.mrb[0].mxu0
    %800 = vmatprep.mubr.f32.mxu0 0.0
    %801 = vmatmul.mubr.f32.gmra.mrb[0].mxu0 %v574
    %v802 = vpop.f32.mrb[0].mxu0
    %v803 = vadd.f32 0.0, %v802
    %v804 = vpop.f32.mrb[0].mxu0
    %805 = vmatprep.mubr.f32.mxu0 0.0
    %806 = vmatmul.mubr.f32.gmra.mrb[0].mxu0 %v577
    %v807 = vpop.f32.mrb[0].mxu0
    %v808 = vadd.f32 0.0, %v807
    %v809 = vpop.f32.mrb[0].mxu0
    %810 = vmatprep.mubr.f32.mxu0 0.0
    %811 = vmatmul.mubr.f32.gmra.mrb[0].mxu0 %v580
    %v812 = vpop.f32.mrb[0].mxu0
    %v813 = vadd.f32 0.0, %v812
    %v814 = vpop.f32.mrb[0].mxu0
    %815 = vmatprep.mubr.f32.mxu0 0.0
    %816 = vmatmul.mubr.f32.gmra.mrb[0].mxu0 %v583
    %v817 = vpop.f32.mrb[0].mxu0
    %v818 = vadd.f32 0.0, %v817
    %v819 = vpop.f32.mrb[0].mxu0
    %820 = vmatprep.mubr.f32.mxu0 0.0
    %821 = vmatmul.mubr.f32.gmra.mrb[0].mxu0 %v586
    %v822 = vpop.f32.mrb[0].mxu0
    %v823 = vadd.f32 0.0, %v822
    %v824 = vpop.f32.mrb[0].mxu0
    %825 = vmatprep.mubr.f32.mxu0 0.0
    %826 = vmatmul.mubr.f32.gmra.mrb[0].mxu0 %v589
    %v827 = vpop.f32.mrb[0].mxu0
    %v828 = vadd.f32 0.0, %v827
    %v829 = vpop.f32.mrb[0].mxu0
    %830 = vmatprep.mubr.f32.mxu0 0.0
    %831 = vmatmul.mubr.f32.gmra.mrb[0].mxu0 %v592
    %v832 = vpop.f32.mrb[0].mxu0
    %v833 = vadd.f32 0.0, %v832
    %v834 = vpop.f32.mrb[0].mxu0
    %835 = vmatprep.mubr.f32.mxu0 0.0
    %836 = vmatmul.mubr.f32.gmra.mrb[0].mxu0 %v595
    %v837 = vpop.f32.mrb[0].mxu0
    %v838 = vadd.f32 0.0, %v837
    %v839 = vpop.f32.mrb[0].mxu0
    %840 = vmatprep.mubr.f32.mxu0 0.0
    %841 = vmatmul.mubr.f32.gmra.mrb[0].mxu0 %v598
    %v842 = vpop.f32.mrb[0].mxu0
    %v843 = vadd.f32 0.0, %v842
    %v844 = vpop.f32.mrb[0].mxu0
    %845 = vmatprep.mubr.f32.mxu0 0.0
    %846 = vmatmul.mubr.f32.gmra.mrb[0].mxu0 %v601
    %v847 = vpop.f32.mrb[0].mxu0
    %v848 = vadd.f32 0.0, %v847
    %v849 = vpop.f32.mrb[0].mxu0
    %850 = vmatprep.mubr.f32.mxu0 0.0
    %851 = vmatmul.mubr.f32.gmra.mrb[0].mxu0 %v604
    %v852 = vpop.f32.mrb[0].mxu0
    %v853 = vadd.f32 0.0, %v852
    %v854 = vpop.f32.mrb[0].mxu0
    %855 = vmatprep.mubr.f32.mxu0 0.0
    %856 = vmatmul.mubr.f32.gmra.mrb[0].mxu0 %v607
    %v857 = vpop.f32.mrb[0].mxu0
    %v858 = vadd.f32 0.0, %v857
    %v859 = vpop.f32.mrb[0].mxu0
    %860 = vmatprep.mubr.f32.mxu0 0.0
    %861 = vmatmul.mubr.f32.gmra.mrb[0].mxu0 %v610
    %v862 = vpop.f32.mrb[0].mxu0
    %v863 = vadd.f32 0.0, %v862
    %v864 = vpop.f32.mrb[0].mxu0
    %865 = vmatprep.mubr.f32.mxu0 0.0
    %866 = vmatmul.mubr.f32.gmra.mrb[0].mxu0 %v613
    %v867 = vpop.f32.mrb[0].mxu0
    %v868 = vadd.f32 0.0, %v867
    %v869 = vpop.f32.mrb[0].mxu0
    %870 = vmatprep.mubr.f32.mxu0 0.0
    %871 = vmatmul.mubr.f32.gmra.mrb[0].mxu0 %v616
    %v872 = vpop.f32.mrb[0].mxu0
    %v873 = vadd.f32 0.0, %v872
    %v874 = vpop.f32.mrb[0].mxu0
    %875 = vmatprep.mubr.f32.mxu0 0.0
    %876 = vmatmul.mubr.f32.gmra.mrb[0].mxu0 %v619
    %v877 = vpop.f32.mrb[0].mxu0
    %v878 = vadd.f32 0.0, %v877
    %v879 = vpop.f32.mrb[0].mxu0
    %880 = vdwg.mxu0
    %v881 = vmax.f32 %v272, %v688
    %v882 = vmax.f32 %v277, %v693
    %v883 = vmax.f32 %v282, %v698
    %v884 = vmax.f32 %v287, %v703
    %v885 = vmax.f32 %v292, %v708
    %v886 = vmax.f32 %v297, %v713
    %v887 = vmax.f32 %v302, %v718
    %v888 = vmax.f32 %v307, %v723
    %v889 = vmax.f32 %v312, %v728
    %v890 = vmax.f32 %v317, %v733
    %v891 = vmax.f32 %v322, %v738
    %v892 = vmax.f32 %v327, %v743
    %v893 = vmax.f32 %v332, %v748
    %v894 = vmax.f32 %v337, %v753
    %v895 = vmax.f32 %v342, %v758
    %v896 = vmax.f32 %v347, %v763
    %v897 = vmax.f32 %v352, %v768
    %v898 = vmax.f32 %v357, %v773
    %v899 = vmax.f32 %v362, %v778
    %v900 = vmax.f32 %v367, %v783
    %v901 = vmax.f32 %v372, %v788
    %v902 = vmax.f32 %v377, %v793
    %v903 = vmax.f32 %v382, %v798
    %v904 = vmax.f32 %v387, %v803
    %v905 = vmax.f32 %v392, %v808
    %v906 = vmax.f32 %v397, %v813
    %v907 = vmax.f32 %v402, %v818
    %v908 = vmax.f32 %v407, %v823
    %v909 = vmax.f32 %v412, %v828
    %v910 = vmax.f32 %v417, %v833
    %v911 = vmax.f32 %v422, %v838
    %v912 = vmax.f32 %v427, %v843
    %v913 = vmax.f32 %v432, %v848
    %v914 = vmax.f32 %v437, %v853
    %v915 = vmax.f32 %v442, %v858
    %v916 = vmax.f32 %v447, %v863
    %v917 = vmax.f32 %v452, %v868
    %v918 = vmax.f32 %v457, %v873
    %v919 = vmax.f32 %v462, %v878
    %v920 = vld [vmem:[#allocation4] sm:$0x1]
    %v922 = vlaneseq
    %v923 = vshrl.u32 %v922, 7
    %v924 = vsub.s32 0, %v923
    %v925 = vrot.slane %v920, %v924
    %v927 = vadd.f32 %v881, %v925
    %v928 = vadd.f32 %v882, %v925
    %v929 = vadd.f32 %v883, %v925
    %v930 = vadd.f32 %v884, %v925
    %v931 = vadd.f32 %v885, %v925
    %v932 = vadd.f32 %v886, %v925
    %v933 = vadd.f32 %v887, %v925
    %v934 = vadd.f32 %v888, %v925
    %v935 = vadd.f32 %v889, %v925
    %v936 = vadd.f32 %v890, %v925
    %v937 = vadd.f32 %v891, %v925
    %v938 = vadd.f32 %v892, %v925
    %v939 = vadd.f32 %v893, %v925
    %v940 = vadd.f32 %v894, %v925
    %v941 = vadd.f32 %v895, %v925
    %v942 = vadd.f32 %v896, %v925
    %v943 = vadd.f32 %v897, %v925
    %v944 = vadd.f32 %v898, %v925
    %v945 = vadd.f32 %v899, %v925
    %v946 = vadd.f32 %v900, %v925
    %v947 = vadd.f32 %v901, %v925
    %v948 = vadd.f32 %v902, %v925
    %v949 = vadd.f32 %v903, %v925
    %v950 = vadd.f32 %v904, %v925
    %v951 = vadd.f32 %v905, %v925
    %v952 = vadd.f32 %v906, %v925
    %v953 = vadd.f32 %v907, %v925
    %v954 = vadd.f32 %v908, %v925
    %v955 = vadd.f32 %v909, %v925
    %v956 = vadd.f32 %v910, %v925
    %v957 = vadd.f32 %v911, %v925
    %v958 = vadd.f32 %v912, %v925
    %v959 = vadd.f32 %v913, %v925
    %v960 = vadd.f32 %v914, %v925
    %v961 = vadd.f32 %v915, %v925
    %v962 = vadd.f32 %v916, %v925
    %v963 = vadd.f32 %v917, %v925
    %v964 = vadd.f32 %v918, %v925
    %v965 = vadd.f32 %v919, %v925
    %v966 = vmax.f32 %v927, 0.0
    %v967 = vmax.f32 %v928, 0.0
    %v968 = vmax.f32 %v929, 0.0
    %v969 = vmax.f32 %v930, 0.0
    %v970 = vmax.f32 %v931, 0.0
    %v971 = vmax.f32 %v932, 0.0
    %v972 = vmax.f32 %v933, 0.0
    %v973 = vmax.f32 %v934, 0.0
    %v974 = vmax.f32 %v935, 0.0
    %v975 = vmax.f32 %v936, 0.0
    %v976 = vmax.f32 %v937, 0.0
    %v977 = vmax.f32 %v938, 0.0
    %v978 = vmax.f32 %v939, 0.0
    %v979 = vmax.f32 %v940, 0.0
    %v980 = vmax.f32 %v941, 0.0
    %v981 = vmax.f32 %v942, 0.0
    %v982 = vmax.f32 %v943, 0.0
    %v983 = vmax.f32 %v944, 0.0
    %v984 = vmax.f32 %v945, 0.0
    %v985 = vmax.f32 %v946, 0.0
    %v986 = vmax.f32 %v947, 0.0
    %v987 = vmax.f32 %v948, 0.0
    %v988 = vmax.f32 %v949, 0.0
    %v989 = vmax.f32 %v950, 0.0
    %v990 = vmax.f32 %v951, 0.0
    %v991 = vmax.f32 %v952, 0.0
    %v992 = vmax.f32 %v953, 0.0
    %v993 = vmax.f32 %v954, 0.0
    %v994 = vmax.f32 %v955, 0.0
    %v995 = vmax.f32 %v956, 0.0
    %v996 = vmax.f32 %v957, 0.0
    %v997 = vmax.f32 %v958, 0.0
    %v998 = vmax.f32 %v959, 0.0
    %v999 = vmax.f32 %v960, 0.0
    %v1000 = vmax.f32 %v961, 0.0
    %v1001 = vmax.f32 %v962, 0.0
    %v1002 = vmax.f32 %v963, 0.0
    %v1003 = vmax.f32 %v964, 0.0
    %v1004 = vmax.f32 %v965, 0.0
    %1005 = vst [vmem:[%s4] sm:$0xff] %v966
    %1006 = vst [vmem:[%s4 + $0x8] sm:$0xff] %v967
    %1007 = vst [vmem:[%s4 + $0x10] sm:$0xff] %v968
    %1008 = vst [vmem:[%s4 + $0x18] sm:$0xff] %v969
    %1009 = vst [vmem:[%s4 + $0x20] sm:$0xff] %v970
    %1010 = vst [vmem:[%s4 + $0x28] sm:$0xff] %v971
    %1011 = vst [vmem:[%s4 + $0x30] sm:$0xff] %v972
    %1012 = vst [vmem:[%s4 + $0x38] sm:$0xff] %v973
    %1013 = vst [vmem:[%s4 + $0x40] sm:$0xff] %v974
    %1014 = vst [vmem:[%s4 + $0x48] sm:$0xff] %v975
    %1015 = vst [vmem:[%s4 + $0x50] sm:$0xff] %v976
    %1016 = vst [vmem:[%s4 + $0x58] sm:$0xff] %v977
    %1017 = vst [vmem:[%s4 + $0x60] sm:$0xff] %v978
    %1018 = vst [vmem:[%s4 + $0x68] sm:$0xff] %v979
    %1019 = vst [vmem:[%s4 + $0x70] sm:$0xff] %v980
    %1020 = vst [vmem:[%s4 + $0x78] sm:$0xff] %v981
    %1021 = vst [vmem:[%s4 + $0x80] sm:$0xff] %v982
    %1022 = vst [vmem:[%s4 + $0x88] sm:$0xff] %v983
    %1023 = vst [vmem:[%s4 + $0x90] sm:$0xff] %v984
    %1024 = vst [vmem:[%s4 + $0x98] sm:$0xff] %v985
    %1025 = vst [vmem:[%s4 + $0xa0] sm:$0xff] %v986
    %1026 = vst [vmem:[%s4 + $0xa8] sm:$0xff] %v987
    %1027 = vst [vmem:[%s4 + $0xb0] sm:$0xff] %v988
    %1028 = vst [vmem:[%s4 + $0xb8] sm:$0xff] %v989
    %1029 = vst [vmem:[%s4 + $0xc0] sm:$0xff] %v990
    %1030 = vst [vmem:[%s4 + $0xc8] sm:$0xff] %v991
    %1031 = vst [vmem:[%s4 + $0xd0] sm:$0xff] %v992
    %1032 = vst [vmem:[%s4 + $0xd8] sm:$0xff] %v993
    %1033 = vst [vmem:[%s4 + $0xe0] sm:$0xff] %v994
    %1034 = vst [vmem:[%s4 + $0xe8] sm:$0xff] %v995
    %1035 = vst [vmem:[%s4 + $0xf0] sm:$0xff] %v996
    %1036 = vst [vmem:[%s4 + $0xf8] sm:$0xff] %v997
    %1037 = vst [vmem:[%s4 + $0x100] sm:$0xff] %v998
    %1038 = vst [vmem:[%s4 + $0x108] sm:$0xff] %v999
    %1039 = vst [vmem:[%s4 + $0x110] sm:$0xff] %v1000
    %1040 = vst [vmem:[%s4 + $0x118] sm:$0xff] %v1001
    %1041 = vst [vmem:[%s4 + $0x120] sm:$0xff] %v1002
    %1042 = vst [vmem:[%s4 + $0x128] sm:$0xff] %v1003
    %1043 = vst [vmem:[%s4 + $0x130] sm:$0x3f] %v1004
    // Predicated region
    $region26: #{cnn1d_forward.6} parent=1 // pred_check
      _
    $region27: #{cnn1d_forward.6} parent=1 // pred_check_branch
      %1045 = sbr.rel (0) target = $region29
    $region28: #{cnn1d_forward.6} parent=1 // pred_region
      _
    $region29: #{cnn1d_forward.6} parent=1 // pred_fallthru
      _
    // Predicated region
    $region30: #{cnn1d_forward.6} parent=1 // pred_check
      _
    $region31: #{cnn1d_forward.6} parent=1 // pred_check_branch
      %1047 = sbr.rel (0) target = $region33
    $region32: #{cnn1d_forward.6} parent=1 // pred_region
      _
    $region33: #{cnn1d_forward.6} parent=1 // pred_fallthru
      _
    %1048 = vsyncpa [#allocation3], 1
    %1049 = vsyncpa [#allocation5], 1

// kernel: cnn1d_forward.7
$region0: #{cnn1d_forward.7}
  #allocation0 [shape = 'u32[]', space=smem, size = 0x4, offset = 0x4, fixed_abs, tag = 'smem constant byte address 0x4 - core index']
  #allocation1 [shape = 'u32[144,128]{1,0:T(1,128)}', space=vmem, size = 0x12000, scoped, tag = 'internal scratch']
  %s0 = inlined_call_operand.vmem [shape: f32[150,640], index: 0, kind: input, shape index: {}]
  %s1 = inlined_call_operand.vmem [shape: f32[150,640], index: 1, kind: input, shape index: {}]
  %s2 = inlined_call_operand.hbm [shape: f32[640,128], index: 2, kind: input, shape index: {}]
  %s3 = inlined_call_operand.hbm [shape: f32[1,128], index: 3, kind: input, shape index: {}]
  %s4 = inlined_call_operand.vmem [shape: f32[150,128], index: 4, kind: output, shape index: {}]
  %s5 = sld [smem:[#allocation0]]
  $region34: #{cnn1d_forward.7} parent=0
    _
  %s7 = ssub.s32 1, %s5
  %s8 = scalar_select 0, %s7, %s5
  $region1: #{cnn1d_forward.7} parent=0
    #allocation2 [shape = 'u8[327680]{0}', space=vmem, size = 0x50000, scoped, tag = 'input window, operand 2, single buffered']
    #allocation3 [shape = 's32[1]{0}', space=sflag, size = 0x4, scoped, tag = 'scoped memory for cnn1d_forward.7']
    #allocation4 [shape = 'u8[512]{0}', space=vmem, size = 0x400, scoped, tag = 'input window, operand 3, single buffered']
    #allocation5 [shape = 's32[1]{0}', space=sflag, size = 0x4, scoped, tag = 'scoped memory for cnn1d_forward.7']
    %9 = vsyncpa [#allocation3], 0
    %10 = vsyncpa [#allocation5], 0
    // Predicated region
    $region2: #{cnn1d_forward.7} parent=1 // pred_check
      _
    $region3: #{cnn1d_forward.7} parent=1 // pred_check_branch
      %12 = sbr.rel (0) target = $region5
    $region4: #{cnn1d_forward.7} parent=1 // pred_region
      _
    $region5: #{cnn1d_forward.7} parent=1 // pred_fallthru
      _
    // Predicated region
    $region6: #{cnn1d_forward.7} parent=1 // pred_check
      _
    $region7: #{cnn1d_forward.7} parent=1 // pred_check_branch
      %14 = sbr.rel (0) target = $region9
    $region8: #{cnn1d_forward.7} parent=1 // pred_region
      _
    $region9: #{cnn1d_forward.7} parent=1 // pred_fallthru
      _
    // Predicated region
    $region10: #{cnn1d_forward.7} parent=1 // pred_check
      _
    $region11: #{cnn1d_forward.7} parent=1 // pred_check_branch
      %16 = sbr.rel (0) target = $region13
    $region12: #{cnn1d_forward.7} parent=1 // pred_region
      %s18 = ssub.s32 10240, 10240
      %19 = vsyncadd [#allocation3], %s18
      %s20 = sshll.u32 [#allocation2], 4
      %s21 = int_to_ptr.vmem [resolvable:$true] %s20
      %26 = dma.hbm_to_vmem [thread:$0]  %s2, 10240, %s21, [#allocation3], 128, 128, 8
    $region13: #{cnn1d_forward.7} parent=1 // pred_fallthru
      _
    // Predicated region
    $region14: #{cnn1d_forward.7} parent=1 // pred_check
      _
    $region15: #{cnn1d_forward.7} parent=1 // pred_check_branch
      %28 = sbr.rel (0) target = $region17
    $region16: #{cnn1d_forward.7} parent=1 // pred_region
      %s30 = ssub.s32 16, 16
      %31 = vsyncadd [#allocation5], %s30
      %s33 = sshll.u32 [#allocation4], 4
      %s34 = int_to_ptr.vmem [resolvable:$true] %s33
      %36 = dma.hbm_to_vmem [thread:$0]  %s3, 16, %s34, [#allocation5]
    $region17: #{cnn1d_forward.7} parent=1 // pred_fallthru
      _
    // Predicated region
    $region18: #{cnn1d_forward.7} parent=1 // pred_check
      _
    $region19: #{cnn1d_forward.7} parent=1 // pred_check_branch
      %38 = sbr.rel (0) target = $region21
    $region20: #{cnn1d_forward.7} parent=1 // pred_region
      %39 = dma.done [#allocation3], 10240
    $region21: #{cnn1d_forward.7} parent=1 // pred_fallthru
      _
    // Predicated region
    $region22: #{cnn1d_forward.7} parent=1 // pred_check
      _
    $region23: #{cnn1d_forward.7} parent=1 // pred_check_branch
      %41 = sbr.rel (0) target = $region25
    $region24: #{cnn1d_forward.7} parent=1 // pred_region
      %42 = dma.done [#allocation5], 16
    $region25: #{cnn1d_forward.7} parent=1 // pred_fallthru
      _
    %v43 = vld [vmem:[%s0] sm:$0xff]
    %v44 = vld [vmem:[%s0 + $0x8] sm:$0xff]
    %v45 = vld [vmem:[%s0 + $0x10] sm:$0xff]
    %v46 = vld [vmem:[%s0 + $0x18] sm:$0xff]
    %v47 = vld [vmem:[%s0 + $0x20] sm:$0xff]
    %v48 = vld [vmem:[%s0 + $0x28] sm:$0xff]
    %v49 = vld [vmem:[%s0 + $0x30] sm:$0xff]
    %v50 = vld [vmem:[%s0 + $0x38] sm:$0xff]
    %v51 = vld [vmem:[%s0 + $0x40] sm:$0xff]
    %v52 = vld [vmem:[%s0 + $0x48] sm:$0xff]
    %v53 = vld [vmem:[%s0 + $0x50] sm:$0xff]
    %v54 = vld [vmem:[%s0 + $0x58] sm:$0xff]
    %v55 = vld [vmem:[%s0 + $0x60] sm:$0xff]
    %v56 = vld [vmem:[%s0 + $0x68] sm:$0xff]
    %v57 = vld [vmem:[%s0 + $0x70] sm:$0xff]
    %v58 = vld [vmem:[%s0 + $0x78] sm:$0xff]
    %v59 = vld [vmem:[%s0 + $0x80] sm:$0xff]
    %v60 = vld [vmem:[%s0 + $0x88] sm:$0xff]
    %v61 = vld [vmem:[%s0 + $0x90] sm:$0xff]
    %v62 = vld [vmem:[%s0 + $0x98] sm:$0xff]
    %v63 = vld [vmem:[%s0 + $0xa0] sm:$0xff]
    %v64 = vld [vmem:[%s0 + $0xa8] sm:$0xff]
    %v65 = vld [vmem:[%s0 + $0xb0] sm:$0xff]
    %v66 = vld [vmem:[%s0 + $0xb8] sm:$0xff]
    %v67 = vld [vmem:[%s0 + $0xc0] sm:$0xff]
    %v68 = vld [vmem:[%s0 + $0xc8] sm:$0xff]
    %v69 = vld [vmem:[%s0 + $0xd0] sm:$0xff]
    %v70 = vld [vmem:[%s0 + $0xd8] sm:$0xff]
    %v71 = vld [vmem:[%s0 + $0xe0] sm:$0xff]
    %v72 = vld [vmem:[%s0 + $0xe8] sm:$0xff]
    %v73 = vld [vmem:[%s0 + $0xf0] sm:$0xff]
    %v74 = vld [vmem:[%s0 + $0xf8] sm:$0xff]
    %v75 = vld [vmem:[%s0 + $0x100] sm:$0xff]
    %v76 = vld [vmem:[%s0 + $0x108] sm:$0xff]
    %v77 = vld [vmem:[%s0 + $0x110] sm:$0xff]
    %v78 = vld [vmem:[%s0 + $0x118] sm:$0xff]
    %v79 = vld [vmem:[%s0 + $0x120] sm:$0xff]
    %v80 = vld [vmem:[%s0 + $0x128] sm:$0xff]
    %v81 = vld [vmem:[%s0 + $0x130] sm:$0xff]
    %v82 = vld [vmem:[%s0 + $0x138] sm:$0xff]
    %v83 = vld [vmem:[%s0 + $0x140] sm:$0xff]
    %v84 = vld [vmem:[%s0 + $0x148] sm:$0xff]
    %v85 = vld [vmem:[%s0 + $0x150] sm:$0xff]
    %v86 = vld [vmem:[%s0 + $0x158] sm:$0xff]
    %v87 = vld [vmem:[%s0 + $0x160] sm:$0xff]
    %v88 = vld [vmem:[%s0 + $0x168] sm:$0xff]
    %v89 = vld [vmem:[%s0 + $0x170] sm:$0xff]
    %v90 = vld [vmem:[%s0 + $0x178] sm:$0xff]
    %v91 = vld [vmem:[%s0 + $0x180] sm:$0xff]
    %v92 = vld [vmem:[%s0 + $0x188] sm:$0xff]
    %v93 = vld [vmem:[%s0 + $0x190] sm:$0xff]
    %v94 = vld [vmem:[%s0 + $0x198] sm:$0xff]
    %v95 = vld [vmem:[%s0 + $0x1a0] sm:$0xff]
    %v96 = vld [vmem:[%s0 + $0x1a8] sm:$0xff]
    %v97 = vld [vmem:[%s0 + $0x1b0] sm:$0xff]
    %v98 = vld [vmem:[%s0 + $0x1b8] sm:$0xff]
    %v99 = vld [vmem:[%s0 + $0x1c0] sm:$0xff]
    %v100 = vld [vmem:[%s0 + $0x1c8] sm:$0xff]
    %v101 = vld [vmem:[%s0 + $0x1d0] sm:$0xff]
    %v102 = vld [vmem:[%s0 + $0x1d8] sm:$0xff]
    %v103 = vld [vmem:[%s0 + $0x1e0] sm:$0xff]
    %v104 = vld [vmem:[%s0 + $0x1e8] sm:$0xff]
    %v105 = vld [vmem:[%s0 + $0x1f0] sm:$0xff]
    %v106 = vld [vmem:[%s0 + $0x1f8] sm:$0xff]
    %v107 = vld [vmem:[%s0 + $0x200] sm:$0xff]
    %v108 = vld [vmem:[%s0 + $0x208] sm:$0xff]
    %v109 = vld [vmem:[%s0 + $0x210] sm:$0xff]
    %v110 = vld [vmem:[%s0 + $0x218] sm:$0xff]
    %v111 = vld [vmem:[%s0 + $0x220] sm:$0xff]
    %v112 = vld [vmem:[%s0 + $0x228] sm:$0xff]
    %v113 = vld [vmem:[%s0 + $0x230] sm:$0xff]
    %v114 = vld [vmem:[%s0 + $0x238] sm:$0xff]
    %v115 = vld [vmem:[%s0 + $0x240] sm:$0xff]
    %v116 = vld [vmem:[%s0 + $0x248] sm:$0xff]
    %v117 = vld [vmem:[%s0 + $0x250] sm:$0xff]
    %v118 = vld [vmem:[%s0 + $0x258] sm:$0xff]
    %v119 = vld [vmem:[%s0 + $0x260] sm:$0xff]
    %v120 = vld [vmem:[%s0 + $0x268] sm:$0xff]
    %v121 = vld [vmem:[%s0 + $0x270] sm:$0xff]
    %v122 = vld [vmem:[%s0 + $0x278] sm:$0xff]
    %v123 = vld [vmem:[%s0 + $0x280] sm:$0xff]
    %v124 = vld [vmem:[%s0 + $0x288] sm:$0xff]
    %v125 = vld [vmem:[%s0 + $0x290] sm:$0xff]
    %v126 = vld [vmem:[%s0 + $0x298] sm:$0xff]
    %v127 = vld [vmem:[%s0 + $0x2a0] sm:$0xff]
    %v128 = vld [vmem:[%s0 + $0x2a8] sm:$0xff]
    %v129 = vld [vmem:[%s0 + $0x2b0] sm:$0xff]
    %v130 = vld [vmem:[%s0 + $0x2b8] sm:$0xff]
    %v131 = vld [vmem:[%s0 + $0x2c0] sm:$0xff]
    %v132 = vld [vmem:[%s0 + $0x2c8] sm:$0xff]
    %v133 = vld [vmem:[%s0 + $0x2d0] sm:$0x3f]
    %v134 = vld [vmem:[%s0 + $0x2d8] sm:$0x3f]
    %v135 = vld [vmem:[%s0 + $0x2e0] sm:$0x3f]
    %v136 = vld [vmem:[%s0 + $0x2e8] sm:$0x3f]
    %v137 = vld [vmem:[%s0 + $0x2f0] sm:$0x3f]
    %v138 = vld [vmem:[#allocation2] sm:$0xff]
    %v139 = vld [vmem:[#allocation2 + $0x8] sm:$0xff]
    %v140 = vld [vmem:[#allocation2 + $0x10] sm:$0xff]
    %v141 = vld [vmem:[#allocation2 + $0x18] sm:$0xff]
    %v142 = vld [vmem:[#allocation2 + $0x20] sm:$0xff]
    %v143 = vld [vmem:[#allocation2 + $0x28] sm:$0xff]
    %v144 = vld [vmem:[#allocation2 + $0x30] sm:$0xff]
    %v145 = vld [vmem:[#allocation2 + $0x38] sm:$0xff]
    %v146 = vld [vmem:[#allocation2 + $0x40] sm:$0xff]
    %v147 = vld [vmem:[#allocation2 + $0x48] sm:$0xff]
    %v148 = vld [vmem:[#allocation2 + $0x50] sm:$0xff]
    %v149 = vld [vmem:[#allocation2 + $0x58] sm:$0xff]
    %v150 = vld [vmem:[#allocation2 + $0x60] sm:$0xff]
    %v151 = vld [vmem:[#allocation2 + $0x68] sm:$0xff]
    %v152 = vld [vmem:[#allocation2 + $0x70] sm:$0xff]
    %v153 = vld [vmem:[#allocation2 + $0x78] sm:$0xff]
    %v154 = vld [vmem:[#allocation2 + $0x80] sm:$0xff]
    %v155 = vld [vmem:[#allocation2 + $0x88] sm:$0xff]
    %v156 = vld [vmem:[#allocation2 + $0x90] sm:$0xff]
    %v157 = vld [vmem:[#allocation2 + $0x98] sm:$0xff]
    %v158 = vld [vmem:[#allocation2 + $0xa0] sm:$0xff]
    %v159 = vld [vmem:[#allocation2 + $0xa8] sm:$0xff]
    %v160 = vld [vmem:[#allocation2 + $0xb0] sm:$0xff]
    %v161 = vld [vmem:[#allocation2 + $0xb8] sm:$0xff]
    %v162 = vld [vmem:[#allocation2 + $0xc0] sm:$0xff]
    %v163 = vld [vmem:[#allocation2 + $0xc8] sm:$0xff]
    %v164 = vld [vmem:[#allocation2 + $0xd0] sm:$0xff]
    %v165 = vld [vmem:[#allocation2 + $0xd8] sm:$0xff]
    %v166 = vld [vmem:[#allocation2 + $0xe0] sm:$0xff]
    %v167 = vld [vmem:[#allocation2 + $0xe8] sm:$0xff]
    %v168 = vld [vmem:[#allocation2 + $0xf0] sm:$0xff]
    %v169 = vld [vmem:[#allocation2 + $0xf8] sm:$0xff]
    %v170 = vld [vmem:[#allocation2 + $0x100] sm:$0xff]
    %v171 = vld [vmem:[#allocation2 + $0x108] sm:$0xff]
    %v172 = vld [vmem:[#allocation2 + $0x110] sm:$0xff]
    %v173 = vld [vmem:[#allocation2 + $0x118] sm:$0xff]
    %v174 = vld [vmem:[#allocation2 + $0x120] sm:$0xff]
    %v175 = vld [vmem:[#allocation2 + $0x128] sm:$0xff]
    %v176 = vld [vmem:[#allocation2 + $0x130] sm:$0xff]
    %v177 = vld [vmem:[#allocation2 + $0x138] sm:$0xff]
    %v178 = vld [vmem:[#allocation2 + $0x140] sm:$0xff]
    %v179 = vld [vmem:[#allocation2 + $0x148] sm:$0xff]
    %v180 = vld [vmem:[#allocation2 + $0x150] sm:$0xff]
    %v181 = vld [vmem:[#allocation2 + $0x158] sm:$0xff]
    %v182 = vld [vmem:[#allocation2 + $0x160] sm:$0xff]
    %v183 = vld [vmem:[#allocation2 + $0x168] sm:$0xff]
    %v184 = vld [vmem:[#allocation2 + $0x170] sm:$0xff]
    %v185 = vld [vmem:[#allocation2 + $0x178] sm:$0xff]
    %v186 = vld [vmem:[#allocation2 + $0x180] sm:$0xff]
    %v187 = vld [vmem:[#allocation2 + $0x188] sm:$0xff]
    %v188 = vld [vmem:[#allocation2 + $0x190] sm:$0xff]
    %v189 = vld [vmem:[#allocation2 + $0x198] sm:$0xff]
    %v190 = vld [vmem:[#allocation2 + $0x1a0] sm:$0xff]
    %v191 = vld [vmem:[#allocation2 + $0x1a8] sm:$0xff]
    %v192 = vld [vmem:[#allocation2 + $0x1b0] sm:$0xff]
    %v193 = vld [vmem:[#allocation2 + $0x1b8] sm:$0xff]
    %v194 = vld [vmem:[#allocation2 + $0x1c0] sm:$0xff]
    %v195 = vld [vmem:[#allocation2 + $0x1c8] sm:$0xff]
    %v196 = vld [vmem:[#allocation2 + $0x1d0] sm:$0xff]
    %v197 = vld [vmem:[#allocation2 + $0x1d8] sm:$0xff]
    %v198 = vld [vmem:[#allocation2 + $0x1e0] sm:$0xff]
    %v199 = vld [vmem:[#allocation2 + $0x1e8] sm:$0xff]
    %v200 = vld [vmem:[#allocation2 + $0x1f0] sm:$0xff]
    %v201 = vld [vmem:[#allocation2 + $0x1f8] sm:$0xff]
    %v202 = vld [vmem:[#allocation2 + $0x200] sm:$0xff]
    %v203 = vld [vmem:[#allocation2 + $0x208] sm:$0xff]
    %v204 = vld [vmem:[#allocation2 + $0x210] sm:$0xff]
    %v205 = vld [vmem:[#allocation2 + $0x218] sm:$0xff]
    %v206 = vld [vmem:[#allocation2 + $0x220] sm:$0xff]
    %v207 = vld [vmem:[#allocation2 + $0x228] sm:$0xff]
    %v208 = vld [vmem:[#allocation2 + $0x230] sm:$0xff]
    %v209 = vld [vmem:[#allocation2 + $0x238] sm:$0xff]
    %v210 = vld [vmem:[#allocation2 + $0x240] sm:$0xff]
    %v211 = vld [vmem:[#allocation2 + $0x248] sm:$0xff]
    %v212 = vld [vmem:[#allocation2 + $0x250] sm:$0xff]
    %v213 = vld [vmem:[#allocation2 + $0x258] sm:$0xff]
    %v214 = vld [vmem:[#allocation2 + $0x260] sm:$0xff]
    %v215 = vld [vmem:[#allocation2 + $0x268] sm:$0xff]
    %v216 = vld [vmem:[#allocation2 + $0x270] sm:$0xff]
    %v217 = vld [vmem:[#allocation2 + $0x278] sm:$0xff]
    %218 = vmatprep.subr.mxu0 0.0
    %219 = vmatpush1.msra.mxu0 %v138
    %220 = vmatprep.subr.mxu0 0.0
    %221 = vmatpush1.msra.mxu0 %v139
    %222 = vmatprep.subr.mxu0 0.0
    %223 = vmatpush1.msra.mxu0 %v140
    %224 = vmatprep.subr.mxu0 0.0
    %225 = vmatpush1.msra.mxu0 %v141
    %226 = vmatprep.subr.mxu0 0.0
    %227 = vmatpush1.msra.mxu0 %v142
    %228 = vmatprep.subr.mxu0 0.0
    %229 = vmatpush1.msra.mxu0 %v143
    %230 = vmatprep.subr.mxu0 0.0
    %231 = vmatpush1.msra.mxu0 %v144
    %232 = vmatprep.subr.mxu0 0.0
    %233 = vmatpush1.msra.mxu0 %v145
    %234 = vmatprep.subr.mxu0 0.0
    %235 = vmatpush1.msra.mxu0 %v146
    %236 = vmatprep.subr.mxu0 0.0
    %237 = vmatpush1.msra.mxu0 %v147
    %238 = vmatprep.subr.mxu0 0.0
    %239 = vmatpush1.msra.mxu0 %v148
    %240 = vmatprep.subr.mxu0 0.0
    %241 = vmatpush1.msra.mxu0 %v149
    %242 = vmatprep.subr.mxu0 0.0
    %243 = vmatpush1.msra.mxu0 %v150
    %244 = vmatprep.subr.mxu0 0.0
    %245 = vmatpush1.msra.mxu0 %v151
    %246 = vmatprep.subr.mxu0 0.0
    %247 = vmatpush1.msra.mxu0 %v152
    %248 = vmatprep.subr.mxu0 0.0
    %249 = vmatpush1.msra.mxu0 %v153
    %250 = vmatprep.subr.mxu0 0.0
    %251 = vmatpush1.msra.mxu0 %v154
    %252 = vmatprep.subr.mxu0 0.0
    %253 = vmatpush1.msra.mxu0 %v155
    %254 = vmatprep.subr.mxu0 0.0
    %255 = vmatpush1.msra.mxu0 %v156
    %256 = vmatprep.subr.mxu0 0.0
    %257 = vmatpush1.msra.mxu0 %v157
    %258 = vmatprep.subr.mxu0 0.0
    %259 = vmatpush1.msra.mxu0 %v158
    %260 = vmatprep.subr.mxu0 0.0
    %261 = vmatpush1.msra.mxu0 %v159
    %262 = vmatprep.subr.mxu0 0.0
    %263 = vmatpush1.msra.mxu0 %v160
    %264 = vmatprep.subr.mxu0 0.0
    %265 = vmatpush1.msra.mxu0 %v161
    %266 = vmatprep.subr.mxu0 0.0
    %267 = vmatpush1.msra.mxu0 %v162
    %268 = vmatprep.subr.mxu0 0.0
    %269 = vmatpush1.msra.mxu0 %v163
    %270 = vmatprep.subr.mxu0 0.0
    %271 = vmatpush1.msra.mxu0 %v164
    %272 = vmatprep.subr.mxu0 0.0
    %273 = vmatpush1.msra.mxu0 %v165
    %274 = vmatprep.subr.mxu0 0.0
    %275 = vmatpush1.msra.mxu0 %v166
    %276 = vmatprep.subr.mxu0 0.0
    %277 = vmatpush1.msra.mxu0 %v167
    %278 = vmatprep.subr.mxu0 0.0
    %279 = vmatpush1.msra.mxu0 %v168
    %280 = vmatprep.subr.mxu0 0.0
    %281 = vmatpush1.msra.mxu0 %v169
    %282 = vmatprep.mubr.f32.mxu0 %v44
    %283 = vmatmul.mubr.f32.gmra.mrb[0].mxu0 %v43
    %v284 = vpop.f32.mrb[0].mxu0
    %v285 = vadd.f32 0.0, %v284
    %v286 = vpop.f32.mrb[0].mxu0
    %287 = vmatprep.mubr.f32.mxu0 %v49
    %288 = vmatmul.mubr.f32.gmra.mrb[0].mxu0 %v48
    %v289 = vpop.f32.mrb[0].mxu0
    %v290 = vadd.f32 0.0, %v289
    %v291 = vpop.f32.mrb[0].mxu0
    %292 = vmatprep.mubr.f32.mxu0 %v54
    %293 = vmatmul.mubr.f32.gmra.mrb[0].mxu0 %v53
    %v294 = vpop.f32.mrb[0].mxu0
    %v295 = vadd.f32 0.0, %v294
    %v296 = vpop.f32.mrb[0].mxu0
    %297 = vmatprep.mubr.f32.mxu0 %v59
    %298 = vmatmul.mubr.f32.gmra.mrb[0].mxu0 %v58
    %v299 = vpop.f32.mrb[0].mxu0
    %v300 = vadd.f32 0.0, %v299
    %v301 = vpop.f32.mrb[0].mxu0
    %302 = vmatprep.mubr.f32.mxu0 %v64
    %303 = vmatmul.mubr.f32.gmra.mrb[0].mxu0 %v63
    %v304 = vpop.f32.mrb[0].mxu0
    %v305 = vadd.f32 0.0, %v304
    %v306 = vpop.f32.mrb[0].mxu0
    %307 = vmatprep.mubr.f32.mxu0 %v69
    %308 = vmatmul.mubr.f32.gmra.mrb[0].mxu0 %v68
    %v309 = vpop.f32.mrb[0].mxu0
    %v310 = vadd.f32 0.0, %v309
    %v311 = vpop.f32.mrb[0].mxu0
    %312 = vmatprep.mubr.f32.mxu0 %v74
    %313 = vmatmul.mubr.f32.gmra.mrb[0].mxu0 %v73
    %v314 = vpop.f32.mrb[0].mxu0
    %v315 = vadd.f32 0.0, %v314
    %v316 = vpop.f32.mrb[0].mxu0
    %317 = vmatprep.mubr.f32.mxu0 %v79
    %318 = vmatmul.mubr.f32.gmra.mrb[0].mxu0 %v78
    %v319 = vpop.f32.mrb[0].mxu0
    %v320 = vadd.f32 0.0, %v319
    %v321 = vpop.f32.mrb[0].mxu0
    %322 = vmatprep.mubr.f32.mxu0 %v84
    %323 = vmatmul.mubr.f32.gmra.mrb[0].mxu0 %v83
    %v324 = vpop.f32.mrb[0].mxu0
    %v325 = vadd.f32 0.0, %v324
    %v326 = vpop.f32.mrb[0].mxu0
    %327 = vmatprep.mubr.f32.mxu0 %v89
    %328 = vmatmul.mubr.f32.gmra.mrb[0].mxu0 %v88
    %v329 = vpop.f32.mrb[0].mxu0
    %v330 = vadd.f32 0.0, %v329
    %v331 = vpop.f32.mrb[0].mxu0
    %332 = vmatprep.mubr.f32.mxu0 %v94
    %333 = vmatmul.mubr.f32.gmra.mrb[0].mxu0 %v93
    %v334 = vpop.f32.mrb[0].mxu0
    %v335 = vadd.f32 0.0, %v334
    %v336 = vpop.f32.mrb[0].mxu0
    %337 = vmatprep.mubr.f32.mxu0 %v99
    %338 = vmatmul.mubr.f32.gmra.mrb[0].mxu0 %v98
    %v339 = vpop.f32.mrb[0].mxu0
    %v340 = vadd.f32 0.0, %v339
    %v341 = vpop.f32.mrb[0].mxu0
    %342 = vmatprep.mubr.f32.mxu0 %v104
    %343 = vmatmul.mubr.f32.gmra.mrb[0].mxu0 %v103
    %v344 = vpop.f32.mrb[0].mxu0
    %v345 = vadd.f32 0.0, %v344
    %v346 = vpop.f32.mrb[0].mxu0
    %347 = vmatprep.mubr.f32.mxu0 %v109
    %348 = vmatmul.mubr.f32.gmra.mrb[0].mxu0 %v108
    %v349 = vpop.f32.mrb[0].mxu0
    %v350 = vadd.f32 0.0, %v349
    %v351 = vpop.f32.mrb[0].mxu0
    %352 = vmatprep.mubr.f32.mxu0 %v114
    %353 = vmatmul.mubr.f32.gmra.mrb[0].mxu0 %v113
    %v354 = vpop.f32.mrb[0].mxu0
    %v355 = vadd.f32 0.0, %v354
    %v356 = vpop.f32.mrb[0].mxu0
    %357 = vmatprep.mubr.f32.mxu0 %v119
    %358 = vmatmul.mubr.f32.gmra.mrb[0].mxu0 %v118
    %v359 = vpop.f32.mrb[0].mxu0
    %v360 = vadd.f32 0.0, %v359
    %v361 = vpop.f32.mrb[0].mxu0
    %362 = vmatprep.mubr.f32.mxu0 %v124
    %363 = vmatmul.mubr.f32.gmra.mrb[0].mxu0 %v123
    %v364 = vpop.f32.mrb[0].mxu0
    %v365 = vadd.f32 0.0, %v364
    %v366 = vpop.f32.mrb[0].mxu0
    %367 = vmatprep.mubr.f32.mxu0 %v129
    %368 = vmatmul.mubr.f32.gmra.mrb[0].mxu0 %v128
    %v369 = vpop.f32.mrb[0].mxu0
    %v370 = vadd.f32 0.0, %v369
    %v371 = vpop.f32.mrb[0].mxu0
    %372 = vmatprep.mubr.f32.mxu0 %v134
    %373 = vmatmul.mubr.f32.gmra.mrb[0].mxu0 %v133
    %v374 = vpop.f32.mrb[0].mxu0
    %v375 = vadd.f32 0.0, %v374
    %v376 = vpop.f32.mrb[0].mxu0
    %377 = vdwg.mxu0
    %378 = vmatprep.subr.mxu0 0.0
    %379 = vmatpush1.msra.mxu0 %v170
    %380 = vmatprep.subr.mxu0 0.0
    %381 = vmatpush1.msra.mxu0 %v171
    %382 = vmatprep.subr.mxu0 0.0
    %383 = vmatpush1.msra.mxu0 %v172
    %384 = vmatprep.subr.mxu0 0.0
    %385 = vmatpush1.msra.mxu0 %v173
    %386 = vmatprep.subr.mxu0 0.0
    %387 = vmatpush1.msra.mxu0 %v174
    %388 = vmatprep.subr.mxu0 0.0
    %389 = vmatpush1.msra.mxu0 %v175
    %390 = vmatprep.subr.mxu0 0.0
    %391 = vmatpush1.msra.mxu0 %v176
    %392 = vmatprep.subr.mxu0 0.0
    %393 = vmatpush1.msra.mxu0 %v177
    %394 = vmatprep.subr.mxu0 0.0
    %395 = vmatpush1.msra.mxu0 %v178
    %396 = vmatprep.subr.mxu0 0.0
    %397 = vmatpush1.msra.mxu0 %v179
    %398 = vmatprep.subr.mxu0 0.0
    %399 = vmatpush1.msra.mxu0 %v180
    %400 = vmatprep.subr.mxu0 0.0
    %401 = vmatpush1.msra.mxu0 %v181
    %402 = vmatprep.subr.mxu0 0.0
    %403 = vmatpush1.msra.mxu0 %v182
    %404 = vmatprep.subr.mxu0 0.0
    %405 = vmatpush1.msra.mxu0 %v183
    %406 = vmatprep.subr.mxu0 0.0
    %407 = vmatpush1.msra.mxu0 %v184
    %408 = vmatprep.subr.mxu0 0.0
    %409 = vmatpush1.msra.mxu0 %v185
    %410 = vmatprep.subr.mxu0 0.0
    %411 = vmatpush1.msra.mxu0 %v186
    %412 = vmatprep.subr.mxu0 0.0
    %413 = vmatpush1.msra.mxu0 %v187
    %414 = vmatprep.subr.mxu0 0.0
    %415 = vmatpush1.msra.mxu0 %v188
    %416 = vmatprep.subr.mxu0 0.0
    %417 = vmatpush1.msra.mxu0 %v189
    %418 = vmatprep.subr.mxu0 0.0
    %419 = vmatpush1.msra.mxu0 %v190
    %420 = vmatprep.subr.mxu0 0.0
    %421 = vmatpush1.msra.mxu0 %v191
    %422 = vmatprep.subr.mxu0 0.0
    %423 = vmatpush1.msra.mxu0 %v192
    %424 = vmatprep.subr.mxu0 0.0
    %425 = vmatpush1.msra.mxu0 %v193
    %426 = vmatprep.subr.mxu0 0.0
    %427 = vmatpush1.msra.mxu0 %v194
    %428 = vmatprep.subr.mxu0 0.0
    %429 = vmatpush1.msra.mxu0 %v195
    %430 = vmatprep.subr.mxu0 0.0
    %431 = vmatpush1.msra.mxu0 %v196
    %432 = vmatprep.subr.mxu0 0.0
    %433 = vmatpush1.msra.mxu0 %v197
    %434 = vmatprep.subr.mxu0 0.0
    %435 = vmatpush1.msra.mxu0 %v198
    %436 = vmatprep.subr.mxu0 0.0
    %437 = vmatpush1.msra.mxu0 %v199
    %438 = vmatprep.subr.mxu0 0.0
    %439 = vmatpush1.msra.mxu0 %v200
    %440 = vmatprep.subr.mxu0 0.0
    %441 = vmatpush1.msra.mxu0 %v201
    %442 = vmatprep.mubr.f32.mxu0 %v46
    %443 = vmatmul.mubr.f32.gmra.mrb[0].mxu0 %v45
    %v444 = vpop.f32.mrb[0].mxu0
    %v445 = vadd.f32 %v285, %v444
    %v446 = vpop.f32.mrb[0].mxu0
    %447 = vmatprep.mubr.f32.mxu0 %v51
    %448 = vmatmul.mubr.f32.gmra.mrb[0].mxu0 %v50
    %v449 = vpop.f32.mrb[0].mxu0
    %v450 = vadd.f32 %v290, %v449
    %v451 = vpop.f32.mrb[0].mxu0
    %452 = vmatprep.mubr.f32.mxu0 %v56
    %453 = vmatmul.mubr.f32.gmra.mrb[0].mxu0 %v55
    %v454 = vpop.f32.mrb[0].mxu0
    %v455 = vadd.f32 %v295, %v454
    %v456 = vpop.f32.mrb[0].mxu0
    %457 = vmatprep.mubr.f32.mxu0 %v61
    %458 = vmatmul.mubr.f32.gmra.mrb[0].mxu0 %v60
    %v459 = vpop.f32.mrb[0].mxu0
    %v460 = vadd.f32 %v300, %v459
    %v461 = vpop.f32.mrb[0].mxu0
    %462 = vmatprep.mubr.f32.mxu0 %v66
    %463 = vmatmul.mubr.f32.gmra.mrb[0].mxu0 %v65
    %v464 = vpop.f32.mrb[0].mxu0
    %v465 = vadd.f32 %v305, %v464
    %v466 = vpop.f32.mrb[0].mxu0
    %467 = vmatprep.mubr.f32.mxu0 %v71
    %468 = vmatmul.mubr.f32.gmra.mrb[0].mxu0 %v70
    %v469 = vpop.f32.mrb[0].mxu0
    %v470 = vadd.f32 %v310, %v469
    %v471 = vpop.f32.mrb[0].mxu0
    %472 = vmatprep.mubr.f32.mxu0 %v76
    %473 = vmatmul.mubr.f32.gmra.mrb[0].mxu0 %v75
    %v474 = vpop.f32.mrb[0].mxu0
    %v475 = vadd.f32 %v315, %v474
    %v476 = vpop.f32.mrb[0].mxu0
    %477 = vmatprep.mubr.f32.mxu0 %v81
    %478 = vmatmul.mubr.f32.gmra.mrb[0].mxu0 %v80
    %v479 = vpop.f32.mrb[0].mxu0
    %v480 = vadd.f32 %v320, %v479
    %v481 = vpop.f32.mrb[0].mxu0
    %482 = vmatprep.mubr.f32.mxu0 %v86
    %483 = vmatmul.mubr.f32.gmra.mrb[0].mxu0 %v85
    %v484 = vpop.f32.mrb[0].mxu0
    %v485 = vadd.f32 %v325, %v484
    %v486 = vpop.f32.mrb[0].mxu0
    %487 = vmatprep.mubr.f32.mxu0 %v91
    %488 = vmatmul.mubr.f32.gmra.mrb[0].mxu0 %v90
    %v489 = vpop.f32.mrb[0].mxu0
    %v490 = vadd.f32 %v330, %v489
    %v491 = vpop.f32.mrb[0].mxu0
    %492 = vmatprep.mubr.f32.mxu0 %v96
    %493 = vmatmul.mubr.f32.gmra.mrb[0].mxu0 %v95
    %v494 = vpop.f32.mrb[0].mxu0
    %v495 = vadd.f32 %v335, %v494
    %v496 = vpop.f32.mrb[0].mxu0
    %497 = vmatprep.mubr.f32.mxu0 %v101
    %498 = vmatmul.mubr.f32.gmra.mrb[0].mxu0 %v100
    %v499 = vpop.f32.mrb[0].mxu0
    %v500 = vadd.f32 %v340, %v499
    %v501 = vpop.f32.mrb[0].mxu0
    %502 = vmatprep.mubr.f32.mxu0 %v106
    %503 = vmatmul.mubr.f32.gmra.mrb[0].mxu0 %v105
    %v504 = vpop.f32.mrb[0].mxu0
    %v505 = vadd.f32 %v345, %v504
    %v506 = vpop.f32.mrb[0].mxu0
    %507 = vmatprep.mubr.f32.mxu0 %v111
    %508 = vmatmul.mubr.f32.gmra.mrb[0].mxu0 %v110
    %v509 = vpop.f32.mrb[0].mxu0
    %v510 = vadd.f32 %v350, %v509
    %v511 = vpop.f32.mrb[0].mxu0
    %512 = vmatprep.mubr.f32.mxu0 %v116
    %513 = vmatmul.mubr.f32.gmra.mrb[0].mxu0 %v115
    %v514 = vpop.f32.mrb[0].mxu0
    %v515 = vadd.f32 %v355, %v514
    %v516 = vpop.f32.mrb[0].mxu0
    %517 = vmatprep.mubr.f32.mxu0 %v121
    %518 = vmatmul.mubr.f32.gmra.mrb[0].mxu0 %v120
    %v519 = vpop.f32.mrb[0].mxu0
    %v520 = vadd.f32 %v360, %v519
    %v521 = vpop.f32.mrb[0].mxu0
    %522 = vmatprep.mubr.f32.mxu0 %v126
    %523 = vmatmul.mubr.f32.gmra.mrb[0].mxu0 %v125
    %v524 = vpop.f32.mrb[0].mxu0
    %v525 = vadd.f32 %v365, %v524
    %v526 = vpop.f32.mrb[0].mxu0
    %527 = vmatprep.mubr.f32.mxu0 %v131
    %528 = vmatmul.mubr.f32.gmra.mrb[0].mxu0 %v130
    %v529 = vpop.f32.mrb[0].mxu0
    %v530 = vadd.f32 %v370, %v529
    %v531 = vpop.f32.mrb[0].mxu0
    %532 = vmatprep.mubr.f32.mxu0 %v136
    %533 = vmatmul.mubr.f32.gmra.mrb[0].mxu0 %v135
    %v534 = vpop.f32.mrb[0].mxu0
    %v535 = vadd.f32 %v375, %v534
    %v536 = vpop.f32.mrb[0].mxu0
    %537 = vdwg.mxu0
    %538 = vmatprep.subr.mxu0 0.0
    %539 = vmatpush1.msra.mxu0 %v202
    %540 = vmatprep.subr.mxu0 0.0
    %541 = vmatpush1.msra.mxu0 %v203
    %542 = vmatprep.subr.mxu0 0.0
    %543 = vmatpush1.msra.mxu0 %v204
    %544 = vmatprep.subr.mxu0 0.0
    %545 = vmatpush1.msra.mxu0 %v205
    %546 = vmatprep.subr.mxu0 0.0
    %547 = vmatpush1.msra.mxu0 %v206
    %548 = vmatprep.subr.mxu0 0.0
    %549 = vmatpush1.msra.mxu0 %v207
    %550 = vmatprep.subr.mxu0 0.0
    %551 = vmatpush1.msra.mxu0 %v208
    %552 = vmatprep.subr.mxu0 0.0
    %553 = vmatpush1.msra.mxu0 %v209
    %554 = vmatprep.subr.mxu0 0.0
    %555 = vmatpush1.msra.mxu0 %v210
    %556 = vmatprep.subr.mxu0 0.0
    %557 = vmatpush1.msra.mxu0 %v211
    %558 = vmatprep.subr.mxu0 0.0
    %559 = vmatpush1.msra.mxu0 %v212
    %560 = vmatprep.subr.mxu0 0.0
    %561 = vmatpush1.msra.mxu0 %v213
    %562 = vmatprep.subr.mxu0 0.0
    %563 = vmatpush1.msra.mxu0 %v214
    %564 = vmatprep.subr.mxu0 0.0
    %565 = vmatpush1.msra.mxu0 %v215
    %566 = vmatprep.subr.mxu0 0.0
    %567 = vmatpush1.msra.mxu0 %v216
    %568 = vmatprep.subr.mxu0 0.0
    %569 = vmatpush1.msra.mxu0 %v217
    %570 = vmatprep.subr.mxu0 0.0
    %571 = vmatpush1.msra.mxu0 0.0
    %572 = vmatprep.subr.mxu0 0.0
    %573 = vmatpush1.msra.mxu0 0.0
    %574 = vmatprep.subr.mxu0 0.0
    %575 = vmatpush1.msra.mxu0 0.0
    %576 = vmatprep.subr.mxu0 0.0
    %577 = vmatpush1.msra.mxu0 0.0
    %578 = vmatprep.subr.mxu0 0.0
    %579 = vmatpush1.msra.mxu0 0.0
    %580 = vmatprep.subr.mxu0 0.0
    %581 = vmatpush1.msra.mxu0 0.0
    %582 = vmatprep.subr.mxu0 0.0
    %583 = vmatpush1.msra.mxu0 0.0
    %584 = vmatprep.subr.mxu0 0.0
    %585 = vmatpush1.msra.mxu0 0.0
    %586 = vmatprep.subr.mxu0 0.0
    %587 = vmatpush1.msra.mxu0 0.0
    %588 = vmatprep.subr.mxu0 0.0
    %589 = vmatpush1.msra.mxu0 0.0
    %590 = vmatprep.subr.mxu0 0.0
    %591 = vmatpush1.msra.mxu0 0.0
    %592 = vmatprep.subr.mxu0 0.0
    %593 = vmatpush1.msra.mxu0 0.0
    %594 = vmatprep.subr.mxu0 0.0
    %595 = vmatpush1.msra.mxu0 0.0
    %596 = vmatprep.subr.mxu0 0.0
    %597 = vmatpush1.msra.mxu0 0.0
    %598 = vmatprep.subr.mxu0 0.0
    %599 = vmatpush1.msra.mxu0 0.0
    %600 = vmatprep.subr.mxu0 0.0
    %601 = vmatpush1.msra.mxu0 0.0
    %602 = vmatprep.mubr.f32.mxu0 0.0
    %603 = vmatmul.mubr.f32.gmra.mrb[0].mxu0 %v47
    %v604 = vpop.f32.mrb[0].mxu0
    %v605 = vadd.f32 %v445, %v604
    %v606 = vpop.f32.mrb[0].mxu0
    %607 = vmatprep.mubr.f32.mxu0 0.0
    %608 = vmatmul.mubr.f32.gmra.mrb[0].mxu0 %v52
    %v609 = vpop.f32.mrb[0].mxu0
    %v610 = vadd.f32 %v450, %v609
    %v611 = vpop.f32.mrb[0].mxu0
    %612 = vmatprep.mubr.f32.mxu0 0.0
    %613 = vmatmul.mubr.f32.gmra.mrb[0].mxu0 %v57
    %v614 = vpop.f32.mrb[0].mxu0
    %v615 = vadd.f32 %v455, %v614
    %v616 = vpop.f32.mrb[0].mxu0
    %617 = vmatprep.mubr.f32.mxu0 0.0
    %618 = vmatmul.mubr.f32.gmra.mrb[0].mxu0 %v62
    %v619 = vpop.f32.mrb[0].mxu0
    %v620 = vadd.f32 %v460, %v619
    %v621 = vpop.f32.mrb[0].mxu0
    %622 = vmatprep.mubr.f32.mxu0 0.0
    %623 = vmatmul.mubr.f32.gmra.mrb[0].mxu0 %v67
    %v624 = vpop.f32.mrb[0].mxu0
    %v625 = vadd.f32 %v465, %v624
    %v626 = vpop.f32.mrb[0].mxu0
    %627 = vmatprep.mubr.f32.mxu0 0.0
    %628 = vmatmul.mubr.f32.gmra.mrb[0].mxu0 %v72
    %v629 = vpop.f32.mrb[0].mxu0
    %v630 = vadd.f32 %v470, %v629
    %v631 = vpop.f32.mrb[0].mxu0
    %632 = vmatprep.mubr.f32.mxu0 0.0
    %633 = vmatmul.mubr.f32.gmra.mrb[0].mxu0 %v77
    %v634 = vpop.f32.mrb[0].mxu0
    %v635 = vadd.f32 %v475, %v634
    %v636 = vpop.f32.mrb[0].mxu0
    %637 = vmatprep.mubr.f32.mxu0 0.0
    %638 = vmatmul.mubr.f32.gmra.mrb[0].mxu0 %v82
    %v639 = vpop.f32.mrb[0].mxu0
    %v640 = vadd.f32 %v480, %v639
    %v641 = vpop.f32.mrb[0].mxu0
    %642 = vmatprep.mubr.f32.mxu0 0.0
    %643 = vmatmul.mubr.f32.gmra.mrb[0].mxu0 %v87
    %v644 = vpop.f32.mrb[0].mxu0
    %v645 = vadd.f32 %v485, %v644
    %v646 = vpop.f32.mrb[0].mxu0
    %647 = vmatprep.mubr.f32.mxu0 0.0
    %648 = vmatmul.mubr.f32.gmra.mrb[0].mxu0 %v92
    %v649 = vpop.f32.mrb[0].mxu0
    %v650 = vadd.f32 %v490, %v649
    %v651 = vpop.f32.mrb[0].mxu0
    %652 = vmatprep.mubr.f32.mxu0 0.0
    %653 = vmatmul.mubr.f32.gmra.mrb[0].mxu0 %v97
    %v654 = vpop.f32.mrb[0].mxu0
    %v655 = vadd.f32 %v495, %v654
    %v656 = vpop.f32.mrb[0].mxu0
    %657 = vmatprep.mubr.f32.mxu0 0.0
    %658 = vmatmul.mubr.f32.gmra.mrb[0].mxu0 %v102
    %v659 = vpop.f32.mrb[0].mxu0
    %v660 = vadd.f32 %v500, %v659
    %v661 = vpop.f32.mrb[0].mxu0
    %662 = vmatprep.mubr.f32.mxu0 0.0
    %663 = vmatmul.mubr.f32.gmra.mrb[0].mxu0 %v107
    %v664 = vpop.f32.mrb[0].mxu0
    %v665 = vadd.f32 %v505, %v664
    %v666 = vpop.f32.mrb[0].mxu0
    %667 = vmatprep.mubr.f32.mxu0 0.0
    %668 = vmatmul.mubr.f32.gmra.mrb[0].mxu0 %v112
    %v669 = vpop.f32.mrb[0].mxu0
    %v670 = vadd.f32 %v510, %v669
    %v671 = vpop.f32.mrb[0].mxu0
    %672 = vmatprep.mubr.f32.mxu0 0.0
    %673 = vmatmul.mubr.f32.gmra.mrb[0].mxu0 %v117
    %v674 = vpop.f32.mrb[0].mxu0
    %v675 = vadd.f32 %v515, %v674
    %v676 = vpop.f32.mrb[0].mxu0
    %677 = vmatprep.mubr.f32.mxu0 0.0
    %678 = vmatmul.mubr.f32.gmra.mrb[0].mxu0 %v122
    %v679 = vpop.f32.mrb[0].mxu0
    %v680 = vadd.f32 %v520, %v679
    %v681 = vpop.f32.mrb[0].mxu0
    %682 = vmatprep.mubr.f32.mxu0 0.0
    %683 = vmatmul.mubr.f32.gmra.mrb[0].mxu0 %v127
    %v684 = vpop.f32.mrb[0].mxu0
    %v685 = vadd.f32 %v525, %v684
    %v686 = vpop.f32.mrb[0].mxu0
    %687 = vmatprep.mubr.f32.mxu0 0.0
    %688 = vmatmul.mubr.f32.gmra.mrb[0].mxu0 %v132
    %v689 = vpop.f32.mrb[0].mxu0
    %v690 = vadd.f32 %v530, %v689
    %v691 = vpop.f32.mrb[0].mxu0
    %692 = vmatprep.mubr.f32.mxu0 0.0
    %693 = vmatmul.mubr.f32.gmra.mrb[0].mxu0 %v137
    %v694 = vpop.f32.mrb[0].mxu0
    %v695 = vadd.f32 %v535, %v694
    %v696 = vpop.f32.mrb[0].mxu0
    %697 = vdwg.mxu0
    %v698 = vld [vmem:[%s1] sm:$0xff]
    %v699 = vld [vmem:[%s1 + $0x8] sm:$0xff]
    %v700 = vld [vmem:[%s1 + $0x10] sm:$0xff]
    %v701 = vld [vmem:[%s1 + $0x18] sm:$0xff]
    %v702 = vld [vmem:[%s1 + $0x20] sm:$0xff]
    %v703 = vld [vmem:[%s1 + $0x28] sm:$0xff]
    %v704 = vld [vmem:[%s1 + $0x30] sm:$0xff]
    %v705 = vld [vmem:[%s1 + $0x38] sm:$0xff]
    %v706 = vld [vmem:[%s1 + $0x40] sm:$0xff]
    %v707 = vld [vmem:[%s1 + $0x48] sm:$0xff]
    %v708 = vld [vmem:[%s1 + $0x50] sm:$0xff]
    %v709 = vld [vmem:[%s1 + $0x58] sm:$0xff]
    %v710 = vld [vmem:[%s1 + $0x60] sm:$0xff]
    %v711 = vld [vmem:[%s1 + $0x68] sm:$0xff]
    %v712 = vld [vmem:[%s1 + $0x70] sm:$0xff]
    %v713 = vld [vmem:[%s1 + $0x78] sm:$0xff]
    %v714 = vld [vmem:[%s1 + $0x80] sm:$0xff]
    %v715 = vld [vmem:[%s1 + $0x88] sm:$0xff]
    %v716 = vld [vmem:[%s1 + $0x90] sm:$0xff]
    %v717 = vld [vmem:[%s1 + $0x98] sm:$0xff]
    %v718 = vld [vmem:[%s1 + $0xa0] sm:$0xff]
    %v719 = vld [vmem:[%s1 + $0xa8] sm:$0xff]
    %v720 = vld [vmem:[%s1 + $0xb0] sm:$0xff]
    %v721 = vld [vmem:[%s1 + $0xb8] sm:$0xff]
    %v722 = vld [vmem:[%s1 + $0xc0] sm:$0xff]
    %v723 = vld [vmem:[%s1 + $0xc8] sm:$0xff]
    %v724 = vld [vmem:[%s1 + $0xd0] sm:$0xff]
    %v725 = vld [vmem:[%s1 + $0xd8] sm:$0xff]
    %v726 = vld [vmem:[%s1 + $0xe0] sm:$0xff]
    %v727 = vld [vmem:[%s1 + $0xe8] sm:$0xff]
    %v728 = vld [vmem:[%s1 + $0xf0] sm:$0xff]
    %v729 = vld [vmem:[%s1 + $0xf8] sm:$0xff]
    %v730 = vld [vmem:[%s1 + $0x100] sm:$0xff]
    %v731 = vld [vmem:[%s1 + $0x108] sm:$0xff]
    %v732 = vld [vmem:[%s1 + $0x110] sm:$0xff]
    %v733 = vld [vmem:[%s1 + $0x118] sm:$0xff]
    %v734 = vld [vmem:[%s1 + $0x120] sm:$0xff]
    %v735 = vld [vmem:[%s1 + $0x128] sm:$0xff]
    %v736 = vld [vmem:[%s1 + $0x130] sm:$0xff]
    %v737 = vld [vmem:[%s1 + $0x138] sm:$0xff]
    %v738 = vld [vmem:[%s1 + $0x140] sm:$0xff]
    %v739 = vld [vmem:[%s1 + $0x148] sm:$0xff]
    %v740 = vld [vmem:[%s1 + $0x150] sm:$0xff]
    %v741 = vld [vmem:[%s1 + $0x158] sm:$0xff]
    %v742 = vld [vmem:[%s1 + $0x160] sm:$0xff]
    %v743 = vld [vmem:[%s1 + $0x168] sm:$0xff]
    %v744 = vld [vmem:[%s1 + $0x170] sm:$0xff]
    %v745 = vld [vmem:[%s1 + $0x178] sm:$0xff]
    %v746 = vld [vmem:[%s1 + $0x180] sm:$0xff]
    %v747 = vld [vmem:[%s1 + $0x188] sm:$0xff]
    %v748 = vld [vmem:[%s1 + $0x190] sm:$0xff]
    %v749 = vld [vmem:[%s1 + $0x198] sm:$0xff]
    %v750 = vld [vmem:[%s1 + $0x1a0] sm:$0xff]
    %v751 = vld [vmem:[%s1 + $0x1a8] sm:$0xff]
    %v752 = vld [vmem:[%s1 + $0x1b0] sm:$0xff]
    %v753 = vld [vmem:[%s1 + $0x1b8] sm:$0xff]
    %v754 = vld [vmem:[%s1 + $0x1c0] sm:$0xff]
    %v755 = vld [vmem:[%s1 + $0x1c8] sm:$0xff]
    %v756 = vld [vmem:[%s1 + $0x1d0] sm:$0xff]
    %v757 = vld [vmem:[%s1 + $0x1d8] sm:$0xff]
    %v758 = vld [vmem:[%s1 + $0x1e0] sm:$0xff]
    %v759 = vld [vmem:[%s1 + $0x1e8] sm:$0xff]
    %v760 = vld [vmem:[%s1 + $0x1f0] sm:$0xff]
    %v761 = vld [vmem:[%s1 + $0x1f8] sm:$0xff]
    %v762 = vld [vmem:[%s1 + $0x200] sm:$0xff]
    %v763 = vld [vmem:[%s1 + $0x208] sm:$0xff]
    %v764 = vld [vmem:[%s1 + $0x210] sm:$0xff]
    %v765 = vld [vmem:[%s1 + $0x218] sm:$0xff]
    %v766 = vld [vmem:[%s1 + $0x220] sm:$0xff]
    %v767 = vld [vmem:[%s1 + $0x228] sm:$0xff]
    %v768 = vld [vmem:[%s1 + $0x230] sm:$0xff]
    %v769 = vld [vmem:[%s1 + $0x238] sm:$0xff]
    %v770 = vld [vmem:[%s1 + $0x240] sm:$0xff]
    %v771 = vld [vmem:[%s1 + $0x248] sm:$0xff]
    %v772 = vld [vmem:[%s1 + $0x250] sm:$0xff]
    %v773 = vld [vmem:[%s1 + $0x258] sm:$0xff]
    %v774 = vld [vmem:[%s1 + $0x260] sm:$0xff]
    %v775 = vld [vmem:[%s1 + $0x268] sm:$0xff]
    %v776 = vld [vmem:[%s1 + $0x270] sm:$0xff]
    %v777 = vld [vmem:[%s1 + $0x278] sm:$0xff]
    %v778 = vld [vmem:[%s1 + $0x280] sm:$0xff]
    %v779 = vld [vmem:[%s1 + $0x288] sm:$0xff]
    %v780 = vld [vmem:[%s1 + $0x290] sm:$0xff]
    %v781 = vld [vmem:[%s1 + $0x298] sm:$0xff]
    %v782 = vld [vmem:[%s1 + $0x2a0] sm:$0xff]
    %v783 = vld [vmem:[%s1 + $0x2a8] sm:$0xff]
    %v784 = vld [vmem:[%s1 + $0x2b0] sm:$0xff]
    %v785 = vld [vmem:[%s1 + $0x2b8] sm:$0xff]
    %v786 = vld [vmem:[%s1 + $0x2c0] sm:$0xff]
    %v787 = vld [vmem:[%s1 + $0x2c8] sm:$0xff]
    %v788 = vld [vmem:[%s1 + $0x2d0] sm:$0x3f]
    %v789 = vld [vmem:[%s1 + $0x2d8] sm:$0x3f]
    %v790 = vld [vmem:[%s1 + $0x2e0] sm:$0x3f]
    %v791 = vld [vmem:[%s1 + $0x2e8] sm:$0x3f]
    %v792 = vld [vmem:[%s1 + $0x2f0] sm:$0x3f]
    %793 = vmatprep.subr.mxu0 0.0
    %794 = vmatpush1.msra.mxu0 %v138
    %795 = vmatprep.subr.mxu0 0.0
    %796 = vmatpush1.msra.mxu0 %v139
    %797 = vmatprep.subr.mxu0 0.0
    %798 = vmatpush1.msra.mxu0 %v140
    %799 = vmatprep.subr.mxu0 0.0
    %800 = vmatpush1.msra.mxu0 %v141
    %801 = vmatprep.subr.mxu0 0.0
    %802 = vmatpush1.msra.mxu0 %v142
    %803 = vmatprep.subr.mxu0 0.0
    %804 = vmatpush1.msra.mxu0 %v143
    %805 = vmatprep.subr.mxu0 0.0
    %806 = vmatpush1.msra.mxu0 %v144
    %807 = vmatprep.subr.mxu0 0.0
    %808 = vmatpush1.msra.mxu0 %v145
    %809 = vmatprep.subr.mxu0 0.0
    %810 = vmatpush1.msra.mxu0 %v146
    %811 = vmatprep.subr.mxu0 0.0
    %812 = vmatpush1.msra.mxu0 %v147
    %813 = vmatprep.subr.mxu0 0.0
    %814 = vmatpush1.msra.mxu0 %v148
    %815 = vmatprep.subr.mxu0 0.0
    %816 = vmatpush1.msra.mxu0 %v149
    %817 = vmatprep.subr.mxu0 0.0
    %818 = vmatpush1.msra.mxu0 %v150
    %819 = vmatprep.subr.mxu0 0.0
    %820 = vmatpush1.msra.mxu0 %v151
    %821 = vmatprep.subr.mxu0 0.0
    %822 = vmatpush1.msra.mxu0 %v152
    %823 = vmatprep.subr.mxu0 0.0
    %824 = vmatpush1.msra.mxu0 %v153
    %825 = vmatprep.subr.mxu0 0.0
    %826 = vmatpush1.msra.mxu0 %v154
    %827 = vmatprep.subr.mxu0 0.0
    %828 = vmatpush1.msra.mxu0 %v155
    %829 = vmatprep.subr.mxu0 0.0
    %830 = vmatpush1.msra.mxu0 %v156
    %831 = vmatprep.subr.mxu0 0.0
    %832 = vmatpush1.msra.mxu0 %v157
    %833 = vmatprep.subr.mxu0 0.0
    %834 = vmatpush1.msra.mxu0 %v158
    %835 = vmatprep.subr.mxu0 0.0
    %836 = vmatpush1.msra.mxu0 %v159
    %837 = vmatprep.subr.mxu0 0.0
    %838 = vmatpush1.msra.mxu0 %v160
    %839 = vmatprep.subr.mxu0 0.0
    %840 = vmatpush1.msra.mxu0 %v161
    %841 = vmatprep.subr.mxu0 0.0
    %842 = vmatpush1.msra.mxu0 %v162
    %843 = vmatprep.subr.mxu0 0.0
    %844 = vmatpush1.msra.mxu0 %v163
    %845 = vmatprep.subr.mxu0 0.0
    %846 = vmatpush1.msra.mxu0 %v164
    %847 = vmatprep.subr.mxu0 0.0
    %848 = vmatpush1.msra.mxu0 %v165
    %849 = vmatprep.subr.mxu0 0.0
    %850 = vmatpush1.msra.mxu0 %v166
    %851 = vmatprep.subr.mxu0 0.0
    %852 = vmatpush1.msra.mxu0 %v167
    %853 = vmatprep.subr.mxu0 0.0
    %854 = vmatpush1.msra.mxu0 %v168
    %855 = vmatprep.subr.mxu0 0.0
    %856 = vmatpush1.msra.mxu0 %v169
    %857 = vmatprep.mubr.f32.mxu0 %v699
    %858 = vmatmul.mubr.f32.gmra.mrb[0].mxu0 %v698
    %v859 = vpop.f32.mrb[0].mxu0
    %v860 = vadd.f32 0.0, %v859
    %v861 = vpop.f32.mrb[0].mxu0
    %862 = vmatprep.mubr.f32.mxu0 %v704
    %863 = vmatmul.mubr.f32.gmra.mrb[0].mxu0 %v703
    %v864 = vpop.f32.mrb[0].mxu0
    %v865 = vadd.f32 0.0, %v864
    %v866 = vpop.f32.mrb[0].mxu0
    %867 = vmatprep.mubr.f32.mxu0 %v709
    %868 = vmatmul.mubr.f32.gmra.mrb[0].mxu0 %v708
    %v869 = vpop.f32.mrb[0].mxu0
    %v870 = vadd.f32 0.0, %v869
    %v871 = vpop.f32.mrb[0].mxu0
    %872 = vmatprep.mubr.f32.mxu0 %v714
    %873 = vmatmul.mubr.f32.gmra.mrb[0].mxu0 %v713
    %v874 = vpop.f32.mrb[0].mxu0
    %v875 = vadd.f32 0.0, %v874
    %v876 = vpop.f32.mrb[0].mxu0
    %877 = vmatprep.mubr.f32.mxu0 %v719
    %878 = vmatmul.mubr.f32.gmra.mrb[0].mxu0 %v718
    %v879 = vpop.f32.mrb[0].mxu0
    %v880 = vadd.f32 0.0, %v879
    %v881 = vpop.f32.mrb[0].mxu0
    %882 = vmatprep.mubr.f32.mxu0 %v724
    %883 = vmatmul.mubr.f32.gmra.mrb[0].mxu0 %v723
    %v884 = vpop.f32.mrb[0].mxu0
    %v885 = vadd.f32 0.0, %v884
    %v886 = vpop.f32.mrb[0].mxu0
    %887 = vmatprep.mubr.f32.mxu0 %v729
    %888 = vmatmul.mubr.f32.gmra.mrb[0].mxu0 %v728
    %v889 = vpop.f32.mrb[0].mxu0
    %v890 = vadd.f32 0.0, %v889
    %v891 = vpop.f32.mrb[0].mxu0
    %892 = vmatprep.mubr.f32.mxu0 %v734
    %893 = vmatmul.mubr.f32.gmra.mrb[0].mxu0 %v733
    %v894 = vpop.f32.mrb[0].mxu0
    %v895 = vadd.f32 0.0, %v894
    %v896 = vpop.f32.mrb[0].mxu0
    %897 = vmatprep.mubr.f32.mxu0 %v739
    %898 = vmatmul.mubr.f32.gmra.mrb[0].mxu0 %v738
    %v899 = vpop.f32.mrb[0].mxu0
    %v900 = vadd.f32 0.0, %v899
    %v901 = vpop.f32.mrb[0].mxu0
    %902 = vmatprep.mubr.f32.mxu0 %v744
    %903 = vmatmul.mubr.f32.gmra.mrb[0].mxu0 %v743
    %v904 = vpop.f32.mrb[0].mxu0
    %v905 = vadd.f32 0.0, %v904
    %v906 = vpop.f32.mrb[0].mxu0
    %907 = vmatprep.mubr.f32.mxu0 %v749
    %908 = vmatmul.mubr.f32.gmra.mrb[0].mxu0 %v748
    %v909 = vpop.f32.mrb[0].mxu0
    %v910 = vadd.f32 0.0, %v909
    %v911 = vpop.f32.mrb[0].mxu0
    %912 = vmatprep.mubr.f32.mxu0 %v754
    %913 = vmatmul.mubr.f32.gmra.mrb[0].mxu0 %v753
    %v914 = vpop.f32.mrb[0].mxu0
    %v915 = vadd.f32 0.0, %v914
    %v916 = vpop.f32.mrb[0].mxu0
    %917 = vmatprep.mubr.f32.mxu0 %v759
    %918 = vmatmul.mubr.f32.gmra.mrb[0].mxu0 %v758
    %v919 = vpop.f32.mrb[0].mxu0
    %v920 = vadd.f32 0.0, %v919
    %v921 = vpop.f32.mrb[0].mxu0
    %922 = vmatprep.mubr.f32.mxu0 %v764
    %923 = vmatmul.mubr.f32.gmra.mrb[0].mxu0 %v763
    %v924 = vpop.f32.mrb[0].mxu0
    %v925 = vadd.f32 0.0, %v924
    %v926 = vpop.f32.mrb[0].mxu0
    %927 = vmatprep.mubr.f32.mxu0 %v769
    %928 = vmatmul.mubr.f32.gmra.mrb[0].mxu0 %v768
    %v929 = vpop.f32.mrb[0].mxu0
    %v930 = vadd.f32 0.0, %v929
    %v931 = vpop.f32.mrb[0].mxu0
    %932 = vmatprep.mubr.f32.mxu0 %v774
    %933 = vmatmul.mubr.f32.gmra.mrb[0].mxu0 %v773
    %v934 = vpop.f32.mrb[0].mxu0
    %v935 = vadd.f32 0.0, %v934
    %v936 = vpop.f32.mrb[0].mxu0
    %937 = vmatprep.mubr.f32.mxu0 %v779
    %938 = vmatmul.mubr.f32.gmra.mrb[0].mxu0 %v778
    %v939 = vpop.f32.mrb[0].mxu0
    %v940 = vadd.f32 0.0, %v939
    %v941 = vpop.f32.mrb[0].mxu0
    %942 = vmatprep.mubr.f32.mxu0 %v784
    %943 = vmatmul.mubr.f32.gmra.mrb[0].mxu0 %v783
    %v944 = vpop.f32.mrb[0].mxu0
    %v945 = vadd.f32 0.0, %v944
    %v946 = vpop.f32.mrb[0].mxu0
    %947 = vmatprep.mubr.f32.mxu0 %v789
    %948 = vmatmul.mubr.f32.gmra.mrb[0].mxu0 %v788
    %v949 = vpop.f32.mrb[0].mxu0
    %v950 = vadd.f32 0.0, %v949
    %v951 = vpop.f32.mrb[0].mxu0
    %952 = vdwg.mxu0
    %953 = vmatprep.subr.mxu0 0.0
    %954 = vmatpush1.msra.mxu0 %v170
    %955 = vmatprep.subr.mxu0 0.0
    %956 = vmatpush1.msra.mxu0 %v171
    %957 = vmatprep.subr.mxu0 0.0
    %958 = vmatpush1.msra.mxu0 %v172
    %959 = vmatprep.subr.mxu0 0.0
    %960 = vmatpush1.msra.mxu0 %v173
    %961 = vmatprep.subr.mxu0 0.0
    %962 = vmatpush1.msra.mxu0 %v174
    %963 = vmatprep.subr.mxu0 0.0
    %964 = vmatpush1.msra.mxu0 %v175
    %965 = vmatprep.subr.mxu0 0.0
    %966 = vmatpush1.msra.mxu0 %v176
    %967 = vmatprep.subr.mxu0 0.0
    %968 = vmatpush1.msra.mxu0 %v177
    %969 = vmatprep.subr.mxu0 0.0
    %970 = vmatpush1.msra.mxu0 %v178
    %971 = vmatprep.subr.mxu0 0.0
    %972 = vmatpush1.msra.mxu0 %v179
    %973 = vmatprep.subr.mxu0 0.0
    %974 = vmatpush1.msra.mxu0 %v180
    %975 = vmatprep.subr.mxu0 0.0
    %976 = vmatpush1.msra.mxu0 %v181
    %977 = vmatprep.subr.mxu0 0.0
    %978 = vmatpush1.msra.mxu0 %v182
    %979 = vmatprep.subr.mxu0 0.0
    %980 = vmatpush1.msra.mxu0 %v183
    %981 = vmatprep.subr.mxu0 0.0
    %982 = vmatpush1.msra.mxu0 %v184
    %983 = vmatprep.subr.mxu0 0.0
    %984 = vmatpush1.msra.mxu0 %v185
    %985 = vmatprep.subr.mxu0 0.0
    %986 = vmatpush1.msra.mxu0 %v186
    %987 = vmatprep.subr.mxu0 0.0
    %988 = vmatpush1.msra.mxu0 %v187
    %989 = vmatprep.subr.mxu0 0.0
    %990 = vmatpush1.msra.mxu0 %v188
    %991 = vmatprep.subr.mxu0 0.0
    %992 = vmatpush1.msra.mxu0 %v189
    %993 = vmatprep.subr.mxu0 0.0
    %994 = vmatpush1.msra.mxu0 %v190
    %995 = vmatprep.subr.mxu0 0.0
    %996 = vmatpush1.msra.mxu0 %v191
    %997 = vmatprep.subr.mxu0 0.0
    %998 = vmatpush1.msra.mxu0 %v192
    %999 = vmatprep.subr.mxu0 0.0
    %1000 = vmatpush1.msra.mxu0 %v193
    %1001 = vmatprep.subr.mxu0 0.0
    %1002 = vmatpush1.msra.mxu0 %v194
    %1003 = vmatprep.subr.mxu0 0.0
    %1004 = vmatpush1.msra.mxu0 %v195
    %1005 = vmatprep.subr.mxu0 0.0
    %1006 = vmatpush1.msra.mxu0 %v196
    %1007 = vmatprep.subr.mxu0 0.0
    %1008 = vmatpush1.msra.mxu0 %v197
    %1009 = vmatprep.subr.mxu0 0.0
    %1010 = vmatpush1.msra.mxu0 %v198
    %1011 = vmatprep.subr.mxu0 0.0
    %1012 = vmatpush1.msra.mxu0 %v199
    %1013 = vmatprep.subr.mxu0 0.0
    %1014 = vmatpush1.msra.mxu0 %v200
    %1015 = vmatprep.subr.mxu0 0.0
    %1016 = vmatpush1.msra.mxu0 %v201
    %1017 = vmatprep.mubr.f32.mxu0 %v701
    %1018 = vmatmul.mubr.f32.gmra.mrb[0].mxu0 %v700
    %v1019 = vpop.f32.mrb[0].mxu0
    %v1020 = vadd.f32 %v860, %v1019
    %v1021 = vpop.f32.mrb[0].mxu0
    %1022 = vmatprep.mubr.f32.mxu0 %v706
    %1023 = vmatmul.mubr.f32.gmra.mrb[0].mxu0 %v705
    %v1024 = vpop.f32.mrb[0].mxu0
    %v1025 = vadd.f32 %v865, %v1024
    %v1026 = vpop.f32.mrb[0].mxu0
    %1027 = vmatprep.mubr.f32.mxu0 %v711
    %1028 = vmatmul.mubr.f32.gmra.mrb[0].mxu0 %v710
    %v1029 = vpop.f32.mrb[0].mxu0
    %v1030 = vadd.f32 %v870, %v1029
    %v1031 = vpop.f32.mrb[0].mxu0
    %1032 = vmatprep.mubr.f32.mxu0 %v716
    %1033 = vmatmul.mubr.f32.gmra.mrb[0].mxu0 %v715
    %v1034 = vpop.f32.mrb[0].mxu0
    %v1035 = vadd.f32 %v875, %v1034
    %v1036 = vpop.f32.mrb[0].mxu0
    %1037 = vmatprep.mubr.f32.mxu0 %v721
    %1038 = vmatmul.mubr.f32.gmra.mrb[0].mxu0 %v720
    %v1039 = vpop.f32.mrb[0].mxu0
    %v1040 = vadd.f32 %v880, %v1039
    %v1041 = vpop.f32.mrb[0].mxu0
    %1042 = vmatprep.mubr.f32.mxu0 %v726
    %1043 = vmatmul.mubr.f32.gmra.mrb[0].mxu0 %v725
    %v1044 = vpop.f32.mrb[0].mxu0
    %v1045 = vadd.f32 %v885, %v1044
    %v1046 = vpop.f32.mrb[0].mxu0
    %1047 = vmatprep.mubr.f32.mxu0 %v731
    %1048 = vmatmul.mubr.f32.gmra.mrb[0].mxu0 %v730
    %v1049 = vpop.f32.mrb[0].mxu0
    %v1050 = vadd.f32 %v890, %v1049
    %v1051 = vpop.f32.mrb[0].mxu0
    %1052 = vmatprep.mubr.f32.mxu0 %v736
    %1053 = vmatmul.mubr.f32.gmra.mrb[0].mxu0 %v735
    %v1054 = vpop.f32.mrb[0].mxu0
    %v1055 = vadd.f32 %v895, %v1054
    %v1056 = vpop.f32.mrb[0].mxu0
    %1057 = vmatprep.mubr.f32.mxu0 %v741
    %1058 = vmatmul.mubr.f32.gmra.mrb[0].mxu0 %v740
    %v1059 = vpop.f32.mrb[0].mxu0
    %v1060 = vadd.f32 %v900, %v1059
    %v1061 = vpop.f32.mrb[0].mxu0
    %1062 = vmatprep.mubr.f32.mxu0 %v746
    %1063 = vmatmul.mubr.f32.gmra.mrb[0].mxu0 %v745
    %v1064 = vpop.f32.mrb[0].mxu0
    %v1065 = vadd.f32 %v905, %v1064
    %v1066 = vpop.f32.mrb[0].mxu0
    %1067 = vmatprep.mubr.f32.mxu0 %v751
    %1068 = vmatmul.mubr.f32.gmra.mrb[0].mxu0 %v750
    %v1069 = vpop.f32.mrb[0].mxu0
    %v1070 = vadd.f32 %v910, %v1069
    %v1071 = vpop.f32.mrb[0].mxu0
    %1072 = vmatprep.mubr.f32.mxu0 %v756
    %1073 = vmatmul.mubr.f32.gmra.mrb[0].mxu0 %v755
    %v1074 = vpop.f32.mrb[0].mxu0
    %v1075 = vadd.f32 %v915, %v1074
    %v1076 = vpop.f32.mrb[0].mxu0
    %1077 = vmatprep.mubr.f32.mxu0 %v761
    %1078 = vmatmul.mubr.f32.gmra.mrb[0].mxu0 %v760
    %v1079 = vpop.f32.mrb[0].mxu0
    %v1080 = vadd.f32 %v920, %v1079
    %v1081 = vpop.f32.mrb[0].mxu0
    %1082 = vmatprep.mubr.f32.mxu0 %v766
    %1083 = vmatmul.mubr.f32.gmra.mrb[0].mxu0 %v765
    %v1084 = vpop.f32.mrb[0].mxu0
    %v1085 = vadd.f32 %v925, %v1084
    %v1086 = vpop.f32.mrb[0].mxu0
    %1087 = vmatprep.mubr.f32.mxu0 %v771
    %1088 = vmatmul.mubr.f32.gmra.mrb[0].mxu0 %v770
    %v1089 = vpop.f32.mrb[0].mxu0
    %v1090 = vadd.f32 %v930, %v1089
    %v1091 = vpop.f32.mrb[0].mxu0
    %1092 = vmatprep.mubr.f32.mxu0 %v776
    %1093 = vmatmul.mubr.f32.gmra.mrb[0].mxu0 %v775
    %v1094 = vpop.f32.mrb[0].mxu0
    %v1095 = vadd.f32 %v935, %v1094
    %v1096 = vpop.f32.mrb[0].mxu0
    %1097 = vmatprep.mubr.f32.mxu0 %v781
    %1098 = vmatmul.mubr.f32.gmra.mrb[0].mxu0 %v780
    %v1099 = vpop.f32.mrb[0].mxu0
    %v1100 = vadd.f32 %v940, %v1099
    %v1101 = vpop.f32.mrb[0].mxu0
    %1102 = vmatprep.mubr.f32.mxu0 %v786
    %1103 = vmatmul.mubr.f32.gmra.mrb[0].mxu0 %v785
    %v1104 = vpop.f32.mrb[0].mxu0
    %v1105 = vadd.f32 %v945, %v1104
    %v1106 = vpop.f32.mrb[0].mxu0
    %1107 = vmatprep.mubr.f32.mxu0 %v791
    %1108 = vmatmul.mubr.f32.gmra.mrb[0].mxu0 %v790
    %v1109 = vpop.f32.mrb[0].mxu0
    %v1110 = vadd.f32 %v950, %v1109
    %v1111 = vpop.f32.mrb[0].mxu0
    %1112 = vdwg.mxu0
    %1113 = vmatprep.subr.mxu0 0.0
    %1114 = vmatpush1.msra.mxu0 %v202
    %1115 = vmatprep.subr.mxu0 0.0
    %1116 = vmatpush1.msra.mxu0 %v203
    %1117 = vmatprep.subr.mxu0 0.0
    %1118 = vmatpush1.msra.mxu0 %v204
    %1119 = vmatprep.subr.mxu0 0.0
    %1120 = vmatpush1.msra.mxu0 %v205
    %1121 = vmatprep.subr.mxu0 0.0
    %1122 = vmatpush1.msra.mxu0 %v206
    %1123 = vmatprep.subr.mxu0 0.0
    %1124 = vmatpush1.msra.mxu0 %v207
    %1125 = vmatprep.subr.mxu0 0.0
    %1126 = vmatpush1.msra.mxu0 %v208
    %1127 = vmatprep.subr.mxu0 0.0
    %1128 = vmatpush1.msra.mxu0 %v209
    %1129 = vmatprep.subr.mxu0 0.0
    %1130 = vmatpush1.msra.mxu0 %v210
    %1131 = vmatprep.subr.mxu0 0.0
    %1132 = vmatpush1.msra.mxu0 %v211
    %1133 = vmatprep.subr.mxu0 0.0
    %1134 = vmatpush1.msra.mxu0 %v212
    %1135 = vmatprep.subr.mxu0 0.0
    %1136 = vmatpush1.msra.mxu0 %v213
    %1137 = vmatprep.subr.mxu0 0.0
    %1138 = vmatpush1.msra.mxu0 %v214
    %1139 = vmatprep.subr.mxu0 0.0
    %1140 = vmatpush1.msra.mxu0 %v215
    %1141 = vmatprep.subr.mxu0 0.0
    %1142 = vmatpush1.msra.mxu0 %v216
    %1143 = vmatprep.subr.mxu0 0.0
    %1144 = vmatpush1.msra.mxu0 %v217
    %1145 = vmatprep.subr.mxu0 0.0
    %1146 = vmatpush1.msra.mxu0 0.0
    %1147 = vmatprep.subr.mxu0 0.0
    %1148 = vmatpush1.msra.mxu0 0.0
    %1149 = vmatprep.subr.mxu0 0.0
    %1150 = vmatpush1.msra.mxu0 0.0
    %1151 = vmatprep.subr.mxu0 0.0
    %1152 = vmatpush1.msra.mxu0 0.0
    %1153 = vmatprep.subr.mxu0 0.0
    %1154 = vmatpush1.msra.mxu0 0.0
    %1155 = vmatprep.subr.mxu0 0.0
    %1156 = vmatpush1.msra.mxu0 0.0
    %1157 = vmatprep.subr.mxu0 0.0
    %1158 = vmatpush1.msra.mxu0 0.0
    %1159 = vmatprep.subr.mxu0 0.0
    %1160 = vmatpush1.msra.mxu0 0.0
    %1161 = vmatprep.subr.mxu0 0.0
    %1162 = vmatpush1.msra.mxu0 0.0
    %1163 = vmatprep.subr.mxu0 0.0
    %1164 = vmatpush1.msra.mxu0 0.0
    %1165 = vmatprep.subr.mxu0 0.0
    %1166 = vmatpush1.msra.mxu0 0.0
    %1167 = vmatprep.subr.mxu0 0.0
    %1168 = vmatpush1.msra.mxu0 0.0
    %1169 = vmatprep.subr.mxu0 0.0
    %1170 = vmatpush1.msra.mxu0 0.0
    %1171 = vmatprep.subr.mxu0 0.0
    %1172 = vmatpush1.msra.mxu0 0.0
    %1173 = vmatprep.subr.mxu0 0.0
    %1174 = vmatpush1.msra.mxu0 0.0
    %1175 = vmatprep.subr.mxu0 0.0
    %1176 = vmatpush1.msra.mxu0 0.0
    %1177 = vmatprep.mubr.f32.mxu0 0.0
    %1178 = vmatmul.mubr.f32.gmra.mrb[0].mxu0 %v702
    %v1179 = vpop.f32.mrb[0].mxu0
    %v1180 = vadd.f32 %v1020, %v1179
    %v1181 = vpop.f32.mrb[0].mxu0
    %1182 = vmatprep.mubr.f32.mxu0 0.0
    %1183 = vmatmul.mubr.f32.gmra.mrb[0].mxu0 %v707
    %v1184 = vpop.f32.mrb[0].mxu0
    %v1185 = vadd.f32 %v1025, %v1184
    %v1186 = vpop.f32.mrb[0].mxu0
    %1187 = vmatprep.mubr.f32.mxu0 0.0
    %1188 = vmatmul.mubr.f32.gmra.mrb[0].mxu0 %v712
    %v1189 = vpop.f32.mrb[0].mxu0
    %v1190 = vadd.f32 %v1030, %v1189
    %v1191 = vpop.f32.mrb[0].mxu0
    %1192 = vmatprep.mubr.f32.mxu0 0.0
    %1193 = vmatmul.mubr.f32.gmra.mrb[0].mxu0 %v717
    %v1194 = vpop.f32.mrb[0].mxu0
    %v1195 = vadd.f32 %v1035, %v1194
    %v1196 = vpop.f32.mrb[0].mxu0
    %1197 = vmatprep.mubr.f32.mxu0 0.0
    %1198 = vmatmul.mubr.f32.gmra.mrb[0].mxu0 %v722
    %v1199 = vpop.f32.mrb[0].mxu0
    %v1200 = vadd.f32 %v1040, %v1199
    %v1201 = vpop.f32.mrb[0].mxu0
    %1202 = vmatprep.mubr.f32.mxu0 0.0
    %1203 = vmatmul.mubr.f32.gmra.mrb[0].mxu0 %v727
    %v1204 = vpop.f32.mrb[0].mxu0
    %v1205 = vadd.f32 %v1045, %v1204
    %v1206 = vpop.f32.mrb[0].mxu0
    %1207 = vmatprep.mubr.f32.mxu0 0.0
    %1208 = vmatmul.mubr.f32.gmra.mrb[0].mxu0 %v732
    %v1209 = vpop.f32.mrb[0].mxu0
    %v1210 = vadd.f32 %v1050, %v1209
    %v1211 = vpop.f32.mrb[0].mxu0
    %1212 = vmatprep.mubr.f32.mxu0 0.0
    %1213 = vmatmul.mubr.f32.gmra.mrb[0].mxu0 %v737
    %v1214 = vpop.f32.mrb[0].mxu0
    %v1215 = vadd.f32 %v1055, %v1214
    %v1216 = vpop.f32.mrb[0].mxu0
    %1217 = vmatprep.mubr.f32.mxu0 0.0
    %1218 = vmatmul.mubr.f32.gmra.mrb[0].mxu0 %v742
    %v1219 = vpop.f32.mrb[0].mxu0
    %v1220 = vadd.f32 %v1060, %v1219
    %v1221 = vpop.f32.mrb[0].mxu0
    %1222 = vmatprep.mubr.f32.mxu0 0.0
    %1223 = vmatmul.mubr.f32.gmra.mrb[0].mxu0 %v747
    %v1224 = vpop.f32.mrb[0].mxu0
    %v1225 = vadd.f32 %v1065, %v1224
    %v1226 = vpop.f32.mrb[0].mxu0
    %1227 = vmatprep.mubr.f32.mxu0 0.0
    %1228 = vmatmul.mubr.f32.gmra.mrb[0].mxu0 %v752
    %v1229 = vpop.f32.mrb[0].mxu0
    %v1230 = vadd.f32 %v1070, %v1229
    %v1231 = vpop.f32.mrb[0].mxu0
    %1232 = vmatprep.mubr.f32.mxu0 0.0
    %1233 = vmatmul.mubr.f32.gmra.mrb[0].mxu0 %v757
    %v1234 = vpop.f32.mrb[0].mxu0
    %v1235 = vadd.f32 %v1075, %v1234
    %v1236 = vpop.f32.mrb[0].mxu0
    %1237 = vmatprep.mubr.f32.mxu0 0.0
    %1238 = vmatmul.mubr.f32.gmra.mrb[0].mxu0 %v762
    %v1239 = vpop.f32.mrb[0].mxu0
    %v1240 = vadd.f32 %v1080, %v1239
    %v1241 = vpop.f32.mrb[0].mxu0
    %1242 = vmatprep.mubr.f32.mxu0 0.0
    %1243 = vmatmul.mubr.f32.gmra.mrb[0].mxu0 %v767
    %v1244 = vpop.f32.mrb[0].mxu0
    %v1245 = vadd.f32 %v1085, %v1244
    %v1246 = vpop.f32.mrb[0].mxu0
    %1247 = vmatprep.mubr.f32.mxu0 0.0
    %1248 = vmatmul.mubr.f32.gmra.mrb[0].mxu0 %v772
    %v1249 = vpop.f32.mrb[0].mxu0
    %v1250 = vadd.f32 %v1090, %v1249
    %v1251 = vpop.f32.mrb[0].mxu0
    %1252 = vmatprep.mubr.f32.mxu0 0.0
    %1253 = vmatmul.mubr.f32.gmra.mrb[0].mxu0 %v777
    %v1254 = vpop.f32.mrb[0].mxu0
    %v1255 = vadd.f32 %v1095, %v1254
    %v1256 = vpop.f32.mrb[0].mxu0
    %1257 = vmatprep.mubr.f32.mxu0 0.0
    %1258 = vmatmul.mubr.f32.gmra.mrb[0].mxu0 %v782
    %v1259 = vpop.f32.mrb[0].mxu0
    %v1260 = vadd.f32 %v1100, %v1259
    %v1261 = vpop.f32.mrb[0].mxu0
    %1262 = vmatprep.mubr.f32.mxu0 0.0
    %1263 = vmatmul.mubr.f32.gmra.mrb[0].mxu0 %v787
    %v1264 = vpop.f32.mrb[0].mxu0
    %v1265 = vadd.f32 %v1105, %v1264
    %v1266 = vpop.f32.mrb[0].mxu0
    %1267 = vmatprep.mubr.f32.mxu0 0.0
    %1268 = vmatmul.mubr.f32.gmra.mrb[0].mxu0 %v792
    %v1269 = vpop.f32.mrb[0].mxu0
    %v1270 = vadd.f32 %v1110, %v1269
    %v1271 = vpop.f32.mrb[0].mxu0
    %1272 = vdwg.mxu0
    %v1273 = vmax.f32 %v605, %v1180
    %v1274 = vmax.f32 %v610, %v1185
    %v1275 = vmax.f32 %v615, %v1190
    %v1276 = vmax.f32 %v620, %v1195
    %v1277 = vmax.f32 %v625, %v1200
    %v1278 = vmax.f32 %v630, %v1205
    %v1279 = vmax.f32 %v635, %v1210
    %v1280 = vmax.f32 %v640, %v1215
    %v1281 = vmax.f32 %v645, %v1220
    %v1282 = vmax.f32 %v650, %v1225
    %v1283 = vmax.f32 %v655, %v1230
    %v1284 = vmax.f32 %v660, %v1235
    %v1285 = vmax.f32 %v665, %v1240
    %v1286 = vmax.f32 %v670, %v1245
    %v1287 = vmax.f32 %v675, %v1250
    %v1288 = vmax.f32 %v680, %v1255
    %v1289 = vmax.f32 %v685, %v1260
    %v1290 = vmax.f32 %v690, %v1265
    %v1291 = vmax.f32 %v695, %v1270
    %v1292 = vld [vmem:[#allocation4] sm:$0x1]
    %v1294 = vlaneseq
    %v1295 = vshrl.u32 %v1294, 7
    %v1296 = vsub.s32 0, %v1295
    %v1297 = vrot.slane %v1292, %v1296
    %v1299 = vadd.f32 %v1273, %v1297
    %v1300 = vadd.f32 %v1274, %v1297
    %v1301 = vadd.f32 %v1275, %v1297
    %v1302 = vadd.f32 %v1276, %v1297
    %v1303 = vadd.f32 %v1277, %v1297
    %v1304 = vadd.f32 %v1278, %v1297
    %v1305 = vadd.f32 %v1279, %v1297
    %v1306 = vadd.f32 %v1280, %v1297
    %v1307 = vadd.f32 %v1281, %v1297
    %v1308 = vadd.f32 %v1282, %v1297
    %v1309 = vadd.f32 %v1283, %v1297
    %v1310 = vadd.f32 %v1284, %v1297
    %v1311 = vadd.f32 %v1285, %v1297
    %v1312 = vadd.f32 %v1286, %v1297
    %v1313 = vadd.f32 %v1287, %v1297
    %v1314 = vadd.f32 %v1288, %v1297
    %v1315 = vadd.f32 %v1289, %v1297
    %v1316 = vadd.f32 %v1290, %v1297
    %v1317 = vadd.f32 %v1291, %v1297
    %v1318 = vmax.f32 %v1299, 0.0
    %v1319 = vmax.f32 %v1300, 0.0
    %v1320 = vmax.f32 %v1301, 0.0
    %v1321 = vmax.f32 %v1302, 0.0
    %v1322 = vmax.f32 %v1303, 0.0
    %v1323 = vmax.f32 %v1304, 0.0
    %v1324 = vmax.f32 %v1305, 0.0
    %v1325 = vmax.f32 %v1306, 0.0
    %v1326 = vmax.f32 %v1307, 0.0
    %v1327 = vmax.f32 %v1308, 0.0
    %v1328 = vmax.f32 %v1309, 0.0
    %v1329 = vmax.f32 %v1310, 0.0
    %v1330 = vmax.f32 %v1311, 0.0
    %v1331 = vmax.f32 %v1312, 0.0
    %v1332 = vmax.f32 %v1313, 0.0
    %v1333 = vmax.f32 %v1314, 0.0
    %v1334 = vmax.f32 %v1315, 0.0
    %v1335 = vmax.f32 %v1316, 0.0
    %v1336 = vmax.f32 %v1317, 0.0
    %1337 = vst [vmem:[%s4] sm:$0xff] %v1318
    %1338 = vst [vmem:[%s4 + $0x8] sm:$0xff] %v1319
    %1339 = vst [vmem:[%s4 + $0x10] sm:$0xff] %v1320
    %1340 = vst [vmem:[%s4 + $0x18] sm:$0xff] %v1321
    %1341 = vst [vmem:[%s4 + $0x20] sm:$0xff] %v1322
    %1342 = vst [vmem:[%s4 + $0x28] sm:$0xff] %v1323
    %1343 = vst [vmem:[%s4 + $0x30] sm:$0xff] %v1324
    %1344 = vst [vmem:[%s4 + $0x38] sm:$0xff] %v1325
    %1345 = vst [vmem:[%s4 + $0x40] sm:$0xff] %v1326
    %1346 = vst [vmem:[%s4 + $0x48] sm:$0xff] %v1327
    %1347 = vst [vmem:[%s4 + $0x50] sm:$0xff] %v1328
    %1348 = vst [vmem:[%s4 + $0x58] sm:$0xff] %v1329
    %1349 = vst [vmem:[%s4 + $0x60] sm:$0xff] %v1330
    %1350 = vst [vmem:[%s4 + $0x68] sm:$0xff] %v1331
    %1351 = vst [vmem:[%s4 + $0x70] sm:$0xff] %v1332
    %1352 = vst [vmem:[%s4 + $0x78] sm:$0xff] %v1333
    %1353 = vst [vmem:[%s4 + $0x80] sm:$0xff] %v1334
    %1354 = vst [vmem:[%s4 + $0x88] sm:$0xff] %v1335
    %1355 = vst [vmem:[%s4 + $0x90] sm:$0x3f] %v1336
    // Predicated region
    $region26: #{cnn1d_forward.7} parent=1 // pred_check
      _
    $region27: #{cnn1d_forward.7} parent=1 // pred_check_branch
      %1357 = sbr.rel (0) target = $region29
    $region28: #{cnn1d_forward.7} parent=1 // pred_region
      _
    $region29: #{cnn1d_forward.7} parent=1 // pred_fallthru
      _
    // Predicated region
    $region30: #{cnn1d_forward.7} parent=1 // pred_check
      _
    $region31: #{cnn1d_forward.7} parent=1 // pred_check_branch
      %1359 = sbr.rel (0) target = $region33
    $region32: #{cnn1d_forward.7} parent=1 // pred_region
      _
    $region33: #{cnn1d_forward.7} parent=1 // pred_fallthru
      _
    %1360 = vsyncpa [#allocation3], 1
    %1361 = vsyncpa [#allocation5], 1

// kernel: cnn1d_forward.8
$region0: #{cnn1d_forward.8}
  #allocation0 [shape = 'u32[]', space=smem, size = 0x4, offset = 0x4, fixed_abs, tag = 'smem constant byte address 0x4 - core index']
  #allocation1 [shape = 'u32[144,128]{1,0:T(1,128)}', space=vmem, size = 0x12000, scoped, tag = 'internal scratch']
  %s0 = inlined_call_operand.vmem [shape: f32[74,256], index: 0, kind: input, shape index: {}]
  %s1 = inlined_call_operand.vmem [shape: f32[74,256], index: 1, kind: input, shape index: {}]
  %s2 = inlined_call_operand.hbm [shape: f32[256,128], index: 2, kind: input, shape index: {}]
  %s3 = inlined_call_operand.hbm [shape: f32[1,128], index: 3, kind: input, shape index: {}]
  %s4 = inlined_call_operand.vmem [shape: f32[74,128], index: 4, kind: output, shape index: {}]
  %s5 = sld [smem:[#allocation0]]
  $region34: #{cnn1d_forward.8} parent=0
    _
  %s7 = ssub.s32 1, %s5
  %s8 = scalar_select 0, %s7, %s5
  $region1: #{cnn1d_forward.8} parent=0
    #allocation2 [shape = 'u8[131072]{0}', space=vmem, size = 0x20000, scoped, tag = 'input window, operand 2, single buffered']
    #allocation3 [shape = 's32[1]{0}', space=sflag, size = 0x4, scoped, tag = 'scoped memory for cnn1d_forward.8']
    #allocation4 [shape = 'u8[512]{0}', space=vmem, size = 0x400, scoped, tag = 'input window, operand 3, single buffered']
    #allocation5 [shape = 's32[1]{0}', space=sflag, size = 0x4, scoped, tag = 'scoped memory for cnn1d_forward.8']
    %9 = vsyncpa [#allocation3], 0
    %10 = vsyncpa [#allocation5], 0
    // Predicated region
    $region2: #{cnn1d_forward.8} parent=1 // pred_check
      _
    $region3: #{cnn1d_forward.8} parent=1 // pred_check_branch
      %12 = sbr.rel (0) target = $region5
    $region4: #{cnn1d_forward.8} parent=1 // pred_region
      _
    $region5: #{cnn1d_forward.8} parent=1 // pred_fallthru
      _
    // Predicated region
    $region6: #{cnn1d_forward.8} parent=1 // pred_check
      _
    $region7: #{cnn1d_forward.8} parent=1 // pred_check_branch
      %14 = sbr.rel (0) target = $region9
    $region8: #{cnn1d_forward.8} parent=1 // pred_region
      _
    $region9: #{cnn1d_forward.8} parent=1 // pred_fallthru
      _
    // Predicated region
    $region10: #{cnn1d_forward.8} parent=1 // pred_check
      _
    $region11: #{cnn1d_forward.8} parent=1 // pred_check_branch
      %16 = sbr.rel (0) target = $region13
    $region12: #{cnn1d_forward.8} parent=1 // pred_region
      %s18 = ssub.s32 4096, 4096
      %19 = vsyncadd [#allocation3], %s18
      %s20 = sshll.u32 [#allocation2], 4
      %s21 = int_to_ptr.vmem [resolvable:$true] %s20
      %26 = dma.hbm_to_vmem [thread:$0]  %s2, 4096, %s21, [#allocation3], 128, 128, 8
    $region13: #{cnn1d_forward.8} parent=1 // pred_fallthru
      _
    // Predicated region
    $region14: #{cnn1d_forward.8} parent=1 // pred_check
      _
    $region15: #{cnn1d_forward.8} parent=1 // pred_check_branch
      %28 = sbr.rel (0) target = $region17
    $region16: #{cnn1d_forward.8} parent=1 // pred_region
      %s30 = ssub.s32 16, 16
      %31 = vsyncadd [#allocation5], %s30
      %s33 = sshll.u32 [#allocation4], 4
      %s34 = int_to_ptr.vmem [resolvable:$true] %s33
      %36 = dma.hbm_to_vmem [thread:$0]  %s3, 16, %s34, [#allocation5]
    $region17: #{cnn1d_forward.8} parent=1 // pred_fallthru
      _
    // Predicated region
    $region18: #{cnn1d_forward.8} parent=1 // pred_check
      _
    $region19: #{cnn1d_forward.8} parent=1 // pred_check_branch
      %38 = sbr.rel (0) target = $region21
    $region20: #{cnn1d_forward.8} parent=1 // pred_region
      %39 = dma.done [#allocation3], 4096
    $region21: #{cnn1d_forward.8} parent=1 // pred_fallthru
      _
    // Predicated region
    $region22: #{cnn1d_forward.8} parent=1 // pred_check
      _
    $region23: #{cnn1d_forward.8} parent=1 // pred_check_branch
      %41 = sbr.rel (0) target = $region25
    $region24: #{cnn1d_forward.8} parent=1 // pred_region
      %42 = dma.done [#allocation5], 16
    $region25: #{cnn1d_forward.8} parent=1 // pred_fallthru
      _
    %v43 = vld [vmem:[%s0] sm:$0xff]
    %v44 = vld [vmem:[%s0 + $0x8] sm:$0xff]
    %v45 = vld [vmem:[%s0 + $0x10] sm:$0xff]
    %v46 = vld [vmem:[%s0 + $0x18] sm:$0xff]
    %v47 = vld [vmem:[%s0 + $0x20] sm:$0xff]
    %v48 = vld [vmem:[%s0 + $0x28] sm:$0xff]
    %v49 = vld [vmem:[%s0 + $0x30] sm:$0xff]
    %v50 = vld [vmem:[%s0 + $0x38] sm:$0xff]
    %v51 = vld [vmem:[%s0 + $0x40] sm:$0xff]
    %v52 = vld [vmem:[%s0 + $0x48] sm:$0xff]
    %v53 = vld [vmem:[%s0 + $0x50] sm:$0xff]
    %v54 = vld [vmem:[%s0 + $0x58] sm:$0xff]
    %v55 = vld [vmem:[%s0 + $0x60] sm:$0xff]
    %v56 = vld [vmem:[%s0 + $0x68] sm:$0xff]
    %v57 = vld [vmem:[%s0 + $0x70] sm:$0xff]
    %v58 = vld [vmem:[%s0 + $0x78] sm:$0xff]
    %v59 = vld [vmem:[%s0 + $0x80] sm:$0xff]
    %v60 = vld [vmem:[%s0 + $0x88] sm:$0xff]
    %v61 = vld [vmem:[%s0 + $0x90] sm:$0x3]
    %v62 = vld [vmem:[%s0 + $0x98] sm:$0x3]
    %v63 = vld [vmem:[#allocation2] sm:$0xff]
    %v64 = vld [vmem:[#allocation2 + $0x8] sm:$0xff]
    %v65 = vld [vmem:[#allocation2 + $0x10] sm:$0xff]
    %v66 = vld [vmem:[#allocation2 + $0x18] sm:$0xff]
    %v67 = vld [vmem:[#allocation2 + $0x20] sm:$0xff]
    %v68 = vld [vmem:[#allocation2 + $0x28] sm:$0xff]
    %v69 = vld [vmem:[#allocation2 + $0x30] sm:$0xff]
    %v70 = vld [vmem:[#allocation2 + $0x38] sm:$0xff]
    %v71 = vld [vmem:[#allocation2 + $0x40] sm:$0xff]
    %v72 = vld [vmem:[#allocation2 + $0x48] sm:$0xff]
    %v73 = vld [vmem:[#allocation2 + $0x50] sm:$0xff]
    %v74 = vld [vmem:[#allocation2 + $0x58] sm:$0xff]
    %v75 = vld [vmem:[#allocation2 + $0x60] sm:$0xff]
    %v76 = vld [vmem:[#allocation2 + $0x68] sm:$0xff]
    %v77 = vld [vmem:[#allocation2 + $0x70] sm:$0xff]
    %v78 = vld [vmem:[#allocation2 + $0x78] sm:$0xff]
    %v79 = vld [vmem:[#allocation2 + $0x80] sm:$0xff]
    %v80 = vld [vmem:[#allocation2 + $0x88] sm:$0xff]
    %v81 = vld [vmem:[#allocation2 + $0x90] sm:$0xff]
    %v82 = vld [vmem:[#allocation2 + $0x98] sm:$0xff]
    %v83 = vld [vmem:[#allocation2 + $0xa0] sm:$0xff]
    %v84 = vld [vmem:[#allocation2 + $0xa8] sm:$0xff]
    %v85 = vld [vmem:[#allocation2 + $0xb0] sm:$0xff]
    %v86 = vld [vmem:[#allocation2 + $0xb8] sm:$0xff]
    %v87 = vld [vmem:[#allocation2 + $0xc0] sm:$0xff]
    %v88 = vld [vmem:[#allocation2 + $0xc8] sm:$0xff]
    %v89 = vld [vmem:[#allocation2 + $0xd0] sm:$0xff]
    %v90 = vld [vmem:[#allocation2 + $0xd8] sm:$0xff]
    %v91 = vld [vmem:[#allocation2 + $0xe0] sm:$0xff]
    %v92 = vld [vmem:[#allocation2 + $0xe8] sm:$0xff]
    %v93 = vld [vmem:[#allocation2 + $0xf0] sm:$0xff]
    %v94 = vld [vmem:[#allocation2 + $0xf8] sm:$0xff]
    %95 = vmatprep.subr.mxu0 0.0
    %96 = vmatpush1.msra.mxu0 %v63
    %97 = vmatprep.subr.mxu0 0.0
    %98 = vmatpush1.msra.mxu0 %v64
    %99 = vmatprep.subr.mxu0 0.0
    %100 = vmatpush1.msra.mxu0 %v65
    %101 = vmatprep.subr.mxu0 0.0
    %102 = vmatpush1.msra.mxu0 %v66
    %103 = vmatprep.subr.mxu0 0.0
    %104 = vmatpush1.msra.mxu0 %v67
    %105 = vmatprep.subr.mxu0 0.0
    %106 = vmatpush1.msra.mxu0 %v68
    %107 = vmatprep.subr.mxu0 0.0
    %108 = vmatpush1.msra.mxu0 %v69
    %109 = vmatprep.subr.mxu0 0.0
    %110 = vmatpush1.msra.mxu0 %v70
    %111 = vmatprep.subr.mxu0 0.0
    %112 = vmatpush1.msra.mxu0 %v71
    %113 = vmatprep.subr.mxu0 0.0
    %114 = vmatpush1.msra.mxu0 %v72
    %115 = vmatprep.subr.mxu0 0.0
    %116 = vmatpush1.msra.mxu0 %v73
    %117 = vmatprep.subr.mxu0 0.0
    %118 = vmatpush1.msra.mxu0 %v74
    %119 = vmatprep.subr.mxu0 0.0
    %120 = vmatpush1.msra.mxu0 %v75
    %121 = vmatprep.subr.mxu0 0.0
    %122 = vmatpush1.msra.mxu0 %v76
    %123 = vmatprep.subr.mxu0 0.0
    %124 = vmatpush1.msra.mxu0 %v77
    %125 = vmatprep.subr.mxu0 0.0
    %126 = vmatpush1.msra.mxu0 %v78
    %127 = vmatprep.subr.mxu0 0.0
    %128 = vmatpush1.msra.mxu0 %v79
    %129 = vmatprep.subr.mxu0 0.0
    %130 = vmatpush1.msra.mxu0 %v80
    %131 = vmatprep.subr.mxu0 0.0
    %132 = vmatpush1.msra.mxu0 %v81
    %133 = vmatprep.subr.mxu0 0.0
    %134 = vmatpush1.msra.mxu0 %v82
    %135 = vmatprep.subr.mxu0 0.0
    %136 = vmatpush1.msra.mxu0 %v83
    %137 = vmatprep.subr.mxu0 0.0
    %138 = vmatpush1.msra.mxu0 %v84
    %139 = vmatprep.subr.mxu0 0.0
    %140 = vmatpush1.msra.mxu0 %v85
    %141 = vmatprep.subr.mxu0 0.0
    %142 = vmatpush1.msra.mxu0 %v86
    %143 = vmatprep.subr.mxu0 0.0
    %144 = vmatpush1.msra.mxu0 %v87
    %145 = vmatprep.subr.mxu0 0.0
    %146 = vmatpush1.msra.mxu0 %v88
    %147 = vmatprep.subr.mxu0 0.0
    %148 = vmatpush1.msra.mxu0 %v89
    %149 = vmatprep.subr.mxu0 0.0
    %150 = vmatpush1.msra.mxu0 %v90
    %151 = vmatprep.subr.mxu0 0.0
    %152 = vmatpush1.msra.mxu0 %v91
    %153 = vmatprep.subr.mxu0 0.0
    %154 = vmatpush1.msra.mxu0 %v92
    %155 = vmatprep.subr.mxu0 0.0
    %156 = vmatpush1.msra.mxu0 %v93
    %157 = vmatprep.subr.mxu0 0.0
    %158 = vmatpush1.msra.mxu0 %v94
    %159 = vmatprep.mubr.f32.mxu0 %v44
    %160 = vmatmul.mubr.f32.gmra.mrb[0].mxu0 %v43
    %v161 = vpop.f32.mrb[0].mxu0
    %v162 = vadd.f32 0.0, %v161
    %v163 = vpop.f32.mrb[0].mxu0
    %164 = vmatprep.mubr.f32.mxu0 %v46
    %165 = vmatmul.mubr.f32.gmra.mrb[0].mxu0 %v45
    %v166 = vpop.f32.mrb[0].mxu0
    %v167 = vadd.f32 0.0, %v166
    %v168 = vpop.f32.mrb[0].mxu0
    %169 = vmatprep.mubr.f32.mxu0 %v48
    %170 = vmatmul.mubr.f32.gmra.mrb[0].mxu0 %v47
    %v171 = vpop.f32.mrb[0].mxu0
    %v172 = vadd.f32 0.0, %v171
    %v173 = vpop.f32.mrb[0].mxu0
    %174 = vmatprep.mubr.f32.mxu0 %v50
    %175 = vmatmul.mubr.f32.gmra.mrb[0].mxu0 %v49
    %v176 = vpop.f32.mrb[0].mxu0
    %v177 = vadd.f32 0.0, %v176
    %v178 = vpop.f32.mrb[0].mxu0
    %179 = vmatprep.mubr.f32.mxu0 %v52
    %180 = vmatmul.mubr.f32.gmra.mrb[0].mxu0 %v51
    %v181 = vpop.f32.mrb[0].mxu0
    %v182 = vadd.f32 0.0, %v181
    %v183 = vpop.f32.mrb[0].mxu0
    %184 = vmatprep.mubr.f32.mxu0 %v54
    %185 = vmatmul.mubr.f32.gmra.mrb[0].mxu0 %v53
    %v186 = vpop.f32.mrb[0].mxu0
    %v187 = vadd.f32 0.0, %v186
    %v188 = vpop.f32.mrb[0].mxu0
    %189 = vmatprep.mubr.f32.mxu0 %v56
    %190 = vmatmul.mubr.f32.gmra.mrb[0].mxu0 %v55
    %v191 = vpop.f32.mrb[0].mxu0
    %v192 = vadd.f32 0.0, %v191
    %v193 = vpop.f32.mrb[0].mxu0
    %194 = vmatprep.mubr.f32.mxu0 %v58
    %195 = vmatmul.mubr.f32.gmra.mrb[0].mxu0 %v57
    %v196 = vpop.f32.mrb[0].mxu0
    %v197 = vadd.f32 0.0, %v196
    %v198 = vpop.f32.mrb[0].mxu0
    %199 = vmatprep.mubr.f32.mxu0 %v60
    %200 = vmatmul.mubr.f32.gmra.mrb[0].mxu0 %v59
    %v201 = vpop.f32.mrb[0].mxu0
    %v202 = vadd.f32 0.0, %v201
    %v203 = vpop.f32.mrb[0].mxu0
    %204 = vmatprep.mubr.f32.mxu0 %v62
    %205 = vmatmul.mubr.f32.gmra.mrb[0].mxu0 %v61
    %v206 = vpop.f32.mrb[0].mxu0
    %v207 = vadd.f32 0.0, %v206
    %v208 = vpop.f32.mrb[0].mxu0
    %209 = vdwg.mxu0
    %v210 = vld [vmem:[%s1] sm:$0xff]
    %v211 = vld [vmem:[%s1 + $0x8] sm:$0xff]
    %v212 = vld [vmem:[%s1 + $0x10] sm:$0xff]
    %v213 = vld [vmem:[%s1 + $0x18] sm:$0xff]
    %v214 = vld [vmem:[%s1 + $0x20] sm:$0xff]
    %v215 = vld [vmem:[%s1 + $0x28] sm:$0xff]
    %v216 = vld [vmem:[%s1 + $0x30] sm:$0xff]
    %v217 = vld [vmem:[%s1 + $0x38] sm:$0xff]
    %v218 = vld [vmem:[%s1 + $0x40] sm:$0xff]
    %v219 = vld [vmem:[%s1 + $0x48] sm:$0xff]
    %v220 = vld [vmem:[%s1 + $0x50] sm:$0xff]
    %v221 = vld [vmem:[%s1 + $0x58] sm:$0xff]
    %v222 = vld [vmem:[%s1 + $0x60] sm:$0xff]
    %v223 = vld [vmem:[%s1 + $0x68] sm:$0xff]
    %v224 = vld [vmem:[%s1 + $0x70] sm:$0xff]
    %v225 = vld [vmem:[%s1 + $0x78] sm:$0xff]
    %v226 = vld [vmem:[%s1 + $0x80] sm:$0xff]
    %v227 = vld [vmem:[%s1 + $0x88] sm:$0xff]
    %v228 = vld [vmem:[%s1 + $0x90] sm:$0x3]
    %v229 = vld [vmem:[%s1 + $0x98] sm:$0x3]
    %230 = vmatprep.subr.mxu0 0.0
    %231 = vmatpush1.msra.mxu0 %v63
    %232 = vmatprep.subr.mxu0 0.0
    %233 = vmatpush1.msra.mxu0 %v64
    %234 = vmatprep.subr.mxu0 0.0
    %235 = vmatpush1.msra.mxu0 %v65
    %236 = vmatprep.subr.mxu0 0.0
    %237 = vmatpush1.msra.mxu0 %v66
    %238 = vmatprep.subr.mxu0 0.0
    %239 = vmatpush1.msra.mxu0 %v67
    %240 = vmatprep.subr.mxu0 0.0
    %241 = vmatpush1.msra.mxu0 %v68
    %242 = vmatprep.subr.mxu0 0.0
    %243 = vmatpush1.msra.mxu0 %v69
    %244 = vmatprep.subr.mxu0 0.0
    %245 = vmatpush1.msra.mxu0 %v70
    %246 = vmatprep.subr.mxu0 0.0
    %247 = vmatpush1.msra.mxu0 %v71
    %248 = vmatprep.subr.mxu0 0.0
    %249 = vmatpush1.msra.mxu0 %v72
    %250 = vmatprep.subr.mxu0 0.0
    %251 = vmatpush1.msra.mxu0 %v73
    %252 = vmatprep.subr.mxu0 0.0
    %253 = vmatpush1.msra.mxu0 %v74
    %254 = vmatprep.subr.mxu0 0.0
    %255 = vmatpush1.msra.mxu0 %v75
    %256 = vmatprep.subr.mxu0 0.0
    %257 = vmatpush1.msra.mxu0 %v76
    %258 = vmatprep.subr.mxu0 0.0
    %259 = vmatpush1.msra.mxu0 %v77
    %260 = vmatprep.subr.mxu0 0.0
    %261 = vmatpush1.msra.mxu0 %v78
    %262 = vmatprep.subr.mxu0 0.0
    %263 = vmatpush1.msra.mxu0 %v79
    %264 = vmatprep.subr.mxu0 0.0
    %265 = vmatpush1.msra.mxu0 %v80
    %266 = vmatprep.subr.mxu0 0.0
    %267 = vmatpush1.msra.mxu0 %v81
    %268 = vmatprep.subr.mxu0 0.0
    %269 = vmatpush1.msra.mxu0 %v82
    %270 = vmatprep.subr.mxu0 0.0
    %271 = vmatpush1.msra.mxu0 %v83
    %272 = vmatprep.subr.mxu0 0.0
    %273 = vmatpush1.msra.mxu0 %v84
    %274 = vmatprep.subr.mxu0 0.0
    %275 = vmatpush1.msra.mxu0 %v85
    %276 = vmatprep.subr.mxu0 0.0
    %277 = vmatpush1.msra.mxu0 %v86
    %278 = vmatprep.subr.mxu0 0.0
    %279 = vmatpush1.msra.mxu0 %v87
    %280 = vmatprep.subr.mxu0 0.0
    %281 = vmatpush1.msra.mxu0 %v88
    %282 = vmatprep.subr.mxu0 0.0
    %283 = vmatpush1.msra.mxu0 %v89
    %284 = vmatprep.subr.mxu0 0.0
    %285 = vmatpush1.msra.mxu0 %v90
    %286 = vmatprep.subr.mxu0 0.0
    %287 = vmatpush1.msra.mxu0 %v91
    %288 = vmatprep.subr.mxu0 0.0
    %289 = vmatpush1.msra.mxu0 %v92
    %290 = vmatprep.subr.mxu0 0.0
    %291 = vmatpush1.msra.mxu0 %v93
    %292 = vmatprep.subr.mxu0 0.0
    %293 = vmatpush1.msra.mxu0 %v94
    %294 = vmatprep.mubr.f32.mxu0 %v211
    %295 = vmatmul.mubr.f32.gmra.mrb[0].mxu0 %v210
    %v296 = vpop.f32.mrb[0].mxu0
    %v297 = vadd.f32 0.0, %v296
    %v298 = vpop.f32.mrb[0].mxu0
    %299 = vmatprep.mubr.f32.mxu0 %v213
    %300 = vmatmul.mubr.f32.gmra.mrb[0].mxu0 %v212
    %v301 = vpop.f32.mrb[0].mxu0
    %v302 = vadd.f32 0.0, %v301
    %v303 = vpop.f32.mrb[0].mxu0
    %304 = vmatprep.mubr.f32.mxu0 %v215
    %305 = vmatmul.mubr.f32.gmra.mrb[0].mxu0 %v214
    %v306 = vpop.f32.mrb[0].mxu0
    %v307 = vadd.f32 0.0, %v306
    %v308 = vpop.f32.mrb[0].mxu0
    %309 = vmatprep.mubr.f32.mxu0 %v217
    %310 = vmatmul.mubr.f32.gmra.mrb[0].mxu0 %v216
    %v311 = vpop.f32.mrb[0].mxu0
    %v312 = vadd.f32 0.0, %v311
    %v313 = vpop.f32.mrb[0].mxu0
    %314 = vmatprep.mubr.f32.mxu0 %v219
    %315 = vmatmul.mubr.f32.gmra.mrb[0].mxu0 %v218
    %v316 = vpop.f32.mrb[0].mxu0
    %v317 = vadd.f32 0.0, %v316
    %v318 = vpop.f32.mrb[0].mxu0
    %319 = vmatprep.mubr.f32.mxu0 %v221
    %320 = vmatmul.mubr.f32.gmra.mrb[0].mxu0 %v220
    %v321 = vpop.f32.mrb[0].mxu0
    %v322 = vadd.f32 0.0, %v321
    %v323 = vpop.f32.mrb[0].mxu0
    %324 = vmatprep.mubr.f32.mxu0 %v223
    %325 = vmatmul.mubr.f32.gmra.mrb[0].mxu0 %v222
    %v326 = vpop.f32.mrb[0].mxu0
    %v327 = vadd.f32 0.0, %v326
    %v328 = vpop.f32.mrb[0].mxu0
    %329 = vmatprep.mubr.f32.mxu0 %v225
    %330 = vmatmul.mubr.f32.gmra.mrb[0].mxu0 %v224
    %v331 = vpop.f32.mrb[0].mxu0
    %v332 = vadd.f32 0.0, %v331
    %v333 = vpop.f32.mrb[0].mxu0
    %334 = vmatprep.mubr.f32.mxu0 %v227
    %335 = vmatmul.mubr.f32.gmra.mrb[0].mxu0 %v226
    %v336 = vpop.f32.mrb[0].mxu0
    %v337 = vadd.f32 0.0, %v336
    %v338 = vpop.f32.mrb[0].mxu0
    %339 = vmatprep.mubr.f32.mxu0 %v229
    %340 = vmatmul.mubr.f32.gmra.mrb[0].mxu0 %v228
    %v341 = vpop.f32.mrb[0].mxu0
    %v342 = vadd.f32 0.0, %v341
    %v343 = vpop.f32.mrb[0].mxu0
    %344 = vdwg.mxu0
    %v345 = vmax.f32 %v162, %v297
    %v346 = vmax.f32 %v167, %v302
    %v347 = vmax.f32 %v172, %v307
    %v348 = vmax.f32 %v177, %v312
    %v349 = vmax.f32 %v182, %v317
    %v350 = vmax.f32 %v187, %v322
    %v351 = vmax.f32 %v192, %v327
    %v352 = vmax.f32 %v197, %v332
    %v353 = vmax.f32 %v202, %v337
    %v354 = vmax.f32 %v207, %v342
    %v355 = vld [vmem:[#allocation4] sm:$0x1]
    %v357 = vlaneseq
    %v358 = vshrl.u32 %v357, 7
    %v359 = vsub.s32 0, %v358
    %v360 = vrot.slane %v355, %v359
    %v362 = vadd.f32 %v345, %v360
    %v363 = vadd.f32 %v346, %v360
    %v364 = vadd.f32 %v347, %v360
    %v365 = vadd.f32 %v348, %v360
    %v366 = vadd.f32 %v349, %v360
    %v367 = vadd.f32 %v350, %v360
    %v368 = vadd.f32 %v351, %v360
    %v369 = vadd.f32 %v352, %v360
    %v370 = vadd.f32 %v353, %v360
    %v371 = vadd.f32 %v354, %v360
    %v372 = vmax.f32 %v362, 0.0
    %v373 = vmax.f32 %v363, 0.0
    %v374 = vmax.f32 %v364, 0.0
    %v375 = vmax.f32 %v365, 0.0
    %v376 = vmax.f32 %v366, 0.0
    %v377 = vmax.f32 %v367, 0.0
    %v378 = vmax.f32 %v368, 0.0
    %v379 = vmax.f32 %v369, 0.0
    %v380 = vmax.f32 %v370, 0.0
    %v381 = vmax.f32 %v371, 0.0
    %382 = vst [vmem:[%s4] sm:$0xff] %v372
    %383 = vst [vmem:[%s4 + $0x8] sm:$0xff] %v373
    %384 = vst [vmem:[%s4 + $0x10] sm:$0xff] %v374
    %385 = vst [vmem:[%s4 + $0x18] sm:$0xff] %v375
    %386 = vst [vmem:[%s4 + $0x20] sm:$0xff] %v376
    %387 = vst [vmem:[%s4 + $0x28] sm:$0xff] %v377
    %388 = vst [vmem:[%s4 + $0x30] sm:$0xff] %v378
    %389 = vst [vmem:[%s4 + $0x38] sm:$0xff] %v379
    %390 = vst [vmem:[%s4 + $0x40] sm:$0xff] %v380
    %391 = vst [vmem:[%s4 + $0x48] sm:$0x3] %v381
    // Predicated region
    $region26: #{cnn1d_forward.8} parent=1 // pred_check
      _
    $region27: #{cnn1d_forward.8} parent=1 // pred_check_branch
      %393 = sbr.rel (0) target = $region29
    $region28: #{cnn1d_forward.8} parent=1 // pred_region
      _
    $region29: #{cnn1d_forward.8} parent=1 // pred_fallthru
      _
    // Predicated region
    $region30: #{cnn1d_forward.8} parent=1 // pred_check
      _
    $region31: #{cnn1d_forward.8} parent=1 // pred_check_branch
      %395 = sbr.rel (0) target = $region33
    $region32: #{cnn1d_forward.8} parent=1 // pred_region
      _
    $region33: #{cnn1d_forward.8} parent=1 // pred_fallthru
      _
    %396 = vsyncpa [#allocation3], 1
    %397 = vsyncpa [#allocation5], 1

// kernel: cnn1d_forward.9
$region0: #{cnn1d_forward.9}
  #allocation0 [shape = 'u32[]', space=smem, size = 0x4, offset = 0x4, fixed_abs, tag = 'smem constant byte address 0x4 - core index']
  #allocation1 [shape = 'u32[144,128]{1,0:T(1,128)}', space=vmem, size = 0x12000, scoped, tag = 'internal scratch']
  %s0 = inlined_call_operand.vmem [shape: f32[36,256], index: 0, kind: input, shape index: {}]
  %s1 = inlined_call_operand.vmem [shape: f32[36,256], index: 1, kind: input, shape index: {}]
  %s2 = inlined_call_operand.hbm [shape: f32[256,128], index: 2, kind: input, shape index: {}]
  %s3 = inlined_call_operand.hbm [shape: f32[1,128], index: 3, kind: input, shape index: {}]
  %s4 = inlined_call_operand.vmem [shape: f32[36,128], index: 4, kind: output, shape index: {}]
  %s5 = sld [smem:[#allocation0]]
  $region34: #{cnn1d_forward.9} parent=0
    _
  %s7 = ssub.s32 1, %s5
  %s8 = scalar_select 0, %s7, %s5
  $region1: #{cnn1d_forward.9} parent=0
    #allocation2 [shape = 'u8[131072]{0}', space=vmem, size = 0x20000, scoped, tag = 'input window, operand 2, single buffered']
    #allocation3 [shape = 's32[1]{0}', space=sflag, size = 0x4, scoped, tag = 'scoped memory for cnn1d_forward.9']
    #allocation4 [shape = 'u8[512]{0}', space=vmem, size = 0x400, scoped, tag = 'input window, operand 3, single buffered']
    #allocation5 [shape = 's32[1]{0}', space=sflag, size = 0x4, scoped, tag = 'scoped memory for cnn1d_forward.9']
    %9 = vsyncpa [#allocation3], 0
    %10 = vsyncpa [#allocation5], 0
    // Predicated region
    $region2: #{cnn1d_forward.9} parent=1 // pred_check
      _
    $region3: #{cnn1d_forward.9} parent=1 // pred_check_branch
      %12 = sbr.rel (0) target = $region5
    $region4: #{cnn1d_forward.9} parent=1 // pred_region
      _
    $region5: #{cnn1d_forward.9} parent=1 // pred_fallthru
      _
    // Predicated region
    $region6: #{cnn1d_forward.9} parent=1 // pred_check
      _
    $region7: #{cnn1d_forward.9} parent=1 // pred_check_branch
      %14 = sbr.rel (0) target = $region9
    $region8: #{cnn1d_forward.9} parent=1 // pred_region
      _
    $region9: #{cnn1d_forward.9} parent=1 // pred_fallthru
      _
    // Predicated region
    $region10: #{cnn1d_forward.9} parent=1 // pred_check
      _
    $region11: #{cnn1d_forward.9} parent=1 // pred_check_branch
      %16 = sbr.rel (0) target = $region13
    $region12: #{cnn1d_forward.9} parent=1 // pred_region
      %s18 = ssub.s32 4096, 4096
      %19 = vsyncadd [#allocation3], %s18
      %s20 = sshll.u32 [#allocation2], 4
      %s21 = int_to_ptr.vmem [resolvable:$true] %s20
      %26 = dma.hbm_to_vmem [thread:$0]  %s2, 4096, %s21, [#allocation3], 128, 128, 8
    $region13: #{cnn1d_forward.9} parent=1 // pred_fallthru
      _
    // Predicated region
    $region14: #{cnn1d_forward.9} parent=1 // pred_check
      _
    $region15: #{cnn1d_forward.9} parent=1 // pred_check_branch
      %28 = sbr.rel (0) target = $region17
    $region16: #{cnn1d_forward.9} parent=1 // pred_region
      %s30 = ssub.s32 16, 16
      %31 = vsyncadd [#allocation5], %s30
      %s33 = sshll.u32 [#allocation4], 4
      %s34 = int_to_ptr.vmem [resolvable:$true] %s33
      %36 = dma.hbm_to_vmem [thread:$0]  %s3, 16, %s34, [#allocation5]
    $region17: #{cnn1d_forward.9} parent=1 // pred_fallthru
      _
    // Predicated region
    $region18: #{cnn1d_forward.9} parent=1 // pred_check
      _
    $region19: #{cnn1d_forward.9} parent=1 // pred_check_branch
      %38 = sbr.rel (0) target = $region21
    $region20: #{cnn1d_forward.9} parent=1 // pred_region
      %39 = dma.done [#allocation3], 4096
    $region21: #{cnn1d_forward.9} parent=1 // pred_fallthru
      _
    // Predicated region
    $region22: #{cnn1d_forward.9} parent=1 // pred_check
      _
    $region23: #{cnn1d_forward.9} parent=1 // pred_check_branch
      %41 = sbr.rel (0) target = $region25
    $region24: #{cnn1d_forward.9} parent=1 // pred_region
      %42 = dma.done [#allocation5], 16
    $region25: #{cnn1d_forward.9} parent=1 // pred_fallthru
      _
    %v43 = vld [vmem:[%s0] sm:$0xff]
    %v44 = vld [vmem:[%s0 + $0x8] sm:$0xff]
    %v45 = vld [vmem:[%s0 + $0x10] sm:$0xff]
    %v46 = vld [vmem:[%s0 + $0x18] sm:$0xff]
    %v47 = vld [vmem:[%s0 + $0x20] sm:$0xff]
    %v48 = vld [vmem:[%s0 + $0x28] sm:$0xff]
    %v49 = vld [vmem:[%s0 + $0x30] sm:$0xff]
    %v50 = vld [vmem:[%s0 + $0x38] sm:$0xff]
    %v51 = vld [vmem:[%s0 + $0x40] sm:$0xf]
    %v52 = vld [vmem:[%s0 + $0x48] sm:$0xf]
    %v53 = vld [vmem:[#allocation2] sm:$0xff]
    %v54 = vld [vmem:[#allocation2 + $0x8] sm:$0xff]
    %v55 = vld [vmem:[#allocation2 + $0x10] sm:$0xff]
    %v56 = vld [vmem:[#allocation2 + $0x18] sm:$0xff]
    %v57 = vld [vmem:[#allocation2 + $0x20] sm:$0xff]
    %v58 = vld [vmem:[#allocation2 + $0x28] sm:$0xff]
    %v59 = vld [vmem:[#allocation2 + $0x30] sm:$0xff]
    %v60 = vld [vmem:[#allocation2 + $0x38] sm:$0xff]
    %v61 = vld [vmem:[#allocation2 + $0x40] sm:$0xff]
    %v62 = vld [vmem:[#allocation2 + $0x48] sm:$0xff]
    %v63 = vld [vmem:[#allocation2 + $0x50] sm:$0xff]
    %v64 = vld [vmem:[#allocation2 + $0x58] sm:$0xff]
    %v65 = vld [vmem:[#allocation2 + $0x60] sm:$0xff]
    %v66 = vld [vmem:[#allocation2 + $0x68] sm:$0xff]
    %v67 = vld [vmem:[#allocation2 + $0x70] sm:$0xff]
    %v68 = vld [vmem:[#allocation2 + $0x78] sm:$0xff]
    %v69 = vld [vmem:[#allocation2 + $0x80] sm:$0xff]
    %v70 = vld [vmem:[#allocation2 + $0x88] sm:$0xff]
    %v71 = vld [vmem:[#allocation2 + $0x90] sm:$0xff]
    %v72 = vld [vmem:[#allocation2 + $0x98] sm:$0xff]
    %v73 = vld [vmem:[#allocation2 + $0xa0] sm:$0xff]
    %v74 = vld [vmem:[#allocation2 + $0xa8] sm:$0xff]
    %v75 = vld [vmem:[#allocation2 + $0xb0] sm:$0xff]
    %v76 = vld [vmem:[#allocation2 + $0xb8] sm:$0xff]
    %v77 = vld [vmem:[#allocation2 + $0xc0] sm:$0xff]
    %v78 = vld [vmem:[#allocation2 + $0xc8] sm:$0xff]
    %v79 = vld [vmem:[#allocation2 + $0xd0] sm:$0xff]
    %v80 = vld [vmem:[#allocation2 + $0xd8] sm:$0xff]
    %v81 = vld [vmem:[#allocation2 + $0xe0] sm:$0xff]
    %v82 = vld [vmem:[#allocation2 + $0xe8] sm:$0xff]
    %v83 = vld [vmem:[#allocation2 + $0xf0] sm:$0xff]
    %v84 = vld [vmem:[#allocation2 + $0xf8] sm:$0xff]
    %85 = vmatprep.subr.mxu0 0.0
    %86 = vmatpush1.msra.mxu0 %v53
    %87 = vmatprep.subr.mxu0 0.0
    %88 = vmatpush1.msra.mxu0 %v54
    %89 = vmatprep.subr.mxu0 0.0
    %90 = vmatpush1.msra.mxu0 %v55
    %91 = vmatprep.subr.mxu0 0.0
    %92 = vmatpush1.msra.mxu0 %v56
    %93 = vmatprep.subr.mxu0 0.0
    %94 = vmatpush1.msra.mxu0 %v57
    %95 = vmatprep.subr.mxu0 0.0
    %96 = vmatpush1.msra.mxu0 %v58
    %97 = vmatprep.subr.mxu0 0.0
    %98 = vmatpush1.msra.mxu0 %v59
    %99 = vmatprep.subr.mxu0 0.0
    %100 = vmatpush1.msra.mxu0 %v60
    %101 = vmatprep.subr.mxu0 0.0
    %102 = vmatpush1.msra.mxu0 %v61
    %103 = vmatprep.subr.mxu0 0.0
    %104 = vmatpush1.msra.mxu0 %v62
    %105 = vmatprep.subr.mxu0 0.0
    %106 = vmatpush1.msra.mxu0 %v63
    %107 = vmatprep.subr.mxu0 0.0
    %108 = vmatpush1.msra.mxu0 %v64
    %109 = vmatprep.subr.mxu0 0.0
    %110 = vmatpush1.msra.mxu0 %v65
    %111 = vmatprep.subr.mxu0 0.0
    %112 = vmatpush1.msra.mxu0 %v66
    %113 = vmatprep.subr.mxu0 0.0
    %114 = vmatpush1.msra.mxu0 %v67
    %115 = vmatprep.subr.mxu0 0.0
    %116 = vmatpush1.msra.mxu0 %v68
    %117 = vmatprep.subr.mxu0 0.0
    %118 = vmatpush1.msra.mxu0 %v69
    %119 = vmatprep.subr.mxu0 0.0
    %120 = vmatpush1.msra.mxu0 %v70
    %121 = vmatprep.subr.mxu0 0.0
    %122 = vmatpush1.msra.mxu0 %v71
    %123 = vmatprep.subr.mxu0 0.0
    %124 = vmatpush1.msra.mxu0 %v72
    %125 = vmatprep.subr.mxu0 0.0
    %126 = vmatpush1.msra.mxu0 %v73
    %127 = vmatprep.subr.mxu0 0.0
    %128 = vmatpush1.msra.mxu0 %v74
    %129 = vmatprep.subr.mxu0 0.0
    %130 = vmatpush1.msra.mxu0 %v75
    %131 = vmatprep.subr.mxu0 0.0
    %132 = vmatpush1.msra.mxu0 %v76
    %133 = vmatprep.subr.mxu0 0.0
    %134 = vmatpush1.msra.mxu0 %v77
    %135 = vmatprep.subr.mxu0 0.0
    %136 = vmatpush1.msra.mxu0 %v78
    %137 = vmatprep.subr.mxu0 0.0
    %138 = vmatpush1.msra.mxu0 %v79
    %139 = vmatprep.subr.mxu0 0.0
    %140 = vmatpush1.msra.mxu0 %v80
    %141 = vmatprep.subr.mxu0 0.0
    %142 = vmatpush1.msra.mxu0 %v81
    %143 = vmatprep.subr.mxu0 0.0
    %144 = vmatpush1.msra.mxu0 %v82
    %145 = vmatprep.subr.mxu0 0.0
    %146 = vmatpush1.msra.mxu0 %v83
    %147 = vmatprep.subr.mxu0 0.0
    %148 = vmatpush1.msra.mxu0 %v84
    %149 = vmatprep.mubr.f32.mxu0 %v44
    %150 = vmatmul.mubr.f32.gmra.mrb[0].mxu0 %v43
    %v151 = vpop.f32.mrb[0].mxu0
    %v152 = vadd.f32 0.0, %v151
    %v153 = vpop.f32.mrb[0].mxu0
    %154 = vmatprep.mubr.f32.mxu0 %v46
    %155 = vmatmul.mubr.f32.gmra.mrb[0].mxu0 %v45
    %v156 = vpop.f32.mrb[0].mxu0
    %v157 = vadd.f32 0.0, %v156
    %v158 = vpop.f32.mrb[0].mxu0
    %159 = vmatprep.mubr.f32.mxu0 %v48
    %160 = vmatmul.mubr.f32.gmra.mrb[0].mxu0 %v47
    %v161 = vpop.f32.mrb[0].mxu0
    %v162 = vadd.f32 0.0, %v161
    %v163 = vpop.f32.mrb[0].mxu0
    %164 = vmatprep.mubr.f32.mxu0 %v50
    %165 = vmatmul.mubr.f32.gmra.mrb[0].mxu0 %v49
    %v166 = vpop.f32.mrb[0].mxu0
    %v167 = vadd.f32 0.0, %v166
    %v168 = vpop.f32.mrb[0].mxu0
    %169 = vmatprep.mubr.f32.mxu0 %v52
    %170 = vmatmul.mubr.f32.gmra.mrb[0].mxu0 %v51
    %v171 = vpop.f32.mrb[0].mxu0
    %v172 = vadd.f32 0.0, %v171
    %v173 = vpop.f32.mrb[0].mxu0
    %174 = vdwg.mxu0
    %v175 = vld [vmem:[%s1] sm:$0xff]
    %v176 = vld [vmem:[%s1 + $0x8] sm:$0xff]
    %v177 = vld [vmem:[%s1 + $0x10] sm:$0xff]
    %v178 = vld [vmem:[%s1 + $0x18] sm:$0xff]
    %v179 = vld [vmem:[%s1 + $0x20] sm:$0xff]
    %v180 = vld [vmem:[%s1 + $0x28] sm:$0xff]
    %v181 = vld [vmem:[%s1 + $0x30] sm:$0xff]
    %v182 = vld [vmem:[%s1 + $0x38] sm:$0xff]
    %v183 = vld [vmem:[%s1 + $0x40] sm:$0xf]
    %v184 = vld [vmem:[%s1 + $0x48] sm:$0xf]
    %185 = vmatprep.subr.mxu0 0.0
    %186 = vmatpush1.msra.mxu0 %v53
    %187 = vmatprep.subr.mxu0 0.0
    %188 = vmatpush1.msra.mxu0 %v54
    %189 = vmatprep.subr.mxu0 0.0
    %190 = vmatpush1.msra.mxu0 %v55
    %191 = vmatprep.subr.mxu0 0.0
    %192 = vmatpush1.msra.mxu0 %v56
    %193 = vmatprep.subr.mxu0 0.0
    %194 = vmatpush1.msra.mxu0 %v57
    %195 = vmatprep.subr.mxu0 0.0
    %196 = vmatpush1.msra.mxu0 %v58
    %197 = vmatprep.subr.mxu0 0.0
    %198 = vmatpush1.msra.mxu0 %v59
    %199 = vmatprep.subr.mxu0 0.0
    %200 = vmatpush1.msra.mxu0 %v60
    %201 = vmatprep.subr.mxu0 0.0
    %202 = vmatpush1.msra.mxu0 %v61
    %203 = vmatprep.subr.mxu0 0.0
    %204 = vmatpush1.msra.mxu0 %v62
    %205 = vmatprep.subr.mxu0 0.0
    %206 = vmatpush1.msra.mxu0 %v63
    %207 = vmatprep.subr.mxu0 0.0
    %208 = vmatpush1.msra.mxu0 %v64
    %209 = vmatprep.subr.mxu0 0.0
    %210 = vmatpush1.msra.mxu0 %v65
    %211 = vmatprep.subr.mxu0 0.0
    %212 = vmatpush1.msra.mxu0 %v66
    %213 = vmatprep.subr.mxu0 0.0
    %214 = vmatpush1.msra.mxu0 %v67
    %215 = vmatprep.subr.mxu0 0.0
    %216 = vmatpush1.msra.mxu0 %v68
    %217 = vmatprep.subr.mxu0 0.0
    %218 = vmatpush1.msra.mxu0 %v69
    %219 = vmatprep.subr.mxu0 0.0
    %220 = vmatpush1.msra.mxu0 %v70
    %221 = vmatprep.subr.mxu0 0.0
    %222 = vmatpush1.msra.mxu0 %v71
    %223 = vmatprep.subr.mxu0 0.0
    %224 = vmatpush1.msra.mxu0 %v72
    %225 = vmatprep.subr.mxu0 0.0
    %226 = vmatpush1.msra.mxu0 %v73
    %227 = vmatprep.subr.mxu0 0.0
    %228 = vmatpush1.msra.mxu0 %v74
    %229 = vmatprep.subr.mxu0 0.0
    %230 = vmatpush1.msra.mxu0 %v75
    %231 = vmatprep.subr.mxu0 0.0
    %232 = vmatpush1.msra.mxu0 %v76
    %233 = vmatprep.subr.mxu0 0.0
    %234 = vmatpush1.msra.mxu0 %v77
    %235 = vmatprep.subr.mxu0 0.0
    %236 = vmatpush1.msra.mxu0 %v78
    %237 = vmatprep.subr.mxu0 0.0
    %238 = vmatpush1.msra.mxu0 %v79
    %239 = vmatprep.subr.mxu0 0.0
    %240 = vmatpush1.msra.mxu0 %v80
    %241 = vmatprep.subr.mxu0 0.0
    %242 = vmatpush1.msra.mxu0 %v81
    %243 = vmatprep.subr.mxu0 0.0
    %244 = vmatpush1.msra.mxu0 %v82
    %245 = vmatprep.subr.mxu0 0.0
    %246 = vmatpush1.msra.mxu0 %v83
    %247 = vmatprep.subr.mxu0 0.0
    %248 = vmatpush1.msra.mxu0 %v84
    %249 = vmatprep.mubr.f32.mxu0 %v176
    %250 = vmatmul.mubr.f32.gmra.mrb[0].mxu0 %v175
    %v251 = vpop.f32.mrb[0].mxu0
    %v252 = vadd.f32 0.0, %v251
    %v253 = vpop.f32.mrb[0].mxu0
    %254 = vmatprep.mubr.f32.mxu0 %v178
    %255 = vmatmul.mubr.f32.gmra.mrb[0].mxu0 %v177
    %v256 = vpop.f32.mrb[0].mxu0
    %v257 = vadd.f32 0.0, %v256
    %v258 = vpop.f32.mrb[0].mxu0
    %259 = vmatprep.mubr.f32.mxu0 %v180
    %260 = vmatmul.mubr.f32.gmra.mrb[0].mxu0 %v179
    %v261 = vpop.f32.mrb[0].mxu0
    %v262 = vadd.f32 0.0, %v261
    %v263 = vpop.f32.mrb[0].mxu0
    %264 = vmatprep.mubr.f32.mxu0 %v182
    %265 = vmatmul.mubr.f32.gmra.mrb[0].mxu0 %v181
    %v266 = vpop.f32.mrb[0].mxu0
    %v267 = vadd.f32 0.0, %v266
    %v268 = vpop.f32.mrb[0].mxu0
    %269 = vmatprep.mubr.f32.mxu0 %v184
    %270 = vmatmul.mubr.f32.gmra.mrb[0].mxu0 %v183
    %v271 = vpop.f32.mrb[0].mxu0
    %v272 = vadd.f32 0.0, %v271
    %v273 = vpop.f32.mrb[0].mxu0
    %274 = vdwg.mxu0
    %v275 = vmax.f32 %v152, %v252
    %v276 = vmax.f32 %v157, %v257
    %v277 = vmax.f32 %v162, %v262
    %v278 = vmax.f32 %v167, %v267
    %v279 = vmax.f32 %v172, %v272
    %v280 = vld [vmem:[#allocation4] sm:$0x1]
    %v282 = vlaneseq
    %v283 = vshrl.u32 %v282, 7
    %v284 = vsub.s32 0, %v283
    %v285 = vrot.slane %v280, %v284
    %v287 = vadd.f32 %v275, %v285
    %v288 = vadd.f32 %v276, %v285
    %v289 = vadd.f32 %v277, %v285
    %v290 = vadd.f32 %v278, %v285
    %v291 = vadd.f32 %v279, %v285
    %v292 = vmax.f32 %v287, 0.0
    %v293 = vmax.f32 %v288, 0.0
    %v294 = vmax.f32 %v289, 0.0
    %v295 = vmax.f32 %v290, 0.0
    %v296 = vmax.f32 %v291, 0.0
    %297 = vst [vmem:[%s4] sm:$0xff] %v292
    %298 = vst [vmem:[%s4 + $0x8] sm:$0xff] %v293
    %299 = vst [vmem:[%s4 + $0x10] sm:$0xff] %v294
    %300 = vst [vmem:[%s4 + $0x18] sm:$0xff] %v295
    %301 = vst [vmem:[%s4 + $0x20] sm:$0xf] %v296
    // Predicated region
    $region26: #{cnn1d_forward.9} parent=1 // pred_check
      _
    $region27: #{cnn1d_forward.9} parent=1 // pred_check_branch
      %303 = sbr.rel (0) target = $region29
    $region28: #{cnn1d_forward.9} parent=1 // pred_region
      _
    $region29: #{cnn1d_forward.9} parent=1 // pred_fallthru
      _
    // Predicated region
    $region30: #{cnn1d_forward.9} parent=1 // pred_check
      _
    $region31: #{cnn1d_forward.9} parent=1 // pred_check_branch
      %305 = sbr.rel (0) target = $region33
    $region32: #{cnn1d_forward.9} parent=1 // pred_region
      _
    $region33: #{cnn1d_forward.9} parent=1 // pred_fallthru
      _
    %306 = vsyncpa [#allocation3], 1
    %307 = vsyncpa [#allocation5], 1

// kernel: cnn1d_forward.10
$region0: #{cnn1d_forward.10}
  #allocation0 [shape = 'u32[]', space=smem, size = 0x4, offset = 0x4, fixed_abs, tag = 'smem constant byte address 0x4 - core index']
  #allocation1 [shape = 'u32[144,128]{1,0:T(1,128)}', space=vmem, size = 0x12000, scoped, tag = 'internal scratch']
  %s0 = inlined_call_operand.vmem [shape: f32[16,256], index: 0, kind: input, shape index: {}]
  %s1 = inlined_call_operand.vmem [shape: f32[16,256], index: 1, kind: input, shape index: {}]
  %s2 = inlined_call_operand.hbm [shape: f32[256,256], index: 2, kind: input, shape index: {}]
  %s3 = inlined_call_operand.hbm [shape: f32[1,256], index: 3, kind: input, shape index: {}]
  %s4 = inlined_call_operand.vmem [shape: f32[16,256], index: 4, kind: output, shape index: {}]
  %s5 = sld [smem:[#allocation0]]
  $region34: #{cnn1d_forward.10} parent=0
    _
  %s7 = ssub.s32 1, %s5
  %s8 = scalar_select 0, %s7, %s5
  $region1: #{cnn1d_forward.10} parent=0
    #allocation2 [shape = 'u8[262144]{0}', space=vmem, size = 0x40000, scoped, tag = 'input window, operand 2, single buffered']
    #allocation3 [shape = 's32[1]{0}', space=sflag, size = 0x4, scoped, tag = 'scoped memory for cnn1d_forward.10']
    #allocation4 [shape = 'u8[1024]{0}', space=vmem, size = 0x400, scoped, tag = 'input window, operand 3, single buffered']
    #allocation5 [shape = 's32[1]{0}', space=sflag, size = 0x4, scoped, tag = 'scoped memory for cnn1d_forward.10']
    %9 = vsyncpa [#allocation3], 0
    %10 = vsyncpa [#allocation5], 0
    // Predicated region
    $region2: #{cnn1d_forward.10} parent=1 // pred_check
      _
    $region3: #{cnn1d_forward.10} parent=1 // pred_check_branch
      %12 = sbr.rel (0) target = $region5
    $region4: #{cnn1d_forward.10} parent=1 // pred_region
      _
    $region5: #{cnn1d_forward.10} parent=1 // pred_fallthru
      _
    // Predicated region
    $region6: #{cnn1d_forward.10} parent=1 // pred_check
      _
    $region7: #{cnn1d_forward.10} parent=1 // pred_check_branch
      %14 = sbr.rel (0) target = $region9
    $region8: #{cnn1d_forward.10} parent=1 // pred_region
      _
    $region9: #{cnn1d_forward.10} parent=1 // pred_fallthru
      _
    // Predicated region
    $region10: #{cnn1d_forward.10} parent=1 // pred_check
      _
    $region11: #{cnn1d_forward.10} parent=1 // pred_check_branch
      %16 = sbr.rel (0) target = $region13
    $region12: #{cnn1d_forward.10} parent=1 // pred_region
      %s18 = ssub.s32 8192, 8192
      %19 = vsyncadd [#allocation3], %s18
      %s20 = sshll.u32 [#allocation2], 4
      %s21 = int_to_ptr.vmem [resolvable:$true] %s20
      %26 = dma.hbm_to_vmem [thread:$0]  %s2, 8192, %s21, [#allocation3], 256, 256, 16
    $region13: #{cnn1d_forward.10} parent=1 // pred_fallthru
      _
    // Predicated region
    $region14: #{cnn1d_forward.10} parent=1 // pred_check
      _
    $region15: #{cnn1d_forward.10} parent=1 // pred_check_branch
      %28 = sbr.rel (0) target = $region17
    $region16: #{cnn1d_forward.10} parent=1 // pred_region
      %s30 = ssub.s32 32, 32
      %31 = vsyncadd [#allocation5], %s30
      %s33 = sshll.u32 [#allocation4], 4
      %s34 = int_to_ptr.vmem [resolvable:$true] %s33
      %36 = dma.hbm_to_vmem [thread:$0]  %s3, 32, %s34, [#allocation5]
    $region17: #{cnn1d_forward.10} parent=1 // pred_fallthru
      _
    // Predicated region
    $region18: #{cnn1d_forward.10} parent=1 // pred_check
      _
    $region19: #{cnn1d_forward.10} parent=1 // pred_check_branch
      %38 = sbr.rel (0) target = $region21
    $region20: #{cnn1d_forward.10} parent=1 // pred_region
      %39 = dma.done [#allocation3], 8192
    $region21: #{cnn1d_forward.10} parent=1 // pred_fallthru
      _
    // Predicated region
    $region22: #{cnn1d_forward.10} parent=1 // pred_check
      _
    $region23: #{cnn1d_forward.10} parent=1 // pred_check_branch
      %41 = sbr.rel (0) target = $region25
    $region24: #{cnn1d_forward.10} parent=1 // pred_region
      %42 = dma.done [#allocation5], 32
    $region25: #{cnn1d_forward.10} parent=1 // pred_fallthru
      _
    %v43 = vld [vmem:[%s0] sm:$0xff]
    %v44 = vld [vmem:[%s0 + $0x8] sm:$0xff]
    %v45 = vld [vmem:[%s0 + $0x10] sm:$0xff]
    %v46 = vld [vmem:[%s0 + $0x18] sm:$0xff]
    %v47 = vld [vmem:[#allocation2] sm:$0xff]
    %v48 = vld [vmem:[#allocation2 + $0x8] sm:$0xff]
    %v49 = vld [vmem:[#allocation2 + $0x10] sm:$0xff]
    %v50 = vld [vmem:[#allocation2 + $0x18] sm:$0xff]
    %v51 = vld [vmem:[#allocation2 + $0x20] sm:$0xff]
    %v52 = vld [vmem:[#allocation2 + $0x28] sm:$0xff]
    %v53 = vld [vmem:[#allocation2 + $0x30] sm:$0xff]
    %v54 = vld [vmem:[#allocation2 + $0x38] sm:$0xff]
    %v55 = vld [vmem:[#allocation2 + $0x40] sm:$0xff]
    %v56 = vld [vmem:[#allocation2 + $0x48] sm:$0xff]
    %v57 = vld [vmem:[#allocation2 + $0x50] sm:$0xff]
    %v58 = vld [vmem:[#allocation2 + $0x58] sm:$0xff]
    %v59 = vld [vmem:[#allocation2 + $0x60] sm:$0xff]
    %v60 = vld [vmem:[#allocation2 + $0x68] sm:$0xff]
    %v61 = vld [vmem:[#allocation2 + $0x70] sm:$0xff]
    %v62 = vld [vmem:[#allocation2 + $0x78] sm:$0xff]
    %v63 = vld [vmem:[#allocation2 + $0x80] sm:$0xff]
    %v64 = vld [vmem:[#allocation2 + $0x88] sm:$0xff]
    %v65 = vld [vmem:[#allocation2 + $0x90] sm:$0xff]
    %v66 = vld [vmem:[#allocation2 + $0x98] sm:$0xff]
    %v67 = vld [vmem:[#allocation2 + $0xa0] sm:$0xff]
    %v68 = vld [vmem:[#allocation2 + $0xa8] sm:$0xff]
    %v69 = vld [vmem:[#allocation2 + $0xb0] sm:$0xff]
    %v70 = vld [vmem:[#allocation2 + $0xb8] sm:$0xff]
    %v71 = vld [vmem:[#allocation2 + $0xc0] sm:$0xff]
    %v72 = vld [vmem:[#allocation2 + $0xc8] sm:$0xff]
    %v73 = vld [vmem:[#allocation2 + $0xd0] sm:$0xff]
    %v74 = vld [vmem:[#allocation2 + $0xd8] sm:$0xff]
    %v75 = vld [vmem:[#allocation2 + $0xe0] sm:$0xff]
    %v76 = vld [vmem:[#allocation2 + $0xe8] sm:$0xff]
    %v77 = vld [vmem:[#allocation2 + $0xf0] sm:$0xff]
    %v78 = vld [vmem:[#allocation2 + $0xf8] sm:$0xff]
    %v79 = vld [vmem:[#allocation2 + $0x100] sm:$0xff]
    %v80 = vld [vmem:[#allocation2 + $0x108] sm:$0xff]
    %v81 = vld [vmem:[#allocation2 + $0x110] sm:$0xff]
    %v82 = vld [vmem:[#allocation2 + $0x118] sm:$0xff]
    %v83 = vld [vmem:[#allocation2 + $0x120] sm:$0xff]
    %v84 = vld [vmem:[#allocation2 + $0x128] sm:$0xff]
    %v85 = vld [vmem:[#allocation2 + $0x130] sm:$0xff]
    %v86 = vld [vmem:[#allocation2 + $0x138] sm:$0xff]
    %v87 = vld [vmem:[#allocation2 + $0x140] sm:$0xff]
    %v88 = vld [vmem:[#allocation2 + $0x148] sm:$0xff]
    %v89 = vld [vmem:[#allocation2 + $0x150] sm:$0xff]
    %v90 = vld [vmem:[#allocation2 + $0x158] sm:$0xff]
    %v91 = vld [vmem:[#allocation2 + $0x160] sm:$0xff]
    %v92 = vld [vmem:[#allocation2 + $0x168] sm:$0xff]
    %v93 = vld [vmem:[#allocation2 + $0x170] sm:$0xff]
    %v94 = vld [vmem:[#allocation2 + $0x178] sm:$0xff]
    %v95 = vld [vmem:[#allocation2 + $0x180] sm:$0xff]
    %v96 = vld [vmem:[#allocation2 + $0x188] sm:$0xff]
    %v97 = vld [vmem:[#allocation2 + $0x190] sm:$0xff]
    %v98 = vld [vmem:[#allocation2 + $0x198] sm:$0xff]
    %v99 = vld [vmem:[#allocation2 + $0x1a0] sm:$0xff]
    %v100 = vld [vmem:[#allocation2 + $0x1a8] sm:$0xff]
    %v101 = vld [vmem:[#allocation2 + $0x1b0] sm:$0xff]
    %v102 = vld [vmem:[#allocation2 + $0x1b8] sm:$0xff]
    %v103 = vld [vmem:[#allocation2 + $0x1c0] sm:$0xff]
    %v104 = vld [vmem:[#allocation2 + $0x1c8] sm:$0xff]
    %v105 = vld [vmem:[#allocation2 + $0x1d0] sm:$0xff]
    %v106 = vld [vmem:[#allocation2 + $0x1d8] sm:$0xff]
    %v107 = vld [vmem:[#allocation2 + $0x1e0] sm:$0xff]
    %v108 = vld [vmem:[#allocation2 + $0x1e8] sm:$0xff]
    %v109 = vld [vmem:[#allocation2 + $0x1f0] sm:$0xff]
    %v110 = vld [vmem:[#allocation2 + $0x1f8] sm:$0xff]
    %111 = vmatprep.subr.mxu0 %v48
    %112 = vmatpush1.msra.mxu0 %v47
    %113 = vmatprep.subr.mxu0 %v50
    %114 = vmatpush1.msra.mxu0 %v49
    %115 = vmatprep.subr.mxu0 %v52
    %116 = vmatpush1.msra.mxu0 %v51
    %117 = vmatprep.subr.mxu0 %v54
    %118 = vmatpush1.msra.mxu0 %v53
    %119 = vmatprep.subr.mxu0 %v56
    %120 = vmatpush1.msra.mxu0 %v55
    %121 = vmatprep.subr.mxu0 %v58
    %122 = vmatpush1.msra.mxu0 %v57
    %123 = vmatprep.subr.mxu0 %v60
    %124 = vmatpush1.msra.mxu0 %v59
    %125 = vmatprep.subr.mxu0 %v62
    %126 = vmatpush1.msra.mxu0 %v61
    %127 = vmatprep.subr.mxu0 %v64
    %128 = vmatpush1.msra.mxu0 %v63
    %129 = vmatprep.subr.mxu0 %v66
    %130 = vmatpush1.msra.mxu0 %v65
    %131 = vmatprep.subr.mxu0 %v68
    %132 = vmatpush1.msra.mxu0 %v67
    %133 = vmatprep.subr.mxu0 %v70
    %134 = vmatpush1.msra.mxu0 %v69
    %135 = vmatprep.subr.mxu0 %v72
    %136 = vmatpush1.msra.mxu0 %v71
    %137 = vmatprep.subr.mxu0 %v74
    %138 = vmatpush1.msra.mxu0 %v73
    %139 = vmatprep.subr.mxu0 %v76
    %140 = vmatpush1.msra.mxu0 %v75
    %141 = vmatprep.subr.mxu0 %v78
    %142 = vmatpush1.msra.mxu0 %v77
    %143 = vmatprep.subr.mxu0 %v80
    %144 = vmatpush1.msra.mxu0 %v79
    %145 = vmatprep.subr.mxu0 %v82
    %146 = vmatpush1.msra.mxu0 %v81
    %147 = vmatprep.subr.mxu0 %v84
    %148 = vmatpush1.msra.mxu0 %v83
    %149 = vmatprep.subr.mxu0 %v86
    %150 = vmatpush1.msra.mxu0 %v85
    %151 = vmatprep.subr.mxu0 %v88
    %152 = vmatpush1.msra.mxu0 %v87
    %153 = vmatprep.subr.mxu0 %v90
    %154 = vmatpush1.msra.mxu0 %v89
    %155 = vmatprep.subr.mxu0 %v92
    %156 = vmatpush1.msra.mxu0 %v91
    %157 = vmatprep.subr.mxu0 %v94
    %158 = vmatpush1.msra.mxu0 %v93
    %159 = vmatprep.subr.mxu0 %v96
    %160 = vmatpush1.msra.mxu0 %v95
    %161 = vmatprep.subr.mxu0 %v98
    %162 = vmatpush1.msra.mxu0 %v97
    %163 = vmatprep.subr.mxu0 %v100
    %164 = vmatpush1.msra.mxu0 %v99
    %165 = vmatprep.subr.mxu0 %v102
    %166 = vmatpush1.msra.mxu0 %v101
    %167 = vmatprep.subr.mxu0 %v104
    %168 = vmatpush1.msra.mxu0 %v103
    %169 = vmatprep.subr.mxu0 %v106
    %170 = vmatpush1.msra.mxu0 %v105
    %171 = vmatprep.subr.mxu0 %v108
    %172 = vmatpush1.msra.mxu0 %v107
    %173 = vmatprep.subr.mxu0 %v110
    %174 = vmatpush1.msra.mxu0 %v109
    %175 = vmatprep.mubr.f32.mxu0 %v44
    %176 = vmatmul.mubr.f32.gmra.mrb[0].mxu0 %v43
    %v177 = vpop.f32.mrb[0].mxu0
    %v178 = vadd.f32 0.0, %v177
    %v179 = vpop.f32.mrb[0].mxu0
    %v180 = vadd.f32 0.0, %v179
    %181 = vmatprep.mubr.f32.mxu0 %v46
    %182 = vmatmul.mubr.f32.gmra.mrb[0].mxu0 %v45
    %v183 = vpop.f32.mrb[0].mxu0
    %v184 = vadd.f32 0.0, %v183
    %v185 = vpop.f32.mrb[0].mxu0
    %v186 = vadd.f32 0.0, %v185
    %187 = vdwg.mxu0
    %v188 = vld [vmem:[%s1] sm:$0xff]
    %v189 = vld [vmem:[%s1 + $0x8] sm:$0xff]
    %v190 = vld [vmem:[%s1 + $0x10] sm:$0xff]
    %v191 = vld [vmem:[%s1 + $0x18] sm:$0xff]
    %192 = vmatprep.subr.mxu0 %v48
    %193 = vmatpush1.msra.mxu0 %v47
    %194 = vmatprep.subr.mxu0 %v50
    %195 = vmatpush1.msra.mxu0 %v49
    %196 = vmatprep.subr.mxu0 %v52
    %197 = vmatpush1.msra.mxu0 %v51
    %198 = vmatprep.subr.mxu0 %v54
    %199 = vmatpush1.msra.mxu0 %v53
    %200 = vmatprep.subr.mxu0 %v56
    %201 = vmatpush1.msra.mxu0 %v55
    %202 = vmatprep.subr.mxu0 %v58
    %203 = vmatpush1.msra.mxu0 %v57
    %204 = vmatprep.subr.mxu0 %v60
    %205 = vmatpush1.msra.mxu0 %v59
    %206 = vmatprep.subr.mxu0 %v62
    %207 = vmatpush1.msra.mxu0 %v61
    %208 = vmatprep.subr.mxu0 %v64
    %209 = vmatpush1.msra.mxu0 %v63
    %210 = vmatprep.subr.mxu0 %v66
    %211 = vmatpush1.msra.mxu0 %v65
    %212 = vmatprep.subr.mxu0 %v68
    %213 = vmatpush1.msra.mxu0 %v67
    %214 = vmatprep.subr.mxu0 %v70
    %215 = vmatpush1.msra.mxu0 %v69
    %216 = vmatprep.subr.mxu0 %v72
    %217 = vmatpush1.msra.mxu0 %v71
    %218 = vmatprep.subr.mxu0 %v74
    %219 = vmatpush1.msra.mxu0 %v73
    %220 = vmatprep.subr.mxu0 %v76
    %221 = vmatpush1.msra.mxu0 %v75
    %222 = vmatprep.subr.mxu0 %v78
    %223 = vmatpush1.msra.mxu0 %v77
    %224 = vmatprep.subr.mxu0 %v80
    %225 = vmatpush1.msra.mxu0 %v79
    %226 = vmatprep.subr.mxu0 %v82
    %227 = vmatpush1.msra.mxu0 %v81
    %228 = vmatprep.subr.mxu0 %v84
    %229 = vmatpush1.msra.mxu0 %v83
    %230 = vmatprep.subr.mxu0 %v86
    %231 = vmatpush1.msra.mxu0 %v85
    %232 = vmatprep.subr.mxu0 %v88
    %233 = vmatpush1.msra.mxu0 %v87
    %234 = vmatprep.subr.mxu0 %v90
    %235 = vmatpush1.msra.mxu0 %v89
    %236 = vmatprep.subr.mxu0 %v92
    %237 = vmatpush1.msra.mxu0 %v91
    %238 = vmatprep.subr.mxu0 %v94
    %239 = vmatpush1.msra.mxu0 %v93
    %240 = vmatprep.subr.mxu0 %v96
    %241 = vmatpush1.msra.mxu0 %v95
    %242 = vmatprep.subr.mxu0 %v98
    %243 = vmatpush1.msra.mxu0 %v97
    %244 = vmatprep.subr.mxu0 %v100
    %245 = vmatpush1.msra.mxu0 %v99
    %246 = vmatprep.subr.mxu0 %v102
    %247 = vmatpush1.msra.mxu0 %v101
    %248 = vmatprep.subr.mxu0 %v104
    %249 = vmatpush1.msra.mxu0 %v103
    %250 = vmatprep.subr.mxu0 %v106
    %251 = vmatpush1.msra.mxu0 %v105
    %252 = vmatprep.subr.mxu0 %v108
    %253 = vmatpush1.msra.mxu0 %v107
    %254 = vmatprep.subr.mxu0 %v110
    %255 = vmatpush1.msra.mxu0 %v109
    %256 = vmatprep.mubr.f32.mxu0 %v189
    %257 = vmatmul.mubr.f32.gmra.mrb[0].mxu0 %v188
    %v258 = vpop.f32.mrb[0].mxu0
    %v259 = vadd.f32 0.0, %v258
    %v260 = vpop.f32.mrb[0].mxu0
    %v261 = vadd.f32 0.0, %v260
    %262 = vmatprep.mubr.f32.mxu0 %v191
    %263 = vmatmul.mubr.f32.gmra.mrb[0].mxu0 %v190
    %v264 = vpop.f32.mrb[0].mxu0
    %v265 = vadd.f32 0.0, %v264
    %v266 = vpop.f32.mrb[0].mxu0
    %v267 = vadd.f32 0.0, %v266
    %268 = vdwg.mxu0
    %v269 = vmax.f32 %v178, %v259
    %v270 = vmax.f32 %v180, %v261
    %v271 = vmax.f32 %v184, %v265
    %v272 = vmax.f32 %v186, %v267
    %v273 = vld [vmem:[#allocation4] sm:$0x3]
    %v275 = vlaneseq
    %v276 = vshrl.u32 %v275, 7
    %v277 = vsub.s32 0, %v276
    %v278 = vrot.slane %v273, %v277
    %v279 = vlaneseq
    %v280 = vshrl.u32 %v279, 7
    %v281 = vsub.s32 1, %v280
    %v282 = vrot.slane %v273, %v281
    %v285 = vadd.f32 %v269, %v278
    %v286 = vadd.f32 %v270, %v282
    %v287 = vadd.f32 %v271, %v278
    %v288 = vadd.f32 %v272, %v282
    %v289 = vmax.f32 %v285, 0.0
    %v290 = vmax.f32 %v286, 0.0
    %v291 = vmax.f32 %v287, 0.0
    %v292 = vmax.f32 %v288, 0.0
    %293 = vst [vmem:[%s4] sm:$0xff] %v289
    %294 = vst [vmem:[%s4 + $0x8] sm:$0xff] %v290
    %295 = vst [vmem:[%s4 + $0x10] sm:$0xff] %v291
    %296 = vst [vmem:[%s4 + $0x18] sm:$0xff] %v292
    // Predicated region
    $region26: #{cnn1d_forward.10} parent=1 // pred_check
      _
    $region27: #{cnn1d_forward.10} parent=1 // pred_check_branch
      %298 = sbr.rel (0) target = $region29
    $region28: #{cnn1d_forward.10} parent=1 // pred_region
      _
    $region29: #{cnn1d_forward.10} parent=1 // pred_fallthru
      _
    // Predicated region
    $region30: #{cnn1d_forward.10} parent=1 // pred_check
      _
    $region31: #{cnn1d_forward.10} parent=1 // pred_check_branch
      %300 = sbr.rel (0) target = $region33
    $region32: #{cnn1d_forward.10} parent=1 // pred_region
      _
    $region33: #{cnn1d_forward.10} parent=1 // pred_fallthru
      _
    %301 = vsyncpa [#allocation3], 1
    %302 = vsyncpa [#allocation5], 1

// kernel: cnn1d_forward.11
$region0: #{cnn1d_forward.11}
  #allocation0 [shape = 'u32[]', space=smem, size = 0x4, offset = 0x4, fixed_abs, tag = 'smem constant byte address 0x4 - core index']
  #allocation1 [shape = 'u32[144,128]{1,0:T(1,128)}', space=vmem, size = 0x12000, scoped, tag = 'internal scratch']
  %s0 = inlined_call_operand.vmem [shape: f32[2,2048], index: 0, kind: input, shape index: {}]
  %s1 = inlined_call_operand.hbm [shape: bf16[2048,3072], index: 1, kind: input, shape index: {}]
  %s2 = inlined_call_operand.hbm [shape: f32[1,3072], index: 2, kind: input, shape index: {}]
  %s3 = inlined_call_operand.hbm [shape: f32[3072,128], index: 3, kind: input, shape index: {}]
  %s4 = inlined_call_operand.hbm [shape: f32[1,128], index: 4, kind: input, shape index: {}]
  %s5 = inlined_call_operand.hbm [shape: f32[2,128], index: 5, kind: output, shape index: {}]
  %s6 = sld [smem:[#allocation0]]
  $region77: #{cnn1d_forward.11} parent=0
    _
  %s8 = ssub.s32 1, %s6
  %s9 = scalar_select 0, %s8, %s6
  $region1: #{cnn1d_forward.11} parent=0
    #allocation2 [shape = 'u8[4194304]{0}', space=vmem, size = 0x400000, scoped, tag = 'input window, operand 1']
    #allocation3 [shape = 's32[2]{0}', space=sflag, size = 0x8, scoped, tag = 'scoped memory for cnn1d_forward.11']
    #allocation4 [shape = 's32[2]{0}', space=sflag, size = 0x8, scoped, tag = 'scoped memory for cnn1d_forward.11']
    #allocation5 [shape = 'u8[4096]{0}', space=vmem, size = 0x1000, scoped, tag = 'input window, operand 2']
    #allocation6 [shape = 's32[2]{0}', space=sflag, size = 0x8, scoped, tag = 'scoped memory for cnn1d_forward.11']
    #allocation7 [shape = 'u8[524288]{0}', space=vmem, size = 0x80000, scoped, tag = 'input window, operand 3']
    #allocation8 [shape = 'u8[512]{0}', space=vmem, size = 0x400, scoped, tag = 'input window, operand 4, single buffered']
    #allocation9 [shape = 's32[1]{0}', space=sflag, size = 0x4, scoped, tag = 'scoped memory for cnn1d_forward.11']
    #allocation10 [shape = 'u8[1024]{0}', space=vmem, size = 0x400, scoped, tag = 'output window, operand 0, single buffered']
    %10 = vsyncpa [#allocation3], 0
    %s11 = scalar_lea.sflag [#allocation3], 1
    %12 = vsyncpa %s11, 0
    %13 = vsyncpa [#allocation6], 0
    %s14 = scalar_lea.sflag [#allocation6], 1
    %15 = vsyncpa %s14, 0
    %16 = vsyncpa [#allocation9], 0
    %17 = vsyncpa [#allocation4], 0
    loop: start=0, step=1, limit=8
    $region2: #{cnn1d_forward.11} parent=1 // loop_pre_header
      _
    $region3: #{cnn1d_forward.11} parent=1 // loop_header
      %s19 = sphi 0, %s23
      %p20 = scmp.ge.s32.totalorder %s19, 8
      %s27 = sphi 0, %s27
      %s29 = sphi 0, %s27
      %s30 = sphi 0, %s29
      %s44 = sphi 0, %s30
      %s50 = sphi 0, %s52
      %s53 = sphi 0, %s50
      %s54 = sphi 0, %s53
      %s70 = sphi 0, %s54
      %s76 = sphi 0, %s78
      %s79 = sphi 0, %s76
      %s80 = sphi 0, %s79
      %s96 = sphi 0, %s80
      %s102 = sphi 0, %s104
      %s105 = sphi 0, %s102
      %s106 = sphi 0, %s105
      %s122 = sphi 0, %s106
      %s126 = sphi 0, %s126
      %s128 = sphi 0, %s126
      %s129 = sphi 0, %s128
      %s143 = sphi 0, %s129
      %s147 = sphi 0, %s147
      %s149 = sphi 0, %s147
      %s150 = sphi 0, %s149
      %s164 = sphi 0, %s150
    $region4: #{cnn1d_forward.11} parent=1 // loop_header_branch
      %22 = sbr.rel (%p20) target = $region8
    $region5: #{cnn1d_forward.11} parent=1 // loop_body
      %s24 = ssub.s32 %s19, 1
      %s25 = ssub.s32 %s19, 2
      %s26 = sadd.s32 %s19, 1
      %s28 = sadd.s32 %s27, 1
      %p31 = scmp.eq.s32.totalorder %s19, 5
      %p32 = scmp.ne.s32.totalorder %s27, %s29
      %p33 = scmp.eq.s32.totalorder %s19, 0
      %p34 = por %p32, %p33
      %p35 = scmp.ne.s32.totalorder %s27, %s29
      %p36 = scmp.eq.s32.totalorder %s24, 5
      %p37 = por %p35, %p36
      %p38 = scmp.ne.s32.totalorder %s29, %s30
      %p39 = scmp.eq.s32.totalorder %s24, 0
      %p40 = por %p38, %p39
      %p41 = scmp.ne.s32.totalorder %s29, %s30
      %p42 = scmp.eq.s32.totalorder %s25, 5
      %p43 = por %p41, %p42
      %p45 = scmp.ne.s32.totalorder %s30, %s44
      %p46 = scmp.eq.s32.totalorder %s25, 0
      %p47 = por %p45, %p46
      %s48 = ssub.s32 %s19, %s26
      %p49 = scmp.eq.s32.totalorder %s48, 0
      %s51 = sadd.s32 %s50, 1
      %s52 = scalar_select %p49, %s50, %s51
      %p55 = pneg %p49
      %p56 = scmp.eq.s32.totalorder %s19, 5
      %p57 = por %p55, %p56
      %p58 = scmp.ne.s32.totalorder %s50, %s53
      %p59 = scmp.eq.s32.totalorder %s19, 0
      %p60 = por %p58, %p59
      %p61 = scmp.ne.s32.totalorder %s50, %s53
      %p62 = scmp.eq.s32.totalorder %s24, 5
      %p63 = por %p61, %p62
      %p64 = scmp.ne.s32.totalorder %s53, %s54
      %p65 = scmp.eq.s32.totalorder %s24, 0
      %p66 = por %p64, %p65
      %p67 = scmp.ne.s32.totalorder %s53, %s54
      %p68 = scmp.eq.s32.totalorder %s25, 5
      %p69 = por %p67, %p68
      %p71 = scmp.ne.s32.totalorder %s54, %s70
      %p72 = scmp.eq.s32.totalorder %s25, 0
      %p73 = por %p71, %p72
      %s74 = ssub.s32 %s19, %s26
      %p75 = scmp.eq.s32.totalorder %s74, 0
      %s77 = sadd.s32 %s76, 1
      %s78 = scalar_select %p75, %s76, %s77
      %p81 = pneg %p75
      %p82 = scmp.eq.s32.totalorder %s19, 5
      %p83 = por %p81, %p82
      %p84 = scmp.ne.s32.totalorder %s76, %s79
      %p85 = scmp.eq.s32.totalorder %s19, 0
      %p86 = por %p84, %p85
      %p87 = scmp.ne.s32.totalorder %s76, %s79
      %p88 = scmp.eq.s32.totalorder %s24, 5
      %p89 = por %p87, %p88
      %p90 = scmp.ne.s32.totalorder %s79, %s80
      %p91 = scmp.eq.s32.totalorder %s24, 0
      %p92 = por %p90, %p91
      %p93 = scmp.ne.s32.totalorder %s79, %s80
      %p94 = scmp.eq.s32.totalorder %s25, 5
      %p95 = por %p93, %p94
      %p97 = scmp.ne.s32.totalorder %s80, %s96
      %p98 = scmp.eq.s32.totalorder %s25, 0
      %p99 = por %p97, %p98
      %s100 = ssub.s32 %s19, %s26
      %p101 = scmp.eq.s32.totalorder %s100, 0
      %s103 = sadd.s32 %s102, 1
      %s104 = scalar_select %p101, %s102, %s103
      %p107 = pneg %p101
      %p108 = scmp.eq.s32.totalorder %s19, 5
      %p109 = por %p107, %p108
      %p110 = scmp.ne.s32.totalorder %s102, %s105
      %p111 = scmp.eq.s32.totalorder %s19, 0
      %p112 = por %p110, %p111
      %p113 = scmp.ne.s32.totalorder %s102, %s105
      %p114 = scmp.eq.s32.totalorder %s24, 5
      %p115 = por %p113, %p114
      %p116 = scmp.ne.s32.totalorder %s105, %s106
      %p117 = scmp.eq.s32.totalorder %s24, 0
      %p118 = por %p116, %p117
      %p119 = scmp.ne.s32.totalorder %s105, %s106
      %p120 = scmp.eq.s32.totalorder %s25, 5
      %p121 = por %p119, %p120
      %p123 = scmp.ne.s32.totalorder %s106, %s122
      %p124 = scmp.eq.s32.totalorder %s25, 0
      %p125 = por %p123, %p124
      %s127 = sadd.s32 %s126, 1
      %p130 = scmp.eq.s32.totalorder %s19, 5
      %p131 = scmp.ne.s32.totalorder %s126, %s128
      %p132 = scmp.eq.s32.totalorder %s19, 0
      %p133 = por %p131, %p132
      %p134 = scmp.ne.s32.totalorder %s126, %s128
      %p135 = scmp.eq.s32.totalorder %s24, 5
      %p136 = por %p134, %p135
      %p137 = scmp.ne.s32.totalorder %s128, %s129
      %p138 = scmp.eq.s32.totalorder %s24, 0
      %p139 = por %p137, %p138
      %p140 = scmp.ne.s32.totalorder %s128, %s129
      %p141 = scmp.eq.s32.totalorder %s25, 5
      %p142 = por %p140, %p141
      %p144 = scmp.ne.s32.totalorder %s129, %s143
      %p145 = scmp.eq.s32.totalorder %s25, 0
      %p146 = por %p144, %p145
      %s148 = sadd.s32 %s147, 1
      %p151 = scmp.eq.s32.totalorder %s19, 5
      %p152 = scmp.ne.s32.totalorder %s147, %s149
      %p153 = scmp.eq.s32.totalorder %s19, 0
      %p154 = por %p152, %p153
      %p155 = scmp.ne.s32.totalorder %s147, %s149
      %p156 = scmp.eq.s32.totalorder %s24, 5
      %p157 = por %p155, %p156
      %p158 = scmp.ne.s32.totalorder %s149, %s150
      %p159 = scmp.eq.s32.totalorder %s24, 0
      %p160 = por %p158, %p159
      %p161 = scmp.ne.s32.totalorder %s149, %s150
      %p162 = scmp.eq.s32.totalorder %s25, 5
      %p163 = por %p161, %p162
      %p165 = scmp.ne.s32.totalorder %s150, %s164
      %p166 = scmp.eq.s32.totalorder %s25, 0
      %p167 = por %p165, %p166
      %p168 = scmp.le.s32.totalorder 1, %s19
      %p169 = scmp.lt.s32.totalorder %s19, 7
      %p170 = pnand %p168, %p169
      %p171 = pneg %p170
      // Predicated region
      $region9: #{cnn1d_forward.11} parent=5 // pred_check
        _
      $region10: #{cnn1d_forward.11} parent=5 // pred_check_branch
        %173 = sbr.rel (%p170) target = $region12
      $region11: #{cnn1d_forward.11} parent=5 // pred_region
        %s174 = ssub.s32 %s19, 1
        // Predicated region
        $region13: #{cnn1d_forward.11} parent=11 // pred_check
          %p175 = pneg %p40
        $region14: #{cnn1d_forward.11} parent=11 // pred_check_branch
          %177 = sbr.rel (%p175) target = $region16
        $region15: #{cnn1d_forward.11} parent=11 // pred_region
          _
        $region16: #{cnn1d_forward.11} parent=11 // pred_fallthru
          _
        // Predicated region
        $region17: #{cnn1d_forward.11} parent=11 // pred_check
          %p178 = pneg %p139
        $region18: #{cnn1d_forward.11} parent=11 // pred_check_branch
          %180 = sbr.rel (%p178) target = $region20
        $region19: #{cnn1d_forward.11} parent=11 // pred_region
          %s182 = ssub.s32 16, 16
          %183 = vsyncadd [#allocation9], %s182
          %s185 = sshll.u32 [#allocation8], 4
          %s186 = int_to_ptr.vmem [resolvable:$true] %s185
          %188 = dma.hbm_to_vmem [thread:$0]  %s4, 16, %s186, [#allocation9]
        $region20: #{cnn1d_forward.11} parent=11 // pred_fallthru
          _
      $region12: #{cnn1d_forward.11} parent=5 // pred_fallthru
        _
      %p189 = scmp.lt.s32.totalorder %s19, 6
      // Predicated region
      $region21: #{cnn1d_forward.11} parent=5 // pred_check
        %p190 = pneg %p189
      $region22: #{cnn1d_forward.11} parent=5 // pred_check_branch
        %192 = sbr.rel (%p190) target = $region24
      $region23: #{cnn1d_forward.11} parent=5 // pred_region
        // Predicated region
        $region25: #{cnn1d_forward.11} parent=23 // pred_check
          %p193 = pneg %p60
        $region26: #{cnn1d_forward.11} parent=23 // pred_check_branch
          %195 = sbr.rel (%p193) target = $region28
        $region27: #{cnn1d_forward.11} parent=23 // pred_region
          %s196 = sand.u32 %s50, 1
          %s197 = scalar_lea.sflag [#allocation3], %s196
          %s198 = sand.u32 %s50, 1
          %s199 = smul.addr %s198, 4096
          %s200 = scalar_lea.vmem [#allocation2], %s199
          %s201 = smul.u32 4, %s19
          %s203 = ssub.s32 65536, 65536
          %204 = vsyncadd %s197, %s203
          %s205 = smul.addr %s201, 64
          %s206 = scalar_lea.hbm %s1, %s205
          %s207 = sshll.u32 %s200, 4
          %s208 = int_to_ptr.vmem [resolvable:$true] %s207
          %213 = dma.hbm_to_vmem [thread:$0]  %s206, 65536, %s208, %s197, 1536, 256, 16
        $region28: #{cnn1d_forward.11} parent=23 // pred_fallthru
          _
        // Predicated region
        $region29: #{cnn1d_forward.11} parent=23 // pred_check
          %p214 = pneg %p86
        $region30: #{cnn1d_forward.11} parent=23 // pred_check_branch
          %216 = sbr.rel (%p214) target = $region32
        $region31: #{cnn1d_forward.11} parent=23 // pred_region
          %s217 = sand.u32 %s19, 1
          %s218 = scalar_lea.sflag [#allocation6], %s217
          %s219 = sand.u32 %s76, 1
          %s220 = smul.addr %s219, 4
          %s221 = scalar_lea.vmem [#allocation5], %s220
          %s222 = smul.u32 4, %s19
          %s224 = ssub.s32 64, 64
          %225 = vsyncadd %s218, %s224
          %s226 = smul.addr %s222, 16
          %s227 = scalar_lea.hbm %s2, %s226
          %s229 = sshll.u32 %s221, 4
          %s230 = int_to_ptr.vmem [resolvable:$true] %s229
          %232 = dma.hbm_to_vmem [thread:$0]  %s227, 64, %s230, %s218
        $region32: #{cnn1d_forward.11} parent=23 // pred_fallthru
          _
        // Predicated region
        $region33: #{cnn1d_forward.11} parent=23 // pred_check
          %p233 = pneg %p112
        $region34: #{cnn1d_forward.11} parent=23 // pred_check_branch
          %235 = sbr.rel (%p233) target = $region36
        $region35: #{cnn1d_forward.11} parent=23 // pred_region
          %s236 = sand.u32 %s19, 1
          %s237 = scalar_lea.sflag [#allocation6], %s236
          %s238 = sand.u32 %s102, 1
          %s239 = smul.addr %s238, 512
          %s240 = scalar_lea.vmem [#allocation7], %s239
          %s241 = smul.u32 64, %s19
          %s243 = ssub.s32 8192, 8192
          %244 = vsyncadd %s237, %s243
          %s245 = smul.addr %s241, 128
          %s246 = scalar_lea.hbm %s3, %s245
          %s247 = sshll.u32 %s240, 4
          %s248 = int_to_ptr.vmem [resolvable:$true] %s247
          %253 = dma.hbm_to_vmem [thread:$0]  %s246, 8192, %s248, %s237, 128, 128, 8
        $region36: #{cnn1d_forward.11} parent=23 // pred_fallthru
          _
      $region24: #{cnn1d_forward.11} parent=5 // pred_fallthru
        _
      %p254 = scmp.le.s32.totalorder 1, %s19
      %p255 = scmp.lt.s32.totalorder %s19, 7
      %p256 = pnand %p254, %p255
      %p257 = pneg %p256
      // Predicated region
      $region37: #{cnn1d_forward.11} parent=5 // pred_check
        _
      $region38: #{cnn1d_forward.11} parent=5 // pred_check_branch
        %259 = sbr.rel (%p256) target = $region40
      $region39: #{cnn1d_forward.11} parent=5 // pred_region
        %s260 = ssub.s32 %s19, 1
        %s261 = sand.u32 %s53, 1
        %s262 = scalar_lea.sflag [#allocation3], %s261
        %s263 = sand.u32 %s53, 1
        %s264 = smul.addr %s263, 4096
        %s265 = scalar_lea.vmem [#allocation2], %s264
        // Predicated region
        $region41: #{cnn1d_forward.11} parent=39 // pred_check
          %p266 = pneg %p66
        $region42: #{cnn1d_forward.11} parent=39 // pred_check_branch
          %268 = sbr.rel (%p266) target = $region44
        $region43: #{cnn1d_forward.11} parent=39 // pred_region
          %269 = dma.done %s262, 65536
        $region44: #{cnn1d_forward.11} parent=39 // pred_fallthru
          _
        %s270 = sand.u32 %s24, 1
        %s271 = scalar_lea.sflag [#allocation6], %s270
        %s272 = sand.u32 %s79, 1
        %s273 = smul.addr %s272, 4
        %s274 = scalar_lea.vmem [#allocation5], %s273
        // Predicated region
        $region45: #{cnn1d_forward.11} parent=39 // pred_check
          %p275 = pneg %p92
        $region46: #{cnn1d_forward.11} parent=39 // pred_check_branch
          %277 = sbr.rel (%p275) target = $region48
        $region47: #{cnn1d_forward.11} parent=39 // pred_region
          %278 = dma.done %s271, 64
        $region48: #{cnn1d_forward.11} parent=39 // pred_fallthru
          _
        %s279 = sand.u32 %s24, 1
        %s280 = scalar_lea.sflag [#allocation6], %s279
        %s281 = sand.u32 %s105, 1
        %s282 = smul.addr %s281, 512
        %s283 = scalar_lea.vmem [#allocation7], %s282
        // Predicated region
        $region49: #{cnn1d_forward.11} parent=39 // pred_check
          %p284 = pneg %p118
        $region50: #{cnn1d_forward.11} parent=39 // pred_check_branch
          %286 = sbr.rel (%p284) target = $region52
        $region51: #{cnn1d_forward.11} parent=39 // pred_region
          %287 = dma.done %s280, 8192
        $region52: #{cnn1d_forward.11} parent=39 // pred_fallthru
          _
        // Predicated region
        $region53: #{cnn1d_forward.11} parent=39 // pred_check
          %p288 = pneg %p139
        $region54: #{cnn1d_forward.11} parent=39 // pred_check_branch
          %290 = sbr.rel (%p288) target = $region56
        $region55: #{cnn1d_forward.11} parent=39 // pred_region
          %291 = dma.done [#allocation9], 16
        $region56: #{cnn1d_forward.11} parent=39 // pred_fallthru
          _
        %p292 = pneg %p40
        %p293 = pneg %p37
        %s294 = sand.u32 %s53, 1
        %s295 = scalar_lea.sflag [#allocation3], %s294
        %s296 = sand.u32 %s53, 1
        %s297 = smul.addr %s296, 4096
        %s298 = scalar_lea.vmem [#allocation2], %s297
        %p299 = pneg %p66
        %p300 = pneg %p63
        %s301 = sand.u32 %s24, 1
        %s302 = scalar_lea.sflag [#allocation6], %s301
        %s303 = sand.u32 %s79, 1
        %s304 = smul.addr %s303, 4
        %s305 = scalar_lea.vmem [#allocation5], %s304
        %p306 = pneg %p92
        %p307 = pneg %p89
        %s308 = sand.u32 %s24, 1
        %s309 = scalar_lea.sflag [#allocation6], %s308
        %s310 = sand.u32 %s105, 1
        %s311 = smul.addr %s310, 512
        %s312 = scalar_lea.vmem [#allocation7], %s311
        %p313 = pneg %p118
        %p314 = pneg %p115
        %p315 = pneg %p139
        %p316 = pneg %p136
        %p317 = pneg %p160
        %p318 = pneg %p157
        %s319 = smul.u32 4, %s24
        %s320 = smul.u32 4, %s24
        %s321 = smul.u32 64, %s24
        %p322 = scmp.eq.s32.totalorder %s24, 0
        // Predicated region
        $region57: #{cnn1d_forward.11} parent=39 // pred_check
          %p323 = pneg %p322
        $region58: #{cnn1d_forward.11} parent=39 // pred_check_branch
          %325 = sbr.rel (%p323) target = $region60
        $region59: #{cnn1d_forward.11} parent=39 // pred_region
          %326 = vst [vmem:[#allocation10] sm:$0x3] 0.0
        $region60: #{cnn1d_forward.11} parent=39 // pred_fallthru
          _
        %v327 = vld [vmem:[%s0] sm:$0xff]
        %v328 = vld [vmem:[%s0 + $0x8] sm:$0xff]
        %v329 = vld [vmem:[%s0 + $0x10] sm:$0xff]
        %v330 = vld [vmem:[%s0 + $0x18] sm:$0xff]
        %v335 = vcombine.high %v327, %v327
        %v337 = vunpack.c.l.s4 1983009808
        %v338 = vunpack.c.0.s8 %v337
        %v339 = vlaneseq
        %v340 = vshrl.u32 %v339, 7
        %v341 = vsub.s32 %v338, %v340
        %v342 = vrot.slane %v327, %v341
        %v344 = vunpack.c.l.s4 1983009808
        %v345 = vunpack.c.0.s8 %v344
        %v346 = vlaneseq
        %v347 = vshrl.u32 %v346, 7
        %v348 = vsub.s32 %v345, %v347
        %v349 = vrot.slane %v335, %v348
        %v350 = vcombine.high %v342, %v342
        %v351 = vcombine.high %v349, %v349
        %v352 = vcombine.high %v328, %v328
        %v354 = vunpack.c.l.s4 1983009808
        %v355 = vunpack.c.0.s8 %v354
        %v356 = vlaneseq
        %v357 = vshrl.u32 %v356, 7
        %v358 = vsub.s32 %v355, %v357
        %v359 = vrot.slane %v328, %v358
        %v361 = vunpack.c.l.s4 1983009808
        %v362 = vunpack.c.0.s8 %v361
        %v363 = vlaneseq
        %v364 = vshrl.u32 %v363, 7
        %v365 = vsub.s32 %v362, %v364
        %v366 = vrot.slane %v352, %v365
        %v367 = vcombine.high %v359, %v359
        %v368 = vcombine.high %v366, %v366
        %v369 = vcombine.high %v329, %v329
        %v371 = vunpack.c.l.s4 1983009808
        %v372 = vunpack.c.0.s8 %v371
        %v373 = vlaneseq
        %v374 = vshrl.u32 %v373, 7
        %v375 = vsub.s32 %v372, %v374
        %v376 = vrot.slane %v329, %v375
        %v378 = vunpack.c.l.s4 1983009808
        %v379 = vunpack.c.0.s8 %v378
        %v380 = vlaneseq
        %v381 = vshrl.u32 %v380, 7
        %v382 = vsub.s32 %v379, %v381
        %v383 = vrot.slane %v369, %v382
        %v384 = vcombine.high %v376, %v376
        %v385 = vcombine.high %v383, %v383
        %v386 = vcombine.high %v330, %v330
        %v388 = vunpack.c.l.s4 1983009808
        %v389 = vunpack.c.0.s8 %v388
        %v390 = vlaneseq
        %v391 = vshrl.u32 %v390, 7
        %v392 = vsub.s32 %v389, %v391
        %v393 = vrot.slane %v330, %v392
        %v395 = vunpack.c.l.s4 1983009808
        %v396 = vunpack.c.0.s8 %v395
        %v397 = vlaneseq
        %v398 = vshrl.u32 %v397, 7
        %v399 = vsub.s32 %v396, %v398
        %v400 = vrot.slane %v386, %v399
        %v401 = vcombine.high %v393, %v393
        %v402 = vcombine.high %v400, %v400
        %v419 = vpack.c.bf16 %v342, %v342
        %v420 = vpack.c.bf16 %v350, %v350
        %v421 = vpack.c.bf16 %v349, %v349
        %v422 = vpack.c.bf16 %v351, %v351
        %v423 = vpack.c.bf16 %v359, %v359
        %v424 = vpack.c.bf16 %v367, %v367
        %v425 = vpack.c.bf16 %v366, %v366
        %v426 = vpack.c.bf16 %v368, %v368
        %v427 = vpack.c.bf16 %v376, %v376
        %v428 = vpack.c.bf16 %v384, %v384
        %v429 = vpack.c.bf16 %v383, %v383
        %v430 = vpack.c.bf16 %v385, %v385
        %v431 = vpack.c.bf16 %v393, %v393
        %v432 = vpack.c.bf16 %v401, %v401
        %v433 = vpack.c.bf16 %v400, %v400
        %v434 = vpack.c.bf16 %v402, %v402
        %v435 = vld [vmem:[%s265] sm:$0xff]
        %v436 = vld [vmem:[%s265 + $0x8] sm:$0xff]
        %v437 = vld [vmem:[%s265 + $0x10] sm:$0xff]
        %v438 = vld [vmem:[%s265 + $0x18] sm:$0xff]
        %v439 = vld [vmem:[%s265 + $0x20] sm:$0xff]
        %v440 = vld [vmem:[%s265 + $0x28] sm:$0xff]
        %v441 = vld [vmem:[%s265 + $0x30] sm:$0xff]
        %v442 = vld [vmem:[%s265 + $0x38] sm:$0xff]
        %v443 = vld [vmem:[%s265 + $0x40] sm:$0xff]
        %v444 = vld [vmem:[%s265 + $0x48] sm:$0xff]
        %v445 = vld [vmem:[%s265 + $0x50] sm:$0xff]
        %v446 = vld [vmem:[%s265 + $0x58] sm:$0xff]
        %v447 = vld [vmem:[%s265 + $0x60] sm:$0xff]
        %v448 = vld [vmem:[%s265 + $0x68] sm:$0xff]
        %v449 = vld [vmem:[%s265 + $0x70] sm:$0xff]
        %v450 = vld [vmem:[%s265 + $0x78] sm:$0xff]
        %v451 = vld [vmem:[%s265 + $0x80] sm:$0xff]
        %v452 = vld [vmem:[%s265 + $0x88] sm:$0xff]
        %v453 = vld [vmem:[%s265 + $0x90] sm:$0xff]
        %v454 = vld [vmem:[%s265 + $0x98] sm:$0xff]
        %v455 = vld [vmem:[%s265 + $0xa0] sm:$0xff]
        %v456 = vld [vmem:[%s265 + $0xa8] sm:$0xff]
        %v457 = vld [vmem:[%s265 + $0xb0] sm:$0xff]
        %v458 = vld [vmem:[%s265 + $0xb8] sm:$0xff]
        %v459 = vld [vmem:[%s265 + $0xc0] sm:$0xff]
        %v460 = vld [vmem:[%s265 + $0xc8] sm:$0xff]
        %v461 = vld [vmem:[%s265 + $0xd0] sm:$0xff]
        %v462 = vld [vmem:[%s265 + $0xd8] sm:$0xff]
        %v463 = vld [vmem:[%s265 + $0xe0] sm:$0xff]
        %v464 = vld [vmem:[%s265 + $0xe8] sm:$0xff]
        %v465 = vld [vmem:[%s265 + $0xf0] sm:$0xff]
        %v466 = vld [vmem:[%s265 + $0xf8] sm:$0xff]
        %v467 = vld [vmem:[%s265 + $0x100] sm:$0xff]
        %v468 = vld [vmem:[%s265 + $0x108] sm:$0xff]
        %v469 = vld [vmem:[%s265 + $0x110] sm:$0xff]
        %v470 = vld [vmem:[%s265 + $0x118] sm:$0xff]
        %v471 = vld [vmem:[%s265 + $0x120] sm:$0xff]
        %v472 = vld [vmem:[%s265 + $0x128] sm:$0xff]
        %v473 = vld [vmem:[%s265 + $0x130] sm:$0xff]
        %v474 = vld [vmem:[%s265 + $0x138] sm:$0xff]
        %v475 = vld [vmem:[%s265 + $0x140] sm:$0xff]
        %v476 = vld [vmem:[%s265 + $0x148] sm:$0xff]
        %v477 = vld [vmem:[%s265 + $0x150] sm:$0xff]
        %v478 = vld [vmem:[%s265 + $0x158] sm:$0xff]
        %v479 = vld [vmem:[%s265 + $0x160] sm:$0xff]
        %v480 = vld [vmem:[%s265 + $0x168] sm:$0xff]
        %v481 = vld [vmem:[%s265 + $0x170] sm:$0xff]
        %v482 = vld [vmem:[%s265 + $0x178] sm:$0xff]
        %v483 = vld [vmem:[%s265 + $0x180] sm:$0xff]
        %v484 = vld [vmem:[%s265 + $0x188] sm:$0xff]
        %v485 = vld [vmem:[%s265 + $0x190] sm:$0xff]
        %v486 = vld [vmem:[%s265 + $0x198] sm:$0xff]
        %v487 = vld [vmem:[%s265 + $0x1a0] sm:$0xff]
        %v488 = vld [vmem:[%s265 + $0x1a8] sm:$0xff]
        %v489 = vld [vmem:[%s265 + $0x1b0] sm:$0xff]
        %v490 = vld [vmem:[%s265 + $0x1b8] sm:$0xff]
        %v491 = vld [vmem:[%s265 + $0x1c0] sm:$0xff]
        %v492 = vld [vmem:[%s265 + $0x1c8] sm:$0xff]
        %v493 = vld [vmem:[%s265 + $0x1d0] sm:$0xff]
        %v494 = vld [vmem:[%s265 + $0x1d8] sm:$0xff]
        %v495 = vld [vmem:[%s265 + $0x1e0] sm:$0xff]
        %v496 = vld [vmem:[%s265 + $0x1e8] sm:$0xff]
        %v497 = vld [vmem:[%s265 + $0x1f0] sm:$0xff]
        %v498 = vld [vmem:[%s265 + $0x1f8] sm:$0xff]
        %v499 = vld [vmem:[%s265 + $0x200] sm:$0xff]
        %v500 = vld [vmem:[%s265 + $0x208] sm:$0xff]
        %v501 = vld [vmem:[%s265 + $0x210] sm:$0xff]
        %v502 = vld [vmem:[%s265 + $0x218] sm:$0xff]
        %v503 = vld [vmem:[%s265 + $0x220] sm:$0xff]
        %v504 = vld [vmem:[%s265 + $0x228] sm:$0xff]
        %v505 = vld [vmem:[%s265 + $0x230] sm:$0xff]
        %v506 = vld [vmem:[%s265 + $0x238] sm:$0xff]
        %v507 = vld [vmem:[%s265 + $0x240] sm:$0xff]
        %v508 = vld [vmem:[%s265 + $0x248] sm:$0xff]
        %v509 = vld [vmem:[%s265 + $0x250] sm:$0xff]
        %v510 = vld [vmem:[%s265 + $0x258] sm:$0xff]
        %v511 = vld [vmem:[%s265 + $0x260] sm:$0xff]
        %v512 = vld [vmem:[%s265 + $0x268] sm:$0xff]
        %v513 = vld [vmem:[%s265 + $0x270] sm:$0xff]
        %v514 = vld [vmem:[%s265 + $0x278] sm:$0xff]
        %v515 = vld [vmem:[%s265 + $0x280] sm:$0xff]
        %v516 = vld [vmem:[%s265 + $0x288] sm:$0xff]
        %v517 = vld [vmem:[%s265 + $0x290] sm:$0xff]
        %v518 = vld [vmem:[%s265 + $0x298] sm:$0xff]
        %v519 = vld [vmem:[%s265 + $0x2a0] sm:$0xff]
        %v520 = vld [vmem:[%s265 + $0x2a8] sm:$0xff]
        %v521 = vld [vmem:[%s265 + $0x2b0] sm:$0xff]
        %v522 = vld [vmem:[%s265 + $0x2b8] sm:$0xff]
        %v523 = vld [vmem:[%s265 + $0x2c0] sm:$0xff]
        %v524 = vld [vmem:[%s265 + $0x2c8] sm:$0xff]
        %v525 = vld [vmem:[%s265 + $0x2d0] sm:$0xff]
        %v526 = vld [vmem:[%s265 + $0x2d8] sm:$0xff]
        %v527 = vld [vmem:[%s265 + $0x2e0] sm:$0xff]
        %v528 = vld [vmem:[%s265 + $0x2e8] sm:$0xff]
        %v529 = vld [vmem:[%s265 + $0x2f0] sm:$0xff]
        %v530 = vld [vmem:[%s265 + $0x2f8] sm:$0xff]
        %v531 = vld [vmem:[%s265 + $0x300] sm:$0xff]
        %v532 = vld [vmem:[%s265 + $0x308] sm:$0xff]
        %v533 = vld [vmem:[%s265 + $0x310] sm:$0xff]
        %v534 = vld [vmem:[%s265 + $0x318] sm:$0xff]
        %v535 = vld [vmem:[%s265 + $0x320] sm:$0xff]
        %v536 = vld [vmem:[%s265 + $0x328] sm:$0xff]
        %v537 = vld [vmem:[%s265 + $0x330] sm:$0xff]
        %v538 = vld [vmem:[%s265 + $0x338] sm:$0xff]
        %v539 = vld [vmem:[%s265 + $0x340] sm:$0xff]
        %v540 = vld [vmem:[%s265 + $0x348] sm:$0xff]
        %v541 = vld [vmem:[%s265 + $0x350] sm:$0xff]
        %v542 = vld [vmem:[%s265 + $0x358] sm:$0xff]
        %v543 = vld [vmem:[%s265 + $0x360] sm:$0xff]
        %v544 = vld [vmem:[%s265 + $0x368] sm:$0xff]
        %v545 = vld [vmem:[%s265 + $0x370] sm:$0xff]
        %v546 = vld [vmem:[%s265 + $0x378] sm:$0xff]
        %v547 = vld [vmem:[%s265 + $0x380] sm:$0xff]
        %v548 = vld [vmem:[%s265 + $0x388] sm:$0xff]
        %v549 = vld [vmem:[%s265 + $0x390] sm:$0xff]
        %v550 = vld [vmem:[%s265 + $0x398] sm:$0xff]
        %v551 = vld [vmem:[%s265 + $0x3a0] sm:$0xff]
        %v552 = vld [vmem:[%s265 + $0x3a8] sm:$0xff]
        %v553 = vld [vmem:[%s265 + $0x3b0] sm:$0xff]
        %v554 = vld [vmem:[%s265 + $0x3b8] sm:$0xff]
        %v555 = vld [vmem:[%s265 + $0x3c0] sm:$0xff]
        %v556 = vld [vmem:[%s265 + $0x3c8] sm:$0xff]
        %v557 = vld [vmem:[%s265 + $0x3d0] sm:$0xff]
        %v558 = vld [vmem:[%s265 + $0x3d8] sm:$0xff]
        %v559 = vld [vmem:[%s265 + $0x3e0] sm:$0xff]
        %v560 = vld [vmem:[%s265 + $0x3e8] sm:$0xff]
        %v561 = vld [vmem:[%s265 + $0x3f0] sm:$0xff]
        %v562 = vld [vmem:[%s265 + $0x3f8] sm:$0xff]
        %v563 = vld [vmem:[%s265 + $0x400] sm:$0xff]
        %v564 = vld [vmem:[%s265 + $0x408] sm:$0xff]
        %v565 = vld [vmem:[%s265 + $0x410] sm:$0xff]
        %v566 = vld [vmem:[%s265 + $0x418] sm:$0xff]
        %v567 = vld [vmem:[%s265 + $0x420] sm:$0xff]
        %v568 = vld [vmem:[%s265 + $0x428] sm:$0xff]
        %v569 = vld [vmem:[%s265 + $0x430] sm:$0xff]
        %v570 = vld [vmem:[%s265 + $0x438] sm:$0xff]
        %v571 = vld [vmem:[%s265 + $0x440] sm:$0xff]
        %v572 = vld [vmem:[%s265 + $0x448] sm:$0xff]
        %v573 = vld [vmem:[%s265 + $0x450] sm:$0xff]
        %v574 = vld [vmem:[%s265 + $0x458] sm:$0xff]
        %v575 = vld [vmem:[%s265 + $0x460] sm:$0xff]
        %v576 = vld [vmem:[%s265 + $0x468] sm:$0xff]
        %v577 = vld [vmem:[%s265 + $0x470] sm:$0xff]
        %v578 = vld [vmem:[%s265 + $0x478] sm:$0xff]
        %v579 = vld [vmem:[%s265 + $0x480] sm:$0xff]
        %v580 = vld [vmem:[%s265 + $0x488] sm:$0xff]
        %v581 = vld [vmem:[%s265 + $0x490] sm:$0xff]
        %v582 = vld [vmem:[%s265 + $0x498] sm:$0xff]
        %v583 = vld [vmem:[%s265 + $0x4a0] sm:$0xff]
        %v584 = vld [vmem:[%s265 + $0x4a8] sm:$0xff]
        %v585 = vld [vmem:[%s265 + $0x4b0] sm:$0xff]
        %v586 = vld [vmem:[%s265 + $0x4b8] sm:$0xff]
        %v587 = vld [vmem:[%s265 + $0x4c0] sm:$0xff]
        %v588 = vld [vmem:[%s265 + $0x4c8] sm:$0xff]
        %v589 = vld [vmem:[%s265 + $0x4d0] sm:$0xff]
        %v590 = vld [vmem:[%s265 + $0x4d8] sm:$0xff]
        %v591 = vld [vmem:[%s265 + $0x4e0] sm:$0xff]
        %v592 = vld [vmem:[%s265 + $0x4e8] sm:$0xff]
        %v593 = vld [vmem:[%s265 + $0x4f0] sm:$0xff]
        %v594 = vld [vmem:[%s265 + $0x4f8] sm:$0xff]
        %v595 = vld [vmem:[%s265 + $0x500] sm:$0xff]
        %v596 = vld [vmem:[%s265 + $0x508] sm:$0xff]
        %v597 = vld [vmem:[%s265 + $0x510] sm:$0xff]
        %v598 = vld [vmem:[%s265 + $0x518] sm:$0xff]
        %v599 = vld [vmem:[%s265 + $0x520] sm:$0xff]
        %v600 = vld [vmem:[%s265 + $0x528] sm:$0xff]
        %v601 = vld [vmem:[%s265 + $0x530] sm:$0xff]
        %v602 = vld [vmem:[%s265 + $0x538] sm:$0xff]
        %v603 = vld [vmem:[%s265 + $0x540] sm:$0xff]
        %v604 = vld [vmem:[%s265 + $0x548] sm:$0xff]
        %v605 = vld [vmem:[%s265 + $0x550] sm:$0xff]
        %v606 = vld [vmem:[%s265 + $0x558] sm:$0xff]
        %v607 = vld [vmem:[%s265 + $0x560] sm:$0xff]
        %v608 = vld [vmem:[%s265 + $0x568] sm:$0xff]
        %v609 = vld [vmem:[%s265 + $0x570] sm:$0xff]
        %v610 = vld [vmem:[%s265 + $0x578] sm:$0xff]
        %v611 = vld [vmem:[%s265 + $0x580] sm:$0xff]
        %v612 = vld [vmem:[%s265 + $0x588] sm:$0xff]
        %v613 = vld [vmem:[%s265 + $0x590] sm:$0xff]
        %v614 = vld [vmem:[%s265 + $0x598] sm:$0xff]
        %v615 = vld [vmem:[%s265 + $0x5a0] sm:$0xff]
        %v616 = vld [vmem:[%s265 + $0x5a8] sm:$0xff]
        %v617 = vld [vmem:[%s265 + $0x5b0] sm:$0xff]
        %v618 = vld [vmem:[%s265 + $0x5b8] sm:$0xff]
        %v619 = vld [vmem:[%s265 + $0x5c0] sm:$0xff]
        %v620 = vld [vmem:[%s265 + $0x5c8] sm:$0xff]
        %v621 = vld [vmem:[%s265 + $0x5d0] sm:$0xff]
        %v622 = vld [vmem:[%s265 + $0x5d8] sm:$0xff]
        %v623 = vld [vmem:[%s265 + $0x5e0] sm:$0xff]
        %v624 = vld [vmem:[%s265 + $0x5e8] sm:$0xff]
        %v625 = vld [vmem:[%s265 + $0x5f0] sm:$0xff]
        %v626 = vld [vmem:[%s265 + $0x5f8] sm:$0xff]
        %v627 = vld [vmem:[%s265 + $0x600] sm:$0xff]
        %v628 = vld [vmem:[%s265 + $0x608] sm:$0xff]
        %v629 = vld [vmem:[%s265 + $0x610] sm:$0xff]
        %v630 = vld [vmem:[%s265 + $0x618] sm:$0xff]
        %v631 = vld [vmem:[%s265 + $0x620] sm:$0xff]
        %v632 = vld [vmem:[%s265 + $0x628] sm:$0xff]
        %v633 = vld [vmem:[%s265 + $0x630] sm:$0xff]
        %v634 = vld [vmem:[%s265 + $0x638] sm:$0xff]
        %v635 = vld [vmem:[%s265 + $0x640] sm:$0xff]
        %v636 = vld [vmem:[%s265 + $0x648] sm:$0xff]
        %v637 = vld [vmem:[%s265 + $0x650] sm:$0xff]
        %v638 = vld [vmem:[%s265 + $0x658] sm:$0xff]
        %v639 = vld [vmem:[%s265 + $0x660] sm:$0xff]
        %v640 = vld [vmem:[%s265 + $0x668] sm:$0xff]
        %v641 = vld [vmem:[%s265 + $0x670] sm:$0xff]
        %v642 = vld [vmem:[%s265 + $0x678] sm:$0xff]
        %v643 = vld [vmem:[%s265 + $0x680] sm:$0xff]
        %v644 = vld [vmem:[%s265 + $0x688] sm:$0xff]
        %v645 = vld [vmem:[%s265 + $0x690] sm:$0xff]
        %v646 = vld [vmem:[%s265 + $0x698] sm:$0xff]
        %v647 = vld [vmem:[%s265 + $0x6a0] sm:$0xff]
        %v648 = vld [vmem:[%s265 + $0x6a8] sm:$0xff]
        %v649 = vld [vmem:[%s265 + $0x6b0] sm:$0xff]
        %v650 = vld [vmem:[%s265 + $0x6b8] sm:$0xff]
        %v651 = vld [vmem:[%s265 + $0x6c0] sm:$0xff]
        %v652 = vld [vmem:[%s265 + $0x6c8] sm:$0xff]
        %v653 = vld [vmem:[%s265 + $0x6d0] sm:$0xff]
        %v654 = vld [vmem:[%s265 + $0x6d8] sm:$0xff]
        %v655 = vld [vmem:[%s265 + $0x6e0] sm:$0xff]
        %v656 = vld [vmem:[%s265 + $0x6e8] sm:$0xff]
        %v657 = vld [vmem:[%s265 + $0x6f0] sm:$0xff]
        %v658 = vld [vmem:[%s265 + $0x6f8] sm:$0xff]
        %v659 = vld [vmem:[%s265 + $0x700] sm:$0xff]
        %v660 = vld [vmem:[%s265 + $0x708] sm:$0xff]
        %v661 = vld [vmem:[%s265 + $0x710] sm:$0xff]
        %v662 = vld [vmem:[%s265 + $0x718] sm:$0xff]
        %v663 = vld [vmem:[%s265 + $0x720] sm:$0xff]
        %v664 = vld [vmem:[%s265 + $0x728] sm:$0xff]
        %v665 = vld [vmem:[%s265 + $0x730] sm:$0xff]
        %v666 = vld [vmem:[%s265 + $0x738] sm:$0xff]
        %v667 = vld [vmem:[%s265 + $0x740] sm:$0xff]
        %v668 = vld [vmem:[%s265 + $0x748] sm:$0xff]
        %v669 = vld [vmem:[%s265 + $0x750] sm:$0xff]
        %v670 = vld [vmem:[%s265 + $0x758] sm:$0xff]
        %v671 = vld [vmem:[%s265 + $0x760] sm:$0xff]
        %v672 = vld [vmem:[%s265 + $0x768] sm:$0xff]
        %v673 = vld [vmem:[%s265 + $0x770] sm:$0xff]
        %v674 = vld [vmem:[%s265 + $0x778] sm:$0xff]
        %v675 = vld [vmem:[%s265 + $0x780] sm:$0xff]
        %v676 = vld [vmem:[%s265 + $0x788] sm:$0xff]
        %v677 = vld [vmem:[%s265 + $0x790] sm:$0xff]
        %v678 = vld [vmem:[%s265 + $0x798] sm:$0xff]
        %v679 = vld [vmem:[%s265 + $0x7a0] sm:$0xff]
        %v680 = vld [vmem:[%s265 + $0x7a8] sm:$0xff]
        %v681 = vld [vmem:[%s265 + $0x7b0] sm:$0xff]
        %v682 = vld [vmem:[%s265 + $0x7b8] sm:$0xff]
        %v683 = vld [vmem:[%s265 + $0x7c0] sm:$0xff]
        %v684 = vld [vmem:[%s265 + $0x7c8] sm:$0xff]
        %v685 = vld [vmem:[%s265 + $0x7d0] sm:$0xff]
        %v686 = vld [vmem:[%s265 + $0x7d8] sm:$0xff]
        %v687 = vld [vmem:[%s265 + $0x7e0] sm:$0xff]
        %v688 = vld [vmem:[%s265 + $0x7e8] sm:$0xff]
        %v689 = vld [vmem:[%s265 + $0x7f0] sm:$0xff]
        %v690 = vld [vmem:[%s265 + $0x7f8] sm:$0xff]
        %v691 = vld [vmem:[%s265 + $0x800] sm:$0xff]
        %v692 = vld [vmem:[%s265 + $0x808] sm:$0xff]
        %v693 = vld [vmem:[%s265 + $0x810] sm:$0xff]
        %v694 = vld [vmem:[%s265 + $0x818] sm:$0xff]
        %v695 = vld [vmem:[%s265 + $0x820] sm:$0xff]
        %v696 = vld [vmem:[%s265 + $0x828] sm:$0xff]
        %v697 = vld [vmem:[%s265 + $0x830] sm:$0xff]
        %v698 = vld [vmem:[%s265 + $0x838] sm:$0xff]
        %v699 = vld [vmem:[%s265 + $0x840] sm:$0xff]
        %v700 = vld [vmem:[%s265 + $0x848] sm:$0xff]
        %v701 = vld [vmem:[%s265 + $0x850] sm:$0xff]
        %v702 = vld [vmem:[%s265 + $0x858] sm:$0xff]
        %v703 = vld [vmem:[%s265 + $0x860] sm:$0xff]
        %v704 = vld [vmem:[%s265 + $0x868] sm:$0xff]
        %v705 = vld [vmem:[%s265 + $0x870] sm:$0xff]
        %v706 = vld [vmem:[%s265 + $0x878] sm:$0xff]
        %v707 = vld [vmem:[%s265 + $0x880] sm:$0xff]
        %v708 = vld [vmem:[%s265 + $0x888] sm:$0xff]
        %v709 = vld [vmem:[%s265 + $0x890] sm:$0xff]
        %v710 = vld [vmem:[%s265 + $0x898] sm:$0xff]
        %v711 = vld [vmem:[%s265 + $0x8a0] sm:$0xff]
        %v712 = vld [vmem:[%s265 + $0x8a8] sm:$0xff]
        %v713 = vld [vmem:[%s265 + $0x8b0] sm:$0xff]
        %v714 = vld [vmem:[%s265 + $0x8b8] sm:$0xff]
        %v715 = vld [vmem:[%s265 + $0x8c0] sm:$0xff]
        %v716 = vld [vmem:[%s265 + $0x8c8] sm:$0xff]
        %v717 = vld [vmem:[%s265 + $0x8d0] sm:$0xff]
        %v718 = vld [vmem:[%s265 + $0x8d8] sm:$0xff]
        %v719 = vld [vmem:[%s265 + $0x8e0] sm:$0xff]
        %v720 = vld [vmem:[%s265 + $0x8e8] sm:$0xff]
        %v721 = vld [vmem:[%s265 + $0x8f0] sm:$0xff]
        %v722 = vld [vmem:[%s265 + $0x8f8] sm:$0xff]
        %v723 = vld [vmem:[%s265 + $0x900] sm:$0xff]
        %v724 = vld [vmem:[%s265 + $0x908] sm:$0xff]
        %v725 = vld [vmem:[%s265 + $0x910] sm:$0xff]
        %v726 = vld [vmem:[%s265 + $0x918] sm:$0xff]
        %v727 = vld [vmem:[%s265 + $0x920] sm:$0xff]
        %v728 = vld [vmem:[%s265 + $0x928] sm:$0xff]
        %v729 = vld [vmem:[%s265 + $0x930] sm:$0xff]
        %v730 = vld [vmem:[%s265 + $0x938] sm:$0xff]
        %v731 = vld [vmem:[%s265 + $0x940] sm:$0xff]
        %v732 = vld [vmem:[%s265 + $0x948] sm:$0xff]
        %v733 = vld [vmem:[%s265 + $0x950] sm:$0xff]
        %v734 = vld [vmem:[%s265 + $0x958] sm:$0xff]
        %v735 = vld [vmem:[%s265 + $0x960] sm:$0xff]
        %v736 = vld [vmem:[%s265 + $0x968] sm:$0xff]
        %v737 = vld [vmem:[%s265 + $0x970] sm:$0xff]
        %v738 = vld [vmem:[%s265 + $0x978] sm:$0xff]
        %v739 = vld [vmem:[%s265 + $0x980] sm:$0xff]
        %v740 = vld [vmem:[%s265 + $0x988] sm:$0xff]
        %v741 = vld [vmem:[%s265 + $0x990] sm:$0xff]
        %v742 = vld [vmem:[%s265 + $0x998] sm:$0xff]
        %v743 = vld [vmem:[%s265 + $0x9a0] sm:$0xff]
        %v744 = vld [vmem:[%s265 + $0x9a8] sm:$0xff]
        %v745 = vld [vmem:[%s265 + $0x9b0] sm:$0xff]
        %v746 = vld [vmem:[%s265 + $0x9b8] sm:$0xff]
        %v747 = vld [vmem:[%s265 + $0x9c0] sm:$0xff]
        %v748 = vld [vmem:[%s265 + $0x9c8] sm:$0xff]
        %v749 = vld [vmem:[%s265 + $0x9d0] sm:$0xff]
        %v750 = vld [vmem:[%s265 + $0x9d8] sm:$0xff]
        %v751 = vld [vmem:[%s265 + $0x9e0] sm:$0xff]
        %v752 = vld [vmem:[%s265 + $0x9e8] sm:$0xff]
        %v753 = vld [vmem:[%s265 + $0x9f0] sm:$0xff]
        %v754 = vld [vmem:[%s265 + $0x9f8] sm:$0xff]
        %v755 = vld [vmem:[%s265 + $0xa00] sm:$0xff]
        %v756 = vld [vmem:[%s265 + $0xa08] sm:$0xff]
        %v757 = vld [vmem:[%s265 + $0xa10] sm:$0xff]
        %v758 = vld [vmem:[%s265 + $0xa18] sm:$0xff]
        %v759 = vld [vmem:[%s265 + $0xa20] sm:$0xff]
        %v760 = vld [vmem:[%s265 + $0xa28] sm:$0xff]
        %v761 = vld [vmem:[%s265 + $0xa30] sm:$0xff]
        %v762 = vld [vmem:[%s265 + $0xa38] sm:$0xff]
        %v763 = vld [vmem:[%s265 + $0xa40] sm:$0xff]
        %v764 = vld [vmem:[%s265 + $0xa48] sm:$0xff]
        %v765 = vld [vmem:[%s265 + $0xa50] sm:$0xff]
        %v766 = vld [vmem:[%s265 + $0xa58] sm:$0xff]
        %v767 = vld [vmem:[%s265 + $0xa60] sm:$0xff]
        %v768 = vld [vmem:[%s265 + $0xa68] sm:$0xff]
        %v769 = vld [vmem:[%s265 + $0xa70] sm:$0xff]
        %v770 = vld [vmem:[%s265 + $0xa78] sm:$0xff]
        %v771 = vld [vmem:[%s265 + $0xa80] sm:$0xff]
        %v772 = vld [vmem:[%s265 + $0xa88] sm:$0xff]
        %v773 = vld [vmem:[%s265 + $0xa90] sm:$0xff]
        %v774 = vld [vmem:[%s265 + $0xa98] sm:$0xff]
        %v775 = vld [vmem:[%s265 + $0xaa0] sm:$0xff]
        %v776 = vld [vmem:[%s265 + $0xaa8] sm:$0xff]
        %v777 = vld [vmem:[%s265 + $0xab0] sm:$0xff]
        %v778 = vld [vmem:[%s265 + $0xab8] sm:$0xff]
        %v779 = vld [vmem:[%s265 + $0xac0] sm:$0xff]
        %v780 = vld [vmem:[%s265 + $0xac8] sm:$0xff]
        %v781 = vld [vmem:[%s265 + $0xad0] sm:$0xff]
        %v782 = vld [vmem:[%s265 + $0xad8] sm:$0xff]
        %v783 = vld [vmem:[%s265 + $0xae0] sm:$0xff]
        %v784 = vld [vmem:[%s265 + $0xae8] sm:$0xff]
        %v785 = vld [vmem:[%s265 + $0xaf0] sm:$0xff]
        %v786 = vld [vmem:[%s265 + $0xaf8] sm:$0xff]
        %v787 = vld [vmem:[%s265 + $0xb00] sm:$0xff]
        %v788 = vld [vmem:[%s265 + $0xb08] sm:$0xff]
        %v789 = vld [vmem:[%s265 + $0xb10] sm:$0xff]
        %v790 = vld [vmem:[%s265 + $0xb18] sm:$0xff]
        %v791 = vld [vmem:[%s265 + $0xb20] sm:$0xff]
        %v792 = vld [vmem:[%s265 + $0xb28] sm:$0xff]
        %v793 = vld [vmem:[%s265 + $0xb30] sm:$0xff]
        %v794 = vld [vmem:[%s265 + $0xb38] sm:$0xff]
        %v795 = vld [vmem:[%s265 + $0xb40] sm:$0xff]
        %v796 = vld [vmem:[%s265 + $0xb48] sm:$0xff]
        %v797 = vld [vmem:[%s265 + $0xb50] sm:$0xff]
        %v798 = vld [vmem:[%s265 + $0xb58] sm:$0xff]
        %v799 = vld [vmem:[%s265 + $0xb60] sm:$0xff]
        %v800 = vld [vmem:[%s265 + $0xb68] sm:$0xff]
        %v801 = vld [vmem:[%s265 + $0xb70] sm:$0xff]
        %v802 = vld [vmem:[%s265 + $0xb78] sm:$0xff]
        %v803 = vld [vmem:[%s265 + $0xb80] sm:$0xff]
        %v804 = vld [vmem:[%s265 + $0xb88] sm:$0xff]
        %v805 = vld [vmem:[%s265 + $0xb90] sm:$0xff]
        %v806 = vld [vmem:[%s265 + $0xb98] sm:$0xff]
        %v807 = vld [vmem:[%s265 + $0xba0] sm:$0xff]
        %v808 = vld [vmem:[%s265 + $0xba8] sm:$0xff]
        %v809 = vld [vmem:[%s265 + $0xbb0] sm:$0xff]
        %v810 = vld [vmem:[%s265 + $0xbb8] sm:$0xff]
        %v811 = vld [vmem:[%s265 + $0xbc0] sm:$0xff]
        %v812 = vld [vmem:[%s265 + $0xbc8] sm:$0xff]
        %v813 = vld [vmem:[%s265 + $0xbd0] sm:$0xff]
        %v814 = vld [vmem:[%s265 + $0xbd8] sm:$0xff]
        %v815 = vld [vmem:[%s265 + $0xbe0] sm:$0xff]
        %v816 = vld [vmem:[%s265 + $0xbe8] sm:$0xff]
        %v817 = vld [vmem:[%s265 + $0xbf0] sm:$0xff]
        %v818 = vld [vmem:[%s265 + $0xbf8] sm:$0xff]
        %v819 = vld [vmem:[%s265 + $0xc00] sm:$0xff]
        %v820 = vld [vmem:[%s265 + $0xc08] sm:$0xff]
        %v821 = vld [vmem:[%s265 + $0xc10] sm:$0xff]
        %v822 = vld [vmem:[%s265 + $0xc18] sm:$0xff]
        %v823 = vld [vmem:[%s265 + $0xc20] sm:$0xff]
        %v824 = vld [vmem:[%s265 + $0xc28] sm:$0xff]
        %v825 = vld [vmem:[%s265 + $0xc30] sm:$0xff]
        %v826 = vld [vmem:[%s265 + $0xc38] sm:$0xff]
        %v827 = vld [vmem:[%s265 + $0xc40] sm:$0xff]
        %v828 = vld [vmem:[%s265 + $0xc48] sm:$0xff]
        %v829 = vld [vmem:[%s265 + $0xc50] sm:$0xff]
        %v830 = vld [vmem:[%s265 + $0xc58] sm:$0xff]
        %v831 = vld [vmem:[%s265 + $0xc60] sm:$0xff]
        %v832 = vld [vmem:[%s265 + $0xc68] sm:$0xff]
        %v833 = vld [vmem:[%s265 + $0xc70] sm:$0xff]
        %v834 = vld [vmem:[%s265 + $0xc78] sm:$0xff]
        %v835 = vld [vmem:[%s265 + $0xc80] sm:$0xff]
        %v836 = vld [vmem:[%s265 + $0xc88] sm:$0xff]
        %v837 = vld [vmem:[%s265 + $0xc90] sm:$0xff]
        %v838 = vld [vmem:[%s265 + $0xc98] sm:$0xff]
        %v839 = vld [vmem:[%s265 + $0xca0] sm:$0xff]
        %v840 = vld [vmem:[%s265 + $0xca8] sm:$0xff]
        %v841 = vld [vmem:[%s265 + $0xcb0] sm:$0xff]
        %v842 = vld [vmem:[%s265 + $0xcb8] sm:$0xff]
        %v843 = vld [vmem:[%s265 + $0xcc0] sm:$0xff]
        %v844 = vld [vmem:[%s265 + $0xcc8] sm:$0xff]
        %v845 = vld [vmem:[%s265 + $0xcd0] sm:$0xff]
        %v846 = vld [vmem:[%s265 + $0xcd8] sm:$0xff]
        %v847 = vld [vmem:[%s265 + $0xce0] sm:$0xff]
        %v848 = vld [vmem:[%s265 + $0xce8] sm:$0xff]
        %v849 = vld [vmem:[%s265 + $0xcf0] sm:$0xff]
        %v850 = vld [vmem:[%s265 + $0xcf8] sm:$0xff]
        %v851 = vld [vmem:[%s265 + $0xd00] sm:$0xff]
        %v852 = vld [vmem:[%s265 + $0xd08] sm:$0xff]
        %v853 = vld [vmem:[%s265 + $0xd10] sm:$0xff]
        %v854 = vld [vmem:[%s265 + $0xd18] sm:$0xff]
        %v855 = vld [vmem:[%s265 + $0xd20] sm:$0xff]
        %v856 = vld [vmem:[%s265 + $0xd28] sm:$0xff]
        %v857 = vld [vmem:[%s265 + $0xd30] sm:$0xff]
        %v858 = vld [vmem:[%s265 + $0xd38] sm:$0xff]
        %v859 = vld [vmem:[%s265 + $0xd40] sm:$0xff]
        %v860 = vld [vmem:[%s265 + $0xd48] sm:$0xff]
        %v861 = vld [vmem:[%s265 + $0xd50] sm:$0xff]
        %v862 = vld [vmem:[%s265 + $0xd58] sm:$0xff]
        %v863 = vld [vmem:[%s265 + $0xd60] sm:$0xff]
        %v864 = vld [vmem:[%s265 + $0xd68] sm:$0xff]
        %v865 = vld [vmem:[%s265 + $0xd70] sm:$0xff]
        %v866 = vld [vmem:[%s265 + $0xd78] sm:$0xff]
        %v867 = vld [vmem:[%s265 + $0xd80] sm:$0xff]
        %v868 = vld [vmem:[%s265 + $0xd88] sm:$0xff]
        %v869 = vld [vmem:[%s265 + $0xd90] sm:$0xff]
        %v870 = vld [vmem:[%s265 + $0xd98] sm:$0xff]
        %v871 = vld [vmem:[%s265 + $0xda0] sm:$0xff]
        %v872 = vld [vmem:[%s265 + $0xda8] sm:$0xff]
        %v873 = vld [vmem:[%s265 + $0xdb0] sm:$0xff]
        %v874 = vld [vmem:[%s265 + $0xdb8] sm:$0xff]
        %v875 = vld [vmem:[%s265 + $0xdc0] sm:$0xff]
        %v876 = vld [vmem:[%s265 + $0xdc8] sm:$0xff]
        %v877 = vld [vmem:[%s265 + $0xdd0] sm:$0xff]
        %v878 = vld [vmem:[%s265 + $0xdd8] sm:$0xff]
        %v879 = vld [vmem:[%s265 + $0xde0] sm:$0xff]
        %v880 = vld [vmem:[%s265 + $0xde8] sm:$0xff]
        %v881 = vld [vmem:[%s265 + $0xdf0] sm:$0xff]
        %v882 = vld [vmem:[%s265 + $0xdf8] sm:$0xff]
        %v883 = vld [vmem:[%s265 + $0xe00] sm:$0xff]
        %v884 = vld [vmem:[%s265 + $0xe08] sm:$0xff]
        %v885 = vld [vmem:[%s265 + $0xe10] sm:$0xff]
        %v886 = vld [vmem:[%s265 + $0xe18] sm:$0xff]
        %v887 = vld [vmem:[%s265 + $0xe20] sm:$0xff]
        %v888 = vld [vmem:[%s265 + $0xe28] sm:$0xff]
        %v889 = vld [vmem:[%s265 + $0xe30] sm:$0xff]
        %v890 = vld [vmem:[%s265 + $0xe38] sm:$0xff]
        %v891 = vld [vmem:[%s265 + $0xe40] sm:$0xff]
        %v892 = vld [vmem:[%s265 + $0xe48] sm:$0xff]
        %v893 = vld [vmem:[%s265 + $0xe50] sm:$0xff]
        %v894 = vld [vmem:[%s265 + $0xe58] sm:$0xff]
        %v895 = vld [vmem:[%s265 + $0xe60] sm:$0xff]
        %v896 = vld [vmem:[%s265 + $0xe68] sm:$0xff]
        %v897 = vld [vmem:[%s265 + $0xe70] sm:$0xff]
        %v898 = vld [vmem:[%s265 + $0xe78] sm:$0xff]
        %v899 = vld [vmem:[%s265 + $0xe80] sm:$0xff]
        %v900 = vld [vmem:[%s265 + $0xe88] sm:$0xff]
        %v901 = vld [vmem:[%s265 + $0xe90] sm:$0xff]
        %v902 = vld [vmem:[%s265 + $0xe98] sm:$0xff]
        %v903 = vld [vmem:[%s265 + $0xea0] sm:$0xff]
        %v904 = vld [vmem:[%s265 + $0xea8] sm:$0xff]
        %v905 = vld [vmem:[%s265 + $0xeb0] sm:$0xff]
        %v906 = vld [vmem:[%s265 + $0xeb8] sm:$0xff]
        %v907 = vld [vmem:[%s265 + $0xec0] sm:$0xff]
        %v908 = vld [vmem:[%s265 + $0xec8] sm:$0xff]
        %v909 = vld [vmem:[%s265 + $0xed0] sm:$0xff]
        %v910 = vld [vmem:[%s265 + $0xed8] sm:$0xff]
        %v911 = vld [vmem:[%s265 + $0xee0] sm:$0xff]
        %v912 = vld [vmem:[%s265 + $0xee8] sm:$0xff]
        %v913 = vld [vmem:[%s265 + $0xef0] sm:$0xff]
        %v914 = vld [vmem:[%s265 + $0xef8] sm:$0xff]
        %v915 = vld [vmem:[%s265 + $0xf00] sm:$0xff]
        %v916 = vld [vmem:[%s265 + $0xf08] sm:$0xff]
        %v917 = vld [vmem:[%s265 + $0xf10] sm:$0xff]
        %v918 = vld [vmem:[%s265 + $0xf18] sm:$0xff]
        %v919 = vld [vmem:[%s265 + $0xf20] sm:$0xff]
        %v920 = vld [vmem:[%s265 + $0xf28] sm:$0xff]
        %v921 = vld [vmem:[%s265 + $0xf30] sm:$0xff]
        %v922 = vld [vmem:[%s265 + $0xf38] sm:$0xff]
        %v923 = vld [vmem:[%s265 + $0xf40] sm:$0xff]
        %v924 = vld [vmem:[%s265 + $0xf48] sm:$0xff]
        %v925 = vld [vmem:[%s265 + $0xf50] sm:$0xff]
        %v926 = vld [vmem:[%s265 + $0xf58] sm:$0xff]
        %v927 = vld [vmem:[%s265 + $0xf60] sm:$0xff]
        %v928 = vld [vmem:[%s265 + $0xf68] sm:$0xff]
        %v929 = vld [vmem:[%s265 + $0xf70] sm:$0xff]
        %v930 = vld [vmem:[%s265 + $0xf78] sm:$0xff]
        %v931 = vld [vmem:[%s265 + $0xf80] sm:$0xff]
        %v932 = vld [vmem:[%s265 + $0xf88] sm:$0xff]
        %v933 = vld [vmem:[%s265 + $0xf90] sm:$0xff]
        %v934 = vld [vmem:[%s265 + $0xf98] sm:$0xff]
        %v935 = vld [vmem:[%s265 + $0xfa0] sm:$0xff]
        %v936 = vld [vmem:[%s265 + $0xfa8] sm:$0xff]
        %v937 = vld [vmem:[%s265 + $0xfb0] sm:$0xff]
        %v938 = vld [vmem:[%s265 + $0xfb8] sm:$0xff]
        %v939 = vld [vmem:[%s265 + $0xfc0] sm:$0xff]
        %v940 = vld [vmem:[%s265 + $0xfc8] sm:$0xff]
        %v941 = vld [vmem:[%s265 + $0xfd0] sm:$0xff]
        %v942 = vld [vmem:[%s265 + $0xfd8] sm:$0xff]
        %v943 = vld [vmem:[%s265 + $0xfe0] sm:$0xff]
        %v944 = vld [vmem:[%s265 + $0xfe8] sm:$0xff]
        %v945 = vld [vmem:[%s265 + $0xff0] sm:$0xff]
        %v946 = vld [vmem:[%s265 + $0xff8] sm:$0xff]
        %v947 = vld [vmem:[%s274] sm:$0xf]
        %v949 = vlaneseq
        %v950 = vshrl.u32 %v949, 7
        %v951 = vsub.s32 0, %v950
        %v952 = vrot.slane %v947, %v951
        %v953 = vlaneseq
        %v954 = vshrl.u32 %v953, 7
        %v955 = vsub.s32 1, %v954
        %v956 = vrot.slane %v947, %v955
        %v957 = vlaneseq
        %v958 = vshrl.u32 %v957, 7
        %v959 = vsub.s32 2, %v958
        %v960 = vrot.slane %v947, %v959
        %v961 = vlaneseq
        %v962 = vshrl.u32 %v961, 7
        %v963 = vsub.s32 3, %v962
        %v964 = vrot.slane %v947, %v963
        %v1481 = vunpack.c.l.b16 %v435
        %v1482 = vunpack.c.h.b16 %v435
        %v1483 = vunpack.c.l.b16 %v436
        %v1484 = vunpack.c.h.b16 %v436
        %v1485 = vunpack.c.l.b16 %v437
        %v1486 = vunpack.c.h.b16 %v437
        %v1487 = vunpack.c.l.b16 %v438
        %v1488 = vunpack.c.h.b16 %v438
        %v1489 = vunpack.c.l.b16 %v439
        %v1490 = vunpack.c.h.b16 %v439
        %v1491 = vunpack.c.l.b16 %v440
        %v1492 = vunpack.c.h.b16 %v440
        %v1493 = vunpack.c.l.b16 %v441
        %v1494 = vunpack.c.h.b16 %v441
        %v1495 = vunpack.c.l.b16 %v442
        %v1496 = vunpack.c.h.b16 %v442
        %v1497 = vunpack.c.l.b16 %v443
        %v1498 = vunpack.c.h.b16 %v443
        %v1499 = vunpack.c.l.b16 %v444
        %v1500 = vunpack.c.h.b16 %v444
        %v1501 = vunpack.c.l.b16 %v445
        %v1502 = vunpack.c.h.b16 %v445
        %v1503 = vunpack.c.l.b16 %v446
        %v1504 = vunpack.c.h.b16 %v446
        %v1505 = vunpack.c.l.b16 %v447
        %v1506 = vunpack.c.h.b16 %v447
        %v1507 = vunpack.c.l.b16 %v448
        %v1508 = vunpack.c.h.b16 %v448
        %v1509 = vunpack.c.l.b16 %v449
        %v1510 = vunpack.c.h.b16 %v449
        %v1511 = vunpack.c.l.b16 %v450
        %v1512 = vunpack.c.h.b16 %v450
        %v1513 = vunpack.c.l.b16 %v451
        %v1514 = vunpack.c.h.b16 %v451
        %v1515 = vunpack.c.l.b16 %v452
        %v1516 = vunpack.c.h.b16 %v452
        %v1517 = vunpack.c.l.b16 %v453
        %v1518 = vunpack.c.h.b16 %v453
        %v1519 = vunpack.c.l.b16 %v454
        %v1520 = vunpack.c.h.b16 %v454
        %v1521 = vunpack.c.l.b16 %v455
        %v1522 = vunpack.c.h.b16 %v455
        %v1523 = vunpack.c.l.b16 %v456
        %v1524 = vunpack.c.h.b16 %v456
        %v1525 = vunpack.c.l.b16 %v457
        %v1526 = vunpack.c.h.b16 %v457
        %v1527 = vunpack.c.l.b16 %v458
        %v1528 = vunpack.c.h.b16 %v458
        %v1529 = vunpack.c.l.b16 %v459
        %v1530 = vunpack.c.h.b16 %v459
        %v1531 = vunpack.c.l.b16 %v460
        %v1532 = vunpack.c.h.b16 %v460
        %v1533 = vunpack.c.l.b16 %v461
        %v1534 = vunpack.c.h.b16 %v461
        %v1535 = vunpack.c.l.b16 %v462
        %v1536 = vunpack.c.h.b16 %v462
        %v1537 = vunpack.c.l.b16 %v463
        %v1538 = vunpack.c.h.b16 %v463
        %v1539 = vunpack.c.l.b16 %v464
        %v1540 = vunpack.c.h.b16 %v464
        %v1541 = vunpack.c.l.b16 %v465
        %v1542 = vunpack.c.h.b16 %v465
        %v1543 = vunpack.c.l.b16 %v466
        %v1544 = vunpack.c.h.b16 %v466
        %v1545 = vunpack.c.l.b16 %v467
        %v1546 = vunpack.c.h.b16 %v467
        %v1547 = vunpack.c.l.b16 %v468
        %v1548 = vunpack.c.h.b16 %v468
        %v1549 = vunpack.c.l.b16 %v469
        %v1550 = vunpack.c.h.b16 %v469
        %v1551 = vunpack.c.l.b16 %v470
        %v1552 = vunpack.c.h.b16 %v470
        %v1553 = vunpack.c.l.b16 %v471
        %v1554 = vunpack.c.h.b16 %v471
        %v1555 = vunpack.c.l.b16 %v472
        %v1556 = vunpack.c.h.b16 %v472
        %v1557 = vunpack.c.l.b16 %v473
        %v1558 = vunpack.c.h.b16 %v473
        %v1559 = vunpack.c.l.b16 %v474
        %v1560 = vunpack.c.h.b16 %v474
        %v1561 = vunpack.c.l.b16 %v475
        %v1562 = vunpack.c.h.b16 %v475
        %v1563 = vunpack.c.l.b16 %v476
        %v1564 = vunpack.c.h.b16 %v476
        %v1565 = vunpack.c.l.b16 %v477
        %v1566 = vunpack.c.h.b16 %v477
        %v1567 = vunpack.c.l.b16 %v478
        %v1568 = vunpack.c.h.b16 %v478
        %v1569 = vunpack.c.l.b16 %v479
        %v1570 = vunpack.c.h.b16 %v479
        %v1571 = vunpack.c.l.b16 %v480
        %v1572 = vunpack.c.h.b16 %v480
        %v1573 = vunpack.c.l.b16 %v481
        %v1574 = vunpack.c.h.b16 %v481
        %v1575 = vunpack.c.l.b16 %v482
        %v1576 = vunpack.c.h.b16 %v482
        %v1577 = vunpack.c.l.b16 %v483
        %v1578 = vunpack.c.h.b16 %v483
        %v1579 = vunpack.c.l.b16 %v484
        %v1580 = vunpack.c.h.b16 %v484
        %v1581 = vunpack.c.l.b16 %v485
        %v1582 = vunpack.c.h.b16 %v485
        %v1583 = vunpack.c.l.b16 %v486
        %v1584 = vunpack.c.h.b16 %v486
        %v1585 = vunpack.c.l.b16 %v487
        %v1586 = vunpack.c.h.b16 %v487
        %v1587 = vunpack.c.l.b16 %v488
        %v1588 = vunpack.c.h.b16 %v488
        %v1589 = vunpack.c.l.b16 %v489
        %v1590 = vunpack.c.h.b16 %v489
        %v1591 = vunpack.c.l.b16 %v490
        %v1592 = vunpack.c.h.b16 %v490
        %v1593 = vunpack.c.l.b16 %v491
        %v1594 = vunpack.c.h.b16 %v491
        %v1595 = vunpack.c.l.b16 %v492
        %v1596 = vunpack.c.h.b16 %v492
        %v1597 = vunpack.c.l.b16 %v493
        %v1598 = vunpack.c.h.b16 %v493
        %v1599 = vunpack.c.l.b16 %v494
        %v1600 = vunpack.c.h.b16 %v494
        %v1601 = vunpack.c.l.b16 %v495
        %v1602 = vunpack.c.h.b16 %v495
        %v1603 = vunpack.c.l.b16 %v496
        %v1604 = vunpack.c.h.b16 %v496
        %v1605 = vunpack.c.l.b16 %v497
        %v1606 = vunpack.c.h.b16 %v497
        %v1607 = vunpack.c.l.b16 %v498
        %v1608 = vunpack.c.h.b16 %v498
        %v1609 = vunpack.c.l.b16 %v499
        %v1610 = vunpack.c.h.b16 %v499
        %v1611 = vunpack.c.l.b16 %v500
        %v1612 = vunpack.c.h.b16 %v500
        %v1613 = vunpack.c.l.b16 %v501
        %v1614 = vunpack.c.h.b16 %v501
        %v1615 = vunpack.c.l.b16 %v502
        %v1616 = vunpack.c.h.b16 %v502
        %v1617 = vunpack.c.l.b16 %v503
        %v1618 = vunpack.c.h.b16 %v503
        %v1619 = vunpack.c.l.b16 %v504
        %v1620 = vunpack.c.h.b16 %v504
        %v1621 = vunpack.c.l.b16 %v505
        %v1622 = vunpack.c.h.b16 %v505
        %v1623 = vunpack.c.l.b16 %v506
        %v1624 = vunpack.c.h.b16 %v506
        %v1625 = vunpack.c.l.b16 %v507
        %v1626 = vunpack.c.h.b16 %v507
        %v1627 = vunpack.c.l.b16 %v508
        %v1628 = vunpack.c.h.b16 %v508
        %v1629 = vunpack.c.l.b16 %v509
        %v1630 = vunpack.c.h.b16 %v509
        %v1631 = vunpack.c.l.b16 %v510
        %v1632 = vunpack.c.h.b16 %v510
        %v1633 = vunpack.c.l.b16 %v511
        %v1634 = vunpack.c.h.b16 %v511
        %v1635 = vunpack.c.l.b16 %v512
        %v1636 = vunpack.c.h.b16 %v512
        %v1637 = vunpack.c.l.b16 %v513
        %v1638 = vunpack.c.h.b16 %v513
        %v1639 = vunpack.c.l.b16 %v514
        %v1640 = vunpack.c.h.b16 %v514
        %v1641 = vunpack.c.l.b16 %v515
        %v1642 = vunpack.c.h.b16 %v515
        %v1643 = vunpack.c.l.b16 %v516
        %v1644 = vunpack.c.h.b16 %v516
        %v1645 = vunpack.c.l.b16 %v517
        %v1646 = vunpack.c.h.b16 %v517
        %v1647 = vunpack.c.l.b16 %v518
        %v1648 = vunpack.c.h.b16 %v518
        %v1649 = vunpack.c.l.b16 %v519
        %v1650 = vunpack.c.h.b16 %v519
        %v1651 = vunpack.c.l.b16 %v520
        %v1652 = vunpack.c.h.b16 %v520
        %v1653 = vunpack.c.l.b16 %v521
        %v1654 = vunpack.c.h.b16 %v521
        %v1655 = vunpack.c.l.b16 %v522
        %v1656 = vunpack.c.h.b16 %v522
        %v1657 = vunpack.c.l.b16 %v523
        %v1658 = vunpack.c.h.b16 %v523
        %v1659 = vunpack.c.l.b16 %v524
        %v1660 = vunpack.c.h.b16 %v524
        %v1661 = vunpack.c.l.b16 %v525
        %v1662 = vunpack.c.h.b16 %v525
        %v1663 = vunpack.c.l.b16 %v526
        %v1664 = vunpack.c.h.b16 %v526
        %v1665 = vunpack.c.l.b16 %v527
        %v1666 = vunpack.c.h.b16 %v527
        %v1667 = vunpack.c.l.b16 %v528
        %v1668 = vunpack.c.h.b16 %v528
        %v1669 = vunpack.c.l.b16 %v529
        %v1670 = vunpack.c.h.b16 %v529
        %v1671 = vunpack.c.l.b16 %v530
        %v1672 = vunpack.c.h.b16 %v530
        %v1673 = vunpack.c.l.b16 %v531
        %v1674 = vunpack.c.h.b16 %v531
        %v1675 = vunpack.c.l.b16 %v532
        %v1676 = vunpack.c.h.b16 %v532
        %v1677 = vunpack.c.l.b16 %v533
        %v1678 = vunpack.c.h.b16 %v533
        %v1679 = vunpack.c.l.b16 %v534
        %v1680 = vunpack.c.h.b16 %v534
        %v1681 = vunpack.c.l.b16 %v535
        %v1682 = vunpack.c.h.b16 %v535
        %v1683 = vunpack.c.l.b16 %v536
        %v1684 = vunpack.c.h.b16 %v536
        %v1685 = vunpack.c.l.b16 %v537
        %v1686 = vunpack.c.h.b16 %v537
        %v1687 = vunpack.c.l.b16 %v538
        %v1688 = vunpack.c.h.b16 %v538
        %v1689 = vunpack.c.l.b16 %v539
        %v1690 = vunpack.c.h.b16 %v539
        %v1691 = vunpack.c.l.b16 %v540
        %v1692 = vunpack.c.h.b16 %v540
        %v1693 = vunpack.c.l.b16 %v541
        %v1694 = vunpack.c.h.b16 %v541
        %v1695 = vunpack.c.l.b16 %v542
        %v1696 = vunpack.c.h.b16 %v542
        %v1697 = vunpack.c.l.b16 %v543
        %v1698 = vunpack.c.h.b16 %v543
        %v1699 = vunpack.c.l.b16 %v544
        %v1700 = vunpack.c.h.b16 %v544
        %v1701 = vunpack.c.l.b16 %v545
        %v1702 = vunpack.c.h.b16 %v545
        %v1703 = vunpack.c.l.b16 %v546
        %v1704 = vunpack.c.h.b16 %v546
        %v1705 = vunpack.c.l.b16 %v547
        %v1706 = vunpack.c.h.b16 %v547
        %v1707 = vunpack.c.l.b16 %v548
        %v1708 = vunpack.c.h.b16 %v548
        %v1709 = vunpack.c.l.b16 %v549
        %v1710 = vunpack.c.h.b16 %v549
        %v1711 = vunpack.c.l.b16 %v550
        %v1712 = vunpack.c.h.b16 %v550
        %v1713 = vunpack.c.l.b16 %v551
        %v1714 = vunpack.c.h.b16 %v551
        %v1715 = vunpack.c.l.b16 %v552
        %v1716 = vunpack.c.h.b16 %v552
        %v1717 = vunpack.c.l.b16 %v553
        %v1718 = vunpack.c.h.b16 %v553
        %v1719 = vunpack.c.l.b16 %v554
        %v1720 = vunpack.c.h.b16 %v554
        %v1721 = vunpack.c.l.b16 %v555
        %v1722 = vunpack.c.h.b16 %v555
        %v1723 = vunpack.c.l.b16 %v556
        %v1724 = vunpack.c.h.b16 %v556
        %v1725 = vunpack.c.l.b16 %v557
        %v1726 = vunpack.c.h.b16 %v557
        %v1727 = vunpack.c.l.b16 %v558
        %v1728 = vunpack.c.h.b16 %v558
        %v1729 = vunpack.c.l.b16 %v559
        %v1730 = vunpack.c.h.b16 %v559
        %v1731 = vunpack.c.l.b16 %v560
        %v1732 = vunpack.c.h.b16 %v560
        %v1733 = vunpack.c.l.b16 %v561
        %v1734 = vunpack.c.h.b16 %v561
        %v1735 = vunpack.c.l.b16 %v562
        %v1736 = vunpack.c.h.b16 %v562
        %v1737 = vunpack.c.l.b16 %v563
        %v1738 = vunpack.c.h.b16 %v563
        %v1739 = vunpack.c.l.b16 %v564
        %v1740 = vunpack.c.h.b16 %v564
        %v1741 = vunpack.c.l.b16 %v565
        %v1742 = vunpack.c.h.b16 %v565
        %v1743 = vunpack.c.l.b16 %v566
        %v1744 = vunpack.c.h.b16 %v566
        %v1745 = vunpack.c.l.b16 %v567
        %v1746 = vunpack.c.h.b16 %v567
        %v1747 = vunpack.c.l.b16 %v568
        %v1748 = vunpack.c.h.b16 %v568
        %v1749 = vunpack.c.l.b16 %v569
        %v1750 = vunpack.c.h.b16 %v569
        %v1751 = vunpack.c.l.b16 %v570
        %v1752 = vunpack.c.h.b16 %v570
        %v1753 = vunpack.c.l.b16 %v571
        %v1754 = vunpack.c.h.b16 %v571
        %v1755 = vunpack.c.l.b16 %v572
        %v1756 = vunpack.c.h.b16 %v572
        %v1757 = vunpack.c.l.b16 %v573
        %v1758 = vunpack.c.h.b16 %v573
        %v1759 = vunpack.c.l.b16 %v574
        %v1760 = vunpack.c.h.b16 %v574
        %v1761 = vunpack.c.l.b16 %v575
        %v1762 = vunpack.c.h.b16 %v575
        %v1763 = vunpack.c.l.b16 %v576
        %v1764 = vunpack.c.h.b16 %v576
        %v1765 = vunpack.c.l.b16 %v577
        %v1766 = vunpack.c.h.b16 %v577
        %v1767 = vunpack.c.l.b16 %v578
        %v1768 = vunpack.c.h.b16 %v578
        %v1769 = vunpack.c.l.b16 %v579
        %v1770 = vunpack.c.h.b16 %v579
        %v1771 = vunpack.c.l.b16 %v580
        %v1772 = vunpack.c.h.b16 %v580
        %v1773 = vunpack.c.l.b16 %v581
        %v1774 = vunpack.c.h.b16 %v581
        %v1775 = vunpack.c.l.b16 %v582
        %v1776 = vunpack.c.h.b16 %v582
        %v1777 = vunpack.c.l.b16 %v583
        %v1778 = vunpack.c.h.b16 %v583
        %v1779 = vunpack.c.l.b16 %v584
        %v1780 = vunpack.c.h.b16 %v584
        %v1781 = vunpack.c.l.b16 %v585
        %v1782 = vunpack.c.h.b16 %v585
        %v1783 = vunpack.c.l.b16 %v586
        %v1784 = vunpack.c.h.b16 %v586
        %v1785 = vunpack.c.l.b16 %v587
        %v1786 = vunpack.c.h.b16 %v587
        %v1787 = vunpack.c.l.b16 %v588
        %v1788 = vunpack.c.h.b16 %v588
        %v1789 = vunpack.c.l.b16 %v589
        %v1790 = vunpack.c.h.b16 %v589
        %v1791 = vunpack.c.l.b16 %v590
        %v1792 = vunpack.c.h.b16 %v590
        %v1793 = vunpack.c.l.b16 %v591
        %v1794 = vunpack.c.h.b16 %v591
        %v1795 = vunpack.c.l.b16 %v592
        %v1796 = vunpack.c.h.b16 %v592
        %v1797 = vunpack.c.l.b16 %v593
        %v1798 = vunpack.c.h.b16 %v593
        %v1799 = vunpack.c.l.b16 %v594
        %v1800 = vunpack.c.h.b16 %v594
        %v1801 = vunpack.c.l.b16 %v595
        %v1802 = vunpack.c.h.b16 %v595
        %v1803 = vunpack.c.l.b16 %v596
        %v1804 = vunpack.c.h.b16 %v596
        %v1805 = vunpack.c.l.b16 %v597
        %v1806 = vunpack.c.h.b16 %v597
        %v1807 = vunpack.c.l.b16 %v598
        %v1808 = vunpack.c.h.b16 %v598
        %v1809 = vunpack.c.l.b16 %v599
        %v1810 = vunpack.c.h.b16 %v599
        %v1811 = vunpack.c.l.b16 %v600
        %v1812 = vunpack.c.h.b16 %v600
        %v1813 = vunpack.c.l.b16 %v601
        %v1814 = vunpack.c.h.b16 %v601
        %v1815 = vunpack.c.l.b16 %v602
        %v1816 = vunpack.c.h.b16 %v602
        %v1817 = vunpack.c.l.b16 %v603
        %v1818 = vunpack.c.h.b16 %v603
        %v1819 = vunpack.c.l.b16 %v604
        %v1820 = vunpack.c.h.b16 %v604
        %v1821 = vunpack.c.l.b16 %v605
        %v1822 = vunpack.c.h.b16 %v605
        %v1823 = vunpack.c.l.b16 %v606
        %v1824 = vunpack.c.h.b16 %v606
        %v1825 = vunpack.c.l.b16 %v607
        %v1826 = vunpack.c.h.b16 %v607
        %v1827 = vunpack.c.l.b16 %v608
        %v1828 = vunpack.c.h.b16 %v608
        %v1829 = vunpack.c.l.b16 %v609
        %v1830 = vunpack.c.h.b16 %v609
        %v1831 = vunpack.c.l.b16 %v610
        %v1832 = vunpack.c.h.b16 %v610
        %v1833 = vunpack.c.l.b16 %v611
        %v1834 = vunpack.c.h.b16 %v611
        %v1835 = vunpack.c.l.b16 %v612
        %v1836 = vunpack.c.h.b16 %v612
        %v1837 = vunpack.c.l.b16 %v613
        %v1838 = vunpack.c.h.b16 %v613
        %v1839 = vunpack.c.l.b16 %v614
        %v1840 = vunpack.c.h.b16 %v614
        %v1841 = vunpack.c.l.b16 %v615
        %v1842 = vunpack.c.h.b16 %v615
        %v1843 = vunpack.c.l.b16 %v616
        %v1844 = vunpack.c.h.b16 %v616
        %v1845 = vunpack.c.l.b16 %v617
        %v1846 = vunpack.c.h.b16 %v617
        %v1847 = vunpack.c.l.b16 %v618
        %v1848 = vunpack.c.h.b16 %v618
        %v1849 = vunpack.c.l.b16 %v619
        %v1850 = vunpack.c.h.b16 %v619
        %v1851 = vunpack.c.l.b16 %v620
        %v1852 = vunpack.c.h.b16 %v620
        %v1853 = vunpack.c.l.b16 %v621
        %v1854 = vunpack.c.h.b16 %v621
        %v1855 = vunpack.c.l.b16 %v622
        %v1856 = vunpack.c.h.b16 %v622
        %v1857 = vunpack.c.l.b16 %v623
        %v1858 = vunpack.c.h.b16 %v623
        %v1859 = vunpack.c.l.b16 %v624
        %v1860 = vunpack.c.h.b16 %v624
        %v1861 = vunpack.c.l.b16 %v625
        %v1862 = vunpack.c.h.b16 %v625
        %v1863 = vunpack.c.l.b16 %v626
        %v1864 = vunpack.c.h.b16 %v626
        %v1865 = vunpack.c.l.b16 %v627
        %v1866 = vunpack.c.h.b16 %v627
        %v1867 = vunpack.c.l.b16 %v628
        %v1868 = vunpack.c.h.b16 %v628
        %v1869 = vunpack.c.l.b16 %v629
        %v1870 = vunpack.c.h.b16 %v629
        %v1871 = vunpack.c.l.b16 %v630
        %v1872 = vunpack.c.h.b16 %v630
        %v1873 = vunpack.c.l.b16 %v631
        %v1874 = vunpack.c.h.b16 %v631
        %v1875 = vunpack.c.l.b16 %v632
        %v1876 = vunpack.c.h.b16 %v632
        %v1877 = vunpack.c.l.b16 %v633
        %v1878 = vunpack.c.h.b16 %v633
        %v1879 = vunpack.c.l.b16 %v634
        %v1880 = vunpack.c.h.b16 %v634
        %v1881 = vunpack.c.l.b16 %v635
        %v1882 = vunpack.c.h.b16 %v635
        %v1883 = vunpack.c.l.b16 %v636
        %v1884 = vunpack.c.h.b16 %v636
        %v1885 = vunpack.c.l.b16 %v637
        %v1886 = vunpack.c.h.b16 %v637
        %v1887 = vunpack.c.l.b16 %v638
        %v1888 = vunpack.c.h.b16 %v638
        %v1889 = vunpack.c.l.b16 %v639
        %v1890 = vunpack.c.h.b16 %v639
        %v1891 = vunpack.c.l.b16 %v640
        %v1892 = vunpack.c.h.b16 %v640
        %v1893 = vunpack.c.l.b16 %v641
        %v1894 = vunpack.c.h.b16 %v641
        %v1895 = vunpack.c.l.b16 %v642
        %v1896 = vunpack.c.h.b16 %v642
        %v1897 = vunpack.c.l.b16 %v643
        %v1898 = vunpack.c.h.b16 %v643
        %v1899 = vunpack.c.l.b16 %v644
        %v1900 = vunpack.c.h.b16 %v644
        %v1901 = vunpack.c.l.b16 %v645
        %v1902 = vunpack.c.h.b16 %v645
        %v1903 = vunpack.c.l.b16 %v646
        %v1904 = vunpack.c.h.b16 %v646
        %v1905 = vunpack.c.l.b16 %v647
        %v1906 = vunpack.c.h.b16 %v647
        %v1907 = vunpack.c.l.b16 %v648
        %v1908 = vunpack.c.h.b16 %v648
        %v1909 = vunpack.c.l.b16 %v649
        %v1910 = vunpack.c.h.b16 %v649
        %v1911 = vunpack.c.l.b16 %v650
        %v1912 = vunpack.c.h.b16 %v650
        %v1913 = vunpack.c.l.b16 %v651
        %v1914 = vunpack.c.h.b16 %v651
        %v1915 = vunpack.c.l.b16 %v652
        %v1916 = vunpack.c.h.b16 %v652
        %v1917 = vunpack.c.l.b16 %v653
        %v1918 = vunpack.c.h.b16 %v653
        %v1919 = vunpack.c.l.b16 %v654
        %v1920 = vunpack.c.h.b16 %v654
        %v1921 = vunpack.c.l.b16 %v655
        %v1922 = vunpack.c.h.b16 %v655
        %v1923 = vunpack.c.l.b16 %v656
        %v1924 = vunpack.c.h.b16 %v656
        %v1925 = vunpack.c.l.b16 %v657
        %v1926 = vunpack.c.h.b16 %v657
        %v1927 = vunpack.c.l.b16 %v658
        %v1928 = vunpack.c.h.b16 %v658
        %v1929 = vunpack.c.l.b16 %v659
        %v1930 = vunpack.c.h.b16 %v659
        %v1931 = vunpack.c.l.b16 %v660
        %v1932 = vunpack.c.h.b16 %v660
        %v1933 = vunpack.c.l.b16 %v661
        %v1934 = vunpack.c.h.b16 %v661
        %v1935 = vunpack.c.l.b16 %v662
        %v1936 = vunpack.c.h.b16 %v662
        %v1937 = vunpack.c.l.b16 %v663
        %v1938 = vunpack.c.h.b16 %v663
        %v1939 = vunpack.c.l.b16 %v664
        %v1940 = vunpack.c.h.b16 %v664
        %v1941 = vunpack.c.l.b16 %v665
        %v1942 = vunpack.c.h.b16 %v665
        %v1943 = vunpack.c.l.b16 %v666
        %v1944 = vunpack.c.h.b16 %v666
        %v1945 = vunpack.c.l.b16 %v667
        %v1946 = vunpack.c.h.b16 %v667
        %v1947 = vunpack.c.l.b16 %v668
        %v1948 = vunpack.c.h.b16 %v668
        %v1949 = vunpack.c.l.b16 %v669
        %v1950 = vunpack.c.h.b16 %v669
        %v1951 = vunpack.c.l.b16 %v670
        %v1952 = vunpack.c.h.b16 %v670
        %v1953 = vunpack.c.l.b16 %v671
        %v1954 = vunpack.c.h.b16 %v671
        %v1955 = vunpack.c.l.b16 %v672
        %v1956 = vunpack.c.h.b16 %v672
        %v1957 = vunpack.c.l.b16 %v673
        %v1958 = vunpack.c.h.b16 %v673
        %v1959 = vunpack.c.l.b16 %v674
        %v1960 = vunpack.c.h.b16 %v674
        %v1961 = vunpack.c.l.b16 %v675
        %v1962 = vunpack.c.h.b16 %v675
        %v1963 = vunpack.c.l.b16 %v676
        %v1964 = vunpack.c.h.b16 %v676
        %v1965 = vunpack.c.l.b16 %v677
        %v1966 = vunpack.c.h.b16 %v677
        %v1967 = vunpack.c.l.b16 %v678
        %v1968 = vunpack.c.h.b16 %v678
        %v1969 = vunpack.c.l.b16 %v679
        %v1970 = vunpack.c.h.b16 %v679
        %v1971 = vunpack.c.l.b16 %v680
        %v1972 = vunpack.c.h.b16 %v680
        %v1973 = vunpack.c.l.b16 %v681
        %v1974 = vunpack.c.h.b16 %v681
        %v1975 = vunpack.c.l.b16 %v682
        %v1976 = vunpack.c.h.b16 %v682
        %v1977 = vunpack.c.l.b16 %v683
        %v1978 = vunpack.c.h.b16 %v683
        %v1979 = vunpack.c.l.b16 %v684
        %v1980 = vunpack.c.h.b16 %v684
        %v1981 = vunpack.c.l.b16 %v685
        %v1982 = vunpack.c.h.b16 %v685
        %v1983 = vunpack.c.l.b16 %v686
        %v1984 = vunpack.c.h.b16 %v686
        %v1985 = vunpack.c.l.b16 %v687
        %v1986 = vunpack.c.h.b16 %v687
        %v1987 = vunpack.c.l.b16 %v688
        %v1988 = vunpack.c.h.b16 %v688
        %v1989 = vunpack.c.l.b16 %v689
        %v1990 = vunpack.c.h.b16 %v689
        %v1991 = vunpack.c.l.b16 %v690
        %v1992 = vunpack.c.h.b16 %v690
        %v1993 = vunpack.c.l.b16 %v691
        %v1994 = vunpack.c.h.b16 %v691
        %v1995 = vunpack.c.l.b16 %v692
        %v1996 = vunpack.c.h.b16 %v692
        %v1997 = vunpack.c.l.b16 %v693
        %v1998 = vunpack.c.h.b16 %v693
        %v1999 = vunpack.c.l.b16 %v694
        %v2000 = vunpack.c.h.b16 %v694
        %v2001 = vunpack.c.l.b16 %v695
        %v2002 = vunpack.c.h.b16 %v695
        %v2003 = vunpack.c.l.b16 %v696
        %v2004 = vunpack.c.h.b16 %v696
        %v2005 = vunpack.c.l.b16 %v697
        %v2006 = vunpack.c.h.b16 %v697
        %v2007 = vunpack.c.l.b16 %v698
        %v2008 = vunpack.c.h.b16 %v698
        %v2009 = vunpack.c.l.b16 %v699
        %v2010 = vunpack.c.h.b16 %v699
        %v2011 = vunpack.c.l.b16 %v700
        %v2012 = vunpack.c.h.b16 %v700
        %v2013 = vunpack.c.l.b16 %v701
        %v2014 = vunpack.c.h.b16 %v701
        %v2015 = vunpack.c.l.b16 %v702
        %v2016 = vunpack.c.h.b16 %v702
        %v2017 = vunpack.c.l.b16 %v703
        %v2018 = vunpack.c.h.b16 %v703
        %v2019 = vunpack.c.l.b16 %v704
        %v2020 = vunpack.c.h.b16 %v704
        %v2021 = vunpack.c.l.b16 %v705
        %v2022 = vunpack.c.h.b16 %v705
        %v2023 = vunpack.c.l.b16 %v706
        %v2024 = vunpack.c.h.b16 %v706
        %v2025 = vunpack.c.l.b16 %v707
        %v2026 = vunpack.c.h.b16 %v707
        %v2027 = vunpack.c.l.b16 %v708
        %v2028 = vunpack.c.h.b16 %v708
        %v2029 = vunpack.c.l.b16 %v709
        %v2030 = vunpack.c.h.b16 %v709
        %v2031 = vunpack.c.l.b16 %v710
        %v2032 = vunpack.c.h.b16 %v710
        %v2033 = vunpack.c.l.b16 %v711
        %v2034 = vunpack.c.h.b16 %v711
        %v2035 = vunpack.c.l.b16 %v712
        %v2036 = vunpack.c.h.b16 %v712
        %v2037 = vunpack.c.l.b16 %v713
        %v2038 = vunpack.c.h.b16 %v713
        %v2039 = vunpack.c.l.b16 %v714
        %v2040 = vunpack.c.h.b16 %v714
        %v2041 = vunpack.c.l.b16 %v715
        %v2042 = vunpack.c.h.b16 %v715
        %v2043 = vunpack.c.l.b16 %v716
        %v2044 = vunpack.c.h.b16 %v716
        %v2045 = vunpack.c.l.b16 %v717
        %v2046 = vunpack.c.h.b16 %v717
        %v2047 = vunpack.c.l.b16 %v718
        %v2048 = vunpack.c.h.b16 %v718
        %v2049 = vunpack.c.l.b16 %v719
        %v2050 = vunpack.c.h.b16 %v719
        %v2051 = vunpack.c.l.b16 %v720
        %v2052 = vunpack.c.h.b16 %v720
        %v2053 = vunpack.c.l.b16 %v721
        %v2054 = vunpack.c.h.b16 %v721
        %v2055 = vunpack.c.l.b16 %v722
        %v2056 = vunpack.c.h.b16 %v722
        %v2057 = vunpack.c.l.b16 %v723
        %v2058 = vunpack.c.h.b16 %v723
        %v2059 = vunpack.c.l.b16 %v724
        %v2060 = vunpack.c.h.b16 %v724
        %v2061 = vunpack.c.l.b16 %v725
        %v2062 = vunpack.c.h.b16 %v725
        %v2063 = vunpack.c.l.b16 %v726
        %v2064 = vunpack.c.h.b16 %v726
        %v2065 = vunpack.c.l.b16 %v727
        %v2066 = vunpack.c.h.b16 %v727
        %v2067 = vunpack.c.l.b16 %v728
        %v2068 = vunpack.c.h.b16 %v728
        %v2069 = vunpack.c.l.b16 %v729
        %v2070 = vunpack.c.h.b16 %v729
        %v2071 = vunpack.c.l.b16 %v730
        %v2072 = vunpack.c.h.b16 %v730
        %v2073 = vunpack.c.l.b16 %v731
        %v2074 = vunpack.c.h.b16 %v731
        %v2075 = vunpack.c.l.b16 %v732
        %v2076 = vunpack.c.h.b16 %v732
        %v2077 = vunpack.c.l.b16 %v733
        %v2078 = vunpack.c.h.b16 %v733
        %v2079 = vunpack.c.l.b16 %v734
        %v2080 = vunpack.c.h.b16 %v734
        %v2081 = vunpack.c.l.b16 %v735
        %v2082 = vunpack.c.h.b16 %v735
        %v2083 = vunpack.c.l.b16 %v736
        %v2084 = vunpack.c.h.b16 %v736
        %v2085 = vunpack.c.l.b16 %v737
        %v2086 = vunpack.c.h.b16 %v737
        %v2087 = vunpack.c.l.b16 %v738
        %v2088 = vunpack.c.h.b16 %v738
        %v2089 = vunpack.c.l.b16 %v739
        %v2090 = vunpack.c.h.b16 %v739
        %v2091 = vunpack.c.l.b16 %v740
        %v2092 = vunpack.c.h.b16 %v740
        %v2093 = vunpack.c.l.b16 %v741
        %v2094 = vunpack.c.h.b16 %v741
        %v2095 = vunpack.c.l.b16 %v742
        %v2096 = vunpack.c.h.b16 %v742
        %v2097 = vunpack.c.l.b16 %v743
        %v2098 = vunpack.c.h.b16 %v743
        %v2099 = vunpack.c.l.b16 %v744
        %v2100 = vunpack.c.h.b16 %v744
        %v2101 = vunpack.c.l.b16 %v745
        %v2102 = vunpack.c.h.b16 %v745
        %v2103 = vunpack.c.l.b16 %v746
        %v2104 = vunpack.c.h.b16 %v746
        %v2105 = vunpack.c.l.b16 %v747
        %v2106 = vunpack.c.h.b16 %v747
        %v2107 = vunpack.c.l.b16 %v748
        %v2108 = vunpack.c.h.b16 %v748
        %v2109 = vunpack.c.l.b16 %v749
        %v2110 = vunpack.c.h.b16 %v749
        %v2111 = vunpack.c.l.b16 %v750
        %v2112 = vunpack.c.h.b16 %v750
        %v2113 = vunpack.c.l.b16 %v751
        %v2114 = vunpack.c.h.b16 %v751
        %v2115 = vunpack.c.l.b16 %v752
        %v2116 = vunpack.c.h.b16 %v752
        %v2117 = vunpack.c.l.b16 %v753
        %v2118 = vunpack.c.h.b16 %v753
        %v2119 = vunpack.c.l.b16 %v754
        %v2120 = vunpack.c.h.b16 %v754
        %v2121 = vunpack.c.l.b16 %v755
        %v2122 = vunpack.c.h.b16 %v755
        %v2123 = vunpack.c.l.b16 %v756
        %v2124 = vunpack.c.h.b16 %v756
        %v2125 = vunpack.c.l.b16 %v757
        %v2126 = vunpack.c.h.b16 %v757
        %v2127 = vunpack.c.l.b16 %v758
        %v2128 = vunpack.c.h.b16 %v758
        %v2129 = vunpack.c.l.b16 %v759
        %v2130 = vunpack.c.h.b16 %v759
        %v2131 = vunpack.c.l.b16 %v760
        %v2132 = vunpack.c.h.b16 %v760
        %v2133 = vunpack.c.l.b16 %v761
        %v2134 = vunpack.c.h.b16 %v761
        %v2135 = vunpack.c.l.b16 %v762
        %v2136 = vunpack.c.h.b16 %v762
        %v2137 = vunpack.c.l.b16 %v763
        %v2138 = vunpack.c.h.b16 %v763
        %v2139 = vunpack.c.l.b16 %v764
        %v2140 = vunpack.c.h.b16 %v764
        %v2141 = vunpack.c.l.b16 %v765
        %v2142 = vunpack.c.h.b16 %v765
        %v2143 = vunpack.c.l.b16 %v766
        %v2144 = vunpack.c.h.b16 %v766
        %v2145 = vunpack.c.l.b16 %v767
        %v2146 = vunpack.c.h.b16 %v767
        %v2147 = vunpack.c.l.b16 %v768
        %v2148 = vunpack.c.h.b16 %v768
        %v2149 = vunpack.c.l.b16 %v769
        %v2150 = vunpack.c.h.b16 %v769
        %v2151 = vunpack.c.l.b16 %v770
        %v2152 = vunpack.c.h.b16 %v770
        %v2153 = vunpack.c.l.b16 %v771
        %v2154 = vunpack.c.h.b16 %v771
        %v2155 = vunpack.c.l.b16 %v772
        %v2156 = vunpack.c.h.b16 %v772
        %v2157 = vunpack.c.l.b16 %v773
        %v2158 = vunpack.c.h.b16 %v773
        %v2159 = vunpack.c.l.b16 %v774
        %v2160 = vunpack.c.h.b16 %v774
        %v2161 = vunpack.c.l.b16 %v775
        %v2162 = vunpack.c.h.b16 %v775
        %v2163 = vunpack.c.l.b16 %v776
        %v2164 = vunpack.c.h.b16 %v776
        %v2165 = vunpack.c.l.b16 %v777
        %v2166 = vunpack.c.h.b16 %v777
        %v2167 = vunpack.c.l.b16 %v778
        %v2168 = vunpack.c.h.b16 %v778
        %v2169 = vunpack.c.l.b16 %v779
        %v2170 = vunpack.c.h.b16 %v779
        %v2171 = vunpack.c.l.b16 %v780
        %v2172 = vunpack.c.h.b16 %v780
        %v2173 = vunpack.c.l.b16 %v781
        %v2174 = vunpack.c.h.b16 %v781
        %v2175 = vunpack.c.l.b16 %v782
        %v2176 = vunpack.c.h.b16 %v782
        %v2177 = vunpack.c.l.b16 %v783
        %v2178 = vunpack.c.h.b16 %v783
        %v2179 = vunpack.c.l.b16 %v784
        %v2180 = vunpack.c.h.b16 %v784
        %v2181 = vunpack.c.l.b16 %v785
        %v2182 = vunpack.c.h.b16 %v785
        %v2183 = vunpack.c.l.b16 %v786
        %v2184 = vunpack.c.h.b16 %v786
        %v2185 = vunpack.c.l.b16 %v787
        %v2186 = vunpack.c.h.b16 %v787
        %v2187 = vunpack.c.l.b16 %v788
        %v2188 = vunpack.c.h.b16 %v788
        %v2189 = vunpack.c.l.b16 %v789
        %v2190 = vunpack.c.h.b16 %v789
        %v2191 = vunpack.c.l.b16 %v790
        %v2192 = vunpack.c.h.b16 %v790
        %v2193 = vunpack.c.l.b16 %v791
        %v2194 = vunpack.c.h.b16 %v791
        %v2195 = vunpack.c.l.b16 %v792
        %v2196 = vunpack.c.h.b16 %v792
        %v2197 = vunpack.c.l.b16 %v793
        %v2198 = vunpack.c.h.b16 %v793
        %v2199 = vunpack.c.l.b16 %v794
        %v2200 = vunpack.c.h.b16 %v794
        %v2201 = vunpack.c.l.b16 %v795
        %v2202 = vunpack.c.h.b16 %v795
        %v2203 = vunpack.c.l.b16 %v796
        %v2204 = vunpack.c.h.b16 %v796
        %v2205 = vunpack.c.l.b16 %v797
        %v2206 = vunpack.c.h.b16 %v797
        %v2207 = vunpack.c.l.b16 %v798
        %v2208 = vunpack.c.h.b16 %v798
        %v2209 = vunpack.c.l.b16 %v799
        %v2210 = vunpack.c.h.b16 %v799
        %v2211 = vunpack.c.l.b16 %v800
        %v2212 = vunpack.c.h.b16 %v800
        %v2213 = vunpack.c.l.b16 %v801
        %v2214 = vunpack.c.h.b16 %v801
        %v2215 = vunpack.c.l.b16 %v802
        %v2216 = vunpack.c.h.b16 %v802
        %v2217 = vunpack.c.l.b16 %v803
        %v2218 = vunpack.c.h.b16 %v803
        %v2219 = vunpack.c.l.b16 %v804
        %v2220 = vunpack.c.h.b16 %v804
        %v2221 = vunpack.c.l.b16 %v805
        %v2222 = vunpack.c.h.b16 %v805
        %v2223 = vunpack.c.l.b16 %v806
        %v2224 = vunpack.c.h.b16 %v806
        %v2225 = vunpack.c.l.b16 %v807
        %v2226 = vunpack.c.h.b16 %v807
        %v2227 = vunpack.c.l.b16 %v808
        %v2228 = vunpack.c.h.b16 %v808
        %v2229 = vunpack.c.l.b16 %v809
        %v2230 = vunpack.c.h.b16 %v809
        %v2231 = vunpack.c.l.b16 %v810
        %v2232 = vunpack.c.h.b16 %v810
        %v2233 = vunpack.c.l.b16 %v811
        %v2234 = vunpack.c.h.b16 %v811
        %v2235 = vunpack.c.l.b16 %v812
        %v2236 = vunpack.c.h.b16 %v812
        %v2237 = vunpack.c.l.b16 %v813
        %v2238 = vunpack.c.h.b16 %v813
        %v2239 = vunpack.c.l.b16 %v814
        %v2240 = vunpack.c.h.b16 %v814
        %v2241 = vunpack.c.l.b16 %v815
        %v2242 = vunpack.c.h.b16 %v815
        %v2243 = vunpack.c.l.b16 %v816
        %v2244 = vunpack.c.h.b16 %v816
        %v2245 = vunpack.c.l.b16 %v817
        %v2246 = vunpack.c.h.b16 %v817
        %v2247 = vunpack.c.l.b16 %v818
        %v2248 = vunpack.c.h.b16 %v818
        %v2249 = vunpack.c.l.b16 %v819
        %v2250 = vunpack.c.h.b16 %v819
        %v2251 = vunpack.c.l.b16 %v820
        %v2252 = vunpack.c.h.b16 %v820
        %v2253 = vunpack.c.l.b16 %v821
        %v2254 = vunpack.c.h.b16 %v821
        %v2255 = vunpack.c.l.b16 %v822
        %v2256 = vunpack.c.h.b16 %v822
        %v2257 = vunpack.c.l.b16 %v823
        %v2258 = vunpack.c.h.b16 %v823
        %v2259 = vunpack.c.l.b16 %v824
        %v2260 = vunpack.c.h.b16 %v824
        %v2261 = vunpack.c.l.b16 %v825
        %v2262 = vunpack.c.h.b16 %v825
        %v2263 = vunpack.c.l.b16 %v826
        %v2264 = vunpack.c.h.b16 %v826
        %v2265 = vunpack.c.l.b16 %v827
        %v2266 = vunpack.c.h.b16 %v827
        %v2267 = vunpack.c.l.b16 %v828
        %v2268 = vunpack.c.h.b16 %v828
        %v2269 = vunpack.c.l.b16 %v829
        %v2270 = vunpack.c.h.b16 %v829
        %v2271 = vunpack.c.l.b16 %v830
        %v2272 = vunpack.c.h.b16 %v830
        %v2273 = vunpack.c.l.b16 %v831
        %v2274 = vunpack.c.h.b16 %v831
        %v2275 = vunpack.c.l.b16 %v832
        %v2276 = vunpack.c.h.b16 %v832
        %v2277 = vunpack.c.l.b16 %v833
        %v2278 = vunpack.c.h.b16 %v833
        %v2279 = vunpack.c.l.b16 %v834
        %v2280 = vunpack.c.h.b16 %v834
        %v2281 = vunpack.c.l.b16 %v835
        %v2282 = vunpack.c.h.b16 %v835
        %v2283 = vunpack.c.l.b16 %v836
        %v2284 = vunpack.c.h.b16 %v836
        %v2285 = vunpack.c.l.b16 %v837
        %v2286 = vunpack.c.h.b16 %v837
        %v2287 = vunpack.c.l.b16 %v838
        %v2288 = vunpack.c.h.b16 %v838
        %v2289 = vunpack.c.l.b16 %v839
        %v2290 = vunpack.c.h.b16 %v839
        %v2291 = vunpack.c.l.b16 %v840
        %v2292 = vunpack.c.h.b16 %v840
        %v2293 = vunpack.c.l.b16 %v841
        %v2294 = vunpack.c.h.b16 %v841
        %v2295 = vunpack.c.l.b16 %v842
        %v2296 = vunpack.c.h.b16 %v842
        %v2297 = vunpack.c.l.b16 %v843
        %v2298 = vunpack.c.h.b16 %v843
        %v2299 = vunpack.c.l.b16 %v844
        %v2300 = vunpack.c.h.b16 %v844
        %v2301 = vunpack.c.l.b16 %v845
        %v2302 = vunpack.c.h.b16 %v845
        %v2303 = vunpack.c.l.b16 %v846
        %v2304 = vunpack.c.h.b16 %v846
        %v2305 = vunpack.c.l.b16 %v847
        %v2306 = vunpack.c.h.b16 %v847
        %v2307 = vunpack.c.l.b16 %v848
        %v2308 = vunpack.c.h.b16 %v848
        %v2309 = vunpack.c.l.b16 %v849
        %v2310 = vunpack.c.h.b16 %v849
        %v2311 = vunpack.c.l.b16 %v850
        %v2312 = vunpack.c.h.b16 %v850
        %v2313 = vunpack.c.l.b16 %v851
        %v2314 = vunpack.c.h.b16 %v851
        %v2315 = vunpack.c.l.b16 %v852
        %v2316 = vunpack.c.h.b16 %v852
        %v2317 = vunpack.c.l.b16 %v853
        %v2318 = vunpack.c.h.b16 %v853
        %v2319 = vunpack.c.l.b16 %v854
        %v2320 = vunpack.c.h.b16 %v854
        %v2321 = vunpack.c.l.b16 %v855
        %v2322 = vunpack.c.h.b16 %v855
        %v2323 = vunpack.c.l.b16 %v856
        %v2324 = vunpack.c.h.b16 %v856
        %v2325 = vunpack.c.l.b16 %v857
        %v2326 = vunpack.c.h.b16 %v857
        %v2327 = vunpack.c.l.b16 %v858
        %v2328 = vunpack.c.h.b16 %v858
        %v2329 = vunpack.c.l.b16 %v859
        %v2330 = vunpack.c.h.b16 %v859
        %v2331 = vunpack.c.l.b16 %v860
        %v2332 = vunpack.c.h.b16 %v860
        %v2333 = vunpack.c.l.b16 %v861
        %v2334 = vunpack.c.h.b16 %v861
        %v2335 = vunpack.c.l.b16 %v862
        %v2336 = vunpack.c.h.b16 %v862
        %v2337 = vunpack.c.l.b16 %v863
        %v2338 = vunpack.c.h.b16 %v863
        %v2339 = vunpack.c.l.b16 %v864
        %v2340 = vunpack.c.h.b16 %v864
        %v2341 = vunpack.c.l.b16 %v865
        %v2342 = vunpack.c.h.b16 %v865
        %v2343 = vunpack.c.l.b16 %v866
        %v2344 = vunpack.c.h.b16 %v866
        %v2345 = vunpack.c.l.b16 %v867
        %v2346 = vunpack.c.h.b16 %v867
        %v2347 = vunpack.c.l.b16 %v868
        %v2348 = vunpack.c.h.b16 %v868
        %v2349 = vunpack.c.l.b16 %v869
        %v2350 = vunpack.c.h.b16 %v869
        %v2351 = vunpack.c.l.b16 %v870
        %v2352 = vunpack.c.h.b16 %v870
        %v2353 = vunpack.c.l.b16 %v871
        %v2354 = vunpack.c.h.b16 %v871
        %v2355 = vunpack.c.l.b16 %v872
        %v2356 = vunpack.c.h.b16 %v872
        %v2357 = vunpack.c.l.b16 %v873
        %v2358 = vunpack.c.h.b16 %v873
        %v2359 = vunpack.c.l.b16 %v874
        %v2360 = vunpack.c.h.b16 %v874
        %v2361 = vunpack.c.l.b16 %v875
        %v2362 = vunpack.c.h.b16 %v875
        %v2363 = vunpack.c.l.b16 %v876
        %v2364 = vunpack.c.h.b16 %v876
        %v2365 = vunpack.c.l.b16 %v877
        %v2366 = vunpack.c.h.b16 %v877
        %v2367 = vunpack.c.l.b16 %v878
        %v2368 = vunpack.c.h.b16 %v878
        %v2369 = vunpack.c.l.b16 %v879
        %v2370 = vunpack.c.h.b16 %v879
        %v2371 = vunpack.c.l.b16 %v880
        %v2372 = vunpack.c.h.b16 %v880
        %v2373 = vunpack.c.l.b16 %v881
        %v2374 = vunpack.c.h.b16 %v881
        %v2375 = vunpack.c.l.b16 %v882
        %v2376 = vunpack.c.h.b16 %v882
        %v2377 = vunpack.c.l.b16 %v883
        %v2378 = vunpack.c.h.b16 %v883
        %v2379 = vunpack.c.l.b16 %v884
        %v2380 = vunpack.c.h.b16 %v884
        %v2381 = vunpack.c.l.b16 %v885
        %v2382 = vunpack.c.h.b16 %v885
        %v2383 = vunpack.c.l.b16 %v886
        %v2384 = vunpack.c.h.b16 %v886
        %v2385 = vunpack.c.l.b16 %v887
        %v2386 = vunpack.c.h.b16 %v887
        %v2387 = vunpack.c.l.b16 %v888
        %v2388 = vunpack.c.h.b16 %v888
        %v2389 = vunpack.c.l.b16 %v889
        %v2390 = vunpack.c.h.b16 %v889
        %v2391 = vunpack.c.l.b16 %v890
        %v2392 = vunpack.c.h.b16 %v890
        %v2393 = vunpack.c.l.b16 %v891
        %v2394 = vunpack.c.h.b16 %v891
        %v2395 = vunpack.c.l.b16 %v892
        %v2396 = vunpack.c.h.b16 %v892
        %v2397 = vunpack.c.l.b16 %v893
        %v2398 = vunpack.c.h.b16 %v893
        %v2399 = vunpack.c.l.b16 %v894
        %v2400 = vunpack.c.h.b16 %v894
        %v2401 = vunpack.c.l.b16 %v895
        %v2402 = vunpack.c.h.b16 %v895
        %v2403 = vunpack.c.l.b16 %v896
        %v2404 = vunpack.c.h.b16 %v896
        %v2405 = vunpack.c.l.b16 %v897
        %v2406 = vunpack.c.h.b16 %v897
        %v2407 = vunpack.c.l.b16 %v898
        %v2408 = vunpack.c.h.b16 %v898
        %v2409 = vunpack.c.l.b16 %v899
        %v2410 = vunpack.c.h.b16 %v899
        %v2411 = vunpack.c.l.b16 %v900
        %v2412 = vunpack.c.h.b16 %v900
        %v2413 = vunpack.c.l.b16 %v901
        %v2414 = vunpack.c.h.b16 %v901
        %v2415 = vunpack.c.l.b16 %v902
        %v2416 = vunpack.c.h.b16 %v902
        %v2417 = vunpack.c.l.b16 %v903
        %v2418 = vunpack.c.h.b16 %v903
        %v2419 = vunpack.c.l.b16 %v904
        %v2420 = vunpack.c.h.b16 %v904
        %v2421 = vunpack.c.l.b16 %v905
        %v2422 = vunpack.c.h.b16 %v905
        %v2423 = vunpack.c.l.b16 %v906
        %v2424 = vunpack.c.h.b16 %v906
        %v2425 = vunpack.c.l.b16 %v907
        %v2426 = vunpack.c.h.b16 %v907
        %v2427 = vunpack.c.l.b16 %v908
        %v2428 = vunpack.c.h.b16 %v908
        %v2429 = vunpack.c.l.b16 %v909
        %v2430 = vunpack.c.h.b16 %v909
        %v2431 = vunpack.c.l.b16 %v910
        %v2432 = vunpack.c.h.b16 %v910
        %v2433 = vunpack.c.l.b16 %v911
        %v2434 = vunpack.c.h.b16 %v911
        %v2435 = vunpack.c.l.b16 %v912
        %v2436 = vunpack.c.h.b16 %v912
        %v2437 = vunpack.c.l.b16 %v913
        %v2438 = vunpack.c.h.b16 %v913
        %v2439 = vunpack.c.l.b16 %v914
        %v2440 = vunpack.c.h.b16 %v914
        %v2441 = vunpack.c.l.b16 %v915
        %v2442 = vunpack.c.h.b16 %v915
        %v2443 = vunpack.c.l.b16 %v916
        %v2444 = vunpack.c.h.b16 %v916
        %v2445 = vunpack.c.l.b16 %v917
        %v2446 = vunpack.c.h.b16 %v917
        %v2447 = vunpack.c.l.b16 %v918
        %v2448 = vunpack.c.h.b16 %v918
        %v2449 = vunpack.c.l.b16 %v919
        %v2450 = vunpack.c.h.b16 %v919
        %v2451 = vunpack.c.l.b16 %v920
        %v2452 = vunpack.c.h.b16 %v920
        %v2453 = vunpack.c.l.b16 %v921
        %v2454 = vunpack.c.h.b16 %v921
        %v2455 = vunpack.c.l.b16 %v922
        %v2456 = vunpack.c.h.b16 %v922
        %v2457 = vunpack.c.l.b16 %v923
        %v2458 = vunpack.c.h.b16 %v923
        %v2459 = vunpack.c.l.b16 %v924
        %v2460 = vunpack.c.h.b16 %v924
        %v2461 = vunpack.c.l.b16 %v925
        %v2462 = vunpack.c.h.b16 %v925
        %v2463 = vunpack.c.l.b16 %v926
        %v2464 = vunpack.c.h.b16 %v926
        %v2465 = vunpack.c.l.b16 %v927
        %v2466 = vunpack.c.h.b16 %v927
        %v2467 = vunpack.c.l.b16 %v928
        %v2468 = vunpack.c.h.b16 %v928
        %v2469 = vunpack.c.l.b16 %v929
        %v2470 = vunpack.c.h.b16 %v929
        %v2471 = vunpack.c.l.b16 %v930
        %v2472 = vunpack.c.h.b16 %v930
        %v2473 = vunpack.c.l.b16 %v931
        %v2474 = vunpack.c.h.b16 %v931
        %v2475 = vunpack.c.l.b16 %v932
        %v2476 = vunpack.c.h.b16 %v932
        %v2477 = vunpack.c.l.b16 %v933
        %v2478 = vunpack.c.h.b16 %v933
        %v2479 = vunpack.c.l.b16 %v934
        %v2480 = vunpack.c.h.b16 %v934
        %v2481 = vunpack.c.l.b16 %v935
        %v2482 = vunpack.c.h.b16 %v935
        %v2483 = vunpack.c.l.b16 %v936
        %v2484 = vunpack.c.h.b16 %v936
        %v2485 = vunpack.c.l.b16 %v937
        %v2486 = vunpack.c.h.b16 %v937
        %v2487 = vunpack.c.l.b16 %v938
        %v2488 = vunpack.c.h.b16 %v938
        %v2489 = vunpack.c.l.b16 %v939
        %v2490 = vunpack.c.h.b16 %v939
        %v2491 = vunpack.c.l.b16 %v940
        %v2492 = vunpack.c.h.b16 %v940
        %v2493 = vunpack.c.l.b16 %v941
        %v2494 = vunpack.c.h.b16 %v941
        %v2495 = vunpack.c.l.b16 %v942
        %v2496 = vunpack.c.h.b16 %v942
        %v2497 = vunpack.c.l.b16 %v943
        %v2498 = vunpack.c.h.b16 %v943
        %v2499 = vunpack.c.l.b16 %v944
        %v2500 = vunpack.c.h.b16 %v944
        %v2501 = vunpack.c.l.b16 %v945
        %v2502 = vunpack.c.h.b16 %v945
        %v2503 = vunpack.c.l.b16 %v946
        %v2504 = vunpack.c.h.b16 %v946
        %v2505 = vpack.c.b16 %v1485, %v1481
        %v2506 = vpack.c.b16 %v1486, %v1482
        %v2507 = vpack.c.b16 %v1487, %v1483
        %v2508 = vpack.c.b16 %v1488, %v1484
        %v2509 = vpack.c.b16 %v1493, %v1489
        %v2510 = vpack.c.b16 %v1494, %v1490
        %v2511 = vpack.c.b16 %v1495, %v1491
        %v2512 = vpack.c.b16 %v1496, %v1492
        %v2513 = vpack.c.b16 %v1501, %v1497
        %v2514 = vpack.c.b16 %v1502, %v1498
        %v2515 = vpack.c.b16 %v1503, %v1499
        %v2516 = vpack.c.b16 %v1504, %v1500
        %v2517 = vpack.c.b16 %v1509, %v1505
        %v2518 = vpack.c.b16 %v1510, %v1506
        %v2519 = vpack.c.b16 %v1511, %v1507
        %v2520 = vpack.c.b16 %v1512, %v1508
        %v2521 = vpack.c.b16 %v1517, %v1513
        %v2522 = vpack.c.b16 %v1518, %v1514
        %v2523 = vpack.c.b16 %v1519, %v1515
        %v2524 = vpack.c.b16 %v1520, %v1516
        %v2525 = vpack.c.b16 %v1525, %v1521
        %v2526 = vpack.c.b16 %v1526, %v1522
        %v2527 = vpack.c.b16 %v1527, %v1523
        %v2528 = vpack.c.b16 %v1528, %v1524
        %v2529 = vpack.c.b16 %v1533, %v1529
        %v2530 = vpack.c.b16 %v1534, %v1530
        %v2531 = vpack.c.b16 %v1535, %v1531
        %v2532 = vpack.c.b16 %v1536, %v1532
        %v2533 = vpack.c.b16 %v1541, %v1537
        %v2534 = vpack.c.b16 %v1542, %v1538
        %v2535 = vpack.c.b16 %v1543, %v1539
        %v2536 = vpack.c.b16 %v1544, %v1540
        %v2537 = vpack.c.b16 %v1549, %v1545
        %v2538 = vpack.c.b16 %v1550, %v1546
        %v2539 = vpack.c.b16 %v1551, %v1547
        %v2540 = vpack.c.b16 %v1552, %v1548
        %v2541 = vpack.c.b16 %v1557, %v1553
        %v2542 = vpack.c.b16 %v1558, %v1554
        %v2543 = vpack.c.b16 %v1559, %v1555
        %v2544 = vpack.c.b16 %v1560, %v1556
        %v2545 = vpack.c.b16 %v1565, %v1561
        %v2546 = vpack.c.b16 %v1566, %v1562
        %v2547 = vpack.c.b16 %v1567, %v1563
        %v2548 = vpack.c.b16 %v1568, %v1564
        %v2549 = vpack.c.b16 %v1573, %v1569
        %v2550 = vpack.c.b16 %v1574, %v1570
        %v2551 = vpack.c.b16 %v1575, %v1571
        %v2552 = vpack.c.b16 %v1576, %v1572
        %v2553 = vpack.c.b16 %v1581, %v1577
        %v2554 = vpack.c.b16 %v1582, %v1578
        %v2555 = vpack.c.b16 %v1583, %v1579
        %v2556 = vpack.c.b16 %v1584, %v1580
        %v2557 = vpack.c.b16 %v1589, %v1585
        %v2558 = vpack.c.b16 %v1590, %v1586
        %v2559 = vpack.c.b16 %v1591, %v1587
        %v2560 = vpack.c.b16 %v1592, %v1588
        %v2561 = vpack.c.b16 %v1597, %v1593
        %v2562 = vpack.c.b16 %v1598, %v1594
        %v2563 = vpack.c.b16 %v1599, %v1595
        %v2564 = vpack.c.b16 %v1600, %v1596
        %v2565 = vpack.c.b16 %v1605, %v1601
        %v2566 = vpack.c.b16 %v1606, %v1602
        %v2567 = vpack.c.b16 %v1607, %v1603
        %v2568 = vpack.c.b16 %v1608, %v1604
        %v2569 = vpack.c.b16 %v1613, %v1609
        %v2570 = vpack.c.b16 %v1614, %v1610
        %v2571 = vpack.c.b16 %v1615, %v1611
        %v2572 = vpack.c.b16 %v1616, %v1612
        %v2573 = vpack.c.b16 %v1621, %v1617
        %v2574 = vpack.c.b16 %v1622, %v1618
        %v2575 = vpack.c.b16 %v1623, %v1619
        %v2576 = vpack.c.b16 %v1624, %v1620
        %v2577 = vpack.c.b16 %v1629, %v1625
        %v2578 = vpack.c.b16 %v1630, %v1626
        %v2579 = vpack.c.b16 %v1631, %v1627
        %v2580 = vpack.c.b16 %v1632, %v1628
        %v2581 = vpack.c.b16 %v1637, %v1633
        %v2582 = vpack.c.b16 %v1638, %v1634
        %v2583 = vpack.c.b16 %v1639, %v1635
        %v2584 = vpack.c.b16 %v1640, %v1636
        %v2585 = vpack.c.b16 %v1645, %v1641
        %v2586 = vpack.c.b16 %v1646, %v1642
        %v2587 = vpack.c.b16 %v1647, %v1643
        %v2588 = vpack.c.b16 %v1648, %v1644
        %v2589 = vpack.c.b16 %v1653, %v1649
        %v2590 = vpack.c.b16 %v1654, %v1650
        %v2591 = vpack.c.b16 %v1655, %v1651
        %v2592 = vpack.c.b16 %v1656, %v1652
        %v2593 = vpack.c.b16 %v1661, %v1657
        %v2594 = vpack.c.b16 %v1662, %v1658
        %v2595 = vpack.c.b16 %v1663, %v1659
        %v2596 = vpack.c.b16 %v1664, %v1660
        %v2597 = vpack.c.b16 %v1669, %v1665
        %v2598 = vpack.c.b16 %v1670, %v1666
        %v2599 = vpack.c.b16 %v1671, %v1667
        %v2600 = vpack.c.b16 %v1672, %v1668
        %v2601 = vpack.c.b16 %v1677, %v1673
        %v2602 = vpack.c.b16 %v1678, %v1674
        %v2603 = vpack.c.b16 %v1679, %v1675
        %v2604 = vpack.c.b16 %v1680, %v1676
        %v2605 = vpack.c.b16 %v1685, %v1681
        %v2606 = vpack.c.b16 %v1686, %v1682
        %v2607 = vpack.c.b16 %v1687, %v1683
        %v2608 = vpack.c.b16 %v1688, %v1684
        %v2609 = vpack.c.b16 %v1693, %v1689
        %v2610 = vpack.c.b16 %v1694, %v1690
        %v2611 = vpack.c.b16 %v1695, %v1691
        %v2612 = vpack.c.b16 %v1696, %v1692
        %v2613 = vpack.c.b16 %v1701, %v1697
        %v2614 = vpack.c.b16 %v1702, %v1698
        %v2615 = vpack.c.b16 %v1703, %v1699
        %v2616 = vpack.c.b16 %v1704, %v1700
        %v2617 = vpack.c.b16 %v1709, %v1705
        %v2618 = vpack.c.b16 %v1710, %v1706
        %v2619 = vpack.c.b16 %v1711, %v1707
        %v2620 = vpack.c.b16 %v1712, %v1708
        %v2621 = vpack.c.b16 %v1717, %v1713
        %v2622 = vpack.c.b16 %v1718, %v1714
        %v2623 = vpack.c.b16 %v1719, %v1715
        %v2624 = vpack.c.b16 %v1720, %v1716
        %v2625 = vpack.c.b16 %v1725, %v1721
        %v2626 = vpack.c.b16 %v1726, %v1722
        %v2627 = vpack.c.b16 %v1727, %v1723
        %v2628 = vpack.c.b16 %v1728, %v1724
        %v2629 = vpack.c.b16 %v1733, %v1729
        %v2630 = vpack.c.b16 %v1734, %v1730
        %v2631 = vpack.c.b16 %v1735, %v1731
        %v2632 = vpack.c.b16 %v1736, %v1732
        %v2633 = vpack.c.b16 %v1741, %v1737
        %v2634 = vpack.c.b16 %v1742, %v1738
        %v2635 = vpack.c.b16 %v1743, %v1739
        %v2636 = vpack.c.b16 %v1744, %v1740
        %v2637 = vpack.c.b16 %v1749, %v1745
        %v2638 = vpack.c.b16 %v1750, %v1746
        %v2639 = vpack.c.b16 %v1751, %v1747
        %v2640 = vpack.c.b16 %v1752, %v1748
        %v2641 = vpack.c.b16 %v1757, %v1753
        %v2642 = vpack.c.b16 %v1758, %v1754
        %v2643 = vpack.c.b16 %v1759, %v1755
        %v2644 = vpack.c.b16 %v1760, %v1756
        %v2645 = vpack.c.b16 %v1765, %v1761
        %v2646 = vpack.c.b16 %v1766, %v1762
        %v2647 = vpack.c.b16 %v1767, %v1763
        %v2648 = vpack.c.b16 %v1768, %v1764
        %v2649 = vpack.c.b16 %v1773, %v1769
        %v2650 = vpack.c.b16 %v1774, %v1770
        %v2651 = vpack.c.b16 %v1775, %v1771
        %v2652 = vpack.c.b16 %v1776, %v1772
        %v2653 = vpack.c.b16 %v1781, %v1777
        %v2654 = vpack.c.b16 %v1782, %v1778
        %v2655 = vpack.c.b16 %v1783, %v1779
        %v2656 = vpack.c.b16 %v1784, %v1780
        %v2657 = vpack.c.b16 %v1789, %v1785
        %v2658 = vpack.c.b16 %v1790, %v1786
        %v2659 = vpack.c.b16 %v1791, %v1787
        %v2660 = vpack.c.b16 %v1792, %v1788
        %v2661 = vpack.c.b16 %v1797, %v1793
        %v2662 = vpack.c.b16 %v1798, %v1794
        %v2663 = vpack.c.b16 %v1799, %v1795
        %v2664 = vpack.c.b16 %v1800, %v1796
        %v2665 = vpack.c.b16 %v1805, %v1801
        %v2666 = vpack.c.b16 %v1806, %v1802
        %v2667 = vpack.c.b16 %v1807, %v1803
        %v2668 = vpack.c.b16 %v1808, %v1804
        %v2669 = vpack.c.b16 %v1813, %v1809
        %v2670 = vpack.c.b16 %v1814, %v1810
        %v2671 = vpack.c.b16 %v1815, %v1811
        %v2672 = vpack.c.b16 %v1816, %v1812
        %v2673 = vpack.c.b16 %v1821, %v1817
        %v2674 = vpack.c.b16 %v1822, %v1818
        %v2675 = vpack.c.b16 %v1823, %v1819
        %v2676 = vpack.c.b16 %v1824, %v1820
        %v2677 = vpack.c.b16 %v1829, %v1825
        %v2678 = vpack.c.b16 %v1830, %v1826
        %v2679 = vpack.c.b16 %v1831, %v1827
        %v2680 = vpack.c.b16 %v1832, %v1828
        %v2681 = vpack.c.b16 %v1837, %v1833
        %v2682 = vpack.c.b16 %v1838, %v1834
        %v2683 = vpack.c.b16 %v1839, %v1835
        %v2684 = vpack.c.b16 %v1840, %v1836
        %v2685 = vpack.c.b16 %v1845, %v1841
        %v2686 = vpack.c.b16 %v1846, %v1842
        %v2687 = vpack.c.b16 %v1847, %v1843
        %v2688 = vpack.c.b16 %v1848, %v1844
        %v2689 = vpack.c.b16 %v1853, %v1849
        %v2690 = vpack.c.b16 %v1854, %v1850
        %v2691 = vpack.c.b16 %v1855, %v1851
        %v2692 = vpack.c.b16 %v1856, %v1852
        %v2693 = vpack.c.b16 %v1861, %v1857
        %v2694 = vpack.c.b16 %v1862, %v1858
        %v2695 = vpack.c.b16 %v1863, %v1859
        %v2696 = vpack.c.b16 %v1864, %v1860
        %v2697 = vpack.c.b16 %v1869, %v1865
        %v2698 = vpack.c.b16 %v1870, %v1866
        %v2699 = vpack.c.b16 %v1871, %v1867
        %v2700 = vpack.c.b16 %v1872, %v1868
        %v2701 = vpack.c.b16 %v1877, %v1873
        %v2702 = vpack.c.b16 %v1878, %v1874
        %v2703 = vpack.c.b16 %v1879, %v1875
        %v2704 = vpack.c.b16 %v1880, %v1876
        %v2705 = vpack.c.b16 %v1885, %v1881
        %v2706 = vpack.c.b16 %v1886, %v1882
        %v2707 = vpack.c.b16 %v1887, %v1883
        %v2708 = vpack.c.b16 %v1888, %v1884
        %v2709 = vpack.c.b16 %v1893, %v1889
        %v2710 = vpack.c.b16 %v1894, %v1890
        %v2711 = vpack.c.b16 %v1895, %v1891
        %v2712 = vpack.c.b16 %v1896, %v1892
        %v2713 = vpack.c.b16 %v1901, %v1897
        %v2714 = vpack.c.b16 %v1902, %v1898
        %v2715 = vpack.c.b16 %v1903, %v1899
        %v2716 = vpack.c.b16 %v1904, %v1900
        %v2717 = vpack.c.b16 %v1909, %v1905
        %v2718 = vpack.c.b16 %v1910, %v1906
        %v2719 = vpack.c.b16 %v1911, %v1907
        %v2720 = vpack.c.b16 %v1912, %v1908
        %v2721 = vpack.c.b16 %v1917, %v1913
        %v2722 = vpack.c.b16 %v1918, %v1914
        %v2723 = vpack.c.b16 %v1919, %v1915
        %v2724 = vpack.c.b16 %v1920, %v1916
        %v2725 = vpack.c.b16 %v1925, %v1921
        %v2726 = vpack.c.b16 %v1926, %v1922
        %v2727 = vpack.c.b16 %v1927, %v1923
        %v2728 = vpack.c.b16 %v1928, %v1924
        %v2729 = vpack.c.b16 %v1933, %v1929
        %v2730 = vpack.c.b16 %v1934, %v1930
        %v2731 = vpack.c.b16 %v1935, %v1931
        %v2732 = vpack.c.b16 %v1936, %v1932
        %v2733 = vpack.c.b16 %v1941, %v1937
        %v2734 = vpack.c.b16 %v1942, %v1938
        %v2735 = vpack.c.b16 %v1943, %v1939
        %v2736 = vpack.c.b16 %v1944, %v1940
        %v2737 = vpack.c.b16 %v1949, %v1945
        %v2738 = vpack.c.b16 %v1950, %v1946
        %v2739 = vpack.c.b16 %v1951, %v1947
        %v2740 = vpack.c.b16 %v1952, %v1948
        %v2741 = vpack.c.b16 %v1957, %v1953
        %v2742 = vpack.c.b16 %v1958, %v1954
        %v2743 = vpack.c.b16 %v1959, %v1955
        %v2744 = vpack.c.b16 %v1960, %v1956
        %v2745 = vpack.c.b16 %v1965, %v1961
        %v2746 = vpack.c.b16 %v1966, %v1962
        %v2747 = vpack.c.b16 %v1967, %v1963
        %v2748 = vpack.c.b16 %v1968, %v1964
        %v2749 = vpack.c.b16 %v1973, %v1969
        %v2750 = vpack.c.b16 %v1974, %v1970
        %v2751 = vpack.c.b16 %v1975, %v1971
        %v2752 = vpack.c.b16 %v1976, %v1972
        %v2753 = vpack.c.b16 %v1981, %v1977
        %v2754 = vpack.c.b16 %v1982, %v1978
        %v2755 = vpack.c.b16 %v1983, %v1979
        %v2756 = vpack.c.b16 %v1984, %v1980
        %v2757 = vpack.c.b16 %v1989, %v1985
        %v2758 = vpack.c.b16 %v1990, %v1986
        %v2759 = vpack.c.b16 %v1991, %v1987
        %v2760 = vpack.c.b16 %v1992, %v1988
        %v2761 = vpack.c.b16 %v1997, %v1993
        %v2762 = vpack.c.b16 %v1998, %v1994
        %v2763 = vpack.c.b16 %v1999, %v1995
        %v2764 = vpack.c.b16 %v2000, %v1996
        %v2765 = vpack.c.b16 %v2005, %v2001
        %v2766 = vpack.c.b16 %v2006, %v2002
        %v2767 = vpack.c.b16 %v2007, %v2003
        %v2768 = vpack.c.b16 %v2008, %v2004
        %v2769 = vpack.c.b16 %v2013, %v2009
        %v2770 = vpack.c.b16 %v2014, %v2010
        %v2771 = vpack.c.b16 %v2015, %v2011
        %v2772 = vpack.c.b16 %v2016, %v2012
        %v2773 = vpack.c.b16 %v2021, %v2017
        %v2774 = vpack.c.b16 %v2022, %v2018
        %v2775 = vpack.c.b16 %v2023, %v2019
        %v2776 = vpack.c.b16 %v2024, %v2020
        %v2777 = vpack.c.b16 %v2029, %v2025
        %v2778 = vpack.c.b16 %v2030, %v2026
        %v2779 = vpack.c.b16 %v2031, %v2027
        %v2780 = vpack.c.b16 %v2032, %v2028
        %v2781 = vpack.c.b16 %v2037, %v2033
        %v2782 = vpack.c.b16 %v2038, %v2034
        %v2783 = vpack.c.b16 %v2039, %v2035
        %v2784 = vpack.c.b16 %v2040, %v2036
        %v2785 = vpack.c.b16 %v2045, %v2041
        %v2786 = vpack.c.b16 %v2046, %v2042
        %v2787 = vpack.c.b16 %v2047, %v2043
        %v2788 = vpack.c.b16 %v2048, %v2044
        %v2789 = vpack.c.b16 %v2053, %v2049
        %v2790 = vpack.c.b16 %v2054, %v2050
        %v2791 = vpack.c.b16 %v2055, %v2051
        %v2792 = vpack.c.b16 %v2056, %v2052
        %v2793 = vpack.c.b16 %v2061, %v2057
        %v2794 = vpack.c.b16 %v2062, %v2058
        %v2795 = vpack.c.b16 %v2063, %v2059
        %v2796 = vpack.c.b16 %v2064, %v2060
        %v2797 = vpack.c.b16 %v2069, %v2065
        %v2798 = vpack.c.b16 %v2070, %v2066
        %v2799 = vpack.c.b16 %v2071, %v2067
        %v2800 = vpack.c.b16 %v2072, %v2068
        %v2801 = vpack.c.b16 %v2077, %v2073
        %v2802 = vpack.c.b16 %v2078, %v2074
        %v2803 = vpack.c.b16 %v2079, %v2075
        %v2804 = vpack.c.b16 %v2080, %v2076
        %v2805 = vpack.c.b16 %v2085, %v2081
        %v2806 = vpack.c.b16 %v2086, %v2082
        %v2807 = vpack.c.b16 %v2087, %v2083
        %v2808 = vpack.c.b16 %v2088, %v2084
        %v2809 = vpack.c.b16 %v2093, %v2089
        %v2810 = vpack.c.b16 %v2094, %v2090
        %v2811 = vpack.c.b16 %v2095, %v2091
        %v2812 = vpack.c.b16 %v2096, %v2092
        %v2813 = vpack.c.b16 %v2101, %v2097
        %v2814 = vpack.c.b16 %v2102, %v2098
        %v2815 = vpack.c.b16 %v2103, %v2099
        %v2816 = vpack.c.b16 %v2104, %v2100
        %v2817 = vpack.c.b16 %v2109, %v2105
        %v2818 = vpack.c.b16 %v2110, %v2106
        %v2819 = vpack.c.b16 %v2111, %v2107
        %v2820 = vpack.c.b16 %v2112, %v2108
        %v2821 = vpack.c.b16 %v2117, %v2113
        %v2822 = vpack.c.b16 %v2118, %v2114
        %v2823 = vpack.c.b16 %v2119, %v2115
        %v2824 = vpack.c.b16 %v2120, %v2116
        %v2825 = vpack.c.b16 %v2125, %v2121
        %v2826 = vpack.c.b16 %v2126, %v2122
        %v2827 = vpack.c.b16 %v2127, %v2123
        %v2828 = vpack.c.b16 %v2128, %v2124
        %v2829 = vpack.c.b16 %v2133, %v2129
        %v2830 = vpack.c.b16 %v2134, %v2130
        %v2831 = vpack.c.b16 %v2135, %v2131
        %v2832 = vpack.c.b16 %v2136, %v2132
        %v2833 = vpack.c.b16 %v2141, %v2137
        %v2834 = vpack.c.b16 %v2142, %v2138
        %v2835 = vpack.c.b16 %v2143, %v2139
        %v2836 = vpack.c.b16 %v2144, %v2140
        %v2837 = vpack.c.b16 %v2149, %v2145
        %v2838 = vpack.c.b16 %v2150, %v2146
        %v2839 = vpack.c.b16 %v2151, %v2147
        %v2840 = vpack.c.b16 %v2152, %v2148
        %v2841 = vpack.c.b16 %v2157, %v2153
        %v2842 = vpack.c.b16 %v2158, %v2154
        %v2843 = vpack.c.b16 %v2159, %v2155
        %v2844 = vpack.c.b16 %v2160, %v2156
        %v2845 = vpack.c.b16 %v2165, %v2161
        %v2846 = vpack.c.b16 %v2166, %v2162
        %v2847 = vpack.c.b16 %v2167, %v2163
        %v2848 = vpack.c.b16 %v2168, %v2164
        %v2849 = vpack.c.b16 %v2173, %v2169
        %v2850 = vpack.c.b16 %v2174, %v2170
        %v2851 = vpack.c.b16 %v2175, %v2171
        %v2852 = vpack.c.b16 %v2176, %v2172
        %v2853 = vpack.c.b16 %v2181, %v2177
        %v2854 = vpack.c.b16 %v2182, %v2178
        %v2855 = vpack.c.b16 %v2183, %v2179
        %v2856 = vpack.c.b16 %v2184, %v2180
        %v2857 = vpack.c.b16 %v2189, %v2185
        %v2858 = vpack.c.b16 %v2190, %v2186
        %v2859 = vpack.c.b16 %v2191, %v2187
        %v2860 = vpack.c.b16 %v2192, %v2188
        %v2861 = vpack.c.b16 %v2197, %v2193
        %v2862 = vpack.c.b16 %v2198, %v2194
        %v2863 = vpack.c.b16 %v2199, %v2195
        %v2864 = vpack.c.b16 %v2200, %v2196
        %v2865 = vpack.c.b16 %v2205, %v2201
        %v2866 = vpack.c.b16 %v2206, %v2202
        %v2867 = vpack.c.b16 %v2207, %v2203
        %v2868 = vpack.c.b16 %v2208, %v2204
        %v2869 = vpack.c.b16 %v2213, %v2209
        %v2870 = vpack.c.b16 %v2214, %v2210
        %v2871 = vpack.c.b16 %v2215, %v2211
        %v2872 = vpack.c.b16 %v2216, %v2212
        %v2873 = vpack.c.b16 %v2221, %v2217
        %v2874 = vpack.c.b16 %v2222, %v2218
        %v2875 = vpack.c.b16 %v2223, %v2219
        %v2876 = vpack.c.b16 %v2224, %v2220
        %v2877 = vpack.c.b16 %v2229, %v2225
        %v2878 = vpack.c.b16 %v2230, %v2226
        %v2879 = vpack.c.b16 %v2231, %v2227
        %v2880 = vpack.c.b16 %v2232, %v2228
        %v2881 = vpack.c.b16 %v2237, %v2233
        %v2882 = vpack.c.b16 %v2238, %v2234
        %v2883 = vpack.c.b16 %v2239, %v2235
        %v2884 = vpack.c.b16 %v2240, %v2236
        %v2885 = vpack.c.b16 %v2245, %v2241
        %v2886 = vpack.c.b16 %v2246, %v2242
        %v2887 = vpack.c.b16 %v2247, %v2243
        %v2888 = vpack.c.b16 %v2248, %v2244
        %v2889 = vpack.c.b16 %v2253, %v2249
        %v2890 = vpack.c.b16 %v2254, %v2250
        %v2891 = vpack.c.b16 %v2255, %v2251
        %v2892 = vpack.c.b16 %v2256, %v2252
        %v2893 = vpack.c.b16 %v2261, %v2257
        %v2894 = vpack.c.b16 %v2262, %v2258
        %v2895 = vpack.c.b16 %v2263, %v2259
        %v2896 = vpack.c.b16 %v2264, %v2260
        %v2897 = vpack.c.b16 %v2269, %v2265
        %v2898 = vpack.c.b16 %v2270, %v2266
        %v2899 = vpack.c.b16 %v2271, %v2267
        %v2900 = vpack.c.b16 %v2272, %v2268
        %v2901 = vpack.c.b16 %v2277, %v2273
        %v2902 = vpack.c.b16 %v2278, %v2274
        %v2903 = vpack.c.b16 %v2279, %v2275
        %v2904 = vpack.c.b16 %v2280, %v2276
        %v2905 = vpack.c.b16 %v2285, %v2281
        %v2906 = vpack.c.b16 %v2286, %v2282
        %v2907 = vpack.c.b16 %v2287, %v2283
        %v2908 = vpack.c.b16 %v2288, %v2284
        %v2909 = vpack.c.b16 %v2293, %v2289
        %v2910 = vpack.c.b16 %v2294, %v2290
        %v2911 = vpack.c.b16 %v2295, %v2291
        %v2912 = vpack.c.b16 %v2296, %v2292
        %v2913 = vpack.c.b16 %v2301, %v2297
        %v2914 = vpack.c.b16 %v2302, %v2298
        %v2915 = vpack.c.b16 %v2303, %v2299
        %v2916 = vpack.c.b16 %v2304, %v2300
        %v2917 = vpack.c.b16 %v2309, %v2305
        %v2918 = vpack.c.b16 %v2310, %v2306
        %v2919 = vpack.c.b16 %v2311, %v2307
        %v2920 = vpack.c.b16 %v2312, %v2308
        %v2921 = vpack.c.b16 %v2317, %v2313
        %v2922 = vpack.c.b16 %v2318, %v2314
        %v2923 = vpack.c.b16 %v2319, %v2315
        %v2924 = vpack.c.b16 %v2320, %v2316
        %v2925 = vpack.c.b16 %v2325, %v2321
        %v2926 = vpack.c.b16 %v2326, %v2322
        %v2927 = vpack.c.b16 %v2327, %v2323
        %v2928 = vpack.c.b16 %v2328, %v2324
        %v2929 = vpack.c.b16 %v2333, %v2329
        %v2930 = vpack.c.b16 %v2334, %v2330
        %v2931 = vpack.c.b16 %v2335, %v2331
        %v2932 = vpack.c.b16 %v2336, %v2332
        %v2933 = vpack.c.b16 %v2341, %v2337
        %v2934 = vpack.c.b16 %v2342, %v2338
        %v2935 = vpack.c.b16 %v2343, %v2339
        %v2936 = vpack.c.b16 %v2344, %v2340
        %v2937 = vpack.c.b16 %v2349, %v2345
        %v2938 = vpack.c.b16 %v2350, %v2346
        %v2939 = vpack.c.b16 %v2351, %v2347
        %v2940 = vpack.c.b16 %v2352, %v2348
        %v2941 = vpack.c.b16 %v2357, %v2353
        %v2942 = vpack.c.b16 %v2358, %v2354
        %v2943 = vpack.c.b16 %v2359, %v2355
        %v2944 = vpack.c.b16 %v2360, %v2356
        %v2945 = vpack.c.b16 %v2365, %v2361
        %v2946 = vpack.c.b16 %v2366, %v2362
        %v2947 = vpack.c.b16 %v2367, %v2363
        %v2948 = vpack.c.b16 %v2368, %v2364
        %v2949 = vpack.c.b16 %v2373, %v2369
        %v2950 = vpack.c.b16 %v2374, %v2370
        %v2951 = vpack.c.b16 %v2375, %v2371
        %v2952 = vpack.c.b16 %v2376, %v2372
        %v2953 = vpack.c.b16 %v2381, %v2377
        %v2954 = vpack.c.b16 %v2382, %v2378
        %v2955 = vpack.c.b16 %v2383, %v2379
        %v2956 = vpack.c.b16 %v2384, %v2380
        %v2957 = vpack.c.b16 %v2389, %v2385
        %v2958 = vpack.c.b16 %v2390, %v2386
        %v2959 = vpack.c.b16 %v2391, %v2387
        %v2960 = vpack.c.b16 %v2392, %v2388
        %v2961 = vpack.c.b16 %v2397, %v2393
        %v2962 = vpack.c.b16 %v2398, %v2394
        %v2963 = vpack.c.b16 %v2399, %v2395
        %v2964 = vpack.c.b16 %v2400, %v2396
        %v2965 = vpack.c.b16 %v2405, %v2401
        %v2966 = vpack.c.b16 %v2406, %v2402
        %v2967 = vpack.c.b16 %v2407, %v2403
        %v2968 = vpack.c.b16 %v2408, %v2404
        %v2969 = vpack.c.b16 %v2413, %v2409
        %v2970 = vpack.c.b16 %v2414, %v2410
        %v2971 = vpack.c.b16 %v2415, %v2411
        %v2972 = vpack.c.b16 %v2416, %v2412
        %v2973 = vpack.c.b16 %v2421, %v2417
        %v2974 = vpack.c.b16 %v2422, %v2418
        %v2975 = vpack.c.b16 %v2423, %v2419
        %v2976 = vpack.c.b16 %v2424, %v2420
        %v2977 = vpack.c.b16 %v2429, %v2425
        %v2978 = vpack.c.b16 %v2430, %v2426
        %v2979 = vpack.c.b16 %v2431, %v2427
        %v2980 = vpack.c.b16 %v2432, %v2428
        %v2981 = vpack.c.b16 %v2437, %v2433
        %v2982 = vpack.c.b16 %v2438, %v2434
        %v2983 = vpack.c.b16 %v2439, %v2435
        %v2984 = vpack.c.b16 %v2440, %v2436
        %v2985 = vpack.c.b16 %v2445, %v2441
        %v2986 = vpack.c.b16 %v2446, %v2442
        %v2987 = vpack.c.b16 %v2447, %v2443
        %v2988 = vpack.c.b16 %v2448, %v2444
        %v2989 = vpack.c.b16 %v2453, %v2449
        %v2990 = vpack.c.b16 %v2454, %v2450
        %v2991 = vpack.c.b16 %v2455, %v2451
        %v2992 = vpack.c.b16 %v2456, %v2452
        %v2993 = vpack.c.b16 %v2461, %v2457
        %v2994 = vpack.c.b16 %v2462, %v2458
        %v2995 = vpack.c.b16 %v2463, %v2459
        %v2996 = vpack.c.b16 %v2464, %v2460
        %v2997 = vpack.c.b16 %v2469, %v2465
        %v2998 = vpack.c.b16 %v2470, %v2466
        %v2999 = vpack.c.b16 %v2471, %v2467
        %v3000 = vpack.c.b16 %v2472, %v2468
        %v3001 = vpack.c.b16 %v2477, %v2473
        %v3002 = vpack.c.b16 %v2478, %v2474
        %v3003 = vpack.c.b16 %v2479, %v2475
        %v3004 = vpack.c.b16 %v2480, %v2476
        %v3005 = vpack.c.b16 %v2485, %v2481
        %v3006 = vpack.c.b16 %v2486, %v2482
        %v3007 = vpack.c.b16 %v2487, %v2483
        %v3008 = vpack.c.b16 %v2488, %v2484
        %v3009 = vpack.c.b16 %v2493, %v2489
        %v3010 = vpack.c.b16 %v2494, %v2490
        %v3011 = vpack.c.b16 %v2495, %v2491
        %v3012 = vpack.c.b16 %v2496, %v2492
        %v3013 = vpack.c.b16 %v2501, %v2497
        %v3014 = vpack.c.b16 %v2502, %v2498
        %v3015 = vpack.c.b16 %v2503, %v2499
        %v3016 = vpack.c.b16 %v2504, %v2500
        %3529 = vmatprep.subr.bf16.mxu0 %v2506
        %3530 = vmatpush1.bf16.msra.mxu0 %v2505
        %3531 = vmatprep.subr.bf16.mxu0 %v2510
        %3532 = vmatpush1.bf16.msra.mxu0 %v2509
        %3533 = vmatprep.subr.bf16.mxu0 %v2514
        %3534 = vmatpush1.bf16.msra.mxu0 %v2513
        %3535 = vmatprep.subr.bf16.mxu0 %v2518
        %3536 = vmatpush1.bf16.msra.mxu0 %v2517
        %3537 = vmatprep.subr.bf16.mxu0 %v2522
        %3538 = vmatpush1.bf16.msra.mxu0 %v2521
        %3539 = vmatprep.subr.bf16.mxu0 %v2526
        %3540 = vmatpush1.bf16.msra.mxu0 %v2525
        %3541 = vmatprep.subr.bf16.mxu0 %v2530
        %3542 = vmatpush1.bf16.msra.mxu0 %v2529
        %3543 = vmatprep.subr.bf16.mxu0 %v2534
        %3544 = vmatpush1.bf16.msra.mxu0 %v2533
        %3545 = vmatprep.subr.bf16.mxu0 %v2538
        %3546 = vmatpush1.bf16.msra.mxu0 %v2537
        %3547 = vmatprep.subr.bf16.mxu0 %v2542
        %3548 = vmatpush1.bf16.msra.mxu0 %v2541
        %3549 = vmatprep.subr.bf16.mxu0 %v2546
        %3550 = vmatpush1.bf16.msra.mxu0 %v2545
        %3551 = vmatprep.subr.bf16.mxu0 %v2550
        %3552 = vmatpush1.bf16.msra.mxu0 %v2549
        %3553 = vmatprep.subr.bf16.mxu0 %v2554
        %3554 = vmatpush1.bf16.msra.mxu0 %v2553
        %3555 = vmatprep.subr.bf16.mxu0 %v2558
        %3556 = vmatpush1.bf16.msra.mxu0 %v2557
        %3557 = vmatprep.subr.bf16.mxu0 %v2562
        %3558 = vmatpush1.bf16.msra.mxu0 %v2561
        %3559 = vmatprep.subr.bf16.mxu0 %v2566
        %3560 = vmatpush1.bf16.msra.mxu0 %v2565
        %3561 = vmatprep.mubr.bf16.mxu0 %v420
        %3562 = vmatmul.mubr.bf16.gmra.mrb[0].mxu0 %v419
        %v3563 = vpop.f32.mrb[0].mxu0
        %v3564 = vadd.f32 %v952, %v3563
        %v3565 = vpop.f32.mrb[0].mxu0
        %v3566 = vadd.f32 %v956, %v3565
        %v3567 = vpop.f32.mrb[0].mxu0
        %v3568 = vpop.f32.mrb[0].mxu0
        %3569 = vdwg.mxu0
        %3570 = vmatprep.subr.bf16.mxu0 %v2570
        %3571 = vmatpush1.bf16.msra.mxu0 %v2569
        %3572 = vmatprep.subr.bf16.mxu0 %v2574
        %3573 = vmatpush1.bf16.msra.mxu0 %v2573
        %3574 = vmatprep.subr.bf16.mxu0 %v2578
        %3575 = vmatpush1.bf16.msra.mxu0 %v2577
        %3576 = vmatprep.subr.bf16.mxu0 %v2582
        %3577 = vmatpush1.bf16.msra.mxu0 %v2581
        %3578 = vmatprep.subr.bf16.mxu0 %v2586
        %3579 = vmatpush1.bf16.msra.mxu0 %v2585
        %3580 = vmatprep.subr.bf16.mxu0 %v2590
        %3581 = vmatpush1.bf16.msra.mxu0 %v2589
        %3582 = vmatprep.subr.bf16.mxu0 %v2594
        %3583 = vmatpush1.bf16.msra.mxu0 %v2593
        %3584 = vmatprep.subr.bf16.mxu0 %v2598
        %3585 = vmatpush1.bf16.msra.mxu0 %v2597
        %3586 = vmatprep.subr.bf16.mxu0 %v2602
        %3587 = vmatpush1.bf16.msra.mxu0 %v2601
        %3588 = vmatprep.subr.bf16.mxu0 %v2606
        %3589 = vmatpush1.bf16.msra.mxu0 %v2605
        %3590 = vmatprep.subr.bf16.mxu0 %v2610
        %3591 = vmatpush1.bf16.msra.mxu0 %v2609
        %3592 = vmatprep.subr.bf16.mxu0 %v2614
        %3593 = vmatpush1.bf16.msra.mxu0 %v2613
        %3594 = vmatprep.subr.bf16.mxu0 %v2618
        %3595 = vmatpush1.bf16.msra.mxu0 %v2617
        %3596 = vmatprep.subr.bf16.mxu0 %v2622
        %3597 = vmatpush1.bf16.msra.mxu0 %v2621
        %3598 = vmatprep.subr.bf16.mxu0 %v2626
        %3599 = vmatpush1.bf16.msra.mxu0 %v2625
        %3600 = vmatprep.subr.bf16.mxu0 %v2630
        %3601 = vmatpush1.bf16.msra.mxu0 %v2629
        %3602 = vmatprep.mubr.bf16.mxu0 %v422
        %3603 = vmatmul.mubr.bf16.gmra.mrb[0].mxu0 %v421
        %v3604 = vpop.f32.mrb[0].mxu0
        %v3605 = vadd.f32 %v3564, %v3604
        %v3606 = vpop.f32.mrb[0].mxu0
        %v3607 = vadd.f32 %v3566, %v3606
        %v3608 = vpop.f32.mrb[0].mxu0
        %v3609 = vpop.f32.mrb[0].mxu0
        %3610 = vdwg.mxu0
        %3611 = vmatprep.subr.bf16.mxu0 %v2634
        %3612 = vmatpush1.bf16.msra.mxu0 %v2633
        %3613 = vmatprep.subr.bf16.mxu0 %v2638
        %3614 = vmatpush1.bf16.msra.mxu0 %v2637
        %3615 = vmatprep.subr.bf16.mxu0 %v2642
        %3616 = vmatpush1.bf16.msra.mxu0 %v2641
        %3617 = vmatprep.subr.bf16.mxu0 %v2646
        %3618 = vmatpush1.bf16.msra.mxu0 %v2645
        %3619 = vmatprep.subr.bf16.mxu0 %v2650
        %3620 = vmatpush1.bf16.msra.mxu0 %v2649
        %3621 = vmatprep.subr.bf16.mxu0 %v2654
        %3622 = vmatpush1.bf16.msra.mxu0 %v2653
        %3623 = vmatprep.subr.bf16.mxu0 %v2658
        %3624 = vmatpush1.bf16.msra.mxu0 %v2657
        %3625 = vmatprep.subr.bf16.mxu0 %v2662
        %3626 = vmatpush1.bf16.msra.mxu0 %v2661
        %3627 = vmatprep.subr.bf16.mxu0 %v2666
        %3628 = vmatpush1.bf16.msra.mxu0 %v2665
        %3629 = vmatprep.subr.bf16.mxu0 %v2670
        %3630 = vmatpush1.bf16.msra.mxu0 %v2669
        %3631 = vmatprep.subr.bf16.mxu0 %v2674
        %3632 = vmatpush1.bf16.msra.mxu0 %v2673
        %3633 = vmatprep.subr.bf16.mxu0 %v2678
        %3634 = vmatpush1.bf16.msra.mxu0 %v2677
        %3635 = vmatprep.subr.bf16.mxu0 %v2682
        %3636 = vmatpush1.bf16.msra.mxu0 %v2681
        %3637 = vmatprep.subr.bf16.mxu0 %v2686
        %3638 = vmatpush1.bf16.msra.mxu0 %v2685
        %3639 = vmatprep.subr.bf16.mxu0 %v2690
        %3640 = vmatpush1.bf16.msra.mxu0 %v2689
        %3641 = vmatprep.subr.bf16.mxu0 %v2694
        %3642 = vmatpush1.bf16.msra.mxu0 %v2693
        %3643 = vmatprep.mubr.bf16.mxu0 %v424
        %3644 = vmatmul.mubr.bf16.gmra.mrb[0].mxu0 %v423
        %v3645 = vpop.f32.mrb[0].mxu0
        %v3646 = vadd.f32 %v3605, %v3645
        %v3647 = vpop.f32.mrb[0].mxu0
        %v3648 = vadd.f32 %v3607, %v3647
        %v3649 = vpop.f32.mrb[0].mxu0
        %v3650 = vpop.f32.mrb[0].mxu0
        %3651 = vdwg.mxu0
        %3652 = vmatprep.subr.bf16.mxu0 %v2698
        %3653 = vmatpush1.bf16.msra.mxu0 %v2697
        %3654 = vmatprep.subr.bf16.mxu0 %v2702
        %3655 = vmatpush1.bf16.msra.mxu0 %v2701
        %3656 = vmatprep.subr.bf16.mxu0 %v2706
        %3657 = vmatpush1.bf16.msra.mxu0 %v2705
        %3658 = vmatprep.subr.bf16.mxu0 %v2710
        %3659 = vmatpush1.bf16.msra.mxu0 %v2709
        %3660 = vmatprep.subr.bf16.mxu0 %v2714
        %3661 = vmatpush1.bf16.msra.mxu0 %v2713
        %3662 = vmatprep.subr.bf16.mxu0 %v2718
        %3663 = vmatpush1.bf16.msra.mxu0 %v2717
        %3664 = vmatprep.subr.bf16.mxu0 %v2722
        %3665 = vmatpush1.bf16.msra.mxu0 %v2721
        %3666 = vmatprep.subr.bf16.mxu0 %v2726
        %3667 = vmatpush1.bf16.msra.mxu0 %v2725
        %3668 = vmatprep.subr.bf16.mxu0 %v2730
        %3669 = vmatpush1.bf16.msra.mxu0 %v2729
        %3670 = vmatprep.subr.bf16.mxu0 %v2734
        %3671 = vmatpush1.bf16.msra.mxu0 %v2733
        %3672 = vmatprep.subr.bf16.mxu0 %v2738
        %3673 = vmatpush1.bf16.msra.mxu0 %v2737
        %3674 = vmatprep.subr.bf16.mxu0 %v2742
        %3675 = vmatpush1.bf16.msra.mxu0 %v2741
        %3676 = vmatprep.subr.bf16.mxu0 %v2746
        %3677 = vmatpush1.bf16.msra.mxu0 %v2745
        %3678 = vmatprep.subr.bf16.mxu0 %v2750
        %3679 = vmatpush1.bf16.msra.mxu0 %v2749
        %3680 = vmatprep.subr.bf16.mxu0 %v2754
        %3681 = vmatpush1.bf16.msra.mxu0 %v2753
        %3682 = vmatprep.subr.bf16.mxu0 %v2758
        %3683 = vmatpush1.bf16.msra.mxu0 %v2757
        %3684 = vmatprep.mubr.bf16.mxu0 %v426
        %3685 = vmatmul.mubr.bf16.gmra.mrb[0].mxu0 %v425
        %v3686 = vpop.f32.mrb[0].mxu0
        %v3687 = vadd.f32 %v3646, %v3686
        %v3688 = vpop.f32.mrb[0].mxu0
        %v3689 = vadd.f32 %v3648, %v3688
        %v3690 = vpop.f32.mrb[0].mxu0
        %v3691 = vpop.f32.mrb[0].mxu0
        %3692 = vdwg.mxu0
        %3693 = vmatprep.subr.bf16.mxu0 %v2762
        %3694 = vmatpush1.bf16.msra.mxu0 %v2761
        %3695 = vmatprep.subr.bf16.mxu0 %v2766
        %3696 = vmatpush1.bf16.msra.mxu0 %v2765
        %3697 = vmatprep.subr.bf16.mxu0 %v2770
        %3698 = vmatpush1.bf16.msra.mxu0 %v2769
        %3699 = vmatprep.subr.bf16.mxu0 %v2774
        %3700 = vmatpush1.bf16.msra.mxu0 %v2773
        %3701 = vmatprep.subr.bf16.mxu0 %v2778
        %3702 = vmatpush1.bf16.msra.mxu0 %v2777
        %3703 = vmatprep.subr.bf16.mxu0 %v2782
        %3704 = vmatpush1.bf16.msra.mxu0 %v2781
        %3705 = vmatprep.subr.bf16.mxu0 %v2786
        %3706 = vmatpush1.bf16.msra.mxu0 %v2785
        %3707 = vmatprep.subr.bf16.mxu0 %v2790
        %3708 = vmatpush1.bf16.msra.mxu0 %v2789
        %3709 = vmatprep.subr.bf16.mxu0 %v2794
        %3710 = vmatpush1.bf16.msra.mxu0 %v2793
        %3711 = vmatprep.subr.bf16.mxu0 %v2798
        %3712 = vmatpush1.bf16.msra.mxu0 %v2797
        %3713 = vmatprep.subr.bf16.mxu0 %v2802
        %3714 = vmatpush1.bf16.msra.mxu0 %v2801
        %3715 = vmatprep.subr.bf16.mxu0 %v2806
        %3716 = vmatpush1.bf16.msra.mxu0 %v2805
        %3717 = vmatprep.subr.bf16.mxu0 %v2810
        %3718 = vmatpush1.bf16.msra.mxu0 %v2809
        %3719 = vmatprep.subr.bf16.mxu0 %v2814
        %3720 = vmatpush1.bf16.msra.mxu0 %v2813
        %3721 = vmatprep.subr.bf16.mxu0 %v2818
        %3722 = vmatpush1.bf16.msra.mxu0 %v2817
        %3723 = vmatprep.subr.bf16.mxu0 %v2822
        %3724 = vmatpush1.bf16.msra.mxu0 %v2821
        %3725 = vmatprep.mubr.bf16.mxu0 %v428
        %3726 = vmatmul.mubr.bf16.gmra.mrb[0].mxu0 %v427
        %v3727 = vpop.f32.mrb[0].mxu0
        %v3728 = vadd.f32 %v3687, %v3727
        %v3729 = vpop.f32.mrb[0].mxu0
        %v3730 = vadd.f32 %v3689, %v3729
        %v3731 = vpop.f32.mrb[0].mxu0
        %v3732 = vpop.f32.mrb[0].mxu0
        %3733 = vdwg.mxu0
        %3734 = vmatprep.subr.bf16.mxu0 %v2826
        %3735 = vmatpush1.bf16.msra.mxu0 %v2825
        %3736 = vmatprep.subr.bf16.mxu0 %v2830
        %3737 = vmatpush1.bf16.msra.mxu0 %v2829
        %3738 = vmatprep.subr.bf16.mxu0 %v2834
        %3739 = vmatpush1.bf16.msra.mxu0 %v2833
        %3740 = vmatprep.subr.bf16.mxu0 %v2838
        %3741 = vmatpush1.bf16.msra.mxu0 %v2837
        %3742 = vmatprep.subr.bf16.mxu0 %v2842
        %3743 = vmatpush1.bf16.msra.mxu0 %v2841
        %3744 = vmatprep.subr.bf16.mxu0 %v2846
        %3745 = vmatpush1.bf16.msra.mxu0 %v2845
        %3746 = vmatprep.subr.bf16.mxu0 %v2850
        %3747 = vmatpush1.bf16.msra.mxu0 %v2849
        %3748 = vmatprep.subr.bf16.mxu0 %v2854
        %3749 = vmatpush1.bf16.msra.mxu0 %v2853
        %3750 = vmatprep.subr.bf16.mxu0 %v2858
        %3751 = vmatpush1.bf16.msra.mxu0 %v2857
        %3752 = vmatprep.subr.bf16.mxu0 %v2862
        %3753 = vmatpush1.bf16.msra.mxu0 %v2861
        %3754 = vmatprep.subr.bf16.mxu0 %v2866
        %3755 = vmatpush1.bf16.msra.mxu0 %v2865
        %3756 = vmatprep.subr.bf16.mxu0 %v2870
        %3757 = vmatpush1.bf16.msra.mxu0 %v2869
        %3758 = vmatprep.subr.bf16.mxu0 %v2874
        %3759 = vmatpush1.bf16.msra.mxu0 %v2873
        %3760 = vmatprep.subr.bf16.mxu0 %v2878
        %3761 = vmatpush1.bf16.msra.mxu0 %v2877
        %3762 = vmatprep.subr.bf16.mxu0 %v2882
        %3763 = vmatpush1.bf16.msra.mxu0 %v2881
        %3764 = vmatprep.subr.bf16.mxu0 %v2886
        %3765 = vmatpush1.bf16.msra.mxu0 %v2885
        %3766 = vmatprep.mubr.bf16.mxu0 %v430
        %3767 = vmatmul.mubr.bf16.gmra.mrb[0].mxu0 %v429
        %v3768 = vpop.f32.mrb[0].mxu0
        %v3769 = vadd.f32 %v3728, %v3768
        %v3770 = vpop.f32.mrb[0].mxu0
        %v3771 = vadd.f32 %v3730, %v3770
        %v3772 = vpop.f32.mrb[0].mxu0
        %v3773 = vpop.f32.mrb[0].mxu0
        %3774 = vdwg.mxu0
        %3775 = vmatprep.subr.bf16.mxu0 %v2890
        %3776 = vmatpush1.bf16.msra.mxu0 %v2889
        %3777 = vmatprep.subr.bf16.mxu0 %v2894
        %3778 = vmatpush1.bf16.msra.mxu0 %v2893
        %3779 = vmatprep.subr.bf16.mxu0 %v2898
        %3780 = vmatpush1.bf16.msra.mxu0 %v2897
        %3781 = vmatprep.subr.bf16.mxu0 %v2902
        %3782 = vmatpush1.bf16.msra.mxu0 %v2901
        %3783 = vmatprep.subr.bf16.mxu0 %v2906
        %3784 = vmatpush1.bf16.msra.mxu0 %v2905
        %3785 = vmatprep.subr.bf16.mxu0 %v2910
        %3786 = vmatpush1.bf16.msra.mxu0 %v2909
        %3787 = vmatprep.subr.bf16.mxu0 %v2914
        %3788 = vmatpush1.bf16.msra.mxu0 %v2913
        %3789 = vmatprep.subr.bf16.mxu0 %v2918
        %3790 = vmatpush1.bf16.msra.mxu0 %v2917
        %3791 = vmatprep.subr.bf16.mxu0 %v2922
        %3792 = vmatpush1.bf16.msra.mxu0 %v2921
        %3793 = vmatprep.subr.bf16.mxu0 %v2926
        %3794 = vmatpush1.bf16.msra.mxu0 %v2925
        %3795 = vmatprep.subr.bf16.mxu0 %v2930
        %3796 = vmatpush1.bf16.msra.mxu0 %v2929
        %3797 = vmatprep.subr.bf16.mxu0 %v2934
        %3798 = vmatpush1.bf16.msra.mxu0 %v2933
        %3799 = vmatprep.subr.bf16.mxu0 %v2938
        %3800 = vmatpush1.bf16.msra.mxu0 %v2937
        %3801 = vmatprep.subr.bf16.mxu0 %v2942
        %3802 = vmatpush1.bf16.msra.mxu0 %v2941
        %3803 = vmatprep.subr.bf16.mxu0 %v2946
        %3804 = vmatpush1.bf16.msra.mxu0 %v2945
        %3805 = vmatprep.subr.bf16.mxu0 %v2950
        %3806 = vmatpush1.bf16.msra.mxu0 %v2949
        %3807 = vmatprep.mubr.bf16.mxu0 %v432
        %3808 = vmatmul.mubr.bf16.gmra.mrb[0].mxu0 %v431
        %v3809 = vpop.f32.mrb[0].mxu0
        %v3810 = vadd.f32 %v3769, %v3809
        %v3811 = vpop.f32.mrb[0].mxu0
        %v3812 = vadd.f32 %v3771, %v3811
        %v3813 = vpop.f32.mrb[0].mxu0
        %v3814 = vpop.f32.mrb[0].mxu0
        %3815 = vdwg.mxu0
        %3816 = vmatprep.subr.bf16.mxu0 %v2954
        %3817 = vmatpush1.bf16.msra.mxu0 %v2953
        %3818 = vmatprep.subr.bf16.mxu0 %v2958
        %3819 = vmatpush1.bf16.msra.mxu0 %v2957
        %3820 = vmatprep.subr.bf16.mxu0 %v2962
        %3821 = vmatpush1.bf16.msra.mxu0 %v2961
        %3822 = vmatprep.subr.bf16.mxu0 %v2966
        %3823 = vmatpush1.bf16.msra.mxu0 %v2965
        %3824 = vmatprep.subr.bf16.mxu0 %v2970
        %3825 = vmatpush1.bf16.msra.mxu0 %v2969
        %3826 = vmatprep.subr.bf16.mxu0 %v2974
        %3827 = vmatpush1.bf16.msra.mxu0 %v2973
        %3828 = vmatprep.subr.bf16.mxu0 %v2978
        %3829 = vmatpush1.bf16.msra.mxu0 %v2977
        %3830 = vmatprep.subr.bf16.mxu0 %v2982
        %3831 = vmatpush1.bf16.msra.mxu0 %v2981
        %3832 = vmatprep.subr.bf16.mxu0 %v2986
        %3833 = vmatpush1.bf16.msra.mxu0 %v2985
        %3834 = vmatprep.subr.bf16.mxu0 %v2990
        %3835 = vmatpush1.bf16.msra.mxu0 %v2989
        %3836 = vmatprep.subr.bf16.mxu0 %v2994
        %3837 = vmatpush1.bf16.msra.mxu0 %v2993
        %3838 = vmatprep.subr.bf16.mxu0 %v2998
        %3839 = vmatpush1.bf16.msra.mxu0 %v2997
        %3840 = vmatprep.subr.bf16.mxu0 %v3002
        %3841 = vmatpush1.bf16.msra.mxu0 %v3001
        %3842 = vmatprep.subr.bf16.mxu0 %v3006
        %3843 = vmatpush1.bf16.msra.mxu0 %v3005
        %3844 = vmatprep.subr.bf16.mxu0 %v3010
        %3845 = vmatpush1.bf16.msra.mxu0 %v3009
        %3846 = vmatprep.subr.bf16.mxu0 %v3014
        %3847 = vmatpush1.bf16.msra.mxu0 %v3013
        %3848 = vmatprep.mubr.bf16.mxu0 %v434
        %3849 = vmatmul.mubr.bf16.gmra.mrb[0].mxu0 %v433
        %v3850 = vpop.f32.mrb[0].mxu0
        %v3851 = vadd.f32 %v3810, %v3850
        %v3852 = vpop.f32.mrb[0].mxu0
        %v3853 = vadd.f32 %v3812, %v3852
        %v3854 = vpop.f32.mrb[0].mxu0
        %v3855 = vpop.f32.mrb[0].mxu0
        %3856 = vdwg.mxu0
        %3857 = vmatprep.subr.bf16.mxu0 %v2508
        %3858 = vmatpush1.bf16.msra.mxu0 %v2507
        %3859 = vmatprep.subr.bf16.mxu0 %v2512
        %3860 = vmatpush1.bf16.msra.mxu0 %v2511
        %3861 = vmatprep.subr.bf16.mxu0 %v2516
        %3862 = vmatpush1.bf16.msra.mxu0 %v2515
        %3863 = vmatprep.subr.bf16.mxu0 %v2520
        %3864 = vmatpush1.bf16.msra.mxu0 %v2519
        %3865 = vmatprep.subr.bf16.mxu0 %v2524
        %3866 = vmatpush1.bf16.msra.mxu0 %v2523
        %3867 = vmatprep.subr.bf16.mxu0 %v2528
        %3868 = vmatpush1.bf16.msra.mxu0 %v2527
        %3869 = vmatprep.subr.bf16.mxu0 %v2532
        %3870 = vmatpush1.bf16.msra.mxu0 %v2531
        %3871 = vmatprep.subr.bf16.mxu0 %v2536
        %3872 = vmatpush1.bf16.msra.mxu0 %v2535
        %3873 = vmatprep.subr.bf16.mxu0 %v2540
        %3874 = vmatpush1.bf16.msra.mxu0 %v2539
        %3875 = vmatprep.subr.bf16.mxu0 %v2544
        %3876 = vmatpush1.bf16.msra.mxu0 %v2543
        %3877 = vmatprep.subr.bf16.mxu0 %v2548
        %3878 = vmatpush1.bf16.msra.mxu0 %v2547
        %3879 = vmatprep.subr.bf16.mxu0 %v2552
        %3880 = vmatpush1.bf16.msra.mxu0 %v2551
        %3881 = vmatprep.subr.bf16.mxu0 %v2556
        %3882 = vmatpush1.bf16.msra.mxu0 %v2555
        %3883 = vmatprep.subr.bf16.mxu0 %v2560
        %3884 = vmatpush1.bf16.msra.mxu0 %v2559
        %3885 = vmatprep.subr.bf16.mxu0 %v2564
        %3886 = vmatpush1.bf16.msra.mxu0 %v2563
        %3887 = vmatprep.subr.bf16.mxu0 %v2568
        %3888 = vmatpush1.bf16.msra.mxu0 %v2567
        %3889 = vmatprep.mubr.bf16.mxu0 %v420
        %3890 = vmatmul.mubr.bf16.gmra.mrb[0].mxu0 %v419
        %v3891 = vpop.f32.mrb[0].mxu0
        %v3892 = vadd.f32 %v960, %v3891
        %v3893 = vpop.f32.mrb[0].mxu0
        %v3894 = vadd.f32 %v964, %v3893
        %v3895 = vpop.f32.mrb[0].mxu0
        %v3896 = vpop.f32.mrb[0].mxu0
        %3897 = vdwg.mxu0
        %3898 = vmatprep.subr.bf16.mxu0 %v2572
        %3899 = vmatpush1.bf16.msra.mxu0 %v2571
        %3900 = vmatprep.subr.bf16.mxu0 %v2576
        %3901 = vmatpush1.bf16.msra.mxu0 %v2575
        %3902 = vmatprep.subr.bf16.mxu0 %v2580
        %3903 = vmatpush1.bf16.msra.mxu0 %v2579
        %3904 = vmatprep.subr.bf16.mxu0 %v2584
        %3905 = vmatpush1.bf16.msra.mxu0 %v2583
        %3906 = vmatprep.subr.bf16.mxu0 %v2588
        %3907 = vmatpush1.bf16.msra.mxu0 %v2587
        %3908 = vmatprep.subr.bf16.mxu0 %v2592
        %3909 = vmatpush1.bf16.msra.mxu0 %v2591
        %3910 = vmatprep.subr.bf16.mxu0 %v2596
        %3911 = vmatpush1.bf16.msra.mxu0 %v2595
        %3912 = vmatprep.subr.bf16.mxu0 %v2600
        %3913 = vmatpush1.bf16.msra.mxu0 %v2599
        %3914 = vmatprep.subr.bf16.mxu0 %v2604
        %3915 = vmatpush1.bf16.msra.mxu0 %v2603
        %3916 = vmatprep.subr.bf16.mxu0 %v2608
        %3917 = vmatpush1.bf16.msra.mxu0 %v2607
        %3918 = vmatprep.subr.bf16.mxu0 %v2612
        %3919 = vmatpush1.bf16.msra.mxu0 %v2611
        %3920 = vmatprep.subr.bf16.mxu0 %v2616
        %3921 = vmatpush1.bf16.msra.mxu0 %v2615
        %3922 = vmatprep.subr.bf16.mxu0 %v2620
        %3923 = vmatpush1.bf16.msra.mxu0 %v2619
        %3924 = vmatprep.subr.bf16.mxu0 %v2624
        %3925 = vmatpush1.bf16.msra.mxu0 %v2623
        %3926 = vmatprep.subr.bf16.mxu0 %v2628
        %3927 = vmatpush1.bf16.msra.mxu0 %v2627
        %3928 = vmatprep.subr.bf16.mxu0 %v2632
        %3929 = vmatpush1.bf16.msra.mxu0 %v2631
        %3930 = vmatprep.mubr.bf16.mxu0 %v422
        %3931 = vmatmul.mubr.bf16.gmra.mrb[0].mxu0 %v421
        %v3932 = vpop.f32.mrb[0].mxu0
        %v3933 = vadd.f32 %v3892, %v3932
        %v3934 = vpop.f32.mrb[0].mxu0
        %v3935 = vadd.f32 %v3894, %v3934
        %v3936 = vpop.f32.mrb[0].mxu0
        %v3937 = vpop.f32.mrb[0].mxu0
        %3938 = vdwg.mxu0
        %3939 = vmatprep.subr.bf16.mxu0 %v2636
        %3940 = vmatpush1.bf16.msra.mxu0 %v2635
        %3941 = vmatprep.subr.bf16.mxu0 %v2640
        %3942 = vmatpush1.bf16.msra.mxu0 %v2639
        %3943 = vmatprep.subr.bf16.mxu0 %v2644
        %3944 = vmatpush1.bf16.msra.mxu0 %v2643
        %3945 = vmatprep.subr.bf16.mxu0 %v2648
        %3946 = vmatpush1.bf16.msra.mxu0 %v2647
        %3947 = vmatprep.subr.bf16.mxu0 %v2652
        %3948 = vmatpush1.bf16.msra.mxu0 %v2651
        %3949 = vmatprep.subr.bf16.mxu0 %v2656
        %3950 = vmatpush1.bf16.msra.mxu0 %v2655
        %3951 = vmatprep.subr.bf16.mxu0 %v2660
        %3952 = vmatpush1.bf16.msra.mxu0 %v2659
        %3953 = vmatprep.subr.bf16.mxu0 %v2664
        %3954 = vmatpush1.bf16.msra.mxu0 %v2663
        %3955 = vmatprep.subr.bf16.mxu0 %v2668
        %3956 = vmatpush1.bf16.msra.mxu0 %v2667
        %3957 = vmatprep.subr.bf16.mxu0 %v2672
        %3958 = vmatpush1.bf16.msra.mxu0 %v2671
        %3959 = vmatprep.subr.bf16.mxu0 %v2676
        %3960 = vmatpush1.bf16.msra.mxu0 %v2675
        %3961 = vmatprep.subr.bf16.mxu0 %v2680
        %3962 = vmatpush1.bf16.msra.mxu0 %v2679
        %3963 = vmatprep.subr.bf16.mxu0 %v2684
        %3964 = vmatpush1.bf16.msra.mxu0 %v2683
        %3965 = vmatprep.subr.bf16.mxu0 %v2688
        %3966 = vmatpush1.bf16.msra.mxu0 %v2687
        %3967 = vmatprep.subr.bf16.mxu0 %v2692
        %3968 = vmatpush1.bf16.msra.mxu0 %v2691
        %3969 = vmatprep.subr.bf16.mxu0 %v2696
        %3970 = vmatpush1.bf16.msra.mxu0 %v2695
        %3971 = vmatprep.mubr.bf16.mxu0 %v424
        %3972 = vmatmul.mubr.bf16.gmra.mrb[0].mxu0 %v423
        %v3973 = vpop.f32.mrb[0].mxu0
        %v3974 = vadd.f32 %v3933, %v3973
        %v3975 = vpop.f32.mrb[0].mxu0
        %v3976 = vadd.f32 %v3935, %v3975
        %v3977 = vpop.f32.mrb[0].mxu0
        %v3978 = vpop.f32.mrb[0].mxu0
        %3979 = vdwg.mxu0
        %3980 = vmatprep.subr.bf16.mxu0 %v2700
        %3981 = vmatpush1.bf16.msra.mxu0 %v2699
        %3982 = vmatprep.subr.bf16.mxu0 %v2704
        %3983 = vmatpush1.bf16.msra.mxu0 %v2703
        %3984 = vmatprep.subr.bf16.mxu0 %v2708
        %3985 = vmatpush1.bf16.msra.mxu0 %v2707
        %3986 = vmatprep.subr.bf16.mxu0 %v2712
        %3987 = vmatpush1.bf16.msra.mxu0 %v2711
        %3988 = vmatprep.subr.bf16.mxu0 %v2716
        %3989 = vmatpush1.bf16.msra.mxu0 %v2715
        %3990 = vmatprep.subr.bf16.mxu0 %v2720
        %3991 = vmatpush1.bf16.msra.mxu0 %v2719
        %3992 = vmatprep.subr.bf16.mxu0 %v2724
        %3993 = vmatpush1.bf16.msra.mxu0 %v2723
        %3994 = vmatprep.subr.bf16.mxu0 %v2728
        %3995 = vmatpush1.bf16.msra.mxu0 %v2727
        %3996 = vmatprep.subr.bf16.mxu0 %v2732
        %3997 = vmatpush1.bf16.msra.mxu0 %v2731
        %3998 = vmatprep.subr.bf16.mxu0 %v2736
        %3999 = vmatpush1.bf16.msra.mxu0 %v2735
        %4000 = vmatprep.subr.bf16.mxu0 %v2740
        %4001 = vmatpush1.bf16.msra.mxu0 %v2739
        %4002 = vmatprep.subr.bf16.mxu0 %v2744
        %4003 = vmatpush1.bf16.msra.mxu0 %v2743
        %4004 = vmatprep.subr.bf16.mxu0 %v2748
        %4005 = vmatpush1.bf16.msra.mxu0 %v2747
        %4006 = vmatprep.subr.bf16.mxu0 %v2752
        %4007 = vmatpush1.bf16.msra.mxu0 %v2751
        %4008 = vmatprep.subr.bf16.mxu0 %v2756
        %4009 = vmatpush1.bf16.msra.mxu0 %v2755
        %4010 = vmatprep.subr.bf16.mxu0 %v2760
        %4011 = vmatpush1.bf16.msra.mxu0 %v2759
        %4012 = vmatprep.mubr.bf16.mxu0 %v426
        %4013 = vmatmul.mubr.bf16.gmra.mrb[0].mxu0 %v425
        %v4014 = vpop.f32.mrb[0].mxu0
        %v4015 = vadd.f32 %v3974, %v4014
        %v4016 = vpop.f32.mrb[0].mxu0
        %v4017 = vadd.f32 %v3976, %v4016
        %v4018 = vpop.f32.mrb[0].mxu0
        %v4019 = vpop.f32.mrb[0].mxu0
        %4020 = vdwg.mxu0
        %4021 = vmatprep.subr.bf16.mxu0 %v2764
        %4022 = vmatpush1.bf16.msra.mxu0 %v2763
        %4023 = vmatprep.subr.bf16.mxu0 %v2768
        %4024 = vmatpush1.bf16.msra.mxu0 %v2767
        %4025 = vmatprep.subr.bf16.mxu0 %v2772
        %4026 = vmatpush1.bf16.msra.mxu0 %v2771
        %4027 = vmatprep.subr.bf16.mxu0 %v2776
        %4028 = vmatpush1.bf16.msra.mxu0 %v2775
        %4029 = vmatprep.subr.bf16.mxu0 %v2780
        %4030 = vmatpush1.bf16.msra.mxu0 %v2779
        %4031 = vmatprep.subr.bf16.mxu0 %v2784
        %4032 = vmatpush1.bf16.msra.mxu0 %v2783
        %4033 = vmatprep.subr.bf16.mxu0 %v2788
        %4034 = vmatpush1.bf16.msra.mxu0 %v2787
        %4035 = vmatprep.subr.bf16.mxu0 %v2792
        %4036 = vmatpush1.bf16.msra.mxu0 %v2791
        %4037 = vmatprep.subr.bf16.mxu0 %v2796
        %4038 = vmatpush1.bf16.msra.mxu0 %v2795
        %4039 = vmatprep.subr.bf16.mxu0 %v2800
        %4040 = vmatpush1.bf16.msra.mxu0 %v2799
        %4041 = vmatprep.subr.bf16.mxu0 %v2804
        %4042 = vmatpush1.bf16.msra.mxu0 %v2803
        %4043 = vmatprep.subr.bf16.mxu0 %v2808
        %4044 = vmatpush1.bf16.msra.mxu0 %v2807
        %4045 = vmatprep.subr.bf16.mxu0 %v2812
        %4046 = vmatpush1.bf16.msra.mxu0 %v2811
        %4047 = vmatprep.subr.bf16.mxu0 %v2816
        %4048 = vmatpush1.bf16.msra.mxu0 %v2815
        %4049 = vmatprep.subr.bf16.mxu0 %v2820
        %4050 = vmatpush1.bf16.msra.mxu0 %v2819
        %4051 = vmatprep.subr.bf16.mxu0 %v2824
        %4052 = vmatpush1.bf16.msra.mxu0 %v2823
        %4053 = vmatprep.mubr.bf16.mxu0 %v428
        %4054 = vmatmul.mubr.bf16.gmra.mrb[0].mxu0 %v427
        %v4055 = vpop.f32.mrb[0].mxu0
        %v4056 = vadd.f32 %v4015, %v4055
        %v4057 = vpop.f32.mrb[0].mxu0
        %v4058 = vadd.f32 %v4017, %v4057
        %v4059 = vpop.f32.mrb[0].mxu0
        %v4060 = vpop.f32.mrb[0].mxu0
        %4061 = vdwg.mxu0
        %4062 = vmatprep.subr.bf16.mxu0 %v2828
        %4063 = vmatpush1.bf16.msra.mxu0 %v2827
        %4064 = vmatprep.subr.bf16.mxu0 %v2832
        %4065 = vmatpush1.bf16.msra.mxu0 %v2831
        %4066 = vmatprep.subr.bf16.mxu0 %v2836
        %4067 = vmatpush1.bf16.msra.mxu0 %v2835
        %4068 = vmatprep.subr.bf16.mxu0 %v2840
        %4069 = vmatpush1.bf16.msra.mxu0 %v2839
        %4070 = vmatprep.subr.bf16.mxu0 %v2844
        %4071 = vmatpush1.bf16.msra.mxu0 %v2843
        %4072 = vmatprep.subr.bf16.mxu0 %v2848
        %4073 = vmatpush1.bf16.msra.mxu0 %v2847
        %4074 = vmatprep.subr.bf16.mxu0 %v2852
        %4075 = vmatpush1.bf16.msra.mxu0 %v2851
        %4076 = vmatprep.subr.bf16.mxu0 %v2856
        %4077 = vmatpush1.bf16.msra.mxu0 %v2855
        %4078 = vmatprep.subr.bf16.mxu0 %v2860
        %4079 = vmatpush1.bf16.msra.mxu0 %v2859
        %4080 = vmatprep.subr.bf16.mxu0 %v2864
        %4081 = vmatpush1.bf16.msra.mxu0 %v2863
        %4082 = vmatprep.subr.bf16.mxu0 %v2868
        %4083 = vmatpush1.bf16.msra.mxu0 %v2867
        %4084 = vmatprep.subr.bf16.mxu0 %v2872
        %4085 = vmatpush1.bf16.msra.mxu0 %v2871
        %4086 = vmatprep.subr.bf16.mxu0 %v2876
        %4087 = vmatpush1.bf16.msra.mxu0 %v2875
        %4088 = vmatprep.subr.bf16.mxu0 %v2880
        %4089 = vmatpush1.bf16.msra.mxu0 %v2879
        %4090 = vmatprep.subr.bf16.mxu0 %v2884
        %4091 = vmatpush1.bf16.msra.mxu0 %v2883
        %4092 = vmatprep.subr.bf16.mxu0 %v2888
        %4093 = vmatpush1.bf16.msra.mxu0 %v2887
        %4094 = vmatprep.mubr.bf16.mxu0 %v430
        %4095 = vmatmul.mubr.bf16.gmra.mrb[0].mxu0 %v429
        %v4096 = vpop.f32.mrb[0].mxu0
        %v4097 = vadd.f32 %v4056, %v4096
        %v4098 = vpop.f32.mrb[0].mxu0
        %v4099 = vadd.f32 %v4058, %v4098
        %v4100 = vpop.f32.mrb[0].mxu0
        %v4101 = vpop.f32.mrb[0].mxu0
        %4102 = vdwg.mxu0
        %4103 = vmatprep.subr.bf16.mxu0 %v2892
        %4104 = vmatpush1.bf16.msra.mxu0 %v2891
        %4105 = vmatprep.subr.bf16.mxu0 %v2896
        %4106 = vmatpush1.bf16.msra.mxu0 %v2895
        %4107 = vmatprep.subr.bf16.mxu0 %v2900
        %4108 = vmatpush1.bf16.msra.mxu0 %v2899
        %4109 = vmatprep.subr.bf16.mxu0 %v2904
        %4110 = vmatpush1.bf16.msra.mxu0 %v2903
        %4111 = vmatprep.subr.bf16.mxu0 %v2908
        %4112 = vmatpush1.bf16.msra.mxu0 %v2907
        %4113 = vmatprep.subr.bf16.mxu0 %v2912
        %4114 = vmatpush1.bf16.msra.mxu0 %v2911
        %4115 = vmatprep.subr.bf16.mxu0 %v2916
        %4116 = vmatpush1.bf16.msra.mxu0 %v2915
        %4117 = vmatprep.subr.bf16.mxu0 %v2920
        %4118 = vmatpush1.bf16.msra.mxu0 %v2919
        %4119 = vmatprep.subr.bf16.mxu0 %v2924
        %4120 = vmatpush1.bf16.msra.mxu0 %v2923
        %4121 = vmatprep.subr.bf16.mxu0 %v2928
        %4122 = vmatpush1.bf16.msra.mxu0 %v2927
        %4123 = vmatprep.subr.bf16.mxu0 %v2932
        %4124 = vmatpush1.bf16.msra.mxu0 %v2931
        %4125 = vmatprep.subr.bf16.mxu0 %v2936
        %4126 = vmatpush1.bf16.msra.mxu0 %v2935
        %4127 = vmatprep.subr.bf16.mxu0 %v2940
        %4128 = vmatpush1.bf16.msra.mxu0 %v2939
        %4129 = vmatprep.subr.bf16.mxu0 %v2944
        %4130 = vmatpush1.bf16.msra.mxu0 %v2943
        %4131 = vmatprep.subr.bf16.mxu0 %v2948
        %4132 = vmatpush1.bf16.msra.mxu0 %v2947
        %4133 = vmatprep.subr.bf16.mxu0 %v2952
        %4134 = vmatpush1.bf16.msra.mxu0 %v2951
        %4135 = vmatprep.mubr.bf16.mxu0 %v432
        %4136 = vmatmul.mubr.bf16.gmra.mrb[0].mxu0 %v431
        %v4137 = vpop.f32.mrb[0].mxu0
        %v4138 = vadd.f32 %v4097, %v4137
        %v4139 = vpop.f32.mrb[0].mxu0
        %v4140 = vadd.f32 %v4099, %v4139
        %v4141 = vpop.f32.mrb[0].mxu0
        %v4142 = vpop.f32.mrb[0].mxu0
        %4143 = vdwg.mxu0
        %4144 = vmatprep.subr.bf16.mxu0 %v2956
        %4145 = vmatpush1.bf16.msra.mxu0 %v2955
        %4146 = vmatprep.subr.bf16.mxu0 %v2960
        %4147 = vmatpush1.bf16.msra.mxu0 %v2959
        %4148 = vmatprep.subr.bf16.mxu0 %v2964
        %4149 = vmatpush1.bf16.msra.mxu0 %v2963
        %4150 = vmatprep.subr.bf16.mxu0 %v2968
        %4151 = vmatpush1.bf16.msra.mxu0 %v2967
        %4152 = vmatprep.subr.bf16.mxu0 %v2972
        %4153 = vmatpush1.bf16.msra.mxu0 %v2971
        %4154 = vmatprep.subr.bf16.mxu0 %v2976
        %4155 = vmatpush1.bf16.msra.mxu0 %v2975
        %4156 = vmatprep.subr.bf16.mxu0 %v2980
        %4157 = vmatpush1.bf16.msra.mxu0 %v2979
        %4158 = vmatprep.subr.bf16.mxu0 %v2984
        %4159 = vmatpush1.bf16.msra.mxu0 %v2983
        %4160 = vmatprep.subr.bf16.mxu0 %v2988
        %4161 = vmatpush1.bf16.msra.mxu0 %v2987
        %4162 = vmatprep.subr.bf16.mxu0 %v2992
        %4163 = vmatpush1.bf16.msra.mxu0 %v2991
        %4164 = vmatprep.subr.bf16.mxu0 %v2996
        %4165 = vmatpush1.bf16.msra.mxu0 %v2995
        %4166 = vmatprep.subr.bf16.mxu0 %v3000
        %4167 = vmatpush1.bf16.msra.mxu0 %v2999
        %4168 = vmatprep.subr.bf16.mxu0 %v3004
        %4169 = vmatpush1.bf16.msra.mxu0 %v3003
        %4170 = vmatprep.subr.bf16.mxu0 %v3008
        %4171 = vmatpush1.bf16.msra.mxu0 %v3007
        %4172 = vmatprep.subr.bf16.mxu0 %v3012
        %4173 = vmatpush1.bf16.msra.mxu0 %v3011
        %4174 = vmatprep.subr.bf16.mxu0 %v3016
        %4175 = vmatpush1.bf16.msra.mxu0 %v3015
        %4176 = vmatprep.mubr.bf16.mxu0 %v434
        %4177 = vmatmul.mubr.bf16.gmra.mrb[0].mxu0 %v433
        %v4178 = vpop.f32.mrb[0].mxu0
        %v4179 = vadd.f32 %v4138, %v4178
        %v4180 = vpop.f32.mrb[0].mxu0
        %v4181 = vadd.f32 %v4140, %v4180
        %v4182 = vpop.f32.mrb[0].mxu0
        %v4183 = vpop.f32.mrb[0].mxu0
        %4184 = vdwg.mxu0
        %v4185 = vmax.f32 %v3851, 0.0
        %v4186 = vmax.f32 %v3853, 0.0
        %v4187 = vmax.f32 %v4179, 0.0
        %v4188 = vmax.f32 %v4181, 0.0
        %v4189 = vld [vmem:[#allocation10] sm:$0x3]
        %v4190 = vld [vmem:[%s283] sm:$0xff]
        %v4191 = vld [vmem:[%s283 + $0x8] sm:$0xff]
        %v4192 = vld [vmem:[%s283 + $0x10] sm:$0xff]
        %v4193 = vld [vmem:[%s283 + $0x18] sm:$0xff]
        %v4194 = vld [vmem:[%s283 + $0x20] sm:$0xff]
        %v4195 = vld [vmem:[%s283 + $0x28] sm:$0xff]
        %v4196 = vld [vmem:[%s283 + $0x30] sm:$0xff]
        %v4197 = vld [vmem:[%s283 + $0x38] sm:$0xff]
        %v4198 = vld [vmem:[%s283 + $0x40] sm:$0xff]
        %v4199 = vld [vmem:[%s283 + $0x48] sm:$0xff]
        %v4200 = vld [vmem:[%s283 + $0x50] sm:$0xff]
        %v4201 = vld [vmem:[%s283 + $0x58] sm:$0xff]
        %v4202 = vld [vmem:[%s283 + $0x60] sm:$0xff]
        %v4203 = vld [vmem:[%s283 + $0x68] sm:$0xff]
        %v4204 = vld [vmem:[%s283 + $0x70] sm:$0xff]
        %v4205 = vld [vmem:[%s283 + $0x78] sm:$0xff]
        %v4206 = vld [vmem:[%s283 + $0x80] sm:$0xff]
        %v4207 = vld [vmem:[%s283 + $0x88] sm:$0xff]
        %v4208 = vld [vmem:[%s283 + $0x90] sm:$0xff]
        %v4209 = vld [vmem:[%s283 + $0x98] sm:$0xff]
        %v4210 = vld [vmem:[%s283 + $0xa0] sm:$0xff]
        %v4211 = vld [vmem:[%s283 + $0xa8] sm:$0xff]
        %v4212 = vld [vmem:[%s283 + $0xb0] sm:$0xff]
        %v4213 = vld [vmem:[%s283 + $0xb8] sm:$0xff]
        %v4214 = vld [vmem:[%s283 + $0xc0] sm:$0xff]
        %v4215 = vld [vmem:[%s283 + $0xc8] sm:$0xff]
        %v4216 = vld [vmem:[%s283 + $0xd0] sm:$0xff]
        %v4217 = vld [vmem:[%s283 + $0xd8] sm:$0xff]
        %v4218 = vld [vmem:[%s283 + $0xe0] sm:$0xff]
        %v4219 = vld [vmem:[%s283 + $0xe8] sm:$0xff]
        %v4220 = vld [vmem:[%s283 + $0xf0] sm:$0xff]
        %v4221 = vld [vmem:[%s283 + $0xf8] sm:$0xff]
        %v4222 = vld [vmem:[%s283 + $0x100] sm:$0xff]
        %v4223 = vld [vmem:[%s283 + $0x108] sm:$0xff]
        %v4224 = vld [vmem:[%s283 + $0x110] sm:$0xff]
        %v4225 = vld [vmem:[%s283 + $0x118] sm:$0xff]
        %v4226 = vld [vmem:[%s283 + $0x120] sm:$0xff]
        %v4227 = vld [vmem:[%s283 + $0x128] sm:$0xff]
        %v4228 = vld [vmem:[%s283 + $0x130] sm:$0xff]
        %v4229 = vld [vmem:[%s283 + $0x138] sm:$0xff]
        %v4230 = vld [vmem:[%s283 + $0x140] sm:$0xff]
        %v4231 = vld [vmem:[%s283 + $0x148] sm:$0xff]
        %v4232 = vld [vmem:[%s283 + $0x150] sm:$0xff]
        %v4233 = vld [vmem:[%s283 + $0x158] sm:$0xff]
        %v4234 = vld [vmem:[%s283 + $0x160] sm:$0xff]
        %v4235 = vld [vmem:[%s283 + $0x168] sm:$0xff]
        %v4236 = vld [vmem:[%s283 + $0x170] sm:$0xff]
        %v4237 = vld [vmem:[%s283 + $0x178] sm:$0xff]
        %v4238 = vld [vmem:[%s283 + $0x180] sm:$0xff]
        %v4239 = vld [vmem:[%s283 + $0x188] sm:$0xff]
        %v4240 = vld [vmem:[%s283 + $0x190] sm:$0xff]
        %v4241 = vld [vmem:[%s283 + $0x198] sm:$0xff]
        %v4242 = vld [vmem:[%s283 + $0x1a0] sm:$0xff]
        %v4243 = vld [vmem:[%s283 + $0x1a8] sm:$0xff]
        %v4244 = vld [vmem:[%s283 + $0x1b0] sm:$0xff]
        %v4245 = vld [vmem:[%s283 + $0x1b8] sm:$0xff]
        %v4246 = vld [vmem:[%s283 + $0x1c0] sm:$0xff]
        %v4247 = vld [vmem:[%s283 + $0x1c8] sm:$0xff]
        %v4248 = vld [vmem:[%s283 + $0x1d0] sm:$0xff]
        %v4249 = vld [vmem:[%s283 + $0x1d8] sm:$0xff]
        %v4250 = vld [vmem:[%s283 + $0x1e0] sm:$0xff]
        %v4251 = vld [vmem:[%s283 + $0x1e8] sm:$0xff]
        %v4252 = vld [vmem:[%s283 + $0x1f0] sm:$0xff]
        %v4253 = vld [vmem:[%s283 + $0x1f8] sm:$0xff]
        %4254 = vmatprep.subr.mxu0 0.0
        %4255 = vmatpush1.msra.mxu0 %v4190
        %4256 = vmatprep.subr.mxu0 0.0
        %4257 = vmatpush1.msra.mxu0 %v4191
        %4258 = vmatprep.subr.mxu0 0.0
        %4259 = vmatpush1.msra.mxu0 %v4192
        %4260 = vmatprep.subr.mxu0 0.0
        %4261 = vmatpush1.msra.mxu0 %v4193
        %4262 = vmatprep.subr.mxu0 0.0
        %4263 = vmatpush1.msra.mxu0 %v4194
        %4264 = vmatprep.subr.mxu0 0.0
        %4265 = vmatpush1.msra.mxu0 %v4195
        %4266 = vmatprep.subr.mxu0 0.0
        %4267 = vmatpush1.msra.mxu0 %v4196
        %4268 = vmatprep.subr.mxu0 0.0
        %4269 = vmatpush1.msra.mxu0 %v4197
        %4270 = vmatprep.subr.mxu0 0.0
        %4271 = vmatpush1.msra.mxu0 %v4198
        %4272 = vmatprep.subr.mxu0 0.0
        %4273 = vmatpush1.msra.mxu0 %v4199
        %4274 = vmatprep.subr.mxu0 0.0
        %4275 = vmatpush1.msra.mxu0 %v4200
        %4276 = vmatprep.subr.mxu0 0.0
        %4277 = vmatpush1.msra.mxu0 %v4201
        %4278 = vmatprep.subr.mxu0 0.0
        %4279 = vmatpush1.msra.mxu0 %v4202
        %4280 = vmatprep.subr.mxu0 0.0
        %4281 = vmatpush1.msra.mxu0 %v4203
        %4282 = vmatprep.subr.mxu0 0.0
        %4283 = vmatpush1.msra.mxu0 %v4204
        %4284 = vmatprep.subr.mxu0 0.0
        %4285 = vmatpush1.msra.mxu0 %v4205
        %4286 = vmatprep.subr.mxu0 0.0
        %4287 = vmatpush1.msra.mxu0 %v4206
        %4288 = vmatprep.subr.mxu0 0.0
        %4289 = vmatpush1.msra.mxu0 %v4207
        %4290 = vmatprep.subr.mxu0 0.0
        %4291 = vmatpush1.msra.mxu0 %v4208
        %4292 = vmatprep.subr.mxu0 0.0
        %4293 = vmatpush1.msra.mxu0 %v4209
        %4294 = vmatprep.subr.mxu0 0.0
        %4295 = vmatpush1.msra.mxu0 %v4210
        %4296 = vmatprep.subr.mxu0 0.0
        %4297 = vmatpush1.msra.mxu0 %v4211
        %4298 = vmatprep.subr.mxu0 0.0
        %4299 = vmatpush1.msra.mxu0 %v4212
        %4300 = vmatprep.subr.mxu0 0.0
        %4301 = vmatpush1.msra.mxu0 %v4213
        %4302 = vmatprep.subr.mxu0 0.0
        %4303 = vmatpush1.msra.mxu0 %v4214
        %4304 = vmatprep.subr.mxu0 0.0
        %4305 = vmatpush1.msra.mxu0 %v4215
        %4306 = vmatprep.subr.mxu0 0.0
        %4307 = vmatpush1.msra.mxu0 %v4216
        %4308 = vmatprep.subr.mxu0 0.0
        %4309 = vmatpush1.msra.mxu0 %v4217
        %4310 = vmatprep.subr.mxu0 0.0
        %4311 = vmatpush1.msra.mxu0 %v4218
        %4312 = vmatprep.subr.mxu0 0.0
        %4313 = vmatpush1.msra.mxu0 %v4219
        %4314 = vmatprep.subr.mxu0 0.0
        %4315 = vmatpush1.msra.mxu0 %v4220
        %4316 = vmatprep.subr.mxu0 0.0
        %4317 = vmatpush1.msra.mxu0 %v4221
        %4318 = vmatprep.mubr.f32.mxu0 %v4186
        %4319 = vmatmul.mubr.f32.gmra.mrb[0].mxu0 %v4185
        %v4320 = vpop.f32.mrb[0].mxu0
        %v4321 = vadd.f32 0.0, %v4320
        %v4322 = vpop.f32.mrb[0].mxu0
        %4323 = vdwg.mxu0
        %4324 = vmatprep.subr.mxu0 0.0
        %4325 = vmatpush1.msra.mxu0 %v4222
        %4326 = vmatprep.subr.mxu0 0.0
        %4327 = vmatpush1.msra.mxu0 %v4223
        %4328 = vmatprep.subr.mxu0 0.0
        %4329 = vmatpush1.msra.mxu0 %v4224
        %4330 = vmatprep.subr.mxu0 0.0
        %4331 = vmatpush1.msra.mxu0 %v4225
        %4332 = vmatprep.subr.mxu0 0.0
        %4333 = vmatpush1.msra.mxu0 %v4226
        %4334 = vmatprep.subr.mxu0 0.0
        %4335 = vmatpush1.msra.mxu0 %v4227
        %4336 = vmatprep.subr.mxu0 0.0
        %4337 = vmatpush1.msra.mxu0 %v4228
        %4338 = vmatprep.subr.mxu0 0.0
        %4339 = vmatpush1.msra.mxu0 %v4229
        %4340 = vmatprep.subr.mxu0 0.0
        %4341 = vmatpush1.msra.mxu0 %v4230
        %4342 = vmatprep.subr.mxu0 0.0
        %4343 = vmatpush1.msra.mxu0 %v4231
        %4344 = vmatprep.subr.mxu0 0.0
        %4345 = vmatpush1.msra.mxu0 %v4232
        %4346 = vmatprep.subr.mxu0 0.0
        %4347 = vmatpush1.msra.mxu0 %v4233
        %4348 = vmatprep.subr.mxu0 0.0
        %4349 = vmatpush1.msra.mxu0 %v4234
        %4350 = vmatprep.subr.mxu0 0.0
        %4351 = vmatpush1.msra.mxu0 %v4235
        %4352 = vmatprep.subr.mxu0 0.0
        %4353 = vmatpush1.msra.mxu0 %v4236
        %4354 = vmatprep.subr.mxu0 0.0
        %4355 = vmatpush1.msra.mxu0 %v4237
        %4356 = vmatprep.subr.mxu0 0.0
        %4357 = vmatpush1.msra.mxu0 %v4238
        %4358 = vmatprep.subr.mxu0 0.0
        %4359 = vmatpush1.msra.mxu0 %v4239
        %4360 = vmatprep.subr.mxu0 0.0
        %4361 = vmatpush1.msra.mxu0 %v4240
        %4362 = vmatprep.subr.mxu0 0.0
        %4363 = vmatpush1.msra.mxu0 %v4241
        %4364 = vmatprep.subr.mxu0 0.0
        %4365 = vmatpush1.msra.mxu0 %v4242
        %4366 = vmatprep.subr.mxu0 0.0
        %4367 = vmatpush1.msra.mxu0 %v4243
        %4368 = vmatprep.subr.mxu0 0.0
        %4369 = vmatpush1.msra.mxu0 %v4244
        %4370 = vmatprep.subr.mxu0 0.0
        %4371 = vmatpush1.msra.mxu0 %v4245
        %4372 = vmatprep.subr.mxu0 0.0
        %4373 = vmatpush1.msra.mxu0 %v4246
        %4374 = vmatprep.subr.mxu0 0.0
        %4375 = vmatpush1.msra.mxu0 %v4247
        %4376 = vmatprep.subr.mxu0 0.0
        %4377 = vmatpush1.msra.mxu0 %v4248
        %4378 = vmatprep.subr.mxu0 0.0
        %4379 = vmatpush1.msra.mxu0 %v4249
        %4380 = vmatprep.subr.mxu0 0.0
        %4381 = vmatpush1.msra.mxu0 %v4250
        %4382 = vmatprep.subr.mxu0 0.0
        %4383 = vmatpush1.msra.mxu0 %v4251
        %4384 = vmatprep.subr.mxu0 0.0
        %4385 = vmatpush1.msra.mxu0 %v4252
        %4386 = vmatprep.subr.mxu0 0.0
        %4387 = vmatpush1.msra.mxu0 %v4253
        %4388 = vmatprep.mubr.f32.mxu0 %v4188
        %4389 = vmatmul.mubr.f32.gmra.mrb[0].mxu0 %v4187
        %v4390 = vpop.f32.mrb[0].mxu0
        %v4391 = vadd.f32 %v4321, %v4390
        %v4392 = vpop.f32.mrb[0].mxu0
        %4393 = vdwg.mxu0
        %v4394 = vadd.f32 %v4189, %v4391
        %4395 = vst [vmem:[#allocation10] sm:$0x3] %v4394
        %p4396 = scmp.eq.s32.totalorder %s24, 5
        // Predicated region
        $region61: #{cnn1d_forward.11} parent=39 // pred_check
          %p4397 = pneg %p4396
        $region62: #{cnn1d_forward.11} parent=39 // pred_check_branch
          %4399 = sbr.rel (%p4397) target = $region64
        $region63: #{cnn1d_forward.11} parent=39 // pred_region
          %v4400 = vld [vmem:[#allocation10] sm:$0x3]
          %v4401 = vld [vmem:[#allocation8] sm:$0x1]
          %v4403 = vlaneseq
          %v4404 = vshrl.u32 %v4403, 7
          %v4405 = vsub.s32 0, %v4404
          %v4406 = vrot.slane %v4401, %v4405
          %v4408 = vadd.f32 %v4400, %v4406
          %v4409 = vlaneseq
          %v4410 = vand.u32 %v4409, 127
          %vm4411 = vcmp.lt.s32.totalorder %v4410, 3
          %v4412 = vsel %vm4411, %v4408, -inf
          %vm4413 = vcmask 1041408
          %v4414 = vsel %vm4413, %v4412, -inf
          %4415 = vmax.xlane.f32.xlu0 %v4414
          %v4416 = vpop.xlane.xlu0 %4415
          %v4417 = vsub.f32 %v4412, %v4416
          %v4418 = vmul.f32 %v4417, 1.442695
          %v4419 = vpow.pop %v4418
          %v4420 = vsel %vm4413, %v4419, 0.0
          %4421 = vadd.xlane.f32.xlu0 %v4420
          %v4422 = vpop.xlane.xlu0 %4421
          %v4423 = vlog2.pop %v4422
          %v4424 = vmul.f32 %v4423, 0.6931472
          %v4425 = vsub.f32 %v4417, %v4424
          %4426 = vst [vmem:[#allocation10] sm:$0x3] %v4425
        $region64: #{cnn1d_forward.11} parent=39 // pred_fallthru
          _
        // Predicated region
        $region65: #{cnn1d_forward.11} parent=39 // pred_check
          %p4427 = pneg %p157
        $region66: #{cnn1d_forward.11} parent=39 // pred_check_branch
          %4429 = sbr.rel (%p4427) target = $region68
        $region67: #{cnn1d_forward.11} parent=39 // pred_region
          %s4431 = ssub.s32 32, 32
          %4432 = vsyncadd [#allocation4], %s4431
          %s4434 = sshll.u32 [#allocation10], 4
          %s4435 = int_to_ptr.vmem [resolvable:$true] %s4434
          %4437 = dma.vmem_to_hbm [thread:$0]  %s4435, 32, %s5, [#allocation4]
        $region68: #{cnn1d_forward.11} parent=39 // pred_fallthru
          _
        // Predicated region
        $region69: #{cnn1d_forward.11} parent=39 // pred_check
          %p4438 = pneg %p157
        $region70: #{cnn1d_forward.11} parent=39 // pred_check_branch
          %4440 = sbr.rel (%p4438) target = $region72
        $region71: #{cnn1d_forward.11} parent=39 // pred_region
          %4441 = dma.done [#allocation4], 32
        $region72: #{cnn1d_forward.11} parent=39 // pred_fallthru
          _
      $region40: #{cnn1d_forward.11} parent=5 // pred_fallthru
        _
      %p4442 = scmp.le.s32.totalorder 2, %s19
      // Predicated region
      $region73: #{cnn1d_forward.11} parent=5 // pred_check
        %p4443 = pneg %p4442
      $region74: #{cnn1d_forward.11} parent=5 // pred_check_branch
        %4445 = sbr.rel (%p4443) target = $region76
      $region75: #{cnn1d_forward.11} parent=5 // pred_region
        %s4446 = ssub.s32 %s19, 2
      $region76: #{cnn1d_forward.11} parent=5 // pred_fallthru
        _
    $region6: #{cnn1d_forward.11} parent=1 // loop_footer
      %s23 = sadd.s32 1, %s19
    $region7: #{cnn1d_forward.11} parent=1 // loop_footer_branch
      %18 = sbr.rel target = $region3
    $region8: #{cnn1d_forward.11} parent=1 // loop_exit
      _
    %4447 = vsyncpa [#allocation3], 1
    %s4448 = scalar_lea.sflag [#allocation3], 1
    %4449 = vsyncpa %s4448, 1
    %4450 = vsyncpa [#allocation6], 1
    %s4451 = scalar_lea.sflag [#allocation6], 1
    %4452 = vsyncpa %s4451, 1
    %4453 = vsyncpa [#allocation9], 1
    %4454 = vsyncpa [#allocation4], 1
    %s4455 = scalar_lea.sflag [#allocation4], 1
    %4456 = vsyncpa %s4455, 1

</llo_original>
